<compile_context>
chip_gen: v7x
topology: tpu7x:2x2x1
jax: 0.10.0
libtpu: 0.0.40
codegen_flags: <defaults>
</compile_context>

<pallas_src>
import jax
import jax.numpy as jnp
import numpy as np
from jax.experimental import pallas as pl
from jax.experimental.pallas import tpu as pltpu

EMB = 64        # emb_dims used by the propagation trunk
K = 12          # knn neighbors
BN_EPS = 1e-5   # PyTorch BatchNorm default eps


# --------------------------------------------------------------------------
# fused kernel: one grid step == one batch item
# --------------------------------------------------------------------------
def _gnn_fused_kernel(x_ref,
                      w1a_ref, b1a_ref, w2a_ref, b2a_ref, w3a_ref, b3a_ref,
                      w1b_ref, b1b_ref, w2b_ref, b2b_ref, w3b_ref, b3b_ref,
                      w1c_ref, b1c_ref, w2c_ref, b2c_ref, w3c_ref, b3c_ref,
                      o_ref, s_ref):
    x = x_ref[0]                                            # (C0, N) f32
    N = x.shape[1]

    # --------------------------- kNN (f32) ------------------------------
    # Column-oriented scores: rows = candidate m, cols = query point n.
    #   score[m, n] = 2 x_m.x_n - ||x_m||^2
    #               = -||x_m - x_n||^2 + ||x_n||^2
    # The dropped ||x_n||^2 term is constant per column, so the per-point
    # argmax (and hence the selected neighbors) is unchanged.
    gram = jax.lax.dot_general(x, x, (((0,), (0,)), ((), ())),
                               preferred_element_type=jnp.float32)   # (N, N)
    sq_row = jnp.sum(x * x, axis=0, keepdims=True)                   # (1, N)
    sq_col = jnp.transpose(sq_row)                                   # (N, 1)
    score = 2.0 * gram - sq_col                                      # (N, N)

    row_i = jax.lax.broadcasted_iota(jnp.int32, (N, N), 0)
    col_i = jax.lax.broadcasted_iota(jnp.int32, (N, N), 1)
    row_f = row_i.astype(jnp.float32)
    eye = (row_i == col_i).astype(jnp.float32)

    # Iterative top-K -> signed gather matrix S, built once per batch item
    # and reused by all three Propagate layers:
    #   S[m, j*N + n] = [nbr_j(n) == m] - [m == n]
    # Ties are broken toward the smallest candidate index (matches top_k).
    for j in range(K):
        cmax = jnp.max(score, axis=0, keepdims=True)                 # (1, N)
        cand = jnp.where(score >= cmax, row_f, float(N))
        amin = jnp.min(cand, axis=0, keepdims=True)                  # (1, N)
        sel = row_f == amin                                          # one 1 per column
        s_ref[:, j * N:(j + 1) * N] = (
            sel.astype(jnp.float32) - eye).astype(jnp.bfloat16)
        score = jnp.where(sel, -1e30, score)

    # ------------------- Propagate (shared S, chunked) -------------------
    nbr_per_chunk = max(1, 256 // N)          # ~256 lanes of edge cols / chunk
    if K % nbr_per_chunk != 0:
        nbr_per_chunk = 1
    chunk = nbr_per_chunk * N
    n_chunks = K // nbr_per_chunk

    def propagate(xin, w1r, b1r, w2r, b2r, w3r, b3r):
        w1 = w1r[...]
        b1 = b1r[...]
        w2 = w2r[...]
        b2 = b2r[...]
        w3 = w3r[...]
        b3 = b3r[...]
        # Conv2d#1 applied before the gather: W1 @ (x @ S) == (W1 @ x) @ S.
        y = jnp.dot(w1, xin, preferred_element_type=jnp.float32)     # (EMB, N)
        m_run = None
        for c in range(n_chunks):
            # S chunk: bf16 in scratch (exact +-1/0), upcast at the MXU.
            s_blk = s_ref[:, c * chunk:(c + 1) * chunk].astype(jnp.float32)
            e = jnp.dot(y, s_blk,
                        preferred_element_type=jnp.float32)          # (EMB, chunk)
            h = jnp.maximum(e + b1, 0.0)          # folded BN bias + ReLU
            h2 = jnp.dot(w2, h,
                         preferred_element_type=jnp.float32)         # Conv2d#2
            m_run = h2 if m_run is None else jnp.maximum(m_run, h2)  # running K-max
        # fold the neighbor blocks that live inside one chunk
        m = m_run[:, 0:N]
        for r in range(1, nbr_per_chunk):
            m = jnp.maximum(m, m_run[:, r * N:(r + 1) * N])
        m = m + b2                                # bias is j-invariant: add after max
        return jnp.dot(w3, m, preferred_element_type=jnp.float32) + b3   # Conv1d

    # GNN.forward residual trunk
    x1 = propagate(x, w1a_ref, b1a_ref, w2a_ref, b2a_ref, w3a_ref, b3a_ref)
    x2 = x1 + propagate(x1, w1b_ref, b1b_ref, w2b_ref, b2b_ref, w3b_ref, b3b_ref)
    x3 = x1 + x2 + propagate(x2, w1c_ref, b1c_ref, w2c_ref, b2c_ref, w3c_ref, b3c_ref)

    # TODO(synk): AttentionalPropagation (att1-3) and the softmax/exp embedding
    # tail of GNN.forward are not implemented -- that class is not defined in
    # the provided spec; this kernel returns the propagation trunk x3.
    o_ref[0] = x3.astype(o_ref.dtype)


# --------------------------------------------------------------------------
# wrapper: fold eval-mode BN, build specs, single pallas_call
# --------------------------------------------------------------------------
def _fold_bn(p):
    O = p["w1"].shape[0]
    scale = p["gamma"] / jnp.sqrt(p["var"] + BN_EPS)
    w1 = (scale[:, None] * p["w1"]).astype(jnp.float32)
    b1 = (p["beta"] - scale * p["mean"]).reshape(O, 1).astype(jnp.float32)
    return (w1, b1,
            p["w2"].astype(jnp.float32),
            p["b2"].reshape(O, 1).astype(jnp.float32),
            p["w3"].astype(jnp.float32),
            p["b3"].reshape(O, 1).astype(jnp.float32))


def _full_spec(a):
    nd = a.ndim
    return pl.BlockSpec(a.shape, lambda b, _nd=nd: (0,) * _nd)


@jax.jit
def gnn_forward(x, params):
    B, C0, N = x.shape
    l1 = _fold_bn(params["prop1"])
    l2 = _fold_bn(params["prop2"])
    l3 = _fold_bn(params["prop3"])
    weights = l1 + l2 + l3

    in_specs = ([pl.BlockSpec((1, C0, N), lambda b: (b, 0, 0))]
                + [_full_spec(a) for a in weights])

    return pl.pallas_call(
        _gnn_fused_kernel,
        out_shape=jax.ShapeDtypeStruct((B, EMB, N), jnp.float32),
        grid=(B,),
        in_specs=in_specs,
        out_specs=pl.BlockSpec((1, EMB, N), lambda b: (b, 0, 0)),
        # S scratch: 2*K*N^2 bytes (bf16) = 384 KiB at N=128.  For N beyond a
        # few thousand (v7x: 64 MiB VMEM), tile the K*N axis onto the grid
        # ("arbitrary" running-max accumulator) instead of one flat scratch.
        scratch_shapes=[pltpu.VMEM((N, K * N), jnp.bfloat16)],
        compiler_params=pltpu.CompilerParams(
            dimension_semantics=("parallel",)),   # B=2 -> one step per v7x core
    )(x, *weights)


# --------------------------------------------------------------------------
# deterministic synthetic parameters (shapes from the module __init__)
# --------------------------------------------------------------------------
def init_propagate_params(key, in_channel, emb):
    ks = jax.random.split(key, 9)
    return {
        "w1":    jax.random.normal(ks[0], (emb, in_channel), jnp.float32)
                 * (1.0 / np.sqrt(in_channel)),
        "gamma": 1.0 + 0.1 * jax.random.normal(ks[1], (emb,), jnp.float32),
        "beta":  0.1 * jax.random.normal(ks[2], (emb,), jnp.float32),
        "mean":  0.1 * jax.random.normal(ks[3], (emb,), jnp.float32),
        "var":   jnp.abs(1.0 + 0.1 * jax.random.normal(ks[4], (emb,), jnp.float32)),
        "w2":    jax.random.normal(ks[5], (emb, emb), jnp.float32)
                 * (1.0 / np.sqrt(emb)),
        "b2":    0.1 * jax.random.normal(ks[6], (emb,), jnp.float32),
        "w3":    jax.random.normal(ks[7], (emb, emb), jnp.float32)
                 * (1.0 / np.sqrt(emb)),
        "b3":    0.1 * jax.random.normal(ks[8], (emb,), jnp.float32),
    }


# --------------------------------------------------------------------------
# pure-JAX reference (explicit BN, lax.top_k knn) for verification
# --------------------------------------------------------------------------
def _knn_ref(x, k):
    inner = jnp.einsum("bcn,bcm->bnm", x, x)
    sq = jnp.sum(x * x, axis=1)
    neg_d = 2.0 * inner - sq[:, :, None] - sq[:, None, :]
    return jax.lax.top_k(neg_d, k)[1]


def _propagate_ref(x, idx, p):
    nn_feat = jax.vmap(lambda xb, ib: xb[:, ib])(x, idx)      # (B, C, N, k)
    edge = nn_feat - x[:, :, :, None]
    h = jnp.einsum("oc,bcnk->bonk", p["w1"], edge)
    scale = p["gamma"] / jnp.sqrt(p["var"] + BN_EPS)
    h = (h - p["mean"][None, :, None, None]) * scale[None, :, None, None] \
        + p["beta"][None, :, None, None]
    h = jnp.maximum(h, 0.0)
    h = jnp.einsum("oc,bcnk->bonk", p["w2"], h) + p["b2"][None, :, None, None]
    m = jnp.max(h, axis=-1)
    return jnp.einsum("oc,bcn->bon", p["w3"], m) + p["b3"][None, :, None]


def gnn_ref(x, params):
    idx = _knn_ref(x, K)
    x1 = _propagate_ref(x, idx, params["prop1"])
    x2 = x1 + _propagate_ref(x1, idx, params["prop2"])
    x3 = x1 + x2 + _propagate_ref(x2, idx, params["prop3"])
    return x3


if __name__ == "__main__":
    key = jax.random.PRNGKey(0)
    kx, kp1, kp2, kp3 = jax.random.split(key, 4)

    # N=128 points keeps every lane axis >= 128 (dense vregs / unmasked stores)
    B, C0, N = 2, 3, 128
    x = jax.random.normal(kx, (B, C0, N), jnp.float32)
    params = {
        "prop1": init_propagate_params(kp1, 3, EMB),
        "prop2": init_propagate_params(kp2, EMB, EMB),
        "prop3": init_propagate_params(kp3, EMB, EMB),
    }

    out = jax.block_until_ready(gnn_forward(x, params))
    assert out.shape == (B, EMB, N)

    ref = gnn_ref(x, params)
    np.testing.assert_allclose(np.asarray(out), np.asarray(ref),
                               rtol=1e-2, atol=1e-2)
    print("KERNEL_OK")
</pallas_src>

<mosaic_0001>
module attributes {stable_mosaic.version = 11 : i64} {
  func.func @_gnn_fused_kernel(%arg0: i32, %arg1: memref<1x3x128xf32, #tpu.memory_space<vmem>>, %arg2: memref<64x3xf32, #tpu.memory_space<vmem>>, %arg3: memref<64x1xf32, #tpu.memory_space<vmem>>, %arg4: memref<64x64xf32, #tpu.memory_space<vmem>>, %arg5: memref<64x1xf32, #tpu.memory_space<vmem>>, %arg6: memref<64x64xf32, #tpu.memory_space<vmem>>, %arg7: memref<64x1xf32, #tpu.memory_space<vmem>>, %arg8: memref<64x64xf32, #tpu.memory_space<vmem>>, %arg9: memref<64x1xf32, #tpu.memory_space<vmem>>, %arg10: memref<64x64xf32, #tpu.memory_space<vmem>>, %arg11: memref<64x1xf32, #tpu.memory_space<vmem>>, %arg12: memref<64x64xf32, #tpu.memory_space<vmem>>, %arg13: memref<64x1xf32, #tpu.memory_space<vmem>>, %arg14: memref<64x64xf32, #tpu.memory_space<vmem>>, %arg15: memref<64x1xf32, #tpu.memory_space<vmem>>, %arg16: memref<64x64xf32, #tpu.memory_space<vmem>>, %arg17: memref<64x1xf32, #tpu.memory_space<vmem>>, %arg18: memref<64x64xf32, #tpu.memory_space<vmem>>, %arg19: memref<64x1xf32, #tpu.memory_space<vmem>>, %arg20: memref<1x64x128xf32, #tpu.memory_space<vmem>>, %arg21: memref<128x1536xbf16, #tpu.memory_space<vmem>>) attributes {dimension_semantics = [#tpu.dimension_semantics<parallel>], iteration_bounds = array<i64: 2>, scalar_prefetch = 0 : i64, scratch_operands = 1 : i64, tpu.core_type = #tpu.core_type<tc>, window_params = [{transform_indices = @transform_0, window_bounds = array<i64: 1, 3, 128>}, {pipeline_mode = #tpu.pipeline_mode<synchronous>, transform_indices = @transform_1, window_bounds = array<i64: 64, 3>}, {pipeline_mode = #tpu.pipeline_mode<synchronous>, transform_indices = @transform_2, window_bounds = array<i64: 64, 1>}, {pipeline_mode = #tpu.pipeline_mode<synchronous>, transform_indices = @transform_3, window_bounds = array<i64: 64, 64>}, {pipeline_mode = #tpu.pipeline_mode<synchronous>, transform_indices = @transform_4, window_bounds = array<i64: 64, 1>}, {pipeline_mode = #tpu.pipeline_mode<synchronous>, transform_indices = @transform_5, window_bounds = array<i64: 64, 64>}, {pipeline_mode = #tpu.pipeline_mode<synchronous>, transform_indices = @transform_6, window_bounds = array<i64: 64, 1>}, {pipeline_mode = #tpu.pipeline_mode<synchronous>, transform_indices = @transform_7, window_bounds = array<i64: 64, 64>}, {pipeline_mode = #tpu.pipeline_mode<synchronous>, transform_indices = @transform_8, window_bounds = array<i64: 64, 1>}, {pipeline_mode = #tpu.pipeline_mode<synchronous>, transform_indices = @transform_9, window_bounds = array<i64: 64, 64>}, {pipeline_mode = #tpu.pipeline_mode<synchronous>, transform_indices = @transform_10, window_bounds = array<i64: 64, 1>}, {pipeline_mode = #tpu.pipeline_mode<synchronous>, transform_indices = @transform_11, window_bounds = array<i64: 64, 64>}, {pipeline_mode = #tpu.pipeline_mode<synchronous>, transform_indices = @transform_12, window_bounds = array<i64: 64, 1>}, {pipeline_mode = #tpu.pipeline_mode<synchronous>, transform_indices = @transform_13, window_bounds = array<i64: 64, 64>}, {pipeline_mode = #tpu.pipeline_mode<synchronous>, transform_indices = @transform_14, window_bounds = array<i64: 64, 1>}, {pipeline_mode = #tpu.pipeline_mode<synchronous>, transform_indices = @transform_15, window_bounds = array<i64: 64, 64>}, {pipeline_mode = #tpu.pipeline_mode<synchronous>, transform_indices = @transform_16, window_bounds = array<i64: 64, 1>}, {pipeline_mode = #tpu.pipeline_mode<synchronous>, transform_indices = @transform_17, window_bounds = array<i64: 64, 64>}, {pipeline_mode = #tpu.pipeline_mode<synchronous>, transform_indices = @transform_18, window_bounds = array<i64: 64, 1>}, {transform_indices = @transform_19, window_bounds = array<i64: 1, 64, 128>}]} {
    %c0 = arith.constant 0 : index
    %c0_0 = arith.constant 0 : index
    %c0_1 = arith.constant 0 : index
    %0 = vector.load %arg1[%c0, %c0_0, %c0_1] : memref<1x3x128xf32, #tpu.memory_space<vmem>>, vector<1x3x128xf32>
    %1 = vector.shape_cast %0 : vector<1x3x128xf32> to vector<3x128xf32>
    %cst = arith.constant dense<0.000000e+00> : vector<128x128xf32>
    %2 = tpu.matmul %1, %1, %cst {dimension_numbers = #tpu.dot_dimension_numbers<[0], [0], [1], [1], [0, 1, 1, 1], [], []>} : vector<3x128xf32>, vector<3x128xf32>, vector<128x128xf32> -> vector<128x128xf32>
    %3 = arith.mulf %1, %1 : vector<3x128xf32>
    %cst_2 = arith.constant dense<0.000000e+00> : vector<128xf32>
    %4 = vector.multi_reduction <add>, %3, %cst_2 [0] : vector<3x128xf32> to vector<128xf32>
    %5 = vector.shape_cast %4 : vector<128xf32> to vector<1x128xf32>
    %6 = tpu.transpose %5, [1, 0] : vector<1x128xf32> -> vector<128x1xf32>
    %cst_3 = arith.constant 2.000000e+00 : f32
    %7 = vector.broadcast %cst_3 : f32 to vector<128x128xf32>
    %8 = arith.mulf %7, %2 : vector<128x128xf32>
    %9 = vector.broadcast %6 : vector<128x1xf32> to vector<128x128xf32>
    %10 = arith.subf %8, %9 : vector<128x128xf32>
    %11 = tpu.iota {dimensions = array<i32: 0>} : vector<128x128xi32>
    %12 = tpu.iota {dimensions = array<i32: 1>} : vector<128x128xi32>
    %13 = arith.sitofp %11 : vector<128x128xi32> to vector<128x128xf32>
    %14 = arith.cmpi eq, %11, %12 : vector<128x128xi32>
    %15 = arith.extui %14 : vector<128x128xi1> to vector<128x128xi32>
    %16 = arith.sitofp %15 : vector<128x128xi32> to vector<128x128xf32>
    %cst_4 = arith.constant dense<0xFF800000> : vector<128xf32>
    %17 = vector.multi_reduction <maximumf>, %10, %cst_4 [0] : vector<128x128xf32> to vector<128xf32>
    %18 = vector.shape_cast %17 : vector<128xf32> to vector<1x128xf32>
    %19 = vector.broadcast %18 : vector<1x128xf32> to vector<128x128xf32>
    %20 = arith.cmpf oge, %10, %19 : vector<128x128xf32>
    %cst_5 = arith.constant 1.280000e+02 : f32
    %21 = vector.broadcast %cst_5 : f32 to vector<128x128xf32>
    %22 = arith.select %20, %13, %21 : vector<128x128xi1>, vector<128x128xf32>
    %cst_6 = arith.constant dense<0x7F800000> : vector<128xf32>
    %23 = vector.multi_reduction <minimumf>, %22, %cst_6 [0] : vector<128x128xf32> to vector<128xf32>
    %24 = vector.shape_cast %23 : vector<128xf32> to vector<1x128xf32>
    %25 = vector.broadcast %24 : vector<1x128xf32> to vector<128x128xf32>
    %26 = arith.cmpf oeq, %13, %25 : vector<128x128xf32>
    %27 = arith.extui %26 : vector<128x128xi1> to vector<128x128xi32>
    %28 = arith.sitofp %27 : vector<128x128xi32> to vector<128x128xf32>
    %29 = arith.subf %28, %16 : vector<128x128xf32>
    %30 = arith.truncf %29 : vector<128x128xf32> to vector<128x128xbf16>
    %c0_7 = arith.constant 0 : index
    %c0_8 = arith.constant 0 : index
    %31 = vector.load %arg21[%c0_7, %c0_8] : memref<128x1536xbf16, #tpu.memory_space<vmem>>, vector<128x128xbf16>
    tpu.vector_store %arg21[%c0_7, %c0_8], %30 {strides = array<i32>} : memref<128x1536xbf16, #tpu.memory_space<vmem>>, vector<128x128xbf16>,
    %cst_9 = arith.constant -1.000000e+30 : f32
    %32 = vector.broadcast %cst_9 : f32 to vector<128x128xf32>
    %33 = arith.select %26, %32, %10 : vector<128x128xi1>, vector<128x128xf32>
    %cst_10 = arith.constant dense<0xFF800000> : vector<128xf32>
    %34 = vector.multi_reduction <maximumf>, %33, %cst_10 [0] : vector<128x128xf32> to vector<128xf32>
    %35 = vector.shape_cast %34 : vector<128xf32> to vector<1x128xf32>
    %36 = vector.broadcast %35 : vector<1x128xf32> to vector<128x128xf32>
    %37 = arith.cmpf oge, %33, %36 : vector<128x128xf32>
    %cst_11 = arith.constant 1.280000e+02 : f32
    %38 = vector.broadcast %cst_11 : f32 to vector<128x128xf32>
    %39 = arith.select %37, %13, %38 : vector<128x128xi1>, vector<128x128xf32>
    %cst_12 = arith.constant dense<0x7F800000> : vector<128xf32>
    %40 = vector.multi_reduction <minimumf>, %39, %cst_12 [0] : vector<128x128xf32> to vector<128xf32>
    %41 = vector.shape_cast %40 : vector<128xf32> to vector<1x128xf32>
    %42 = vector.broadcast %41 : vector<1x128xf32> to vector<128x128xf32>
    %43 = arith.cmpf oeq, %13, %42 : vector<128x128xf32>
    %44 = arith.extui %43 : vector<128x128xi1> to vector<128x128xi32>
    %45 = arith.sitofp %44 : vector<128x128xi32> to vector<128x128xf32>
    %46 = arith.subf %45, %16 : vector<128x128xf32>
    %47 = arith.truncf %46 : vector<128x128xf32> to vector<128x128xbf16>
    %c0_13 = arith.constant 0 : index
    %c128 = arith.constant 128 : index
    %48 = vector.load %arg21[%c0_13, %c128] : memref<128x1536xbf16, #tpu.memory_space<vmem>>, vector<128x128xbf16>
    tpu.vector_store %arg21[%c0_13, %c128], %47 {strides = array<i32>} : memref<128x1536xbf16, #tpu.memory_space<vmem>>, vector<128x128xbf16>,
    %cst_14 = arith.constant -1.000000e+30 : f32
    %49 = vector.broadcast %cst_14 : f32 to vector<128x128xf32>
    %50 = arith.select %43, %49, %33 : vector<128x128xi1>, vector<128x128xf32>
    %cst_15 = arith.constant dense<0xFF800000> : vector<128xf32>
    %51 = vector.multi_reduction <maximumf>, %50, %cst_15 [0] : vector<128x128xf32> to vector<128xf32>
    %52 = vector.shape_cast %51 : vector<128xf32> to vector<1x128xf32>
    %53 = vector.broadcast %52 : vector<1x128xf32> to vector<128x128xf32>
    %54 = arith.cmpf oge, %50, %53 : vector<128x128xf32>
    %cst_16 = arith.constant 1.280000e+02 : f32
    %55 = vector.broadcast %cst_16 : f32 to vector<128x128xf32>
    %56 = arith.select %54, %13, %55 : vector<128x128xi1>, vector<128x128xf32>
    %cst_17 = arith.constant dense<0x7F800000> : vector<128xf32>
    %57 = vector.multi_reduction <minimumf>, %56, %cst_17 [0] : vector<128x128xf32> to vector<128xf32>
    %58 = vector.shape_cast %57 : vector<128xf32> to vector<1x128xf32>
    %59 = vector.broadcast %58 : vector<1x128xf32> to vector<128x128xf32>
    %60 = arith.cmpf oeq, %13, %59 : vector<128x128xf32>
    %61 = arith.extui %60 : vector<128x128xi1> to vector<128x128xi32>
    %62 = arith.sitofp %61 : vector<128x128xi32> to vector<128x128xf32>
    %63 = arith.subf %62, %16 : vector<128x128xf32>
    %64 = arith.truncf %63 : vector<128x128xf32> to vector<128x128xbf16>
    %c0_18 = arith.constant 0 : index
    %c256 = arith.constant 256 : index
    %65 = vector.load %arg21[%c0_18, %c256] : memref<128x1536xbf16, #tpu.memory_space<vmem>>, vector<128x128xbf16>
    tpu.vector_store %arg21[%c0_18, %c256], %64 {strides = array<i32>} : memref<128x1536xbf16, #tpu.memory_space<vmem>>, vector<128x128xbf16>,
    %cst_19 = arith.constant -1.000000e+30 : f32
    %66 = vector.broadcast %cst_19 : f32 to vector<128x128xf32>
    %67 = arith.select %60, %66, %50 : vector<128x128xi1>, vector<128x128xf32>
    %cst_20 = arith.constant dense<0xFF800000> : vector<128xf32>
    %68 = vector.multi_reduction <maximumf>, %67, %cst_20 [0] : vector<128x128xf32> to vector<128xf32>
    %69 = vector.shape_cast %68 : vector<128xf32> to vector<1x128xf32>
    %70 = vector.broadcast %69 : vector<1x128xf32> to vector<128x128xf32>
    %71 = arith.cmpf oge, %67, %70 : vector<128x128xf32>
    %cst_21 = arith.constant 1.280000e+02 : f32
    %72 = vector.broadcast %cst_21 : f32 to vector<128x128xf32>
    %73 = arith.select %71, %13, %72 : vector<128x128xi1>, vector<128x128xf32>
    %cst_22 = arith.constant dense<0x7F800000> : vector<128xf32>
    %74 = vector.multi_reduction <minimumf>, %73, %cst_22 [0] : vector<128x128xf32> to vector<128xf32>
    %75 = vector.shape_cast %74 : vector<128xf32> to vector<1x128xf32>
    %76 = vector.broadcast %75 : vector<1x128xf32> to vector<128x128xf32>
    %77 = arith.cmpf oeq, %13, %76 : vector<128x128xf32>
    %78 = arith.extui %77 : vector<128x128xi1> to vector<128x128xi32>
    %79 = arith.sitofp %78 : vector<128x128xi32> to vector<128x128xf32>
    %80 = arith.subf %79, %16 : vector<128x128xf32>
    %81 = arith.truncf %80 : vector<128x128xf32> to vector<128x128xbf16>
    %c0_23 = arith.constant 0 : index
    %c384 = arith.constant 384 : index
    %82 = vector.load %arg21[%c0_23, %c384] : memref<128x1536xbf16, #tpu.memory_space<vmem>>, vector<128x128xbf16>
    tpu.vector_store %arg21[%c0_23, %c384], %81 {strides = array<i32>} : memref<128x1536xbf16, #tpu.memory_space<vmem>>, vector<128x128xbf16>,
    %cst_24 = arith.constant -1.000000e+30 : f32
    %83 = vector.broadcast %cst_24 : f32 to vector<128x128xf32>
    %84 = arith.select %77, %83, %67 : vector<128x128xi1>, vector<128x128xf32>
    %cst_25 = arith.constant dense<0xFF800000> : vector<128xf32>
    %85 = vector.multi_reduction <maximumf>, %84, %cst_25 [0] : vector<128x128xf32> to vector<128xf32>
    %86 = vector.shape_cast %85 : vector<128xf32> to vector<1x128xf32>
    %87 = vector.broadcast %86 : vector<1x128xf32> to vector<128x128xf32>
    %88 = arith.cmpf oge, %84, %87 : vector<128x128xf32>
    %cst_26 = arith.constant 1.280000e+02 : f32
    %89 = vector.broadcast %cst_26 : f32 to vector<128x128xf32>
    %90 = arith.select %88, %13, %89 : vector<128x128xi1>, vector<128x128xf32>
    %cst_27 = arith.constant dense<0x7F800000> : vector<128xf32>
    %91 = vector.multi_reduction <minimumf>, %90, %cst_27 [0] : vector<128x128xf32> to vector<128xf32>
    %92 = vector.shape_cast %91 : vector<128xf32> to vector<1x128xf32>
    %93 = vector.broadcast %92 : vector<1x128xf32> to vector<128x128xf32>
    %94 = arith.cmpf oeq, %13, %93 : vector<128x128xf32>
    %95 = arith.extui %94 : vector<128x128xi1> to vector<128x128xi32>
    %96 = arith.sitofp %95 : vector<128x128xi32> to vector<128x128xf32>
    %97 = arith.subf %96, %16 : vector<128x128xf32>
    %98 = arith.truncf %97 : vector<128x128xf32> to vector<128x128xbf16>
    %c0_28 = arith.constant 0 : index
    %c512 = arith.constant 512 : index
    %99 = vector.load %arg21[%c0_28, %c512] : memref<128x1536xbf16, #tpu.memory_space<vmem>>, vector<128x128xbf16>
    tpu.vector_store %arg21[%c0_28, %c512], %98 {strides = array<i32>} : memref<128x1536xbf16, #tpu.memory_space<vmem>>, vector<128x128xbf16>,
    %cst_29 = arith.constant -1.000000e+30 : f32
    %100 = vector.broadcast %cst_29 : f32 to vector<128x128xf32>
    %101 = arith.select %94, %100, %84 : vector<128x128xi1>, vector<128x128xf32>
    %cst_30 = arith.constant dense<0xFF800000> : vector<128xf32>
    %102 = vector.multi_reduction <maximumf>, %101, %cst_30 [0] : vector<128x128xf32> to vector<128xf32>
    %103 = vector.shape_cast %102 : vector<128xf32> to vector<1x128xf32>
    %104 = vector.broadcast %103 : vector<1x128xf32> to vector<128x128xf32>
    %105 = arith.cmpf oge, %101, %104 : vector<128x128xf32>
    %cst_31 = arith.constant 1.280000e+02 : f32
    %106 = vector.broadcast %cst_31 : f32 to vector<128x128xf32>
    %107 = arith.select %105, %13, %106 : vector<128x128xi1>, vector<128x128xf32>
    %cst_32 = arith.constant dense<0x7F800000> : vector<128xf32>
    %108 = vector.multi_reduction <minimumf>, %107, %cst_32 [0] : vector<128x128xf32> to vector<128xf32>
    %109 = vector.shape_cast %108 : vector<128xf32> to vector<1x128xf32>
    %110 = vector.broadcast %109 : vector<1x128xf32> to vector<128x128xf32>
    %111 = arith.cmpf oeq, %13, %110 : vector<128x128xf32>
    %112 = arith.extui %111 : vector<128x128xi1> to vector<128x128xi32>
    %113 = arith.sitofp %112 : vector<128x128xi32> to vector<128x128xf32>
    %114 = arith.subf %113, %16 : vector<128x128xf32>
    %115 = arith.truncf %114 : vector<128x128xf32> to vector<128x128xbf16>
    %c0_33 = arith.constant 0 : index
    %c640 = arith.constant 640 : index
    %116 = vector.load %arg21[%c0_33, %c640] : memref<128x1536xbf16, #tpu.memory_space<vmem>>, vector<128x128xbf16>
    tpu.vector_store %arg21[%c0_33, %c640], %115 {strides = array<i32>} : memref<128x1536xbf16, #tpu.memory_space<vmem>>, vector<128x128xbf16>,
    %cst_34 = arith.constant -1.000000e+30 : f32
    %117 = vector.broadcast %cst_34 : f32 to vector<128x128xf32>
    %118 = arith.select %111, %117, %101 : vector<128x128xi1>, vector<128x128xf32>
    %cst_35 = arith.constant dense<0xFF800000> : vector<128xf32>
    %119 = vector.multi_reduction <maximumf>, %118, %cst_35 [0] : vector<128x128xf32> to vector<128xf32>
    %120 = vector.shape_cast %119 : vector<128xf32> to vector<1x128xf32>
    %121 = vector.broadcast %120 : vector<1x128xf32> to vector<128x128xf32>
    %122 = arith.cmpf oge, %118, %121 : vector<128x128xf32>
    %cst_36 = arith.constant 1.280000e+02 : f32
    %123 = vector.broadcast %cst_36 : f32 to vector<128x128xf32>
    %124 = arith.select %122, %13, %123 : vector<128x128xi1>, vector<128x128xf32>
    %cst_37 = arith.constant dense<0x7F800000> : vector<128xf32>
    %125 = vector.multi_reduction <minimumf>, %124, %cst_37 [0] : vector<128x128xf32> to vector<128xf32>
    %126 = vector.shape_cast %125 : vector<128xf32> to vector<1x128xf32>
    %127 = vector.broadcast %126 : vector<1x128xf32> to vector<128x128xf32>
    %128 = arith.cmpf oeq, %13, %127 : vector<128x128xf32>
    %129 = arith.extui %128 : vector<128x128xi1> to vector<128x128xi32>
    %130 = arith.sitofp %129 : vector<128x128xi32> to vector<128x128xf32>
    %131 = arith.subf %130, %16 : vector<128x128xf32>
    %132 = arith.truncf %131 : vector<128x128xf32> to vector<128x128xbf16>
    %c0_38 = arith.constant 0 : index
    %c768 = arith.constant 768 : index
    %133 = vector.load %arg21[%c0_38, %c768] : memref<128x1536xbf16, #tpu.memory_space<vmem>>, vector<128x128xbf16>
    tpu.vector_store %arg21[%c0_38, %c768], %132 {strides = array<i32>} : memref<128x1536xbf16, #tpu.memory_space<vmem>>, vector<128x128xbf16>,
    %cst_39 = arith.constant -1.000000e+30 : f32
    %134 = vector.broadcast %cst_39 : f32 to vector<128x128xf32>
    %135 = arith.select %128, %134, %118 : vector<128x128xi1>, vector<128x128xf32>
    %cst_40 = arith.constant dense<0xFF800000> : vector<128xf32>
    %136 = vector.multi_reduction <maximumf>, %135, %cst_40 [0] : vector<128x128xf32> to vector<128xf32>
    %137 = vector.shape_cast %136 : vector<128xf32> to vector<1x128xf32>
    %138 = vector.broadcast %137 : vector<1x128xf32> to vector<128x128xf32>
    %139 = arith.cmpf oge, %135, %138 : vector<128x128xf32>
    %cst_41 = arith.constant 1.280000e+02 : f32
    %140 = vector.broadcast %cst_41 : f32 to vector<128x128xf32>
    %141 = arith.select %139, %13, %140 : vector<128x128xi1>, vector<128x128xf32>
    %cst_42 = arith.constant dense<0x7F800000> : vector<128xf32>
    %142 = vector.multi_reduction <minimumf>, %141, %cst_42 [0] : vector<128x128xf32> to vector<128xf32>
    %143 = vector.shape_cast %142 : vector<128xf32> to vector<1x128xf32>
    %144 = vector.broadcast %143 : vector<1x128xf32> to vector<128x128xf32>
    %145 = arith.cmpf oeq, %13, %144 : vector<128x128xf32>
    %146 = arith.extui %145 : vector<128x128xi1> to vector<128x128xi32>
    %147 = arith.sitofp %146 : vector<128x128xi32> to vector<128x128xf32>
    %148 = arith.subf %147, %16 : vector<128x128xf32>
    %149 = arith.truncf %148 : vector<128x128xf32> to vector<128x128xbf16>
    %c0_43 = arith.constant 0 : index
    %c896 = arith.constant 896 : index
    %150 = vector.load %arg21[%c0_43, %c896] : memref<128x1536xbf16, #tpu.memory_space<vmem>>, vector<128x128xbf16>
    tpu.vector_store %arg21[%c0_43, %c896], %149 {strides = array<i32>} : memref<128x1536xbf16, #tpu.memory_space<vmem>>, vector<128x128xbf16>,
    %cst_44 = arith.constant -1.000000e+30 : f32
    %151 = vector.broadcast %cst_44 : f32 to vector<128x128xf32>
    %152 = arith.select %145, %151, %135 : vector<128x128xi1>, vector<128x128xf32>
    %cst_45 = arith.constant dense<0xFF800000> : vector<128xf32>
    %153 = vector.multi_reduction <maximumf>, %152, %cst_45 [0] : vector<128x128xf32> to vector<128xf32>
    %154 = vector.shape_cast %153 : vector<128xf32> to vector<1x128xf32>
    %155 = vector.broadcast %154 : vector<1x128xf32> to vector<128x128xf32>
    %156 = arith.cmpf oge, %152, %155 : vector<128x128xf32>
    %cst_46 = arith.constant 1.280000e+02 : f32
    %157 = vector.broadcast %cst_46 : f32 to vector<128x128xf32>
    %158 = arith.select %156, %13, %157 : vector<128x128xi1>, vector<128x128xf32>
    %cst_47 = arith.constant dense<0x7F800000> : vector<128xf32>
    %159 = vector.multi_reduction <minimumf>, %158, %cst_47 [0] : vector<128x128xf32> to vector<128xf32>
    %160 = vector.shape_cast %159 : vector<128xf32> to vector<1x128xf32>
    %161 = vector.broadcast %160 : vector<1x128xf32> to vector<128x128xf32>
    %162 = arith.cmpf oeq, %13, %161 : vector<128x128xf32>
    %163 = arith.extui %162 : vector<128x128xi1> to vector<128x128xi32>
    %164 = arith.sitofp %163 : vector<128x128xi32> to vector<128x128xf32>
    %165 = arith.subf %164, %16 : vector<128x128xf32>
    %166 = arith.truncf %165 : vector<128x128xf32> to vector<128x128xbf16>
    %c0_48 = arith.constant 0 : index
    %c1024 = arith.constant 1024 : index
    %167 = vector.load %arg21[%c0_48, %c1024] : memref<128x1536xbf16, #tpu.memory_space<vmem>>, vector<128x128xbf16>
    tpu.vector_store %arg21[%c0_48, %c1024], %166 {strides = array<i32>} : memref<128x1536xbf16, #tpu.memory_space<vmem>>, vector<128x128xbf16>,
    %cst_49 = arith.constant -1.000000e+30 : f32
    %168 = vector.broadcast %cst_49 : f32 to vector<128x128xf32>
    %169 = arith.select %162, %168, %152 : vector<128x128xi1>, vector<128x128xf32>
    %cst_50 = arith.constant dense<0xFF800000> : vector<128xf32>
    %170 = vector.multi_reduction <maximumf>, %169, %cst_50 [0] : vector<128x128xf32> to vector<128xf32>
    %171 = vector.shape_cast %170 : vector<128xf32> to vector<1x128xf32>
    %172 = vector.broadcast %171 : vector<1x128xf32> to vector<128x128xf32>
    %173 = arith.cmpf oge, %169, %172 : vector<128x128xf32>
    %cst_51 = arith.constant 1.280000e+02 : f32
    %174 = vector.broadcast %cst_51 : f32 to vector<128x128xf32>
    %175 = arith.select %173, %13, %174 : vector<128x128xi1>, vector<128x128xf32>
    %cst_52 = arith.constant dense<0x7F800000> : vector<128xf32>
    %176 = vector.multi_reduction <minimumf>, %175, %cst_52 [0] : vector<128x128xf32> to vector<128xf32>
    %177 = vector.shape_cast %176 : vector<128xf32> to vector<1x128xf32>
    %178 = vector.broadcast %177 : vector<1x128xf32> to vector<128x128xf32>
    %179 = arith.cmpf oeq, %13, %178 : vector<128x128xf32>
    %180 = arith.extui %179 : vector<128x128xi1> to vector<128x128xi32>
    %181 = arith.sitofp %180 : vector<128x128xi32> to vector<128x128xf32>
    %182 = arith.subf %181, %16 : vector<128x128xf32>
    %183 = arith.truncf %182 : vector<128x128xf32> to vector<128x128xbf16>
    %c0_53 = arith.constant 0 : index
    %c1152 = arith.constant 1152 : index
    %184 = vector.load %arg21[%c0_53, %c1152] : memref<128x1536xbf16, #tpu.memory_space<vmem>>, vector<128x128xbf16>
    tpu.vector_store %arg21[%c0_53, %c1152], %183 {strides = array<i32>} : memref<128x1536xbf16, #tpu.memory_space<vmem>>, vector<128x128xbf16>,
    %cst_54 = arith.constant -1.000000e+30 : f32
    %185 = vector.broadcast %cst_54 : f32 to vector<128x128xf32>
    %186 = arith.select %179, %185, %169 : vector<128x128xi1>, vector<128x128xf32>
    %cst_55 = arith.constant dense<0xFF800000> : vector<128xf32>
    %187 = vector.multi_reduction <maximumf>, %186, %cst_55 [0] : vector<128x128xf32> to vector<128xf32>
    %188 = vector.shape_cast %187 : vector<128xf32> to vector<1x128xf32>
    %189 = vector.broadcast %188 : vector<1x128xf32> to vector<128x128xf32>
    %190 = arith.cmpf oge, %186, %189 : vector<128x128xf32>
    %cst_56 = arith.constant 1.280000e+02 : f32
    %191 = vector.broadcast %cst_56 : f32 to vector<128x128xf32>
    %192 = arith.select %190, %13, %191 : vector<128x128xi1>, vector<128x128xf32>
    %cst_57 = arith.constant dense<0x7F800000> : vector<128xf32>
    %193 = vector.multi_reduction <minimumf>, %192, %cst_57 [0] : vector<128x128xf32> to vector<128xf32>
    %194 = vector.shape_cast %193 : vector<128xf32> to vector<1x128xf32>
    %195 = vector.broadcast %194 : vector<1x128xf32> to vector<128x128xf32>
    %196 = arith.cmpf oeq, %13, %195 : vector<128x128xf32>
    %197 = arith.extui %196 : vector<128x128xi1> to vector<128x128xi32>
    %198 = arith.sitofp %197 : vector<128x128xi32> to vector<128x128xf32>
    %199 = arith.subf %198, %16 : vector<128x128xf32>
    %200 = arith.truncf %199 : vector<128x128xf32> to vector<128x128xbf16>
    %c0_58 = arith.constant 0 : index
    %c1280 = arith.constant 1280 : index
    %201 = vector.load %arg21[%c0_58, %c1280] : memref<128x1536xbf16, #tpu.memory_space<vmem>>, vector<128x128xbf16>
    tpu.vector_store %arg21[%c0_58, %c1280], %200 {strides = array<i32>} : memref<128x1536xbf16, #tpu.memory_space<vmem>>, vector<128x128xbf16>,
    %cst_59 = arith.constant -1.000000e+30 : f32
    %202 = vector.broadcast %cst_59 : f32 to vector<128x128xf32>
    %203 = arith.select %196, %202, %186 : vector<128x128xi1>, vector<128x128xf32>
    %cst_60 = arith.constant dense<0xFF800000> : vector<128xf32>
    %204 = vector.multi_reduction <maximumf>, %203, %cst_60 [0] : vector<128x128xf32> to vector<128xf32>
    %205 = vector.shape_cast %204 : vector<128xf32> to vector<1x128xf32>
    %206 = vector.broadcast %205 : vector<1x128xf32> to vector<128x128xf32>
    %207 = arith.cmpf oge, %203, %206 : vector<128x128xf32>
    %cst_61 = arith.constant 1.280000e+02 : f32
    %208 = vector.broadcast %cst_61 : f32 to vector<128x128xf32>
    %209 = arith.select %207, %13, %208 : vector<128x128xi1>, vector<128x128xf32>
    %cst_62 = arith.constant dense<0x7F800000> : vector<128xf32>
    %210 = vector.multi_reduction <minimumf>, %209, %cst_62 [0] : vector<128x128xf32> to vector<128xf32>
    %211 = vector.shape_cast %210 : vector<128xf32> to vector<1x128xf32>
    %212 = vector.broadcast %211 : vector<1x128xf32> to vector<128x128xf32>
    %213 = arith.cmpf oeq, %13, %212 : vector<128x128xf32>
    %214 = arith.extui %213 : vector<128x128xi1> to vector<128x128xi32>
    %215 = arith.sitofp %214 : vector<128x128xi32> to vector<128x128xf32>
    %216 = arith.subf %215, %16 : vector<128x128xf32>
    %217 = arith.truncf %216 : vector<128x128xf32> to vector<128x128xbf16>
    %c0_63 = arith.constant 0 : index
    %c1408 = arith.constant 1408 : index
    %218 = vector.load %arg21[%c0_63, %c1408] : memref<128x1536xbf16, #tpu.memory_space<vmem>>, vector<128x128xbf16>
    tpu.vector_store %arg21[%c0_63, %c1408], %217 {strides = array<i32>} : memref<128x1536xbf16, #tpu.memory_space<vmem>>, vector<128x128xbf16>,
    %c0_64 = arith.constant 0 : index
    %c0_65 = arith.constant 0 : index
    %219 = vector.load %arg2[%c0_64, %c0_65] : memref<64x3xf32, #tpu.memory_space<vmem>>, vector<64x3xf32>
    %c0_66 = arith.constant 0 : index
    %c0_67 = arith.constant 0 : index
    %220 = vector.load %arg3[%c0_66, %c0_67] : memref<64x1xf32, #tpu.memory_space<vmem>>, vector<64x1xf32>
    %c0_68 = arith.constant 0 : index
    %c0_69 = arith.constant 0 : index
    %221 = vector.load %arg4[%c0_68, %c0_69] : memref<64x64xf32, #tpu.memory_space<vmem>>, vector<64x64xf32>
    %c0_70 = arith.constant 0 : index
    %c0_71 = arith.constant 0 : index
    %222 = vector.load %arg5[%c0_70, %c0_71] : memref<64x1xf32, #tpu.memory_space<vmem>>, vector<64x1xf32>
    %c0_72 = arith.constant 0 : index
    %c0_73 = arith.constant 0 : index
    %223 = vector.load %arg6[%c0_72, %c0_73] : memref<64x64xf32, #tpu.memory_space<vmem>>, vector<64x64xf32>
    %c0_74 = arith.constant 0 : index
    %c0_75 = arith.constant 0 : index
    %224 = vector.load %arg7[%c0_74, %c0_75] : memref<64x1xf32, #tpu.memory_space<vmem>>, vector<64x1xf32>
    %cst_76 = arith.constant dense<0.000000e+00> : vector<64x128xf32>
    %225 = tpu.matmul %219, %1, %cst_76 {dimension_numbers = #tpu.dot_dimension_numbers<[1], [0], [0], [1], [0, 0, 1, 1], [], []>} : vector<64x3xf32>, vector<3x128xf32>, vector<64x128xf32> -> vector<64x128xf32>
    %c0_77 = arith.constant 0 : index
    %c0_78 = arith.constant 0 : index
    %226 = vector.load %arg21[%c0_77, %c0_78] : memref<128x1536xbf16, #tpu.memory_space<vmem>>, vector<128x256xbf16>
    %227 = arith.extf %226 : vector<128x256xbf16> to vector<128x256xf32>
    %cst_79 = arith.constant dense<0.000000e+00> : vector<64x256xf32>
    %228 = tpu.matmul %225, %227, %cst_79 {dimension_numbers = #tpu.dot_dimension_numbers<[1], [0], [0], [1], [0, 0, 1, 1], [], []>} : vector<64x128xf32>, vector<128x256xf32>, vector<64x256xf32> -> vector<64x256xf32>
    %229 = vector.broadcast %220 : vector<64x1xf32> to vector<64x256xf32>
    %230 = arith.addf %228, %229 : vector<64x256xf32>
    %cst_80 = arith.constant 0.000000e+00 : f32
    %231 = vector.broadcast %cst_80 : f32 to vector<64x256xf32>
    %232 = arith.maximumf %230, %231 : vector<64x256xf32>
    %cst_81 = arith.constant dense<0.000000e+00> : vector<64x256xf32>
    %233 = tpu.matmul %221, %232, %cst_81 {dimension_numbers = #tpu.dot_dimension_numbers<[1], [0], [0], [1], [0, 0, 1, 1], [], []>} : vector<64x64xf32>, vector<64x256xf32>, vector<64x256xf32> -> vector<64x256xf32>
    %c0_82 = arith.constant 0 : index
    %c256_83 = arith.constant 256 : index
    %234 = vector.load %arg21[%c0_82, %c256_83] : memref<128x1536xbf16, #tpu.memory_space<vmem>>, vector<128x256xbf16>
    %235 = arith.extf %234 : vector<128x256xbf16> to vector<128x256xf32>
    %cst_84 = arith.constant dense<0.000000e+00> : vector<64x256xf32>
    %236 = tpu.matmul %225, %235, %cst_84 {dimension_numbers = #tpu.dot_dimension_numbers<[1], [0], [0], [1], [0, 0, 1, 1], [], []>} : vector<64x128xf32>, vector<128x256xf32>, vector<64x256xf32> -> vector<64x256xf32>
    %237 = vector.broadcast %220 : vector<64x1xf32> to vector<64x256xf32>
    %238 = arith.addf %236, %237 : vector<64x256xf32>
    %cst_85 = arith.constant 0.000000e+00 : f32
    %239 = vector.broadcast %cst_85 : f32 to vector<64x256xf32>
    %240 = arith.maximumf %238, %239 : vector<64x256xf32>
    %cst_86 = arith.constant dense<0.000000e+00> : vector<64x256xf32>
    %241 = tpu.matmul %221, %240, %cst_86 {dimension_numbers = #tpu.dot_dimension_numbers<[1], [0], [0], [1], [0, 0, 1, 1], [], []>} : vector<64x64xf32>, vector<64x256xf32>, vector<64x256xf32> -> vector<64x256xf32>
    %242 = arith.maximumf %233, %241 : vector<64x256xf32>
    %c0_87 = arith.constant 0 : index
    %c512_88 = arith.constant 512 : index
    %243 = vector.load %arg21[%c0_87, %c512_88] : memref<128x1536xbf16, #tpu.memory_space<vmem>>, vector<128x256xbf16>
    %244 = arith.extf %243 : vector<128x256xbf16> to vector<128x256xf32>
    %cst_89 = arith.constant dense<0.000000e+00> : vector<64x256xf32>
    %245 = tpu.matmul %225, %244, %cst_89 {dimension_numbers = #tpu.dot_dimension_numbers<[1], [0], [0], [1], [0, 0, 1, 1], [], []>} : vector<64x128xf32>, vector<128x256xf32>, vector<64x256xf32> -> vector<64x256xf32>
    %246 = vector.broadcast %220 : vector<64x1xf32> to vector<64x256xf32>
    %247 = arith.addf %245, %246 : vector<64x256xf32>
    %cst_90 = arith.constant 0.000000e+00 : f32
    %248 = vector.broadcast %cst_90 : f32 to vector<64x256xf32>
    %249 = arith.maximumf %247, %248 : vector<64x256xf32>
    %cst_91 = arith.constant dense<0.000000e+00> : vector<64x256xf32>
    %250 = tpu.matmul %221, %249, %cst_91 {dimension_numbers = #tpu.dot_dimension_numbers<[1], [0], [0], [1], [0, 0, 1, 1], [], []>} : vector<64x64xf32>, vector<64x256xf32>, vector<64x256xf32> -> vector<64x256xf32>
    %251 = arith.maximumf %242, %250 : vector<64x256xf32>
    %c0_92 = arith.constant 0 : index
    %c768_93 = arith.constant 768 : index
    %252 = vector.load %arg21[%c0_92, %c768_93] : memref<128x1536xbf16, #tpu.memory_space<vmem>>, vector<128x256xbf16>
    %253 = arith.extf %252 : vector<128x256xbf16> to vector<128x256xf32>
    %cst_94 = arith.constant dense<0.000000e+00> : vector<64x256xf32>
    %254 = tpu.matmul %225, %253, %cst_94 {dimension_numbers = #tpu.dot_dimension_numbers<[1], [0], [0], [1], [0, 0, 1, 1], [], []>} : vector<64x128xf32>, vector<128x256xf32>, vector<64x256xf32> -> vector<64x256xf32>
    %255 = vector.broadcast %220 : vector<64x1xf32> to vector<64x256xf32>
    %256 = arith.addf %254, %255 : vector<64x256xf32>
    %cst_95 = arith.constant 0.000000e+00 : f32
    %257 = vector.broadcast %cst_95 : f32 to vector<64x256xf32>
    %258 = arith.maximumf %256, %257 : vector<64x256xf32>
    %cst_96 = arith.constant dense<0.000000e+00> : vector<64x256xf32>
    %259 = tpu.matmul %221, %258, %cst_96 {dimension_numbers = #tpu.dot_dimension_numbers<[1], [0], [0], [1], [0, 0, 1, 1], [], []>} : vector<64x64xf32>, vector<64x256xf32>, vector<64x256xf32> -> vector<64x256xf32>
    %260 = arith.maximumf %251, %259 : vector<64x256xf32>
    %c0_97 = arith.constant 0 : index
    %c1024_98 = arith.constant 1024 : index
    %261 = vector.load %arg21[%c0_97, %c1024_98] : memref<128x1536xbf16, #tpu.memory_space<vmem>>, vector<128x256xbf16>
    %262 = arith.extf %261 : vector<128x256xbf16> to vector<128x256xf32>
    %cst_99 = arith.constant dense<0.000000e+00> : vector<64x256xf32>
    %263 = tpu.matmul %225, %262, %cst_99 {dimension_numbers = #tpu.dot_dimension_numbers<[1], [0], [0], [1], [0, 0, 1, 1], [], []>} : vector<64x128xf32>, vector<128x256xf32>, vector<64x256xf32> -> vector<64x256xf32>
    %264 = vector.broadcast %220 : vector<64x1xf32> to vector<64x256xf32>
    %265 = arith.addf %263, %264 : vector<64x256xf32>
    %cst_100 = arith.constant 0.000000e+00 : f32
    %266 = vector.broadcast %cst_100 : f32 to vector<64x256xf32>
    %267 = arith.maximumf %265, %266 : vector<64x256xf32>
    %cst_101 = arith.constant dense<0.000000e+00> : vector<64x256xf32>
    %268 = tpu.matmul %221, %267, %cst_101 {dimension_numbers = #tpu.dot_dimension_numbers<[1], [0], [0], [1], [0, 0, 1, 1], [], []>} : vector<64x64xf32>, vector<64x256xf32>, vector<64x256xf32> -> vector<64x256xf32>
    %269 = arith.maximumf %260, %268 : vector<64x256xf32>
    %c0_102 = arith.constant 0 : index
    %c1280_103 = arith.constant 1280 : index
    %270 = vector.load %arg21[%c0_102, %c1280_103] : memref<128x1536xbf16, #tpu.memory_space<vmem>>, vector<128x256xbf16>
    %271 = arith.extf %270 : vector<128x256xbf16> to vector<128x256xf32>
    %cst_104 = arith.constant dense<0.000000e+00> : vector<64x256xf32>
    %272 = tpu.matmul %225, %271, %cst_104 {dimension_numbers = #tpu.dot_dimension_numbers<[1], [0], [0], [1], [0, 0, 1, 1], [], []>} : vector<64x128xf32>, vector<128x256xf32>, vector<64x256xf32> -> vector<64x256xf32>
    %273 = vector.broadcast %220 : vector<64x1xf32> to vector<64x256xf32>
    %274 = arith.addf %272, %273 : vector<64x256xf32>
    %cst_105 = arith.constant 0.000000e+00 : f32
    %275 = vector.broadcast %cst_105 : f32 to vector<64x256xf32>
    %276 = arith.maximumf %274, %275 : vector<64x256xf32>
    %cst_106 = arith.constant dense<0.000000e+00> : vector<64x256xf32>
    %277 = tpu.matmul %221, %276, %cst_106 {dimension_numbers = #tpu.dot_dimension_numbers<[1], [0], [0], [1], [0, 0, 1, 1], [], []>} : vector<64x64xf32>, vector<64x256xf32>, vector<64x256xf32> -> vector<64x256xf32>
    %278 = arith.maximumf %269, %277 : vector<64x256xf32>
    %279 = vector.extract_strided_slice %278 {offsets = [0, 0], sizes = [64, 128], strides = [1, 1]} : vector<64x256xf32> to vector<64x128xf32>
    %280 = vector.extract_strided_slice %278 {offsets = [0, 128], sizes = [64, 128], strides = [1, 1]} : vector<64x256xf32> to vector<64x128xf32>
    %281 = arith.maximumf %279, %280 : vector<64x128xf32>
    %282 = vector.broadcast %222 : vector<64x1xf32> to vector<64x128xf32>
    %283 = arith.addf %281, %282 : vector<64x128xf32>
    %cst_107 = arith.constant dense<0.000000e+00> : vector<64x128xf32>
    %284 = tpu.matmul %223, %283, %cst_107 {dimension_numbers = #tpu.dot_dimension_numbers<[1], [0], [0], [1], [0, 0, 1, 1], [], []>} : vector<64x64xf32>, vector<64x128xf32>, vector<64x128xf32> -> vector<64x128xf32>
    %285 = vector.broadcast %224 : vector<64x1xf32> to vector<64x128xf32>
    %286 = arith.addf %284, %285 : vector<64x128xf32>
    %c0_108 = arith.constant 0 : index
    %c0_109 = arith.constant 0 : index
    %287 = vector.load %arg8[%c0_108, %c0_109] : memref<64x64xf32, #tpu.memory_space<vmem>>, vector<64x64xf32>
    %c0_110 = arith.constant 0 : index
    %c0_111 = arith.constant 0 : index
    %288 = vector.load %arg9[%c0_110, %c0_111] : memref<64x1xf32, #tpu.memory_space<vmem>>, vector<64x1xf32>
    %c0_112 = arith.constant 0 : index
    %c0_113 = arith.constant 0 : index
    %289 = vector.load %arg10[%c0_112, %c0_113] : memref<64x64xf32, #tpu.memory_space<vmem>>, vector<64x64xf32>
    %c0_114 = arith.constant 0 : index
    %c0_115 = arith.constant 0 : index
    %290 = vector.load %arg11[%c0_114, %c0_115] : memref<64x1xf32, #tpu.memory_space<vmem>>, vector<64x1xf32>
    %c0_116 = arith.constant 0 : index
    %c0_117 = arith.constant 0 : index
    %291 = vector.load %arg12[%c0_116, %c0_117] : memref<64x64xf32, #tpu.memory_space<vmem>>, vector<64x64xf32>
    %c0_118 = arith.constant 0 : index
    %c0_119 = arith.constant 0 : index
    %292 = vector.load %arg13[%c0_118, %c0_119] : memref<64x1xf32, #tpu.memory_space<vmem>>, vector<64x1xf32>
    %cst_120 = arith.constant dense<0.000000e+00> : vector<64x128xf32>
    %293 = tpu.matmul %287, %286, %cst_120 {dimension_numbers = #tpu.dot_dimension_numbers<[1], [0], [0], [1], [0, 0, 1, 1], [], []>} : vector<64x64xf32>, vector<64x128xf32>, vector<64x128xf32> -> vector<64x128xf32>
    %c0_121 = arith.constant 0 : index
    %c0_122 = arith.constant 0 : index
    %294 = vector.load %arg21[%c0_121, %c0_122] : memref<128x1536xbf16, #tpu.memory_space<vmem>>, vector<128x256xbf16>
    %295 = arith.extf %294 : vector<128x256xbf16> to vector<128x256xf32>
    %cst_123 = arith.constant dense<0.000000e+00> : vector<64x256xf32>
    %296 = tpu.matmul %293, %295, %cst_123 {dimension_numbers = #tpu.dot_dimension_numbers<[1], [0], [0], [1], [0, 0, 1, 1], [], []>} : vector<64x128xf32>, vector<128x256xf32>, vector<64x256xf32> -> vector<64x256xf32>
    %297 = vector.broadcast %288 : vector<64x1xf32> to vector<64x256xf32>
    %298 = arith.addf %296, %297 : vector<64x256xf32>
    %cst_124 = arith.constant 0.000000e+00 : f32
    %299 = vector.broadcast %cst_124 : f32 to vector<64x256xf32>
    %300 = arith.maximumf %298, %299 : vector<64x256xf32>
    %cst_125 = arith.constant dense<0.000000e+00> : vector<64x256xf32>
    %301 = tpu.matmul %289, %300, %cst_125 {dimension_numbers = #tpu.dot_dimension_numbers<[1], [0], [0], [1], [0, 0, 1, 1], [], []>} : vector<64x64xf32>, vector<64x256xf32>, vector<64x256xf32> -> vector<64x256xf32>
    %c0_126 = arith.constant 0 : index
    %c256_127 = arith.constant 256 : index
    %302 = vector.load %arg21[%c0_126, %c256_127] : memref<128x1536xbf16, #tpu.memory_space<vmem>>, vector<128x256xbf16>
    %303 = arith.extf %302 : vector<128x256xbf16> to vector<128x256xf32>
    %cst_128 = arith.constant dense<0.000000e+00> : vector<64x256xf32>
    %304 = tpu.matmul %293, %303, %cst_128 {dimension_numbers = #tpu.dot_dimension_numbers<[1], [0], [0], [1], [0, 0, 1, 1], [], []>} : vector<64x128xf32>, vector<128x256xf32>, vector<64x256xf32> -> vector<64x256xf32>
    %305 = vector.broadcast %288 : vector<64x1xf32> to vector<64x256xf32>
    %306 = arith.addf %304, %305 : vector<64x256xf32>
    %cst_129 = arith.constant 0.000000e+00 : f32
    %307 = vector.broadcast %cst_129 : f32 to vector<64x256xf32>
    %308 = arith.maximumf %306, %307 : vector<64x256xf32>
    %cst_130 = arith.constant dense<0.000000e+00> : vector<64x256xf32>
    %309 = tpu.matmul %289, %308, %cst_130 {dimension_numbers = #tpu.dot_dimension_numbers<[1], [0], [0], [1], [0, 0, 1, 1], [], []>} : vector<64x64xf32>, vector<64x256xf32>, vector<64x256xf32> -> vector<64x256xf32>
    %310 = arith.maximumf %301, %309 : vector<64x256xf32>
    %c0_131 = arith.constant 0 : index
    %c512_132 = arith.constant 512 : index
    %311 = vector.load %arg21[%c0_131, %c512_132] : memref<128x1536xbf16, #tpu.memory_space<vmem>>, vector<128x256xbf16>
    %312 = arith.extf %311 : vector<128x256xbf16> to vector<128x256xf32>
    %cst_133 = arith.constant dense<0.000000e+00> : vector<64x256xf32>
    %313 = tpu.matmul %293, %312, %cst_133 {dimension_numbers = #tpu.dot_dimension_numbers<[1], [0], [0], [1], [0, 0, 1, 1], [], []>} : vector<64x128xf32>, vector<128x256xf32>, vector<64x256xf32> -> vector<64x256xf32>
    %314 = vector.broadcast %288 : vector<64x1xf32> to vector<64x256xf32>
    %315 = arith.addf %313, %314 : vector<64x256xf32>
    %cst_134 = arith.constant 0.000000e+00 : f32
    %316 = vector.broadcast %cst_134 : f32 to vector<64x256xf32>
    %317 = arith.maximumf %315, %316 : vector<64x256xf32>
    %cst_135 = arith.constant dense<0.000000e+00> : vector<64x256xf32>
    %318 = tpu.matmul %289, %317, %cst_135 {dimension_numbers = #tpu.dot_dimension_numbers<[1], [0], [0], [1], [0, 0, 1, 1], [], []>} : vector<64x64xf32>, vector<64x256xf32>, vector<64x256xf32> -> vector<64x256xf32>
    %319 = arith.maximumf %310, %318 : vector<64x256xf32>
    %c0_136 = arith.constant 0 : index
    %c768_137 = arith.constant 768 : index
    %320 = vector.load %arg21[%c0_136, %c768_137] : memref<128x1536xbf16, #tpu.memory_space<vmem>>, vector<128x256xbf16>
    %321 = arith.extf %320 : vector<128x256xbf16> to vector<128x256xf32>
    %cst_138 = arith.constant dense<0.000000e+00> : vector<64x256xf32>
    %322 = tpu.matmul %293, %321, %cst_138 {dimension_numbers = #tpu.dot_dimension_numbers<[1], [0], [0], [1], [0, 0, 1, 1], [], []>} : vector<64x128xf32>, vector<128x256xf32>, vector<64x256xf32> -> vector<64x256xf32>
    %323 = vector.broadcast %288 : vector<64x1xf32> to vector<64x256xf32>
    %324 = arith.addf %322, %323 : vector<64x256xf32>
    %cst_139 = arith.constant 0.000000e+00 : f32
    %325 = vector.broadcast %cst_139 : f32 to vector<64x256xf32>
    %326 = arith.maximumf %324, %325 : vector<64x256xf32>
    %cst_140 = arith.constant dense<0.000000e+00> : vector<64x256xf32>
    %327 = tpu.matmul %289, %326, %cst_140 {dimension_numbers = #tpu.dot_dimension_numbers<[1], [0], [0], [1], [0, 0, 1, 1], [], []>} : vector<64x64xf32>, vector<64x256xf32>, vector<64x256xf32> -> vector<64x256xf32>
    %328 = arith.maximumf %319, %327 : vector<64x256xf32>
    %c0_141 = arith.constant 0 : index
    %c1024_142 = arith.constant 1024 : index
    %329 = vector.load %arg21[%c0_141, %c1024_142] : memref<128x1536xbf16, #tpu.memory_space<vmem>>, vector<128x256xbf16>
    %330 = arith.extf %329 : vector<128x256xbf16> to vector<128x256xf32>
    %cst_143 = arith.constant dense<0.000000e+00> : vector<64x256xf32>
    %331 = tpu.matmul %293, %330, %cst_143 {dimension_numbers = #tpu.dot_dimension_numbers<[1], [0], [0], [1], [0, 0, 1, 1], [], []>} : vector<64x128xf32>, vector<128x256xf32>, vector<64x256xf32> -> vector<64x256xf32>
    %332 = vector.broadcast %288 : vector<64x1xf32> to vector<64x256xf32>
    %333 = arith.addf %331, %332 : vector<64x256xf32>
    %cst_144 = arith.constant 0.000000e+00 : f32
    %334 = vector.broadcast %cst_144 : f32 to vector<64x256xf32>
    %335 = arith.maximumf %333, %334 : vector<64x256xf32>
    %cst_145 = arith.constant dense<0.000000e+00> : vector<64x256xf32>
    %336 = tpu.matmul %289, %335, %cst_145 {dimension_numbers = #tpu.dot_dimension_numbers<[1], [0], [0], [1], [0, 0, 1, 1], [], []>} : vector<64x64xf32>, vector<64x256xf32>, vector<64x256xf32> -> vector<64x256xf32>
    %337 = arith.maximumf %328, %336 : vector<64x256xf32>
    %c0_146 = arith.constant 0 : index
    %c1280_147 = arith.constant 1280 : index
    %338 = vector.load %arg21[%c0_146, %c1280_147] : memref<128x1536xbf16, #tpu.memory_space<vmem>>, vector<128x256xbf16>
    %339 = arith.extf %338 : vector<128x256xbf16> to vector<128x256xf32>
    %cst_148 = arith.constant dense<0.000000e+00> : vector<64x256xf32>
    %340 = tpu.matmul %293, %339, %cst_148 {dimension_numbers = #tpu.dot_dimension_numbers<[1], [0], [0], [1], [0, 0, 1, 1], [], []>} : vector<64x128xf32>, vector<128x256xf32>, vector<64x256xf32> -> vector<64x256xf32>
    %341 = vector.broadcast %288 : vector<64x1xf32> to vector<64x256xf32>
    %342 = arith.addf %340, %341 : vector<64x256xf32>
    %cst_149 = arith.constant 0.000000e+00 : f32
    %343 = vector.broadcast %cst_149 : f32 to vector<64x256xf32>
    %344 = arith.maximumf %342, %343 : vector<64x256xf32>
    %cst_150 = arith.constant dense<0.000000e+00> : vector<64x256xf32>
    %345 = tpu.matmul %289, %344, %cst_150 {dimension_numbers = #tpu.dot_dimension_numbers<[1], [0], [0], [1], [0, 0, 1, 1], [], []>} : vector<64x64xf32>, vector<64x256xf32>, vector<64x256xf32> -> vector<64x256xf32>
    %346 = arith.maximumf %337, %345 : vector<64x256xf32>
    %347 = vector.extract_strided_slice %346 {offsets = [0, 0], sizes = [64, 128], strides = [1, 1]} : vector<64x256xf32> to vector<64x128xf32>
    %348 = vector.extract_strided_slice %346 {offsets = [0, 128], sizes = [64, 128], strides = [1, 1]} : vector<64x256xf32> to vector<64x128xf32>
    %349 = arith.maximumf %347, %348 : vector<64x128xf32>
    %350 = vector.broadcast %290 : vector<64x1xf32> to vector<64x128xf32>
    %351 = arith.addf %349, %350 : vector<64x128xf32>
    %cst_151 = arith.constant dense<0.000000e+00> : vector<64x128xf32>
    %352 = tpu.matmul %291, %351, %cst_151 {dimension_numbers = #tpu.dot_dimension_numbers<[1], [0], [0], [1], [0, 0, 1, 1], [], []>} : vector<64x64xf32>, vector<64x128xf32>, vector<64x128xf32> -> vector<64x128xf32>
    %353 = vector.broadcast %292 : vector<64x1xf32> to vector<64x128xf32>
    %354 = arith.addf %352, %353 : vector<64x128xf32>
    %355 = arith.addf %286, %354 : vector<64x128xf32>
    %356 = arith.addf %286, %355 : vector<64x128xf32>
    %c0_152 = arith.constant 0 : index
    %c0_153 = arith.constant 0 : index
    %357 = vector.load %arg14[%c0_152, %c0_153] : memref<64x64xf32, #tpu.memory_space<vmem>>, vector<64x64xf32>
    %c0_154 = arith.constant 0 : index
    %c0_155 = arith.constant 0 : index
    %358 = vector.load %arg15[%c0_154, %c0_155] : memref<64x1xf32, #tpu.memory_space<vmem>>, vector<64x1xf32>
    %c0_156 = arith.constant 0 : index
    %c0_157 = arith.constant 0 : index
    %359 = vector.load %arg16[%c0_156, %c0_157] : memref<64x64xf32, #tpu.memory_space<vmem>>, vector<64x64xf32>
    %c0_158 = arith.constant 0 : index
    %c0_159 = arith.constant 0 : index
    %360 = vector.load %arg17[%c0_158, %c0_159] : memref<64x1xf32, #tpu.memory_space<vmem>>, vector<64x1xf32>
    %c0_160 = arith.constant 0 : index
    %c0_161 = arith.constant 0 : index
    %361 = vector.load %arg18[%c0_160, %c0_161] : memref<64x64xf32, #tpu.memory_space<vmem>>, vector<64x64xf32>
    %c0_162 = arith.constant 0 : index
    %c0_163 = arith.constant 0 : index
    %362 = vector.load %arg19[%c0_162, %c0_163] : memref<64x1xf32, #tpu.memory_space<vmem>>, vector<64x1xf32>
    %cst_164 = arith.constant dense<0.000000e+00> : vector<64x128xf32>
    %363 = tpu.matmul %357, %355, %cst_164 {dimension_numbers = #tpu.dot_dimension_numbers<[1], [0], [0], [1], [0, 0, 1, 1], [], []>} : vector<64x64xf32>, vector<64x128xf32>, vector<64x128xf32> -> vector<64x128xf32>
    %c0_165 = arith.constant 0 : index
    %c0_166 = arith.constant 0 : index
    %364 = vector.load %arg21[%c0_165, %c0_166] : memref<128x1536xbf16, #tpu.memory_space<vmem>>, vector<128x256xbf16>
    %365 = arith.extf %364 : vector<128x256xbf16> to vector<128x256xf32>
    %cst_167 = arith.constant dense<0.000000e+00> : vector<64x256xf32>
    %366 = tpu.matmul %363, %365, %cst_167 {dimension_numbers = #tpu.dot_dimension_numbers<[1], [0], [0], [1], [0, 0, 1, 1], [], []>} : vector<64x128xf32>, vector<128x256xf32>, vector<64x256xf32> -> vector<64x256xf32>
    %367 = vector.broadcast %358 : vector<64x1xf32> to vector<64x256xf32>
    %368 = arith.addf %366, %367 : vector<64x256xf32>
    %cst_168 = arith.constant 0.000000e+00 : f32
    %369 = vector.broadcast %cst_168 : f32 to vector<64x256xf32>
    %370 = arith.maximumf %368, %369 : vector<64x256xf32>
    %cst_169 = arith.constant dense<0.000000e+00> : vector<64x256xf32>
    %371 = tpu.matmul %359, %370, %cst_169 {dimension_numbers = #tpu.dot_dimension_numbers<[1], [0], [0], [1], [0, 0, 1, 1], [], []>} : vector<64x64xf32>, vector<64x256xf32>, vector<64x256xf32> -> vector<64x256xf32>
    %c0_170 = arith.constant 0 : index
    %c256_171 = arith.constant 256 : index
    %372 = vector.load %arg21[%c0_170, %c256_171] : memref<128x1536xbf16, #tpu.memory_space<vmem>>, vector<128x256xbf16>
    %373 = arith.extf %372 : vector<128x256xbf16> to vector<128x256xf32>
    %cst_172 = arith.constant dense<0.000000e+00> : vector<64x256xf32>
    %374 = tpu.matmul %363, %373, %cst_172 {dimension_numbers = #tpu.dot_dimension_numbers<[1], [0], [0], [1], [0, 0, 1, 1], [], []>} : vector<64x128xf32>, vector<128x256xf32>, vector<64x256xf32> -> vector<64x256xf32>
    %375 = vector.broadcast %358 : vector<64x1xf32> to vector<64x256xf32>
    %376 = arith.addf %374, %375 : vector<64x256xf32>
    %cst_173 = arith.constant 0.000000e+00 : f32
    %377 = vector.broadcast %cst_173 : f32 to vector<64x256xf32>
    %378 = arith.maximumf %376, %377 : vector<64x256xf32>
    %cst_174 = arith.constant dense<0.000000e+00> : vector<64x256xf32>
    %379 = tpu.matmul %359, %378, %cst_174 {dimension_numbers = #tpu.dot_dimension_numbers<[1], [0], [0], [1], [0, 0, 1, 1], [], []>} : vector<64x64xf32>, vector<64x256xf32>, vector<64x256xf32> -> vector<64x256xf32>
    %380 = arith.maximumf %371, %379 : vector<64x256xf32>
    %c0_175 = arith.constant 0 : index
    %c512_176 = arith.constant 512 : index
    %381 = vector.load %arg21[%c0_175, %c512_176] : memref<128x1536xbf16, #tpu.memory_space<vmem>>, vector<128x256xbf16>
    %382 = arith.extf %381 : vector<128x256xbf16> to vector<128x256xf32>
    %cst_177 = arith.constant dense<0.000000e+00> : vector<64x256xf32>
    %383 = tpu.matmul %363, %382, %cst_177 {dimension_numbers = #tpu.dot_dimension_numbers<[1], [0], [0], [1], [0, 0, 1, 1], [], []>} : vector<64x128xf32>, vector<128x256xf32>, vector<64x256xf32> -> vector<64x256xf32>
    %384 = vector.broadcast %358 : vector<64x1xf32> to vector<64x256xf32>
    %385 = arith.addf %383, %384 : vector<64x256xf32>
    %cst_178 = arith.constant 0.000000e+00 : f32
    %386 = vector.broadcast %cst_178 : f32 to vector<64x256xf32>
    %387 = arith.maximumf %385, %386 : vector<64x256xf32>
    %cst_179 = arith.constant dense<0.000000e+00> : vector<64x256xf32>
    %388 = tpu.matmul %359, %387, %cst_179 {dimension_numbers = #tpu.dot_dimension_numbers<[1], [0], [0], [1], [0, 0, 1, 1], [], []>} : vector<64x64xf32>, vector<64x256xf32>, vector<64x256xf32> -> vector<64x256xf32>
    %389 = arith.maximumf %380, %388 : vector<64x256xf32>
    %c0_180 = arith.constant 0 : index
    %c768_181 = arith.constant 768 : index
    %390 = vector.load %arg21[%c0_180, %c768_181] : memref<128x1536xbf16, #tpu.memory_space<vmem>>, vector<128x256xbf16>
    %391 = arith.extf %390 : vector<128x256xbf16> to vector<128x256xf32>
    %cst_182 = arith.constant dense<0.000000e+00> : vector<64x256xf32>
    %392 = tpu.matmul %363, %391, %cst_182 {dimension_numbers = #tpu.dot_dimension_numbers<[1], [0], [0], [1], [0, 0, 1, 1], [], []>} : vector<64x128xf32>, vector<128x256xf32>, vector<64x256xf32> -> vector<64x256xf32>
    %393 = vector.broadcast %358 : vector<64x1xf32> to vector<64x256xf32>
    %394 = arith.addf %392, %393 : vector<64x256xf32>
    %cst_183 = arith.constant 0.000000e+00 : f32
    %395 = vector.broadcast %cst_183 : f32 to vector<64x256xf32>
    %396 = arith.maximumf %394, %395 : vector<64x256xf32>
    %cst_184 = arith.constant dense<0.000000e+00> : vector<64x256xf32>
    %397 = tpu.matmul %359, %396, %cst_184 {dimension_numbers = #tpu.dot_dimension_numbers<[1], [0], [0], [1], [0, 0, 1, 1], [], []>} : vector<64x64xf32>, vector<64x256xf32>, vector<64x256xf32> -> vector<64x256xf32>
    %398 = arith.maximumf %389, %397 : vector<64x256xf32>
    %c0_185 = arith.constant 0 : index
    %c1024_186 = arith.constant 1024 : index
    %399 = vector.load %arg21[%c0_185, %c1024_186] : memref<128x1536xbf16, #tpu.memory_space<vmem>>, vector<128x256xbf16>
    %400 = arith.extf %399 : vector<128x256xbf16> to vector<128x256xf32>
    %cst_187 = arith.constant dense<0.000000e+00> : vector<64x256xf32>
    %401 = tpu.matmul %363, %400, %cst_187 {dimension_numbers = #tpu.dot_dimension_numbers<[1], [0], [0], [1], [0, 0, 1, 1], [], []>} : vector<64x128xf32>, vector<128x256xf32>, vector<64x256xf32> -> vector<64x256xf32>
    %402 = vector.broadcast %358 : vector<64x1xf32> to vector<64x256xf32>
    %403 = arith.addf %401, %402 : vector<64x256xf32>
    %cst_188 = arith.constant 0.000000e+00 : f32
    %404 = vector.broadcast %cst_188 : f32 to vector<64x256xf32>
    %405 = arith.maximumf %403, %404 : vector<64x256xf32>
    %cst_189 = arith.constant dense<0.000000e+00> : vector<64x256xf32>
    %406 = tpu.matmul %359, %405, %cst_189 {dimension_numbers = #tpu.dot_dimension_numbers<[1], [0], [0], [1], [0, 0, 1, 1], [], []>} : vector<64x64xf32>, vector<64x256xf32>, vector<64x256xf32> -> vector<64x256xf32>
    %407 = arith.maximumf %398, %406 : vector<64x256xf32>
    %c0_190 = arith.constant 0 : index
    %c1280_191 = arith.constant 1280 : index
    %408 = vector.load %arg21[%c0_190, %c1280_191] : memref<128x1536xbf16, #tpu.memory_space<vmem>>, vector<128x256xbf16>
    %409 = arith.extf %408 : vector<128x256xbf16> to vector<128x256xf32>
    %cst_192 = arith.constant dense<0.000000e+00> : vector<64x256xf32>
    %410 = tpu.matmul %363, %409, %cst_192 {dimension_numbers = #tpu.dot_dimension_numbers<[1], [0], [0], [1], [0, 0, 1, 1], [], []>} : vector<64x128xf32>, vector<128x256xf32>, vector<64x256xf32> -> vector<64x256xf32>
    %411 = vector.broadcast %358 : vector<64x1xf32> to vector<64x256xf32>
    %412 = arith.addf %410, %411 : vector<64x256xf32>
    %cst_193 = arith.constant 0.000000e+00 : f32
    %413 = vector.broadcast %cst_193 : f32 to vector<64x256xf32>
    %414 = arith.maximumf %412, %413 : vector<64x256xf32>
    %cst_194 = arith.constant dense<0.000000e+00> : vector<64x256xf32>
    %415 = tpu.matmul %359, %414, %cst_194 {dimension_numbers = #tpu.dot_dimension_numbers<[1], [0], [0], [1], [0, 0, 1, 1], [], []>} : vector<64x64xf32>, vector<64x256xf32>, vector<64x256xf32> -> vector<64x256xf32>
    %416 = arith.maximumf %407, %415 : vector<64x256xf32>
    %417 = vector.extract_strided_slice %416 {offsets = [0, 0], sizes = [64, 128], strides = [1, 1]} : vector<64x256xf32> to vector<64x128xf32>
    %418 = vector.extract_strided_slice %416 {offsets = [0, 128], sizes = [64, 128], strides = [1, 1]} : vector<64x256xf32> to vector<64x128xf32>
    %419 = arith.maximumf %417, %418 : vector<64x128xf32>
    %420 = vector.broadcast %360 : vector<64x1xf32> to vector<64x128xf32>
    %421 = arith.addf %419, %420 : vector<64x128xf32>
    %cst_195 = arith.constant dense<0.000000e+00> : vector<64x128xf32>
    %422 = tpu.matmul %361, %421, %cst_195 {dimension_numbers = #tpu.dot_dimension_numbers<[1], [0], [0], [1], [0, 0, 1, 1], [], []>} : vector<64x64xf32>, vector<64x128xf32>, vector<64x128xf32> -> vector<64x128xf32>
    %423 = vector.broadcast %362 : vector<64x1xf32> to vector<64x128xf32>
    %424 = arith.addf %422, %423 : vector<64x128xf32>
    %425 = arith.addf %356, %424 : vector<64x128xf32>
    %c0_196 = arith.constant 0 : index
    %c0_197 = arith.constant 0 : index
    %c0_198 = arith.constant 0 : index
    %426 = vector.load %arg20[%c0_196, %c0_197, %c0_198] : memref<1x64x128xf32, #tpu.memory_space<vmem>>, vector<1x64x128xf32>
    %427 = vector.shape_cast %426 : vector<1x64x128xf32> to vector<64x128xf32>
    %428 = vector.shape_cast %425 : vector<64x128xf32> to vector<1x64x128xf32>
    tpu.vector_store %arg20[%c0_196, %c0_197, %c0_198], %428 {strides = array<i32>} : memref<1x64x128xf32, #tpu.memory_space<vmem>>, vector<1x64x128xf32>,
    return
  }
  func.func @transform_0(%arg0: i32) -> (i32, i32, i32) {
    %c0_i32 = arith.constant 0 : i32
    %c0_i32_0 = arith.constant 0 : i32
    %c0_i32_1 = arith.constant 0 : i32
    return %arg0, %c0_i32, %c0_i32_0 : i32, i32, i32
  }
  func.func @transform_1(%arg0: i32) -> (i32, i32) {
    %c0_i32 = arith.constant 0 : i32
    %c0_i32_0 = arith.constant 0 : i32
    %c0_i32_1 = arith.constant 0 : i32
    return %c0_i32, %c0_i32_0 : i32, i32
  }
  func.func @transform_2(%arg0: i32) -> (i32, i32) {
    %c0_i32 = arith.constant 0 : i32
    %c0_i32_0 = arith.constant 0 : i32
    %c0_i32_1 = arith.constant 0 : i32
    return %c0_i32, %c0_i32_0 : i32, i32
  }
  func.func @transform_3(%arg0: i32) -> (i32, i32) {
    %c0_i32 = arith.constant 0 : i32
    %c0_i32_0 = arith.constant 0 : i32
    %c0_i32_1 = arith.constant 0 : i32
    return %c0_i32, %c0_i32_0 : i32, i32
  }
  func.func @transform_4(%arg0: i32) -> (i32, i32) {
    %c0_i32 = arith.constant 0 : i32
    %c0_i32_0 = arith.constant 0 : i32
    %c0_i32_1 = arith.constant 0 : i32
    return %c0_i32, %c0_i32_0 : i32, i32
  }
  func.func @transform_5(%arg0: i32) -> (i32, i32) {
    %c0_i32 = arith.constant 0 : i32
    %c0_i32_0 = arith.constant 0 : i32
    %c0_i32_1 = arith.constant 0 : i32
    return %c0_i32, %c0_i32_0 : i32, i32
  }
  func.func @transform_6(%arg0: i32) -> (i32, i32) {
    %c0_i32 = arith.constant 0 : i32
    %c0_i32_0 = arith.constant 0 : i32
    %c0_i32_1 = arith.constant 0 : i32
    return %c0_i32, %c0_i32_0 : i32, i32
  }
  func.func @transform_7(%arg0: i32) -> (i32, i32) {
    %c0_i32 = arith.constant 0 : i32
    %c0_i32_0 = arith.constant 0 : i32
    %c0_i32_1 = arith.constant 0 : i32
    return %c0_i32, %c0_i32_0 : i32, i32
  }
  func.func @transform_8(%arg0: i32) -> (i32, i32) {
    %c0_i32 = arith.constant 0 : i32
    %c0_i32_0 = arith.constant 0 : i32
    %c0_i32_1 = arith.constant 0 : i32
    return %c0_i32, %c0_i32_0 : i32, i32
  }
  func.func @transform_9(%arg0: i32) -> (i32, i32) {
    %c0_i32 = arith.constant 0 : i32
    %c0_i32_0 = arith.constant 0 : i32
    %c0_i32_1 = arith.constant 0 : i32
    return %c0_i32, %c0_i32_0 : i32, i32
  }
  func.func @transform_10(%arg0: i32) -> (i32, i32) {
    %c0_i32 = arith.constant 0 : i32
    %c0_i32_0 = arith.constant 0 : i32
    %c0_i32_1 = arith.constant 0 : i32
    return %c0_i32, %c0_i32_0 : i32, i32
  }
  func.func @transform_11(%arg0: i32) -> (i32, i32) {
    %c0_i32 = arith.constant 0 : i32
    %c0_i32_0 = arith.constant 0 : i32
    %c0_i32_1 = arith.constant 0 : i32
    return %c0_i32, %c0_i32_0 : i32, i32
  }
  func.func @transform_12(%arg0: i32) -> (i32, i32) {
    %c0_i32 = arith.constant 0 : i32
    %c0_i32_0 = arith.constant 0 : i32
    %c0_i32_1 = arith.constant 0 : i32
    return %c0_i32, %c0_i32_0 : i32, i32
  }
  func.func @transform_13(%arg0: i32) -> (i32, i32) {
    %c0_i32 = arith.constant 0 : i32
    %c0_i32_0 = arith.constant 0 : i32
    %c0_i32_1 = arith.constant 0 : i32
    return %c0_i32, %c0_i32_0 : i32, i32
  }
  func.func @transform_14(%arg0: i32) -> (i32, i32) {
    %c0_i32 = arith.constant 0 : i32
    %c0_i32_0 = arith.constant 0 : i32
    %c0_i32_1 = arith.constant 0 : i32
    return %c0_i32, %c0_i32_0 : i32, i32
  }
  func.func @transform_15(%arg0: i32) -> (i32, i32) {
    %c0_i32 = arith.constant 0 : i32
    %c0_i32_0 = arith.constant 0 : i32
    %c0_i32_1 = arith.constant 0 : i32
    return %c0_i32, %c0_i32_0 : i32, i32
  }
  func.func @transform_16(%arg0: i32) -> (i32, i32) {
    %c0_i32 = arith.constant 0 : i32
    %c0_i32_0 = arith.constant 0 : i32
    %c0_i32_1 = arith.constant 0 : i32
    return %c0_i32, %c0_i32_0 : i32, i32
  }
  func.func @transform_17(%arg0: i32) -> (i32, i32) {
    %c0_i32 = arith.constant 0 : i32
    %c0_i32_0 = arith.constant 0 : i32
    %c0_i32_1 = arith.constant 0 : i32
    return %c0_i32, %c0_i32_0 : i32, i32
  }
  func.func @transform_18(%arg0: i32) -> (i32, i32) {
    %c0_i32 = arith.constant 0 : i32
    %c0_i32_0 = arith.constant 0 : i32
    %c0_i32_1 = arith.constant 0 : i32
    return %c0_i32, %c0_i32_0 : i32, i32
  }
  func.func @transform_19(%arg0: i32) -> (i32, i32, i32) {
    %c0_i32 = arith.constant 0 : i32
    %c0_i32_0 = arith.constant 0 : i32
    %c0_i32_1 = arith.constant 0 : i32
    return %arg0, %c0_i32, %c0_i32_0 : i32, i32, i32
  }
}

</mosaic_0001>

<llo_original>
// kernel: gnn_forward.1
$region0: #{gnn_forward.1}
  #allocation0 [shape = 'u32[]', space=smem, size = 0x4, offset = 0x4, fixed_abs, tag = 'smem constant byte address 0x4 - core index']
  #allocation1 [shape = 'u32[144,128]{1,0:T(1,128)}', space=vmem, size = 0x12000, scoped, tag = 'internal scratch']
  #allocation2 [shape = 'bf16[128,1536]{1,0:T(16,128)(2,1)}', space=vmem, size = 0x60000, scoped, tag = 'scratch operand']
  %s0 = inlined_call_operand.vmem [shape: f32[2,3,128], index: 0, kind: input, shape index: {}]
  %s1 = inlined_call_operand.vmem [shape: f32[64,3], index: 1, kind: input, shape index: {}]
  %s2 = inlined_call_operand.vmem [shape: f32[64,1], index: 2, kind: input, shape index: {}]
  %s3 = inlined_call_operand.vmem [shape: f32[64,64], index: 3, kind: input, shape index: {}]
  %s4 = inlined_call_operand.vmem [shape: f32[64,1], index: 4, kind: input, shape index: {}]
  %s5 = inlined_call_operand.vmem [shape: f32[64,64], index: 5, kind: input, shape index: {}]
  %s6 = inlined_call_operand.vmem [shape: f32[64,1], index: 6, kind: input, shape index: {}]
  %s7 = inlined_call_operand.vmem [shape: f32[64,64], index: 7, kind: input, shape index: {}]
  %s8 = inlined_call_operand.vmem [shape: f32[64,1], index: 8, kind: input, shape index: {}]
  %s9 = inlined_call_operand.vmem [shape: f32[64,64], index: 9, kind: input, shape index: {}]
  %s10 = inlined_call_operand.vmem [shape: f32[64,1], index: 10, kind: input, shape index: {}]
  %s11 = inlined_call_operand.vmem [shape: f32[64,64], index: 11, kind: input, shape index: {}]
  %s12 = inlined_call_operand.vmem [shape: f32[64,1], index: 12, kind: input, shape index: {}]
  %s13 = inlined_call_operand.vmem [shape: f32[64,64], index: 13, kind: input, shape index: {}]
  %s14 = inlined_call_operand.vmem [shape: f32[64,1], index: 14, kind: input, shape index: {}]
  %s15 = inlined_call_operand.vmem [shape: f32[64,64], index: 15, kind: input, shape index: {}]
  %s16 = inlined_call_operand.vmem [shape: f32[64,1], index: 16, kind: input, shape index: {}]
  %s17 = inlined_call_operand.vmem [shape: f32[64,64], index: 17, kind: input, shape index: {}]
  %s18 = inlined_call_operand.vmem [shape: f32[64,1], index: 18, kind: input, shape index: {}]
  %s19 = inlined_call_operand.hbm [shape: f32[2,64,128], index: 19, kind: output, shape index: {}]
  %s20 = sld [smem:[#allocation0]]
  $region109: #{gnn_forward.1} parent=0
    _
  %s22 = ssub.s32 1, %s20
  %s23 = scalar_select 0, %s22, %s20
  $region1: #{gnn_forward.1} parent=0
    #allocation3 [shape = 'u8[65536]{0}', space=vmem, size = 0x10000, scoped, tag = 'output window, operand 0']
    #allocation4 [shape = 's32[2]{0}', space=sflag, size = 0x8, scoped, tag = 'scoped memory for gnn_forward.1']
    %24 = vsyncpa [#allocation4], 0
    %s25 = scalar_lea.sflag [#allocation4], 1
    %26 = vsyncpa %s25, 0
    loop: start=0, step=1, limit=4
    $region2: #{gnn_forward.1} parent=1 // loop_pre_header
      _
    $region3: #{gnn_forward.1} parent=1 // loop_header
      %s28 = sphi 0, %s32
      %p29 = scmp.ge.s32.totalorder %s28, 4
      %s38 = sphi 0, %s40
      %s41 = sphi 0, %s38
      %s42 = sphi 0, %s41
      %s58 = sphi 0, %s42
      %s62 = sphi 0, %s62
      %s64 = sphi 0, %s62
      %s65 = sphi 0, %s64
      %s79 = sphi 0, %s65
      %s83 = sphi 0, %s83
      %s85 = sphi 0, %s83
      %s86 = sphi 0, %s85
      %s100 = sphi 0, %s86
      %s104 = sphi 0, %s104
      %s106 = sphi 0, %s104
      %s107 = sphi 0, %s106
      %s121 = sphi 0, %s107
      %s125 = sphi 0, %s125
      %s127 = sphi 0, %s125
      %s128 = sphi 0, %s127
      %s142 = sphi 0, %s128
      %s146 = sphi 0, %s146
      %s148 = sphi 0, %s146
      %s149 = sphi 0, %s148
      %s163 = sphi 0, %s149
      %s167 = sphi 0, %s167
      %s169 = sphi 0, %s167
      %s170 = sphi 0, %s169
      %s184 = sphi 0, %s170
      %s188 = sphi 0, %s188
      %s190 = sphi 0, %s188
      %s191 = sphi 0, %s190
      %s205 = sphi 0, %s191
      %s209 = sphi 0, %s209
      %s211 = sphi 0, %s209
      %s212 = sphi 0, %s211
      %s226 = sphi 0, %s212
      %s230 = sphi 0, %s230
      %s232 = sphi 0, %s230
      %s233 = sphi 0, %s232
      %s247 = sphi 0, %s233
      %s251 = sphi 0, %s251
      %s253 = sphi 0, %s251
      %s254 = sphi 0, %s253
      %s268 = sphi 0, %s254
      %s272 = sphi 0, %s272
      %s274 = sphi 0, %s272
      %s275 = sphi 0, %s274
      %s289 = sphi 0, %s275
      %s293 = sphi 0, %s293
      %s295 = sphi 0, %s293
      %s296 = sphi 0, %s295
      %s310 = sphi 0, %s296
      %s314 = sphi 0, %s314
      %s316 = sphi 0, %s314
      %s317 = sphi 0, %s316
      %s331 = sphi 0, %s317
      %s335 = sphi 0, %s335
      %s337 = sphi 0, %s335
      %s338 = sphi 0, %s337
      %s352 = sphi 0, %s338
      %s356 = sphi 0, %s356
      %s358 = sphi 0, %s356
      %s359 = sphi 0, %s358
      %s373 = sphi 0, %s359
      %s377 = sphi 0, %s377
      %s379 = sphi 0, %s377
      %s380 = sphi 0, %s379
      %s394 = sphi 0, %s380
      %s398 = sphi 0, %s398
      %s400 = sphi 0, %s398
      %s401 = sphi 0, %s400
      %s415 = sphi 0, %s401
      %s419 = sphi 0, %s419
      %s421 = sphi 0, %s419
      %s422 = sphi 0, %s421
      %s436 = sphi 0, %s422
      %s442 = sphi 0, %s444
      %s445 = sphi 0, %s442
      %s446 = sphi 0, %s445
      %s462 = sphi 0, %s446
    $region4: #{gnn_forward.1} parent=1 // loop_header_branch
      %31 = sbr.rel (%p29) target = $region8
    $region5: #{gnn_forward.1} parent=1 // loop_body
      %s33 = ssub.s32 %s28, 1
      %s34 = ssub.s32 %s28, 2
      %s35 = sadd.s32 %s28, 1
      %s36 = ssub.s32 %s28, %s35
      %p37 = scmp.eq.s32.totalorder %s36, 0
      %s39 = sadd.s32 %s38, 1
      %s40 = scalar_select %p37, %s38, %s39
      %p43 = pneg %p37
      %p44 = scmp.eq.s32.totalorder %s28, 1
      %p45 = por %p43, %p44
      %p46 = scmp.ne.s32.totalorder %s38, %s41
      %p47 = scmp.eq.s32.totalorder %s28, 0
      %p48 = por %p46, %p47
      %p49 = scmp.ne.s32.totalorder %s38, %s41
      %p50 = scmp.eq.s32.totalorder %s33, 1
      %p51 = por %p49, %p50
      %p52 = scmp.ne.s32.totalorder %s41, %s42
      %p53 = scmp.eq.s32.totalorder %s33, 0
      %p54 = por %p52, %p53
      %p55 = scmp.ne.s32.totalorder %s41, %s42
      %p56 = scmp.eq.s32.totalorder %s34, 1
      %p57 = por %p55, %p56
      %p59 = scmp.ne.s32.totalorder %s42, %s58
      %p60 = scmp.eq.s32.totalorder %s34, 0
      %p61 = por %p59, %p60
      %s63 = sadd.s32 %s62, 1
      %p66 = scmp.eq.s32.totalorder %s28, 1
      %p67 = scmp.ne.s32.totalorder %s62, %s64
      %p68 = scmp.eq.s32.totalorder %s28, 0
      %p69 = por %p67, %p68
      %p70 = scmp.ne.s32.totalorder %s62, %s64
      %p71 = scmp.eq.s32.totalorder %s33, 1
      %p72 = por %p70, %p71
      %p73 = scmp.ne.s32.totalorder %s64, %s65
      %p74 = scmp.eq.s32.totalorder %s33, 0
      %p75 = por %p73, %p74
      %p76 = scmp.ne.s32.totalorder %s64, %s65
      %p77 = scmp.eq.s32.totalorder %s34, 1
      %p78 = por %p76, %p77
      %p80 = scmp.ne.s32.totalorder %s65, %s79
      %p81 = scmp.eq.s32.totalorder %s34, 0
      %p82 = por %p80, %p81
      %s84 = sadd.s32 %s83, 1
      %p87 = scmp.eq.s32.totalorder %s28, 1
      %p88 = scmp.ne.s32.totalorder %s83, %s85
      %p89 = scmp.eq.s32.totalorder %s28, 0
      %p90 = por %p88, %p89
      %p91 = scmp.ne.s32.totalorder %s83, %s85
      %p92 = scmp.eq.s32.totalorder %s33, 1
      %p93 = por %p91, %p92
      %p94 = scmp.ne.s32.totalorder %s85, %s86
      %p95 = scmp.eq.s32.totalorder %s33, 0
      %p96 = por %p94, %p95
      %p97 = scmp.ne.s32.totalorder %s85, %s86
      %p98 = scmp.eq.s32.totalorder %s34, 1
      %p99 = por %p97, %p98
      %p101 = scmp.ne.s32.totalorder %s86, %s100
      %p102 = scmp.eq.s32.totalorder %s34, 0
      %p103 = por %p101, %p102
      %s105 = sadd.s32 %s104, 1
      %p108 = scmp.eq.s32.totalorder %s28, 1
      %p109 = scmp.ne.s32.totalorder %s104, %s106
      %p110 = scmp.eq.s32.totalorder %s28, 0
      %p111 = por %p109, %p110
      %p112 = scmp.ne.s32.totalorder %s104, %s106
      %p113 = scmp.eq.s32.totalorder %s33, 1
      %p114 = por %p112, %p113
      %p115 = scmp.ne.s32.totalorder %s106, %s107
      %p116 = scmp.eq.s32.totalorder %s33, 0
      %p117 = por %p115, %p116
      %p118 = scmp.ne.s32.totalorder %s106, %s107
      %p119 = scmp.eq.s32.totalorder %s34, 1
      %p120 = por %p118, %p119
      %p122 = scmp.ne.s32.totalorder %s107, %s121
      %p123 = scmp.eq.s32.totalorder %s34, 0
      %p124 = por %p122, %p123
      %s126 = sadd.s32 %s125, 1
      %p129 = scmp.eq.s32.totalorder %s28, 1
      %p130 = scmp.ne.s32.totalorder %s125, %s127
      %p131 = scmp.eq.s32.totalorder %s28, 0
      %p132 = por %p130, %p131
      %p133 = scmp.ne.s32.totalorder %s125, %s127
      %p134 = scmp.eq.s32.totalorder %s33, 1
      %p135 = por %p133, %p134
      %p136 = scmp.ne.s32.totalorder %s127, %s128
      %p137 = scmp.eq.s32.totalorder %s33, 0
      %p138 = por %p136, %p137
      %p139 = scmp.ne.s32.totalorder %s127, %s128
      %p140 = scmp.eq.s32.totalorder %s34, 1
      %p141 = por %p139, %p140
      %p143 = scmp.ne.s32.totalorder %s128, %s142
      %p144 = scmp.eq.s32.totalorder %s34, 0
      %p145 = por %p143, %p144
      %s147 = sadd.s32 %s146, 1
      %p150 = scmp.eq.s32.totalorder %s28, 1
      %p151 = scmp.ne.s32.totalorder %s146, %s148
      %p152 = scmp.eq.s32.totalorder %s28, 0
      %p153 = por %p151, %p152
      %p154 = scmp.ne.s32.totalorder %s146, %s148
      %p155 = scmp.eq.s32.totalorder %s33, 1
      %p156 = por %p154, %p155
      %p157 = scmp.ne.s32.totalorder %s148, %s149
      %p158 = scmp.eq.s32.totalorder %s33, 0
      %p159 = por %p157, %p158
      %p160 = scmp.ne.s32.totalorder %s148, %s149
      %p161 = scmp.eq.s32.totalorder %s34, 1
      %p162 = por %p160, %p161
      %p164 = scmp.ne.s32.totalorder %s149, %s163
      %p165 = scmp.eq.s32.totalorder %s34, 0
      %p166 = por %p164, %p165
      %s168 = sadd.s32 %s167, 1
      %p171 = scmp.eq.s32.totalorder %s28, 1
      %p172 = scmp.ne.s32.totalorder %s167, %s169
      %p173 = scmp.eq.s32.totalorder %s28, 0
      %p174 = por %p172, %p173
      %p175 = scmp.ne.s32.totalorder %s167, %s169
      %p176 = scmp.eq.s32.totalorder %s33, 1
      %p177 = por %p175, %p176
      %p178 = scmp.ne.s32.totalorder %s169, %s170
      %p179 = scmp.eq.s32.totalorder %s33, 0
      %p180 = por %p178, %p179
      %p181 = scmp.ne.s32.totalorder %s169, %s170
      %p182 = scmp.eq.s32.totalorder %s34, 1
      %p183 = por %p181, %p182
      %p185 = scmp.ne.s32.totalorder %s170, %s184
      %p186 = scmp.eq.s32.totalorder %s34, 0
      %p187 = por %p185, %p186
      %s189 = sadd.s32 %s188, 1
      %p192 = scmp.eq.s32.totalorder %s28, 1
      %p193 = scmp.ne.s32.totalorder %s188, %s190
      %p194 = scmp.eq.s32.totalorder %s28, 0
      %p195 = por %p193, %p194
      %p196 = scmp.ne.s32.totalorder %s188, %s190
      %p197 = scmp.eq.s32.totalorder %s33, 1
      %p198 = por %p196, %p197
      %p199 = scmp.ne.s32.totalorder %s190, %s191
      %p200 = scmp.eq.s32.totalorder %s33, 0
      %p201 = por %p199, %p200
      %p202 = scmp.ne.s32.totalorder %s190, %s191
      %p203 = scmp.eq.s32.totalorder %s34, 1
      %p204 = por %p202, %p203
      %p206 = scmp.ne.s32.totalorder %s191, %s205
      %p207 = scmp.eq.s32.totalorder %s34, 0
      %p208 = por %p206, %p207
      %s210 = sadd.s32 %s209, 1
      %p213 = scmp.eq.s32.totalorder %s28, 1
      %p214 = scmp.ne.s32.totalorder %s209, %s211
      %p215 = scmp.eq.s32.totalorder %s28, 0
      %p216 = por %p214, %p215
      %p217 = scmp.ne.s32.totalorder %s209, %s211
      %p218 = scmp.eq.s32.totalorder %s33, 1
      %p219 = por %p217, %p218
      %p220 = scmp.ne.s32.totalorder %s211, %s212
      %p221 = scmp.eq.s32.totalorder %s33, 0
      %p222 = por %p220, %p221
      %p223 = scmp.ne.s32.totalorder %s211, %s212
      %p224 = scmp.eq.s32.totalorder %s34, 1
      %p225 = por %p223, %p224
      %p227 = scmp.ne.s32.totalorder %s212, %s226
      %p228 = scmp.eq.s32.totalorder %s34, 0
      %p229 = por %p227, %p228
      %s231 = sadd.s32 %s230, 1
      %p234 = scmp.eq.s32.totalorder %s28, 1
      %p235 = scmp.ne.s32.totalorder %s230, %s232
      %p236 = scmp.eq.s32.totalorder %s28, 0
      %p237 = por %p235, %p236
      %p238 = scmp.ne.s32.totalorder %s230, %s232
      %p239 = scmp.eq.s32.totalorder %s33, 1
      %p240 = por %p238, %p239
      %p241 = scmp.ne.s32.totalorder %s232, %s233
      %p242 = scmp.eq.s32.totalorder %s33, 0
      %p243 = por %p241, %p242
      %p244 = scmp.ne.s32.totalorder %s232, %s233
      %p245 = scmp.eq.s32.totalorder %s34, 1
      %p246 = por %p244, %p245
      %p248 = scmp.ne.s32.totalorder %s233, %s247
      %p249 = scmp.eq.s32.totalorder %s34, 0
      %p250 = por %p248, %p249
      %s252 = sadd.s32 %s251, 1
      %p255 = scmp.eq.s32.totalorder %s28, 1
      %p256 = scmp.ne.s32.totalorder %s251, %s253
      %p257 = scmp.eq.s32.totalorder %s28, 0
      %p258 = por %p256, %p257
      %p259 = scmp.ne.s32.totalorder %s251, %s253
      %p260 = scmp.eq.s32.totalorder %s33, 1
      %p261 = por %p259, %p260
      %p262 = scmp.ne.s32.totalorder %s253, %s254
      %p263 = scmp.eq.s32.totalorder %s33, 0
      %p264 = por %p262, %p263
      %p265 = scmp.ne.s32.totalorder %s253, %s254
      %p266 = scmp.eq.s32.totalorder %s34, 1
      %p267 = por %p265, %p266
      %p269 = scmp.ne.s32.totalorder %s254, %s268
      %p270 = scmp.eq.s32.totalorder %s34, 0
      %p271 = por %p269, %p270
      %s273 = sadd.s32 %s272, 1
      %p276 = scmp.eq.s32.totalorder %s28, 1
      %p277 = scmp.ne.s32.totalorder %s272, %s274
      %p278 = scmp.eq.s32.totalorder %s28, 0
      %p279 = por %p277, %p278
      %p280 = scmp.ne.s32.totalorder %s272, %s274
      %p281 = scmp.eq.s32.totalorder %s33, 1
      %p282 = por %p280, %p281
      %p283 = scmp.ne.s32.totalorder %s274, %s275
      %p284 = scmp.eq.s32.totalorder %s33, 0
      %p285 = por %p283, %p284
      %p286 = scmp.ne.s32.totalorder %s274, %s275
      %p287 = scmp.eq.s32.totalorder %s34, 1
      %p288 = por %p286, %p287
      %p290 = scmp.ne.s32.totalorder %s275, %s289
      %p291 = scmp.eq.s32.totalorder %s34, 0
      %p292 = por %p290, %p291
      %s294 = sadd.s32 %s293, 1
      %p297 = scmp.eq.s32.totalorder %s28, 1
      %p298 = scmp.ne.s32.totalorder %s293, %s295
      %p299 = scmp.eq.s32.totalorder %s28, 0
      %p300 = por %p298, %p299
      %p301 = scmp.ne.s32.totalorder %s293, %s295
      %p302 = scmp.eq.s32.totalorder %s33, 1
      %p303 = por %p301, %p302
      %p304 = scmp.ne.s32.totalorder %s295, %s296
      %p305 = scmp.eq.s32.totalorder %s33, 0
      %p306 = por %p304, %p305
      %p307 = scmp.ne.s32.totalorder %s295, %s296
      %p308 = scmp.eq.s32.totalorder %s34, 1
      %p309 = por %p307, %p308
      %p311 = scmp.ne.s32.totalorder %s296, %s310
      %p312 = scmp.eq.s32.totalorder %s34, 0
      %p313 = por %p311, %p312
      %s315 = sadd.s32 %s314, 1
      %p318 = scmp.eq.s32.totalorder %s28, 1
      %p319 = scmp.ne.s32.totalorder %s314, %s316
      %p320 = scmp.eq.s32.totalorder %s28, 0
      %p321 = por %p319, %p320
      %p322 = scmp.ne.s32.totalorder %s314, %s316
      %p323 = scmp.eq.s32.totalorder %s33, 1
      %p324 = por %p322, %p323
      %p325 = scmp.ne.s32.totalorder %s316, %s317
      %p326 = scmp.eq.s32.totalorder %s33, 0
      %p327 = por %p325, %p326
      %p328 = scmp.ne.s32.totalorder %s316, %s317
      %p329 = scmp.eq.s32.totalorder %s34, 1
      %p330 = por %p328, %p329
      %p332 = scmp.ne.s32.totalorder %s317, %s331
      %p333 = scmp.eq.s32.totalorder %s34, 0
      %p334 = por %p332, %p333
      %s336 = sadd.s32 %s335, 1
      %p339 = scmp.eq.s32.totalorder %s28, 1
      %p340 = scmp.ne.s32.totalorder %s335, %s337
      %p341 = scmp.eq.s32.totalorder %s28, 0
      %p342 = por %p340, %p341
      %p343 = scmp.ne.s32.totalorder %s335, %s337
      %p344 = scmp.eq.s32.totalorder %s33, 1
      %p345 = por %p343, %p344
      %p346 = scmp.ne.s32.totalorder %s337, %s338
      %p347 = scmp.eq.s32.totalorder %s33, 0
      %p348 = por %p346, %p347
      %p349 = scmp.ne.s32.totalorder %s337, %s338
      %p350 = scmp.eq.s32.totalorder %s34, 1
      %p351 = por %p349, %p350
      %p353 = scmp.ne.s32.totalorder %s338, %s352
      %p354 = scmp.eq.s32.totalorder %s34, 0
      %p355 = por %p353, %p354
      %s357 = sadd.s32 %s356, 1
      %p360 = scmp.eq.s32.totalorder %s28, 1
      %p361 = scmp.ne.s32.totalorder %s356, %s358
      %p362 = scmp.eq.s32.totalorder %s28, 0
      %p363 = por %p361, %p362
      %p364 = scmp.ne.s32.totalorder %s356, %s358
      %p365 = scmp.eq.s32.totalorder %s33, 1
      %p366 = por %p364, %p365
      %p367 = scmp.ne.s32.totalorder %s358, %s359
      %p368 = scmp.eq.s32.totalorder %s33, 0
      %p369 = por %p367, %p368
      %p370 = scmp.ne.s32.totalorder %s358, %s359
      %p371 = scmp.eq.s32.totalorder %s34, 1
      %p372 = por %p370, %p371
      %p374 = scmp.ne.s32.totalorder %s359, %s373
      %p375 = scmp.eq.s32.totalorder %s34, 0
      %p376 = por %p374, %p375
      %s378 = sadd.s32 %s377, 1
      %p381 = scmp.eq.s32.totalorder %s28, 1
      %p382 = scmp.ne.s32.totalorder %s377, %s379
      %p383 = scmp.eq.s32.totalorder %s28, 0
      %p384 = por %p382, %p383
      %p385 = scmp.ne.s32.totalorder %s377, %s379
      %p386 = scmp.eq.s32.totalorder %s33, 1
      %p387 = por %p385, %p386
      %p388 = scmp.ne.s32.totalorder %s379, %s380
      %p389 = scmp.eq.s32.totalorder %s33, 0
      %p390 = por %p388, %p389
      %p391 = scmp.ne.s32.totalorder %s379, %s380
      %p392 = scmp.eq.s32.totalorder %s34, 1
      %p393 = por %p391, %p392
      %p395 = scmp.ne.s32.totalorder %s380, %s394
      %p396 = scmp.eq.s32.totalorder %s34, 0
      %p397 = por %p395, %p396
      %s399 = sadd.s32 %s398, 1
      %p402 = scmp.eq.s32.totalorder %s28, 1
      %p403 = scmp.ne.s32.totalorder %s398, %s400
      %p404 = scmp.eq.s32.totalorder %s28, 0
      %p405 = por %p403, %p404
      %p406 = scmp.ne.s32.totalorder %s398, %s400
      %p407 = scmp.eq.s32.totalorder %s33, 1
      %p408 = por %p406, %p407
      %p409 = scmp.ne.s32.totalorder %s400, %s401
      %p410 = scmp.eq.s32.totalorder %s33, 0
      %p411 = por %p409, %p410
      %p412 = scmp.ne.s32.totalorder %s400, %s401
      %p413 = scmp.eq.s32.totalorder %s34, 1
      %p414 = por %p412, %p413
      %p416 = scmp.ne.s32.totalorder %s401, %s415
      %p417 = scmp.eq.s32.totalorder %s34, 0
      %p418 = por %p416, %p417
      %s420 = sadd.s32 %s419, 1
      %p423 = scmp.eq.s32.totalorder %s28, 1
      %p424 = scmp.ne.s32.totalorder %s419, %s421
      %p425 = scmp.eq.s32.totalorder %s28, 0
      %p426 = por %p424, %p425
      %p427 = scmp.ne.s32.totalorder %s419, %s421
      %p428 = scmp.eq.s32.totalorder %s33, 1
      %p429 = por %p427, %p428
      %p430 = scmp.ne.s32.totalorder %s421, %s422
      %p431 = scmp.eq.s32.totalorder %s33, 0
      %p432 = por %p430, %p431
      %p433 = scmp.ne.s32.totalorder %s421, %s422
      %p434 = scmp.eq.s32.totalorder %s34, 1
      %p435 = por %p433, %p434
      %p437 = scmp.ne.s32.totalorder %s422, %s436
      %p438 = scmp.eq.s32.totalorder %s34, 0
      %p439 = por %p437, %p438
      %s440 = ssub.s32 %s28, %s35
      %p441 = scmp.eq.s32.totalorder %s440, 0
      %s443 = sadd.s32 %s442, 1
      %s444 = scalar_select %p441, %s442, %s443
      %p447 = pneg %p441
      %p448 = scmp.eq.s32.totalorder %s28, 1
      %p449 = por %p447, %p448
      %p450 = scmp.ne.s32.totalorder %s442, %s445
      %p451 = scmp.eq.s32.totalorder %s28, 0
      %p452 = por %p450, %p451
      %p453 = scmp.ne.s32.totalorder %s442, %s445
      %p454 = scmp.eq.s32.totalorder %s33, 1
      %p455 = por %p453, %p454
      %p456 = scmp.ne.s32.totalorder %s445, %s446
      %p457 = scmp.eq.s32.totalorder %s33, 0
      %p458 = por %p456, %p457
      %p459 = scmp.ne.s32.totalorder %s445, %s446
      %p460 = scmp.eq.s32.totalorder %s34, 1
      %p461 = por %p459, %p460
      %p463 = scmp.ne.s32.totalorder %s446, %s462
      %p464 = scmp.eq.s32.totalorder %s34, 0
      %p465 = por %p463, %p464
      %p466 = scmp.le.s32.totalorder 1, %s28
      %p467 = scmp.lt.s32.totalorder %s28, 3
      %p468 = pnand %p466, %p467
      %p469 = pneg %p468
      // Predicated region
      $region9: #{gnn_forward.1} parent=5 // pred_check
        _
      $region10: #{gnn_forward.1} parent=5 // pred_check_branch
        %471 = sbr.rel (%p468) target = $region12
      $region11: #{gnn_forward.1} parent=5 // pred_region
        %s472 = ssub.s32 %s28, 1
        // Predicated region
        $region13: #{gnn_forward.1} parent=11 // pred_check
          %p473 = pneg %p75
        $region14: #{gnn_forward.1} parent=11 // pred_check_branch
          %475 = sbr.rel (%p473) target = $region16
        $region15: #{gnn_forward.1} parent=11 // pred_region
          _
        $region16: #{gnn_forward.1} parent=11 // pred_fallthru
          _
        // Predicated region
        $region17: #{gnn_forward.1} parent=11 // pred_check
          %p476 = pneg %p96
        $region18: #{gnn_forward.1} parent=11 // pred_check_branch
          %478 = sbr.rel (%p476) target = $region20
        $region19: #{gnn_forward.1} parent=11 // pred_region
          _
        $region20: #{gnn_forward.1} parent=11 // pred_fallthru
          _
        // Predicated region
        $region21: #{gnn_forward.1} parent=11 // pred_check
          %p479 = pneg %p117
        $region22: #{gnn_forward.1} parent=11 // pred_check_branch
          %481 = sbr.rel (%p479) target = $region24
        $region23: #{gnn_forward.1} parent=11 // pred_region
          _
        $region24: #{gnn_forward.1} parent=11 // pred_fallthru
          _
        // Predicated region
        $region25: #{gnn_forward.1} parent=11 // pred_check
          %p482 = pneg %p138
        $region26: #{gnn_forward.1} parent=11 // pred_check_branch
          %484 = sbr.rel (%p482) target = $region28
        $region27: #{gnn_forward.1} parent=11 // pred_region
          _
        $region28: #{gnn_forward.1} parent=11 // pred_fallthru
          _
        // Predicated region
        $region29: #{gnn_forward.1} parent=11 // pred_check
          %p485 = pneg %p159
        $region30: #{gnn_forward.1} parent=11 // pred_check_branch
          %487 = sbr.rel (%p485) target = $region32
        $region31: #{gnn_forward.1} parent=11 // pred_region
          _
        $region32: #{gnn_forward.1} parent=11 // pred_fallthru
          _
        // Predicated region
        $region33: #{gnn_forward.1} parent=11 // pred_check
          %p488 = pneg %p180
        $region34: #{gnn_forward.1} parent=11 // pred_check_branch
          %490 = sbr.rel (%p488) target = $region36
        $region35: #{gnn_forward.1} parent=11 // pred_region
          _
        $region36: #{gnn_forward.1} parent=11 // pred_fallthru
          _
        // Predicated region
        $region37: #{gnn_forward.1} parent=11 // pred_check
          %p491 = pneg %p201
        $region38: #{gnn_forward.1} parent=11 // pred_check_branch
          %493 = sbr.rel (%p491) target = $region40
        $region39: #{gnn_forward.1} parent=11 // pred_region
          _
        $region40: #{gnn_forward.1} parent=11 // pred_fallthru
          _
        // Predicated region
        $region41: #{gnn_forward.1} parent=11 // pred_check
          %p494 = pneg %p222
        $region42: #{gnn_forward.1} parent=11 // pred_check_branch
          %496 = sbr.rel (%p494) target = $region44
        $region43: #{gnn_forward.1} parent=11 // pred_region
          _
        $region44: #{gnn_forward.1} parent=11 // pred_fallthru
          _
        // Predicated region
        $region45: #{gnn_forward.1} parent=11 // pred_check
          %p497 = pneg %p243
        $region46: #{gnn_forward.1} parent=11 // pred_check_branch
          %499 = sbr.rel (%p497) target = $region48
        $region47: #{gnn_forward.1} parent=11 // pred_region
          _
        $region48: #{gnn_forward.1} parent=11 // pred_fallthru
          _
        // Predicated region
        $region49: #{gnn_forward.1} parent=11 // pred_check
          %p500 = pneg %p264
        $region50: #{gnn_forward.1} parent=11 // pred_check_branch
          %502 = sbr.rel (%p500) target = $region52
        $region51: #{gnn_forward.1} parent=11 // pred_region
          _
        $region52: #{gnn_forward.1} parent=11 // pred_fallthru
          _
        // Predicated region
        $region53: #{gnn_forward.1} parent=11 // pred_check
          %p503 = pneg %p285
        $region54: #{gnn_forward.1} parent=11 // pred_check_branch
          %505 = sbr.rel (%p503) target = $region56
        $region55: #{gnn_forward.1} parent=11 // pred_region
          _
        $region56: #{gnn_forward.1} parent=11 // pred_fallthru
          _
        // Predicated region
        $region57: #{gnn_forward.1} parent=11 // pred_check
          %p506 = pneg %p306
        $region58: #{gnn_forward.1} parent=11 // pred_check_branch
          %508 = sbr.rel (%p506) target = $region60
        $region59: #{gnn_forward.1} parent=11 // pred_region
          _
        $region60: #{gnn_forward.1} parent=11 // pred_fallthru
          _
        // Predicated region
        $region61: #{gnn_forward.1} parent=11 // pred_check
          %p509 = pneg %p327
        $region62: #{gnn_forward.1} parent=11 // pred_check_branch
          %511 = sbr.rel (%p509) target = $region64
        $region63: #{gnn_forward.1} parent=11 // pred_region
          _
        $region64: #{gnn_forward.1} parent=11 // pred_fallthru
          _
        // Predicated region
        $region65: #{gnn_forward.1} parent=11 // pred_check
          %p512 = pneg %p348
        $region66: #{gnn_forward.1} parent=11 // pred_check_branch
          %514 = sbr.rel (%p512) target = $region68
        $region67: #{gnn_forward.1} parent=11 // pred_region
          _
        $region68: #{gnn_forward.1} parent=11 // pred_fallthru
          _
        // Predicated region
        $region69: #{gnn_forward.1} parent=11 // pred_check
          %p515 = pneg %p369
        $region70: #{gnn_forward.1} parent=11 // pred_check_branch
          %517 = sbr.rel (%p515) target = $region72
        $region71: #{gnn_forward.1} parent=11 // pred_region
          _
        $region72: #{gnn_forward.1} parent=11 // pred_fallthru
          _
        // Predicated region
        $region73: #{gnn_forward.1} parent=11 // pred_check
          %p518 = pneg %p390
        $region74: #{gnn_forward.1} parent=11 // pred_check_branch
          %520 = sbr.rel (%p518) target = $region76
        $region75: #{gnn_forward.1} parent=11 // pred_region
          _
        $region76: #{gnn_forward.1} parent=11 // pred_fallthru
          _
        // Predicated region
        $region77: #{gnn_forward.1} parent=11 // pred_check
          %p521 = pneg %p411
        $region78: #{gnn_forward.1} parent=11 // pred_check_branch
          %523 = sbr.rel (%p521) target = $region80
        $region79: #{gnn_forward.1} parent=11 // pred_region
          _
        $region80: #{gnn_forward.1} parent=11 // pred_fallthru
          _
        // Predicated region
        $region81: #{gnn_forward.1} parent=11 // pred_check
          %p524 = pneg %p432
        $region82: #{gnn_forward.1} parent=11 // pred_check_branch
          %526 = sbr.rel (%p524) target = $region84
        $region83: #{gnn_forward.1} parent=11 // pred_region
          _
        $region84: #{gnn_forward.1} parent=11 // pred_fallthru
          _
      $region12: #{gnn_forward.1} parent=5 // pred_fallthru
        _
      %p527 = scmp.lt.s32.totalorder %s28, 2
      // Predicated region
      $region85: #{gnn_forward.1} parent=5 // pred_check
        %p528 = pneg %p527
      $region86: #{gnn_forward.1} parent=5 // pred_check_branch
        %530 = sbr.rel (%p528) target = $region88
      $region87: #{gnn_forward.1} parent=5 // pred_region
        // Predicated region
        $region89: #{gnn_forward.1} parent=87 // pred_check
          %p531 = pneg %p48
        $region90: #{gnn_forward.1} parent=87 // pred_check_branch
          %533 = sbr.rel (%p531) target = $region92
        $region91: #{gnn_forward.1} parent=87 // pred_region
          %p534 = scmp.lt.s32.totalorder %s28, 1
          %s535 = scalar_select %p534, %s28, 1
          %s536 = smul.addr %s535, 4
          %s537 = scalar_lea.vmem %s0, %s536
        $region92: #{gnn_forward.1} parent=87 // pred_fallthru
          _
      $region88: #{gnn_forward.1} parent=5 // pred_fallthru
        _
      %p538 = scmp.le.s32.totalorder 1, %s28
      %p539 = scmp.lt.s32.totalorder %s28, 3
      %p540 = pnand %p538, %p539
      %p541 = pneg %p540
      // Predicated region
      $region93: #{gnn_forward.1} parent=5 // pred_check
        _
      $region94: #{gnn_forward.1} parent=5 // pred_check_branch
        %543 = sbr.rel (%p540) target = $region96
      $region95: #{gnn_forward.1} parent=5 // pred_region
        %s544 = ssub.s32 %s28, 1
        %p545 = scmp.lt.s32.totalorder %s33, 1
        %s546 = scalar_select %p545, %s33, 1
        %s547 = smul.addr %s546, 4
        %s548 = scalar_lea.vmem %s0, %s547
        %p549 = pneg %p54
        %p550 = pneg %p51
        %p551 = pneg %p75
        %p552 = pneg %p72
        %p553 = pneg %p96
        %p554 = pneg %p93
        %p555 = pneg %p117
        %p556 = pneg %p114
        %p557 = pneg %p138
        %p558 = pneg %p135
        %p559 = pneg %p159
        %p560 = pneg %p156
        %p561 = pneg %p180
        %p562 = pneg %p177
        %p563 = pneg %p201
        %p564 = pneg %p198
        %p565 = pneg %p222
        %p566 = pneg %p219
        %p567 = pneg %p243
        %p568 = pneg %p240
        %p569 = pneg %p264
        %p570 = pneg %p261
        %p571 = pneg %p285
        %p572 = pneg %p282
        %p573 = pneg %p306
        %p574 = pneg %p303
        %p575 = pneg %p327
        %p576 = pneg %p324
        %p577 = pneg %p348
        %p578 = pneg %p345
        %p579 = pneg %p369
        %p580 = pneg %p366
        %p581 = pneg %p390
        %p582 = pneg %p387
        %p583 = pneg %p411
        %p584 = pneg %p408
        %p585 = pneg %p432
        %p586 = pneg %p429
        %p587 = pneg %p458
        %p588 = pneg %p455
        %s589 = sand.u32 %s445, 1
        %s590 = scalar_lea.sflag [#allocation4], %s589
        %s591 = sand.u32 %s445, 1
        %s592 = smul.addr %s591, 64
        %s593 = scalar_lea.vmem [#allocation3], %s592
        %p594 = scmp.lt.s32.totalorder %s33, 1
        %s595 = scalar_select %p594, %s33, 1
        %s596 = smul.addr %s595, 4
        %s597 = scalar_lea.vmem %s0, %s596
        %v598 = vld [vmem:[%s597] sm:$0x7]
        %599 = vxpose.xlu0.b32.start [1/16] %v598, 128
        %600 = vxpose.xlu0.b32.cont [2/16] 0.0, 128
        %601 = vxpose.xlu0.b32.cont [3/16] 0.0, 128
        %602 = vxpose.xlu0.b32.cont [4/16] 0.0, 128
        %603 = vxpose.xlu0.b32.cont [5/16] 0.0, 128
        %604 = vxpose.xlu0.b32.cont [6/16] 0.0, 128
        %605 = vxpose.xlu0.b32.cont [7/16] 0.0, 128
        %606 = vxpose.xlu0.b32.cont [8/16] 0.0, 128
        %607 = vxpose.xlu0.b32.cont [9/16] 0.0, 128
        %608 = vxpose.xlu0.b32.cont [10/16] 0.0, 128
        %609 = vxpose.xlu0.b32.cont [11/16] 0.0, 128
        %610 = vxpose.xlu0.b32.cont [12/16] 0.0, 128
        %611 = vxpose.xlu0.b32.cont [13/16] 0.0, 128
        %612 = vxpose.xlu0.b32.cont [14/16] 0.0, 128
        %613 = vxpose.xlu0.b32.cont [15/16] 0.0, 128
        %614 = vxpose.xlu0.b32.end [16/16] 0.0, 128
        %v615 = vpop.trf.xlu0
        %v616 = vpop.trf.xlu0
        %v617 = vpop.trf.xlu0
        %v618 = vpop.trf.xlu0
        %v619 = vpop.trf.xlu0
        %v620 = vpop.trf.xlu0
        %v621 = vpop.trf.xlu0
        %v622 = vpop.trf.xlu0
        %v623 = vpop.trf.xlu0
        %v624 = vpop.trf.xlu0
        %v625 = vpop.trf.xlu0
        %v626 = vpop.trf.xlu0
        %v627 = vpop.trf.xlu0
        %v628 = vpop.trf.xlu0
        %v629 = vpop.trf.xlu0
        %v630 = vpop.trf.xlu0
        %vm631 = vcmask 23552
        %v633 = vsel %vm631, %v615, 0
        %v636 = vsel %vm631, %v616, 0
        %v639 = vsel %vm631, %v617, 0
        %v642 = vsel %vm631, %v618, 0
        %v645 = vsel %vm631, %v619, 0
        %v648 = vsel %vm631, %v620, 0
        %v651 = vsel %vm631, %v621, 0
        %v654 = vsel %vm631, %v622, 0
        %v657 = vsel %vm631, %v623, 0
        %v660 = vsel %vm631, %v624, 0
        %v663 = vsel %vm631, %v625, 0
        %v666 = vsel %vm631, %v626, 0
        %v669 = vsel %vm631, %v627, 0
        %v672 = vsel %vm631, %v628, 0
        %v675 = vsel %vm631, %v629, 0
        %v678 = vsel %vm631, %v630, 0
        %vm680 = vcmask 1042432
        %v682 = vsel %vm680, %v598, 0
        %684 = vmatprep.subr.mxu0 0.0
        %685 = vmatpush1.msra.mxu0 %v682
        %686 = vmatprep.subr.mxu0 0.0
        %687 = vmatpush1.msra.mxu0 0.0
        %688 = vmatprep.subr.mxu0 0.0
        %689 = vmatpush1.msra.mxu0 0.0
        %690 = vmatprep.subr.mxu0 0.0
        %691 = vmatpush1.msra.mxu0 0.0
        %692 = vmatprep.subr.mxu0 0.0
        %693 = vmatpush1.msra.mxu0 0.0
        %694 = vmatprep.subr.mxu0 0.0
        %695 = vmatpush1.msra.mxu0 0.0
        %696 = vmatprep.subr.mxu0 0.0
        %697 = vmatpush1.msra.mxu0 0.0
        %698 = vmatprep.subr.mxu0 0.0
        %699 = vmatpush1.msra.mxu0 0.0
        %700 = vmatprep.subr.mxu0 0.0
        %701 = vmatpush1.msra.mxu0 0.0
        %702 = vmatprep.subr.mxu0 0.0
        %703 = vmatpush1.msra.mxu0 0.0
        %704 = vmatprep.subr.mxu0 0.0
        %705 = vmatpush1.msra.mxu0 0.0
        %706 = vmatprep.subr.mxu0 0.0
        %707 = vmatpush1.msra.mxu0 0.0
        %708 = vmatprep.subr.mxu0 0.0
        %709 = vmatpush1.msra.mxu0 0.0
        %710 = vmatprep.subr.mxu0 0.0
        %711 = vmatpush1.msra.mxu0 0.0
        %712 = vmatprep.subr.mxu0 0.0
        %713 = vmatpush1.msra.mxu0 0.0
        %714 = vmatprep.subr.mxu0 0.0
        %715 = vmatpush1.msra.mxu0 0.0
        %716 = vmatprep.subr.mxu0 0.0
        %717 = vmatpush1.msra.mxu0 0.0
        %718 = vmatprep.subr.mxu0 0.0
        %719 = vmatpush1.msra.mxu0 0.0
        %720 = vmatprep.subr.mxu0 0.0
        %721 = vmatpush1.msra.mxu0 0.0
        %722 = vmatprep.subr.mxu0 0.0
        %723 = vmatpush1.msra.mxu0 0.0
        %724 = vmatprep.subr.mxu0 0.0
        %725 = vmatpush1.msra.mxu0 0.0
        %726 = vmatprep.subr.mxu0 0.0
        %727 = vmatpush1.msra.mxu0 0.0
        %728 = vmatprep.subr.mxu0 0.0
        %729 = vmatpush1.msra.mxu0 0.0
        %730 = vmatprep.subr.mxu0 0.0
        %731 = vmatpush1.msra.mxu0 0.0
        %732 = vmatprep.subr.mxu0 0.0
        %733 = vmatpush1.msra.mxu0 0.0
        %734 = vmatprep.subr.mxu0 0.0
        %735 = vmatpush1.msra.mxu0 0.0
        %736 = vmatprep.subr.mxu0 0.0
        %737 = vmatpush1.msra.mxu0 0.0
        %738 = vmatprep.subr.mxu0 0.0
        %739 = vmatpush1.msra.mxu0 0.0
        %740 = vmatprep.subr.mxu0 0.0
        %741 = vmatpush1.msra.mxu0 0.0
        %742 = vmatprep.subr.mxu0 0.0
        %743 = vmatpush1.msra.mxu0 0.0
        %744 = vmatprep.subr.mxu0 0.0
        %745 = vmatpush1.msra.mxu0 0.0
        %746 = vmatprep.subr.mxu0 0.0
        %747 = vmatpush1.msra.mxu0 0.0
        %748 = vmatprep.mubr.f32.mxu0 0.0
        %749 = vmatmul.mubr.f32.gmra.mrb[0].mxu0 %v633
        %v750 = vpop.f32.mrb[0].mxu0
        %v751 = vadd.f32 0.0, %v750
        %v752 = vpop.f32.mrb[0].mxu0
        %753 = vmatprep.mubr.f32.mxu0 0.0
        %754 = vmatmul.mubr.f32.gmra.mrb[0].mxu0 %v636
        %v755 = vpop.f32.mrb[0].mxu0
        %v756 = vadd.f32 0.0, %v755
        %v757 = vpop.f32.mrb[0].mxu0
        %758 = vmatprep.mubr.f32.mxu0 0.0
        %759 = vmatmul.mubr.f32.gmra.mrb[0].mxu0 %v639
        %v760 = vpop.f32.mrb[0].mxu0
        %v761 = vadd.f32 0.0, %v760
        %v762 = vpop.f32.mrb[0].mxu0
        %763 = vmatprep.mubr.f32.mxu0 0.0
        %764 = vmatmul.mubr.f32.gmra.mrb[0].mxu0 %v642
        %v765 = vpop.f32.mrb[0].mxu0
        %v766 = vadd.f32 0.0, %v765
        %v767 = vpop.f32.mrb[0].mxu0
        %768 = vmatprep.mubr.f32.mxu0 0.0
        %769 = vmatmul.mubr.f32.gmra.mrb[0].mxu0 %v645
        %v770 = vpop.f32.mrb[0].mxu0
        %v771 = vadd.f32 0.0, %v770
        %v772 = vpop.f32.mrb[0].mxu0
        %773 = vmatprep.mubr.f32.mxu0 0.0
        %774 = vmatmul.mubr.f32.gmra.mrb[0].mxu0 %v648
        %v775 = vpop.f32.mrb[0].mxu0
        %v776 = vadd.f32 0.0, %v775
        %v777 = vpop.f32.mrb[0].mxu0
        %778 = vmatprep.mubr.f32.mxu0 0.0
        %779 = vmatmul.mubr.f32.gmra.mrb[0].mxu0 %v651
        %v780 = vpop.f32.mrb[0].mxu0
        %v781 = vadd.f32 0.0, %v780
        %v782 = vpop.f32.mrb[0].mxu0
        %783 = vmatprep.mubr.f32.mxu0 0.0
        %784 = vmatmul.mubr.f32.gmra.mrb[0].mxu0 %v654
        %v785 = vpop.f32.mrb[0].mxu0
        %v786 = vadd.f32 0.0, %v785
        %v787 = vpop.f32.mrb[0].mxu0
        %788 = vmatprep.mubr.f32.mxu0 0.0
        %789 = vmatmul.mubr.f32.gmra.mrb[0].mxu0 %v657
        %v790 = vpop.f32.mrb[0].mxu0
        %v791 = vadd.f32 0.0, %v790
        %v792 = vpop.f32.mrb[0].mxu0
        %793 = vmatprep.mubr.f32.mxu0 0.0
        %794 = vmatmul.mubr.f32.gmra.mrb[0].mxu0 %v660
        %v795 = vpop.f32.mrb[0].mxu0
        %v796 = vadd.f32 0.0, %v795
        %v797 = vpop.f32.mrb[0].mxu0
        %798 = vmatprep.mubr.f32.mxu0 0.0
        %799 = vmatmul.mubr.f32.gmra.mrb[0].mxu0 %v663
        %v800 = vpop.f32.mrb[0].mxu0
        %v801 = vadd.f32 0.0, %v800
        %v802 = vpop.f32.mrb[0].mxu0
        %803 = vmatprep.mubr.f32.mxu0 0.0
        %804 = vmatmul.mubr.f32.gmra.mrb[0].mxu0 %v666
        %v805 = vpop.f32.mrb[0].mxu0
        %v806 = vadd.f32 0.0, %v805
        %v807 = vpop.f32.mrb[0].mxu0
        %808 = vmatprep.mubr.f32.mxu0 0.0
        %809 = vmatmul.mubr.f32.gmra.mrb[0].mxu0 %v669
        %v810 = vpop.f32.mrb[0].mxu0
        %v811 = vadd.f32 0.0, %v810
        %v812 = vpop.f32.mrb[0].mxu0
        %813 = vmatprep.mubr.f32.mxu0 0.0
        %814 = vmatmul.mubr.f32.gmra.mrb[0].mxu0 %v672
        %v815 = vpop.f32.mrb[0].mxu0
        %v816 = vadd.f32 0.0, %v815
        %v817 = vpop.f32.mrb[0].mxu0
        %818 = vmatprep.mubr.f32.mxu0 0.0
        %819 = vmatmul.mubr.f32.gmra.mrb[0].mxu0 %v675
        %v820 = vpop.f32.mrb[0].mxu0
        %v821 = vadd.f32 0.0, %v820
        %v822 = vpop.f32.mrb[0].mxu0
        %823 = vmatprep.mubr.f32.mxu0 0.0
        %824 = vmatmul.mubr.f32.gmra.mrb[0].mxu0 %v678
        %v825 = vpop.f32.mrb[0].mxu0
        %v826 = vadd.f32 0.0, %v825
        %v827 = vpop.f32.mrb[0].mxu0
        %828 = vdwg.mxu0
        %v829 = vmul.f32 %v598, %v598
        %v830 = vsel %vm680, %v829, 0.0
        %v831 = vrot.slane %v830, 4
        %v832 = vadd.f32 %v830, %v831
        %v833 = vrot.slane %v832, 2
        %v834 = vadd.f32 %v832, %v833
        %v835 = vrot.slane %v834, 1
        %v836 = vadd.f32 %v834, %v835
        %837 = vxpose.xlu0.b32.start [1/16] %v836, 128
        %838 = vxpose.xlu0.b32.cont [2/16] 0.0, 128
        %839 = vxpose.xlu0.b32.cont [3/16] 0.0, 128
        %840 = vxpose.xlu0.b32.cont [4/16] 0.0, 128
        %841 = vxpose.xlu0.b32.cont [5/16] 0.0, 128
        %842 = vxpose.xlu0.b32.cont [6/16] 0.0, 128
        %843 = vxpose.xlu0.b32.cont [7/16] 0.0, 128
        %844 = vxpose.xlu0.b32.cont [8/16] 0.0, 128
        %845 = vxpose.xlu0.b32.cont [9/16] 0.0, 128
        %846 = vxpose.xlu0.b32.cont [10/16] 0.0, 128
        %847 = vxpose.xlu0.b32.cont [11/16] 0.0, 128
        %848 = vxpose.xlu0.b32.cont [12/16] 0.0, 128
        %849 = vxpose.xlu0.b32.cont [13/16] 0.0, 128
        %850 = vxpose.xlu0.b32.cont [14/16] 0.0, 128
        %851 = vxpose.xlu0.b32.cont [15/16] 0.0, 128
        %852 = vxpose.xlu0.b32.end [16/16] 0.0, 128
        %v853 = vpop.trf.xlu0
        %v854 = vpop.trf.xlu0
        %v855 = vpop.trf.xlu0
        %v856 = vpop.trf.xlu0
        %v857 = vpop.trf.xlu0
        %v858 = vpop.trf.xlu0
        %v859 = vpop.trf.xlu0
        %v860 = vpop.trf.xlu0
        %v861 = vpop.trf.xlu0
        %v862 = vpop.trf.xlu0
        %v863 = vpop.trf.xlu0
        %v864 = vpop.trf.xlu0
        %v865 = vpop.trf.xlu0
        %v866 = vpop.trf.xlu0
        %v867 = vpop.trf.xlu0
        %v868 = vpop.trf.xlu0
        %v869 = vmul.f32 %v751, 2.0
        %v870 = vmul.f32 %v756, 2.0
        %v871 = vmul.f32 %v761, 2.0
        %v872 = vmul.f32 %v766, 2.0
        %v873 = vmul.f32 %v771, 2.0
        %v874 = vmul.f32 %v776, 2.0
        %v875 = vmul.f32 %v781, 2.0
        %v876 = vmul.f32 %v786, 2.0
        %v877 = vmul.f32 %v791, 2.0
        %v878 = vmul.f32 %v796, 2.0
        %v879 = vmul.f32 %v801, 2.0
        %v880 = vmul.f32 %v806, 2.0
        %v881 = vmul.f32 %v811, 2.0
        %v882 = vmul.f32 %v816, 2.0
        %v883 = vmul.f32 %v821, 2.0
        %v884 = vmul.f32 %v826, 2.0
        %886 = vset.pattern.permute.xlu0 0
        %887 = vperm.xlu0 %886, %v853
        %v888 = vpop.permute.xlu0 %887
        %891 = vset.pattern.permute.xlu0 0
        %892 = vperm.xlu0 %891, %v854
        %v893 = vpop.permute.xlu0 %892
        %896 = vset.pattern.permute.xlu0 0
        %897 = vperm.xlu0 %896, %v855
        %v898 = vpop.permute.xlu0 %897
        %901 = vset.pattern.permute.xlu0 0
        %902 = vperm.xlu0 %901, %v856
        %v903 = vpop.permute.xlu0 %902
        %906 = vset.pattern.permute.xlu0 0
        %907 = vperm.xlu0 %906, %v857
        %v908 = vpop.permute.xlu0 %907
        %911 = vset.pattern.permute.xlu0 0
        %912 = vperm.xlu0 %911, %v858
        %v913 = vpop.permute.xlu0 %912
        %916 = vset.pattern.permute.xlu0 0
        %917 = vperm.xlu0 %916, %v859
        %v918 = vpop.permute.xlu0 %917
        %921 = vset.pattern.permute.xlu0 0
        %922 = vperm.xlu0 %921, %v860
        %v923 = vpop.permute.xlu0 %922
        %926 = vset.pattern.permute.xlu0 0
        %927 = vperm.xlu0 %926, %v861
        %v928 = vpop.permute.xlu0 %927
        %931 = vset.pattern.permute.xlu0 0
        %932 = vperm.xlu0 %931, %v862
        %v933 = vpop.permute.xlu0 %932
        %936 = vset.pattern.permute.xlu0 0
        %937 = vperm.xlu0 %936, %v863
        %v938 = vpop.permute.xlu0 %937
        %941 = vset.pattern.permute.xlu0 0
        %942 = vperm.xlu0 %941, %v864
        %v943 = vpop.permute.xlu0 %942
        %946 = vset.pattern.permute.xlu0 0
        %947 = vperm.xlu0 %946, %v865
        %v948 = vpop.permute.xlu0 %947
        %951 = vset.pattern.permute.xlu0 0
        %952 = vperm.xlu0 %951, %v866
        %v953 = vpop.permute.xlu0 %952
        %956 = vset.pattern.permute.xlu0 0
        %957 = vperm.xlu0 %956, %v867
        %v958 = vpop.permute.xlu0 %957
        %961 = vset.pattern.permute.xlu0 0
        %962 = vperm.xlu0 %961, %v868
        %v963 = vpop.permute.xlu0 %962
        %v965 = vsub.f32 %v869, %v888
        %v966 = vsub.f32 %v870, %v893
        %v967 = vsub.f32 %v871, %v898
        %v968 = vsub.f32 %v872, %v903
        %v969 = vsub.f32 %v873, %v908
        %v970 = vsub.f32 %v874, %v913
        %v971 = vsub.f32 %v875, %v918
        %v972 = vsub.f32 %v876, %v923
        %v973 = vsub.f32 %v877, %v928
        %v974 = vsub.f32 %v878, %v933
        %v975 = vsub.f32 %v879, %v938
        %v976 = vsub.f32 %v880, %v943
        %v977 = vsub.f32 %v881, %v948
        %v978 = vsub.f32 %v882, %v953
        %v979 = vsub.f32 %v883, %v958
        %v980 = vsub.f32 %v884, %v963
        %v981 = vlaneseq
        %v982 = vshrl.u32 %v981, 7
        %v983 = vadd.s32 %v982, 8
        %v984 = vadd.s32 %v982, 16
        %v985 = vadd.s32 %v982, 24
        %v986 = vadd.s32 %v982, 32
        %v987 = vadd.s32 %v982, 40
        %v988 = vadd.s32 %v982, 48
        %v989 = vadd.s32 %v982, 56
        %v990 = vadd.s32 %v982, 64
        %v991 = vadd.s32 %v982, 72
        %v992 = vadd.s32 %v982, 80
        %v993 = vadd.s32 %v982, 88
        %v994 = vadd.s32 %v982, 96
        %v995 = vadd.s32 %v982, 104
        %v996 = vadd.s32 %v982, 112
        %v997 = vadd.s32 %v982, 120
        %v998 = vlaneseq
        %v999 = vand.u32 %v998, 127
        %v1000 = vcvt.s32.f32 %v982
        %v1001 = vcvt.s32.f32 %v983
        %v1002 = vcvt.s32.f32 %v984
        %v1003 = vcvt.s32.f32 %v985
        %v1004 = vcvt.s32.f32 %v986
        %v1005 = vcvt.s32.f32 %v987
        %v1006 = vcvt.s32.f32 %v988
        %v1007 = vcvt.s32.f32 %v989
        %v1008 = vcvt.s32.f32 %v990
        %v1009 = vcvt.s32.f32 %v991
        %v1010 = vcvt.s32.f32 %v992
        %v1011 = vcvt.s32.f32 %v993
        %v1012 = vcvt.s32.f32 %v994
        %v1013 = vcvt.s32.f32 %v995
        %v1014 = vcvt.s32.f32 %v996
        %v1015 = vcvt.s32.f32 %v997
        %vm1016 = vcmp.eq.s32.totalorder %v982, %v999
        %vm1017 = vcmp.eq.s32.totalorder %v983, %v999
        %vm1018 = vcmp.eq.s32.totalorder %v984, %v999
        %vm1019 = vcmp.eq.s32.totalorder %v985, %v999
        %vm1020 = vcmp.eq.s32.totalorder %v986, %v999
        %vm1021 = vcmp.eq.s32.totalorder %v987, %v999
        %vm1022 = vcmp.eq.s32.totalorder %v988, %v999
        %vm1023 = vcmp.eq.s32.totalorder %v989, %v999
        %vm1024 = vcmp.eq.s32.totalorder %v990, %v999
        %vm1025 = vcmp.eq.s32.totalorder %v991, %v999
        %vm1026 = vcmp.eq.s32.totalorder %v992, %v999
        %vm1027 = vcmp.eq.s32.totalorder %v993, %v999
        %vm1028 = vcmp.eq.s32.totalorder %v994, %v999
        %vm1029 = vcmp.eq.s32.totalorder %v995, %v999
        %vm1030 = vcmp.eq.s32.totalorder %v996, %v999
        %vm1031 = vcmp.eq.s32.totalorder %v997, %v999
        %v1032 = vsel %vm1016, 1, 0
        %v1033 = vsel %vm1017, 1, 0
        %v1034 = vsel %vm1018, 1, 0
        %v1035 = vsel %vm1019, 1, 0
        %v1036 = vsel %vm1020, 1, 0
        %v1037 = vsel %vm1021, 1, 0
        %v1038 = vsel %vm1022, 1, 0
        %v1039 = vsel %vm1023, 1, 0
        %v1040 = vsel %vm1024, 1, 0
        %v1041 = vsel %vm1025, 1, 0
        %v1042 = vsel %vm1026, 1, 0
        %v1043 = vsel %vm1027, 1, 0
        %v1044 = vsel %vm1028, 1, 0
        %v1045 = vsel %vm1029, 1, 0
        %v1046 = vsel %vm1030, 1, 0
        %v1047 = vsel %vm1031, 1, 0
        %v1048 = vcvt.s32.f32 %v1032
        %v1049 = vcvt.s32.f32 %v1033
        %v1050 = vcvt.s32.f32 %v1034
        %v1051 = vcvt.s32.f32 %v1035
        %v1052 = vcvt.s32.f32 %v1036
        %v1053 = vcvt.s32.f32 %v1037
        %v1054 = vcvt.s32.f32 %v1038
        %v1055 = vcvt.s32.f32 %v1039
        %v1056 = vcvt.s32.f32 %v1040
        %v1057 = vcvt.s32.f32 %v1041
        %v1058 = vcvt.s32.f32 %v1042
        %v1059 = vcvt.s32.f32 %v1043
        %v1060 = vcvt.s32.f32 %v1044
        %v1061 = vcvt.s32.f32 %v1045
        %v1062 = vcvt.s32.f32 %v1046
        %v1063 = vcvt.s32.f32 %v1047
        %v1064 = vmax.f32 %v965, %v969
        %v1065 = vmax.f32 %v966, %v970
        %v1066 = vmax.f32 %v967, %v971
        %v1067 = vmax.f32 %v968, %v972
        %v1068 = vmax.f32 %v1064, %v973
        %v1069 = vmax.f32 %v1065, %v974
        %v1070 = vmax.f32 %v1066, %v975
        %v1071 = vmax.f32 %v1067, %v976
        %v1072 = vmax.f32 %v1068, %v977
        %v1073 = vmax.f32 %v1069, %v978
        %v1074 = vmax.f32 %v1070, %v979
        %v1075 = vmax.f32 %v1071, %v980
        %v1076 = vmax.f32 %v1072, %v1073
        %v1077 = vmax.f32 %v1074, %v1075
        %v1078 = vmax.f32 %v1076, %v1077
        %v1079 = vrot.slane %v1078, 4
        %v1080 = vmax.f32 %v1078, %v1079
        %v1081 = vrot.slane %v1080, 2
        %v1082 = vmax.f32 %v1080, %v1081
        %v1083 = vrot.slane %v1082, 1
        %v1084 = vmax.f32 %v1082, %v1083
        %vm1085 = vcmp.ge.f32.partialorder %v965, %v1084
        %vm1086 = vcmp.ge.f32.partialorder %v966, %v1084
        %vm1087 = vcmp.ge.f32.partialorder %v967, %v1084
        %vm1088 = vcmp.ge.f32.partialorder %v968, %v1084
        %vm1089 = vcmp.ge.f32.partialorder %v969, %v1084
        %vm1090 = vcmp.ge.f32.partialorder %v970, %v1084
        %vm1091 = vcmp.ge.f32.partialorder %v971, %v1084
        %vm1092 = vcmp.ge.f32.partialorder %v972, %v1084
        %vm1093 = vcmp.ge.f32.partialorder %v973, %v1084
        %vm1094 = vcmp.ge.f32.partialorder %v974, %v1084
        %vm1095 = vcmp.ge.f32.partialorder %v975, %v1084
        %vm1096 = vcmp.ge.f32.partialorder %v976, %v1084
        %vm1097 = vcmp.ge.f32.partialorder %v977, %v1084
        %vm1098 = vcmp.ge.f32.partialorder %v978, %v1084
        %vm1099 = vcmp.ge.f32.partialorder %v979, %v1084
        %vm1100 = vcmp.ge.f32.partialorder %v980, %v1084
        %v1101 = vsel %vm1085, %v1000, 128.0
        %v1102 = vsel %vm1086, %v1001, 128.0
        %v1103 = vsel %vm1087, %v1002, 128.0
        %v1104 = vsel %vm1088, %v1003, 128.0
        %v1105 = vsel %vm1089, %v1004, 128.0
        %v1106 = vsel %vm1090, %v1005, 128.0
        %v1107 = vsel %vm1091, %v1006, 128.0
        %v1108 = vsel %vm1092, %v1007, 128.0
        %v1109 = vsel %vm1093, %v1008, 128.0
        %v1110 = vsel %vm1094, %v1009, 128.0
        %v1111 = vsel %vm1095, %v1010, 128.0
        %v1112 = vsel %vm1096, %v1011, 128.0
        %v1113 = vsel %vm1097, %v1012, 128.0
        %v1114 = vsel %vm1098, %v1013, 128.0
        %v1115 = vsel %vm1099, %v1014, 128.0
        %v1116 = vsel %vm1100, %v1015, 128.0
        %v1117 = vmin.f32 %v1101, %v1105
        %v1118 = vmin.f32 %v1102, %v1106
        %v1119 = vmin.f32 %v1103, %v1107
        %v1120 = vmin.f32 %v1104, %v1108
        %v1121 = vmin.f32 %v1117, %v1109
        %v1122 = vmin.f32 %v1118, %v1110
        %v1123 = vmin.f32 %v1119, %v1111
        %v1124 = vmin.f32 %v1120, %v1112
        %v1125 = vmin.f32 %v1121, %v1113
        %v1126 = vmin.f32 %v1122, %v1114
        %v1127 = vmin.f32 %v1123, %v1115
        %v1128 = vmin.f32 %v1124, %v1116
        %v1129 = vmin.f32 %v1125, %v1126
        %v1130 = vmin.f32 %v1127, %v1128
        %v1131 = vmin.f32 %v1129, %v1130
        %v1132 = vrot.slane %v1131, 4
        %v1133 = vmin.f32 %v1131, %v1132
        %v1134 = vrot.slane %v1133, 2
        %v1135 = vmin.f32 %v1133, %v1134
        %v1136 = vrot.slane %v1135, 1
        %v1137 = vmin.f32 %v1135, %v1136
        %vm1138 = vcmp.eq.f32.partialorder %v1000, %v1137
        %vm1139 = vcmp.eq.f32.partialorder %v1001, %v1137
        %vm1140 = vcmp.eq.f32.partialorder %v1002, %v1137
        %vm1141 = vcmp.eq.f32.partialorder %v1003, %v1137
        %vm1142 = vcmp.eq.f32.partialorder %v1004, %v1137
        %vm1143 = vcmp.eq.f32.partialorder %v1005, %v1137
        %vm1144 = vcmp.eq.f32.partialorder %v1006, %v1137
        %vm1145 = vcmp.eq.f32.partialorder %v1007, %v1137
        %vm1146 = vcmp.eq.f32.partialorder %v1008, %v1137
        %vm1147 = vcmp.eq.f32.partialorder %v1009, %v1137
        %vm1148 = vcmp.eq.f32.partialorder %v1010, %v1137
        %vm1149 = vcmp.eq.f32.partialorder %v1011, %v1137
        %vm1150 = vcmp.eq.f32.partialorder %v1012, %v1137
        %vm1151 = vcmp.eq.f32.partialorder %v1013, %v1137
        %vm1152 = vcmp.eq.f32.partialorder %v1014, %v1137
        %vm1153 = vcmp.eq.f32.partialorder %v1015, %v1137
        %v1154 = vsel %vm1138, 1, 0
        %v1155 = vsel %vm1139, 1, 0
        %v1156 = vsel %vm1140, 1, 0
        %v1157 = vsel %vm1141, 1, 0
        %v1158 = vsel %vm1142, 1, 0
        %v1159 = vsel %vm1143, 1, 0
        %v1160 = vsel %vm1144, 1, 0
        %v1161 = vsel %vm1145, 1, 0
        %v1162 = vsel %vm1146, 1, 0
        %v1163 = vsel %vm1147, 1, 0
        %v1164 = vsel %vm1148, 1, 0
        %v1165 = vsel %vm1149, 1, 0
        %v1166 = vsel %vm1150, 1, 0
        %v1167 = vsel %vm1151, 1, 0
        %v1168 = vsel %vm1152, 1, 0
        %v1169 = vsel %vm1153, 1, 0
        %v1170 = vcvt.s32.f32 %v1154
        %v1171 = vcvt.s32.f32 %v1155
        %v1172 = vcvt.s32.f32 %v1156
        %v1173 = vcvt.s32.f32 %v1157
        %v1174 = vcvt.s32.f32 %v1158
        %v1175 = vcvt.s32.f32 %v1159
        %v1176 = vcvt.s32.f32 %v1160
        %v1177 = vcvt.s32.f32 %v1161
        %v1178 = vcvt.s32.f32 %v1162
        %v1179 = vcvt.s32.f32 %v1163
        %v1180 = vcvt.s32.f32 %v1164
        %v1181 = vcvt.s32.f32 %v1165
        %v1182 = vcvt.s32.f32 %v1166
        %v1183 = vcvt.s32.f32 %v1167
        %v1184 = vcvt.s32.f32 %v1168
        %v1185 = vcvt.s32.f32 %v1169
        %v1186 = vsub.f32 %v1170, %v1048
        %v1187 = vsub.f32 %v1171, %v1049
        %v1188 = vsub.f32 %v1172, %v1050
        %v1189 = vsub.f32 %v1173, %v1051
        %v1190 = vsub.f32 %v1174, %v1052
        %v1191 = vsub.f32 %v1175, %v1053
        %v1192 = vsub.f32 %v1176, %v1054
        %v1193 = vsub.f32 %v1177, %v1055
        %v1194 = vsub.f32 %v1178, %v1056
        %v1195 = vsub.f32 %v1179, %v1057
        %v1196 = vsub.f32 %v1180, %v1058
        %v1197 = vsub.f32 %v1181, %v1059
        %v1198 = vsub.f32 %v1182, %v1060
        %v1199 = vsub.f32 %v1183, %v1061
        %v1200 = vsub.f32 %v1184, %v1062
        %v1201 = vsub.f32 %v1185, %v1063
        %v1202 = vpack.c.bf16 %v1187, %v1186
        %v1203 = vpack.c.bf16 %v1189, %v1188
        %v1204 = vpack.c.bf16 %v1191, %v1190
        %v1205 = vpack.c.bf16 %v1193, %v1192
        %v1206 = vpack.c.bf16 %v1195, %v1194
        %v1207 = vpack.c.bf16 %v1197, %v1196
        %v1208 = vpack.c.bf16 %v1199, %v1198
        %v1209 = vpack.c.bf16 %v1201, %v1200
        %1210 = vst [vmem:[#allocation2] sm:$0xff] %v1202
        %1211 = vst [vmem:[#allocation2 + $0x60] sm:$0xff] %v1203
        %1212 = vst [vmem:[#allocation2 + $0xc0] sm:$0xff] %v1204
        %1213 = vst [vmem:[#allocation2 + $0x120] sm:$0xff] %v1205
        %1214 = vst [vmem:[#allocation2 + $0x180] sm:$0xff] %v1206
        %1215 = vst [vmem:[#allocation2 + $0x1e0] sm:$0xff] %v1207
        %1216 = vst [vmem:[#allocation2 + $0x240] sm:$0xff] %v1208
        %1217 = vst [vmem:[#allocation2 + $0x2a0] sm:$0xff] %v1209
        %v1218 = vsel %vm1138, -1e+30, %v965
        %v1219 = vsel %vm1139, -1e+30, %v966
        %v1220 = vsel %vm1140, -1e+30, %v967
        %v1221 = vsel %vm1141, -1e+30, %v968
        %v1222 = vsel %vm1142, -1e+30, %v969
        %v1223 = vsel %vm1143, -1e+30, %v970
        %v1224 = vsel %vm1144, -1e+30, %v971
        %v1225 = vsel %vm1145, -1e+30, %v972
        %v1226 = vsel %vm1146, -1e+30, %v973
        %v1227 = vsel %vm1147, -1e+30, %v974
        %v1228 = vsel %vm1148, -1e+30, %v975
        %v1229 = vsel %vm1149, -1e+30, %v976
        %v1230 = vsel %vm1150, -1e+30, %v977
        %v1231 = vsel %vm1151, -1e+30, %v978
        %v1232 = vsel %vm1152, -1e+30, %v979
        %v1233 = vsel %vm1153, -1e+30, %v980
        %v1234 = vmax.f32 %v1218, %v1222
        %v1235 = vmax.f32 %v1219, %v1223
        %v1236 = vmax.f32 %v1220, %v1224
        %v1237 = vmax.f32 %v1221, %v1225
        %v1238 = vmax.f32 %v1234, %v1226
        %v1239 = vmax.f32 %v1235, %v1227
        %v1240 = vmax.f32 %v1236, %v1228
        %v1241 = vmax.f32 %v1237, %v1229
        %v1242 = vmax.f32 %v1238, %v1230
        %v1243 = vmax.f32 %v1239, %v1231
        %v1244 = vmax.f32 %v1240, %v1232
        %v1245 = vmax.f32 %v1241, %v1233
        %v1246 = vmax.f32 %v1242, %v1243
        %v1247 = vmax.f32 %v1244, %v1245
        %v1248 = vmax.f32 %v1246, %v1247
        %v1249 = vrot.slane %v1248, 4
        %v1250 = vmax.f32 %v1248, %v1249
        %v1251 = vrot.slane %v1250, 2
        %v1252 = vmax.f32 %v1250, %v1251
        %v1253 = vrot.slane %v1252, 1
        %v1254 = vmax.f32 %v1252, %v1253
        %vm1255 = vcmp.ge.f32.partialorder %v1218, %v1254
        %vm1256 = vcmp.ge.f32.partialorder %v1219, %v1254
        %vm1257 = vcmp.ge.f32.partialorder %v1220, %v1254
        %vm1258 = vcmp.ge.f32.partialorder %v1221, %v1254
        %vm1259 = vcmp.ge.f32.partialorder %v1222, %v1254
        %vm1260 = vcmp.ge.f32.partialorder %v1223, %v1254
        %vm1261 = vcmp.ge.f32.partialorder %v1224, %v1254
        %vm1262 = vcmp.ge.f32.partialorder %v1225, %v1254
        %vm1263 = vcmp.ge.f32.partialorder %v1226, %v1254
        %vm1264 = vcmp.ge.f32.partialorder %v1227, %v1254
        %vm1265 = vcmp.ge.f32.partialorder %v1228, %v1254
        %vm1266 = vcmp.ge.f32.partialorder %v1229, %v1254
        %vm1267 = vcmp.ge.f32.partialorder %v1230, %v1254
        %vm1268 = vcmp.ge.f32.partialorder %v1231, %v1254
        %vm1269 = vcmp.ge.f32.partialorder %v1232, %v1254
        %vm1270 = vcmp.ge.f32.partialorder %v1233, %v1254
        %v1271 = vsel %vm1255, %v1000, 128.0
        %v1272 = vsel %vm1256, %v1001, 128.0
        %v1273 = vsel %vm1257, %v1002, 128.0
        %v1274 = vsel %vm1258, %v1003, 128.0
        %v1275 = vsel %vm1259, %v1004, 128.0
        %v1276 = vsel %vm1260, %v1005, 128.0
        %v1277 = vsel %vm1261, %v1006, 128.0
        %v1278 = vsel %vm1262, %v1007, 128.0
        %v1279 = vsel %vm1263, %v1008, 128.0
        %v1280 = vsel %vm1264, %v1009, 128.0
        %v1281 = vsel %vm1265, %v1010, 128.0
        %v1282 = vsel %vm1266, %v1011, 128.0
        %v1283 = vsel %vm1267, %v1012, 128.0
        %v1284 = vsel %vm1268, %v1013, 128.0
        %v1285 = vsel %vm1269, %v1014, 128.0
        %v1286 = vsel %vm1270, %v1015, 128.0
        %v1287 = vmin.f32 %v1271, %v1275
        %v1288 = vmin.f32 %v1272, %v1276
        %v1289 = vmin.f32 %v1273, %v1277
        %v1290 = vmin.f32 %v1274, %v1278
        %v1291 = vmin.f32 %v1287, %v1279
        %v1292 = vmin.f32 %v1288, %v1280
        %v1293 = vmin.f32 %v1289, %v1281
        %v1294 = vmin.f32 %v1290, %v1282
        %v1295 = vmin.f32 %v1291, %v1283
        %v1296 = vmin.f32 %v1292, %v1284
        %v1297 = vmin.f32 %v1293, %v1285
        %v1298 = vmin.f32 %v1294, %v1286
        %v1299 = vmin.f32 %v1295, %v1296
        %v1300 = vmin.f32 %v1297, %v1298
        %v1301 = vmin.f32 %v1299, %v1300
        %v1302 = vrot.slane %v1301, 4
        %v1303 = vmin.f32 %v1301, %v1302
        %v1304 = vrot.slane %v1303, 2
        %v1305 = vmin.f32 %v1303, %v1304
        %v1306 = vrot.slane %v1305, 1
        %v1307 = vmin.f32 %v1305, %v1306
        %vm1308 = vcmp.eq.f32.partialorder %v1000, %v1307
        %vm1309 = vcmp.eq.f32.partialorder %v1001, %v1307
        %vm1310 = vcmp.eq.f32.partialorder %v1002, %v1307
        %vm1311 = vcmp.eq.f32.partialorder %v1003, %v1307
        %vm1312 = vcmp.eq.f32.partialorder %v1004, %v1307
        %vm1313 = vcmp.eq.f32.partialorder %v1005, %v1307
        %vm1314 = vcmp.eq.f32.partialorder %v1006, %v1307
        %vm1315 = vcmp.eq.f32.partialorder %v1007, %v1307
        %vm1316 = vcmp.eq.f32.partialorder %v1008, %v1307
        %vm1317 = vcmp.eq.f32.partialorder %v1009, %v1307
        %vm1318 = vcmp.eq.f32.partialorder %v1010, %v1307
        %vm1319 = vcmp.eq.f32.partialorder %v1011, %v1307
        %vm1320 = vcmp.eq.f32.partialorder %v1012, %v1307
        %vm1321 = vcmp.eq.f32.partialorder %v1013, %v1307
        %vm1322 = vcmp.eq.f32.partialorder %v1014, %v1307
        %vm1323 = vcmp.eq.f32.partialorder %v1015, %v1307
        %v1324 = vsel %vm1308, 1, 0
        %v1325 = vsel %vm1309, 1, 0
        %v1326 = vsel %vm1310, 1, 0
        %v1327 = vsel %vm1311, 1, 0
        %v1328 = vsel %vm1312, 1, 0
        %v1329 = vsel %vm1313, 1, 0
        %v1330 = vsel %vm1314, 1, 0
        %v1331 = vsel %vm1315, 1, 0
        %v1332 = vsel %vm1316, 1, 0
        %v1333 = vsel %vm1317, 1, 0
        %v1334 = vsel %vm1318, 1, 0
        %v1335 = vsel %vm1319, 1, 0
        %v1336 = vsel %vm1320, 1, 0
        %v1337 = vsel %vm1321, 1, 0
        %v1338 = vsel %vm1322, 1, 0
        %v1339 = vsel %vm1323, 1, 0
        %v1340 = vcvt.s32.f32 %v1324
        %v1341 = vcvt.s32.f32 %v1325
        %v1342 = vcvt.s32.f32 %v1326
        %v1343 = vcvt.s32.f32 %v1327
        %v1344 = vcvt.s32.f32 %v1328
        %v1345 = vcvt.s32.f32 %v1329
        %v1346 = vcvt.s32.f32 %v1330
        %v1347 = vcvt.s32.f32 %v1331
        %v1348 = vcvt.s32.f32 %v1332
        %v1349 = vcvt.s32.f32 %v1333
        %v1350 = vcvt.s32.f32 %v1334
        %v1351 = vcvt.s32.f32 %v1335
        %v1352 = vcvt.s32.f32 %v1336
        %v1353 = vcvt.s32.f32 %v1337
        %v1354 = vcvt.s32.f32 %v1338
        %v1355 = vcvt.s32.f32 %v1339
        %v1356 = vsub.f32 %v1340, %v1048
        %v1357 = vsub.f32 %v1341, %v1049
        %v1358 = vsub.f32 %v1342, %v1050
        %v1359 = vsub.f32 %v1343, %v1051
        %v1360 = vsub.f32 %v1344, %v1052
        %v1361 = vsub.f32 %v1345, %v1053
        %v1362 = vsub.f32 %v1346, %v1054
        %v1363 = vsub.f32 %v1347, %v1055
        %v1364 = vsub.f32 %v1348, %v1056
        %v1365 = vsub.f32 %v1349, %v1057
        %v1366 = vsub.f32 %v1350, %v1058
        %v1367 = vsub.f32 %v1351, %v1059
        %v1368 = vsub.f32 %v1352, %v1060
        %v1369 = vsub.f32 %v1353, %v1061
        %v1370 = vsub.f32 %v1354, %v1062
        %v1371 = vsub.f32 %v1355, %v1063
        %v1372 = vpack.c.bf16 %v1357, %v1356
        %v1373 = vpack.c.bf16 %v1359, %v1358
        %v1374 = vpack.c.bf16 %v1361, %v1360
        %v1375 = vpack.c.bf16 %v1363, %v1362
        %v1376 = vpack.c.bf16 %v1365, %v1364
        %v1377 = vpack.c.bf16 %v1367, %v1366
        %v1378 = vpack.c.bf16 %v1369, %v1368
        %v1379 = vpack.c.bf16 %v1371, %v1370
        %1380 = vst [vmem:[#allocation2 + $0x8] sm:$0xff] %v1372
        %1381 = vst [vmem:[#allocation2 + $0x68] sm:$0xff] %v1373
        %1382 = vst [vmem:[#allocation2 + $0xc8] sm:$0xff] %v1374
        %1383 = vst [vmem:[#allocation2 + $0x128] sm:$0xff] %v1375
        %1384 = vst [vmem:[#allocation2 + $0x188] sm:$0xff] %v1376
        %1385 = vst [vmem:[#allocation2 + $0x1e8] sm:$0xff] %v1377
        %1386 = vst [vmem:[#allocation2 + $0x248] sm:$0xff] %v1378
        %1387 = vst [vmem:[#allocation2 + $0x2a8] sm:$0xff] %v1379
        %v1388 = vsel %vm1308, -1e+30, %v1218
        %v1389 = vsel %vm1309, -1e+30, %v1219
        %v1390 = vsel %vm1310, -1e+30, %v1220
        %v1391 = vsel %vm1311, -1e+30, %v1221
        %v1392 = vsel %vm1312, -1e+30, %v1222
        %v1393 = vsel %vm1313, -1e+30, %v1223
        %v1394 = vsel %vm1314, -1e+30, %v1224
        %v1395 = vsel %vm1315, -1e+30, %v1225
        %v1396 = vsel %vm1316, -1e+30, %v1226
        %v1397 = vsel %vm1317, -1e+30, %v1227
        %v1398 = vsel %vm1318, -1e+30, %v1228
        %v1399 = vsel %vm1319, -1e+30, %v1229
        %v1400 = vsel %vm1320, -1e+30, %v1230
        %v1401 = vsel %vm1321, -1e+30, %v1231
        %v1402 = vsel %vm1322, -1e+30, %v1232
        %v1403 = vsel %vm1323, -1e+30, %v1233
        %v1404 = vmax.f32 %v1388, %v1392
        %v1405 = vmax.f32 %v1389, %v1393
        %v1406 = vmax.f32 %v1390, %v1394
        %v1407 = vmax.f32 %v1391, %v1395
        %v1408 = vmax.f32 %v1404, %v1396
        %v1409 = vmax.f32 %v1405, %v1397
        %v1410 = vmax.f32 %v1406, %v1398
        %v1411 = vmax.f32 %v1407, %v1399
        %v1412 = vmax.f32 %v1408, %v1400
        %v1413 = vmax.f32 %v1409, %v1401
        %v1414 = vmax.f32 %v1410, %v1402
        %v1415 = vmax.f32 %v1411, %v1403
        %v1416 = vmax.f32 %v1412, %v1413
        %v1417 = vmax.f32 %v1414, %v1415
        %v1418 = vmax.f32 %v1416, %v1417
        %v1419 = vrot.slane %v1418, 4
        %v1420 = vmax.f32 %v1418, %v1419
        %v1421 = vrot.slane %v1420, 2
        %v1422 = vmax.f32 %v1420, %v1421
        %v1423 = vrot.slane %v1422, 1
        %v1424 = vmax.f32 %v1422, %v1423
        %vm1425 = vcmp.ge.f32.partialorder %v1388, %v1424
        %vm1426 = vcmp.ge.f32.partialorder %v1389, %v1424
        %vm1427 = vcmp.ge.f32.partialorder %v1390, %v1424
        %vm1428 = vcmp.ge.f32.partialorder %v1391, %v1424
        %vm1429 = vcmp.ge.f32.partialorder %v1392, %v1424
        %vm1430 = vcmp.ge.f32.partialorder %v1393, %v1424
        %vm1431 = vcmp.ge.f32.partialorder %v1394, %v1424
        %vm1432 = vcmp.ge.f32.partialorder %v1395, %v1424
        %vm1433 = vcmp.ge.f32.partialorder %v1396, %v1424
        %vm1434 = vcmp.ge.f32.partialorder %v1397, %v1424
        %vm1435 = vcmp.ge.f32.partialorder %v1398, %v1424
        %vm1436 = vcmp.ge.f32.partialorder %v1399, %v1424
        %vm1437 = vcmp.ge.f32.partialorder %v1400, %v1424
        %vm1438 = vcmp.ge.f32.partialorder %v1401, %v1424
        %vm1439 = vcmp.ge.f32.partialorder %v1402, %v1424
        %vm1440 = vcmp.ge.f32.partialorder %v1403, %v1424
        %v1441 = vsel %vm1425, %v1000, 128.0
        %v1442 = vsel %vm1426, %v1001, 128.0
        %v1443 = vsel %vm1427, %v1002, 128.0
        %v1444 = vsel %vm1428, %v1003, 128.0
        %v1445 = vsel %vm1429, %v1004, 128.0
        %v1446 = vsel %vm1430, %v1005, 128.0
        %v1447 = vsel %vm1431, %v1006, 128.0
        %v1448 = vsel %vm1432, %v1007, 128.0
        %v1449 = vsel %vm1433, %v1008, 128.0
        %v1450 = vsel %vm1434, %v1009, 128.0
        %v1451 = vsel %vm1435, %v1010, 128.0
        %v1452 = vsel %vm1436, %v1011, 128.0
        %v1453 = vsel %vm1437, %v1012, 128.0
        %v1454 = vsel %vm1438, %v1013, 128.0
        %v1455 = vsel %vm1439, %v1014, 128.0
        %v1456 = vsel %vm1440, %v1015, 128.0
        %v1457 = vmin.f32 %v1441, %v1445
        %v1458 = vmin.f32 %v1442, %v1446
        %v1459 = vmin.f32 %v1443, %v1447
        %v1460 = vmin.f32 %v1444, %v1448
        %v1461 = vmin.f32 %v1457, %v1449
        %v1462 = vmin.f32 %v1458, %v1450
        %v1463 = vmin.f32 %v1459, %v1451
        %v1464 = vmin.f32 %v1460, %v1452
        %v1465 = vmin.f32 %v1461, %v1453
        %v1466 = vmin.f32 %v1462, %v1454
        %v1467 = vmin.f32 %v1463, %v1455
        %v1468 = vmin.f32 %v1464, %v1456
        %v1469 = vmin.f32 %v1465, %v1466
        %v1470 = vmin.f32 %v1467, %v1468
        %v1471 = vmin.f32 %v1469, %v1470
        %v1472 = vrot.slane %v1471, 4
        %v1473 = vmin.f32 %v1471, %v1472
        %v1474 = vrot.slane %v1473, 2
        %v1475 = vmin.f32 %v1473, %v1474
        %v1476 = vrot.slane %v1475, 1
        %v1477 = vmin.f32 %v1475, %v1476
        %vm1478 = vcmp.eq.f32.partialorder %v1000, %v1477
        %vm1479 = vcmp.eq.f32.partialorder %v1001, %v1477
        %vm1480 = vcmp.eq.f32.partialorder %v1002, %v1477
        %vm1481 = vcmp.eq.f32.partialorder %v1003, %v1477
        %vm1482 = vcmp.eq.f32.partialorder %v1004, %v1477
        %vm1483 = vcmp.eq.f32.partialorder %v1005, %v1477
        %vm1484 = vcmp.eq.f32.partialorder %v1006, %v1477
        %vm1485 = vcmp.eq.f32.partialorder %v1007, %v1477
        %vm1486 = vcmp.eq.f32.partialorder %v1008, %v1477
        %vm1487 = vcmp.eq.f32.partialorder %v1009, %v1477
        %vm1488 = vcmp.eq.f32.partialorder %v1010, %v1477
        %vm1489 = vcmp.eq.f32.partialorder %v1011, %v1477
        %vm1490 = vcmp.eq.f32.partialorder %v1012, %v1477
        %vm1491 = vcmp.eq.f32.partialorder %v1013, %v1477
        %vm1492 = vcmp.eq.f32.partialorder %v1014, %v1477
        %vm1493 = vcmp.eq.f32.partialorder %v1015, %v1477
        %v1494 = vsel %vm1478, 1, 0
        %v1495 = vsel %vm1479, 1, 0
        %v1496 = vsel %vm1480, 1, 0
        %v1497 = vsel %vm1481, 1, 0
        %v1498 = vsel %vm1482, 1, 0
        %v1499 = vsel %vm1483, 1, 0
        %v1500 = vsel %vm1484, 1, 0
        %v1501 = vsel %vm1485, 1, 0
        %v1502 = vsel %vm1486, 1, 0
        %v1503 = vsel %vm1487, 1, 0
        %v1504 = vsel %vm1488, 1, 0
        %v1505 = vsel %vm1489, 1, 0
        %v1506 = vsel %vm1490, 1, 0
        %v1507 = vsel %vm1491, 1, 0
        %v1508 = vsel %vm1492, 1, 0
        %v1509 = vsel %vm1493, 1, 0
        %v1510 = vcvt.s32.f32 %v1494
        %v1511 = vcvt.s32.f32 %v1495
        %v1512 = vcvt.s32.f32 %v1496
        %v1513 = vcvt.s32.f32 %v1497
        %v1514 = vcvt.s32.f32 %v1498
        %v1515 = vcvt.s32.f32 %v1499
        %v1516 = vcvt.s32.f32 %v1500
        %v1517 = vcvt.s32.f32 %v1501
        %v1518 = vcvt.s32.f32 %v1502
        %v1519 = vcvt.s32.f32 %v1503
        %v1520 = vcvt.s32.f32 %v1504
        %v1521 = vcvt.s32.f32 %v1505
        %v1522 = vcvt.s32.f32 %v1506
        %v1523 = vcvt.s32.f32 %v1507
        %v1524 = vcvt.s32.f32 %v1508
        %v1525 = vcvt.s32.f32 %v1509
        %v1526 = vsub.f32 %v1510, %v1048
        %v1527 = vsub.f32 %v1511, %v1049
        %v1528 = vsub.f32 %v1512, %v1050
        %v1529 = vsub.f32 %v1513, %v1051
        %v1530 = vsub.f32 %v1514, %v1052
        %v1531 = vsub.f32 %v1515, %v1053
        %v1532 = vsub.f32 %v1516, %v1054
        %v1533 = vsub.f32 %v1517, %v1055
        %v1534 = vsub.f32 %v1518, %v1056
        %v1535 = vsub.f32 %v1519, %v1057
        %v1536 = vsub.f32 %v1520, %v1058
        %v1537 = vsub.f32 %v1521, %v1059
        %v1538 = vsub.f32 %v1522, %v1060
        %v1539 = vsub.f32 %v1523, %v1061
        %v1540 = vsub.f32 %v1524, %v1062
        %v1541 = vsub.f32 %v1525, %v1063
        %v1542 = vpack.c.bf16 %v1527, %v1526
        %v1543 = vpack.c.bf16 %v1529, %v1528
        %v1544 = vpack.c.bf16 %v1531, %v1530
        %v1545 = vpack.c.bf16 %v1533, %v1532
        %v1546 = vpack.c.bf16 %v1535, %v1534
        %v1547 = vpack.c.bf16 %v1537, %v1536
        %v1548 = vpack.c.bf16 %v1539, %v1538
        %v1549 = vpack.c.bf16 %v1541, %v1540
        %1550 = vst [vmem:[#allocation2 + $0x10] sm:$0xff] %v1542
        %1551 = vst [vmem:[#allocation2 + $0x70] sm:$0xff] %v1543
        %1552 = vst [vmem:[#allocation2 + $0xd0] sm:$0xff] %v1544
        %1553 = vst [vmem:[#allocation2 + $0x130] sm:$0xff] %v1545
        %1554 = vst [vmem:[#allocation2 + $0x190] sm:$0xff] %v1546
        %1555 = vst [vmem:[#allocation2 + $0x1f0] sm:$0xff] %v1547
        %1556 = vst [vmem:[#allocation2 + $0x250] sm:$0xff] %v1548
        %1557 = vst [vmem:[#allocation2 + $0x2b0] sm:$0xff] %v1549
        %v1558 = vsel %vm1478, -1e+30, %v1388
        %v1559 = vsel %vm1479, -1e+30, %v1389
        %v1560 = vsel %vm1480, -1e+30, %v1390
        %v1561 = vsel %vm1481, -1e+30, %v1391
        %v1562 = vsel %vm1482, -1e+30, %v1392
        %v1563 = vsel %vm1483, -1e+30, %v1393
        %v1564 = vsel %vm1484, -1e+30, %v1394
        %v1565 = vsel %vm1485, -1e+30, %v1395
        %v1566 = vsel %vm1486, -1e+30, %v1396
        %v1567 = vsel %vm1487, -1e+30, %v1397
        %v1568 = vsel %vm1488, -1e+30, %v1398
        %v1569 = vsel %vm1489, -1e+30, %v1399
        %v1570 = vsel %vm1490, -1e+30, %v1400
        %v1571 = vsel %vm1491, -1e+30, %v1401
        %v1572 = vsel %vm1492, -1e+30, %v1402
        %v1573 = vsel %vm1493, -1e+30, %v1403
        %v1574 = vmax.f32 %v1558, %v1562
        %v1575 = vmax.f32 %v1559, %v1563
        %v1576 = vmax.f32 %v1560, %v1564
        %v1577 = vmax.f32 %v1561, %v1565
        %v1578 = vmax.f32 %v1574, %v1566
        %v1579 = vmax.f32 %v1575, %v1567
        %v1580 = vmax.f32 %v1576, %v1568
        %v1581 = vmax.f32 %v1577, %v1569
        %v1582 = vmax.f32 %v1578, %v1570
        %v1583 = vmax.f32 %v1579, %v1571
        %v1584 = vmax.f32 %v1580, %v1572
        %v1585 = vmax.f32 %v1581, %v1573
        %v1586 = vmax.f32 %v1582, %v1583
        %v1587 = vmax.f32 %v1584, %v1585
        %v1588 = vmax.f32 %v1586, %v1587
        %v1589 = vrot.slane %v1588, 4
        %v1590 = vmax.f32 %v1588, %v1589
        %v1591 = vrot.slane %v1590, 2
        %v1592 = vmax.f32 %v1590, %v1591
        %v1593 = vrot.slane %v1592, 1
        %v1594 = vmax.f32 %v1592, %v1593
        %vm1595 = vcmp.ge.f32.partialorder %v1558, %v1594
        %vm1596 = vcmp.ge.f32.partialorder %v1559, %v1594
        %vm1597 = vcmp.ge.f32.partialorder %v1560, %v1594
        %vm1598 = vcmp.ge.f32.partialorder %v1561, %v1594
        %vm1599 = vcmp.ge.f32.partialorder %v1562, %v1594
        %vm1600 = vcmp.ge.f32.partialorder %v1563, %v1594
        %vm1601 = vcmp.ge.f32.partialorder %v1564, %v1594
        %vm1602 = vcmp.ge.f32.partialorder %v1565, %v1594
        %vm1603 = vcmp.ge.f32.partialorder %v1566, %v1594
        %vm1604 = vcmp.ge.f32.partialorder %v1567, %v1594
        %vm1605 = vcmp.ge.f32.partialorder %v1568, %v1594
        %vm1606 = vcmp.ge.f32.partialorder %v1569, %v1594
        %vm1607 = vcmp.ge.f32.partialorder %v1570, %v1594
        %vm1608 = vcmp.ge.f32.partialorder %v1571, %v1594
        %vm1609 = vcmp.ge.f32.partialorder %v1572, %v1594
        %vm1610 = vcmp.ge.f32.partialorder %v1573, %v1594
        %v1611 = vsel %vm1595, %v1000, 128.0
        %v1612 = vsel %vm1596, %v1001, 128.0
        %v1613 = vsel %vm1597, %v1002, 128.0
        %v1614 = vsel %vm1598, %v1003, 128.0
        %v1615 = vsel %vm1599, %v1004, 128.0
        %v1616 = vsel %vm1600, %v1005, 128.0
        %v1617 = vsel %vm1601, %v1006, 128.0
        %v1618 = vsel %vm1602, %v1007, 128.0
        %v1619 = vsel %vm1603, %v1008, 128.0
        %v1620 = vsel %vm1604, %v1009, 128.0
        %v1621 = vsel %vm1605, %v1010, 128.0
        %v1622 = vsel %vm1606, %v1011, 128.0
        %v1623 = vsel %vm1607, %v1012, 128.0
        %v1624 = vsel %vm1608, %v1013, 128.0
        %v1625 = vsel %vm1609, %v1014, 128.0
        %v1626 = vsel %vm1610, %v1015, 128.0
        %v1627 = vmin.f32 %v1611, %v1615
        %v1628 = vmin.f32 %v1612, %v1616
        %v1629 = vmin.f32 %v1613, %v1617
        %v1630 = vmin.f32 %v1614, %v1618
        %v1631 = vmin.f32 %v1627, %v1619
        %v1632 = vmin.f32 %v1628, %v1620
        %v1633 = vmin.f32 %v1629, %v1621
        %v1634 = vmin.f32 %v1630, %v1622
        %v1635 = vmin.f32 %v1631, %v1623
        %v1636 = vmin.f32 %v1632, %v1624
        %v1637 = vmin.f32 %v1633, %v1625
        %v1638 = vmin.f32 %v1634, %v1626
        %v1639 = vmin.f32 %v1635, %v1636
        %v1640 = vmin.f32 %v1637, %v1638
        %v1641 = vmin.f32 %v1639, %v1640
        %v1642 = vrot.slane %v1641, 4
        %v1643 = vmin.f32 %v1641, %v1642
        %v1644 = vrot.slane %v1643, 2
        %v1645 = vmin.f32 %v1643, %v1644
        %v1646 = vrot.slane %v1645, 1
        %v1647 = vmin.f32 %v1645, %v1646
        %vm1648 = vcmp.eq.f32.partialorder %v1000, %v1647
        %vm1649 = vcmp.eq.f32.partialorder %v1001, %v1647
        %vm1650 = vcmp.eq.f32.partialorder %v1002, %v1647
        %vm1651 = vcmp.eq.f32.partialorder %v1003, %v1647
        %vm1652 = vcmp.eq.f32.partialorder %v1004, %v1647
        %vm1653 = vcmp.eq.f32.partialorder %v1005, %v1647
        %vm1654 = vcmp.eq.f32.partialorder %v1006, %v1647
        %vm1655 = vcmp.eq.f32.partialorder %v1007, %v1647
        %vm1656 = vcmp.eq.f32.partialorder %v1008, %v1647
        %vm1657 = vcmp.eq.f32.partialorder %v1009, %v1647
        %vm1658 = vcmp.eq.f32.partialorder %v1010, %v1647
        %vm1659 = vcmp.eq.f32.partialorder %v1011, %v1647
        %vm1660 = vcmp.eq.f32.partialorder %v1012, %v1647
        %vm1661 = vcmp.eq.f32.partialorder %v1013, %v1647
        %vm1662 = vcmp.eq.f32.partialorder %v1014, %v1647
        %vm1663 = vcmp.eq.f32.partialorder %v1015, %v1647
        %v1664 = vsel %vm1648, 1, 0
        %v1665 = vsel %vm1649, 1, 0
        %v1666 = vsel %vm1650, 1, 0
        %v1667 = vsel %vm1651, 1, 0
        %v1668 = vsel %vm1652, 1, 0
        %v1669 = vsel %vm1653, 1, 0
        %v1670 = vsel %vm1654, 1, 0
        %v1671 = vsel %vm1655, 1, 0
        %v1672 = vsel %vm1656, 1, 0
        %v1673 = vsel %vm1657, 1, 0
        %v1674 = vsel %vm1658, 1, 0
        %v1675 = vsel %vm1659, 1, 0
        %v1676 = vsel %vm1660, 1, 0
        %v1677 = vsel %vm1661, 1, 0
        %v1678 = vsel %vm1662, 1, 0
        %v1679 = vsel %vm1663, 1, 0
        %v1680 = vcvt.s32.f32 %v1664
        %v1681 = vcvt.s32.f32 %v1665
        %v1682 = vcvt.s32.f32 %v1666
        %v1683 = vcvt.s32.f32 %v1667
        %v1684 = vcvt.s32.f32 %v1668
        %v1685 = vcvt.s32.f32 %v1669
        %v1686 = vcvt.s32.f32 %v1670
        %v1687 = vcvt.s32.f32 %v1671
        %v1688 = vcvt.s32.f32 %v1672
        %v1689 = vcvt.s32.f32 %v1673
        %v1690 = vcvt.s32.f32 %v1674
        %v1691 = vcvt.s32.f32 %v1675
        %v1692 = vcvt.s32.f32 %v1676
        %v1693 = vcvt.s32.f32 %v1677
        %v1694 = vcvt.s32.f32 %v1678
        %v1695 = vcvt.s32.f32 %v1679
        %v1696 = vsub.f32 %v1680, %v1048
        %v1697 = vsub.f32 %v1681, %v1049
        %v1698 = vsub.f32 %v1682, %v1050
        %v1699 = vsub.f32 %v1683, %v1051
        %v1700 = vsub.f32 %v1684, %v1052
        %v1701 = vsub.f32 %v1685, %v1053
        %v1702 = vsub.f32 %v1686, %v1054
        %v1703 = vsub.f32 %v1687, %v1055
        %v1704 = vsub.f32 %v1688, %v1056
        %v1705 = vsub.f32 %v1689, %v1057
        %v1706 = vsub.f32 %v1690, %v1058
        %v1707 = vsub.f32 %v1691, %v1059
        %v1708 = vsub.f32 %v1692, %v1060
        %v1709 = vsub.f32 %v1693, %v1061
        %v1710 = vsub.f32 %v1694, %v1062
        %v1711 = vsub.f32 %v1695, %v1063
        %v1712 = vpack.c.bf16 %v1697, %v1696
        %v1713 = vpack.c.bf16 %v1699, %v1698
        %v1714 = vpack.c.bf16 %v1701, %v1700
        %v1715 = vpack.c.bf16 %v1703, %v1702
        %v1716 = vpack.c.bf16 %v1705, %v1704
        %v1717 = vpack.c.bf16 %v1707, %v1706
        %v1718 = vpack.c.bf16 %v1709, %v1708
        %v1719 = vpack.c.bf16 %v1711, %v1710
        %1720 = vst [vmem:[#allocation2 + $0x18] sm:$0xff] %v1712
        %1721 = vst [vmem:[#allocation2 + $0x78] sm:$0xff] %v1713
        %1722 = vst [vmem:[#allocation2 + $0xd8] sm:$0xff] %v1714
        %1723 = vst [vmem:[#allocation2 + $0x138] sm:$0xff] %v1715
        %1724 = vst [vmem:[#allocation2 + $0x198] sm:$0xff] %v1716
        %1725 = vst [vmem:[#allocation2 + $0x1f8] sm:$0xff] %v1717
        %1726 = vst [vmem:[#allocation2 + $0x258] sm:$0xff] %v1718
        %1727 = vst [vmem:[#allocation2 + $0x2b8] sm:$0xff] %v1719
        %v1728 = vsel %vm1648, -1e+30, %v1558
        %v1729 = vsel %vm1649, -1e+30, %v1559
        %v1730 = vsel %vm1650, -1e+30, %v1560
        %v1731 = vsel %vm1651, -1e+30, %v1561
        %v1732 = vsel %vm1652, -1e+30, %v1562
        %v1733 = vsel %vm1653, -1e+30, %v1563
        %v1734 = vsel %vm1654, -1e+30, %v1564
        %v1735 = vsel %vm1655, -1e+30, %v1565
        %v1736 = vsel %vm1656, -1e+30, %v1566
        %v1737 = vsel %vm1657, -1e+30, %v1567
        %v1738 = vsel %vm1658, -1e+30, %v1568
        %v1739 = vsel %vm1659, -1e+30, %v1569
        %v1740 = vsel %vm1660, -1e+30, %v1570
        %v1741 = vsel %vm1661, -1e+30, %v1571
        %v1742 = vsel %vm1662, -1e+30, %v1572
        %v1743 = vsel %vm1663, -1e+30, %v1573
        %v1744 = vmax.f32 %v1728, %v1732
        %v1745 = vmax.f32 %v1729, %v1733
        %v1746 = vmax.f32 %v1730, %v1734
        %v1747 = vmax.f32 %v1731, %v1735
        %v1748 = vmax.f32 %v1744, %v1736
        %v1749 = vmax.f32 %v1745, %v1737
        %v1750 = vmax.f32 %v1746, %v1738
        %v1751 = vmax.f32 %v1747, %v1739
        %v1752 = vmax.f32 %v1748, %v1740
        %v1753 = vmax.f32 %v1749, %v1741
        %v1754 = vmax.f32 %v1750, %v1742
        %v1755 = vmax.f32 %v1751, %v1743
        %v1756 = vmax.f32 %v1752, %v1753
        %v1757 = vmax.f32 %v1754, %v1755
        %v1758 = vmax.f32 %v1756, %v1757
        %v1759 = vrot.slane %v1758, 4
        %v1760 = vmax.f32 %v1758, %v1759
        %v1761 = vrot.slane %v1760, 2
        %v1762 = vmax.f32 %v1760, %v1761
        %v1763 = vrot.slane %v1762, 1
        %v1764 = vmax.f32 %v1762, %v1763
        %vm1765 = vcmp.ge.f32.partialorder %v1728, %v1764
        %vm1766 = vcmp.ge.f32.partialorder %v1729, %v1764
        %vm1767 = vcmp.ge.f32.partialorder %v1730, %v1764
        %vm1768 = vcmp.ge.f32.partialorder %v1731, %v1764
        %vm1769 = vcmp.ge.f32.partialorder %v1732, %v1764
        %vm1770 = vcmp.ge.f32.partialorder %v1733, %v1764
        %vm1771 = vcmp.ge.f32.partialorder %v1734, %v1764
        %vm1772 = vcmp.ge.f32.partialorder %v1735, %v1764
        %vm1773 = vcmp.ge.f32.partialorder %v1736, %v1764
        %vm1774 = vcmp.ge.f32.partialorder %v1737, %v1764
        %vm1775 = vcmp.ge.f32.partialorder %v1738, %v1764
        %vm1776 = vcmp.ge.f32.partialorder %v1739, %v1764
        %vm1777 = vcmp.ge.f32.partialorder %v1740, %v1764
        %vm1778 = vcmp.ge.f32.partialorder %v1741, %v1764
        %vm1779 = vcmp.ge.f32.partialorder %v1742, %v1764
        %vm1780 = vcmp.ge.f32.partialorder %v1743, %v1764
        %v1781 = vsel %vm1765, %v1000, 128.0
        %v1782 = vsel %vm1766, %v1001, 128.0
        %v1783 = vsel %vm1767, %v1002, 128.0
        %v1784 = vsel %vm1768, %v1003, 128.0
        %v1785 = vsel %vm1769, %v1004, 128.0
        %v1786 = vsel %vm1770, %v1005, 128.0
        %v1787 = vsel %vm1771, %v1006, 128.0
        %v1788 = vsel %vm1772, %v1007, 128.0
        %v1789 = vsel %vm1773, %v1008, 128.0
        %v1790 = vsel %vm1774, %v1009, 128.0
        %v1791 = vsel %vm1775, %v1010, 128.0
        %v1792 = vsel %vm1776, %v1011, 128.0
        %v1793 = vsel %vm1777, %v1012, 128.0
        %v1794 = vsel %vm1778, %v1013, 128.0
        %v1795 = vsel %vm1779, %v1014, 128.0
        %v1796 = vsel %vm1780, %v1015, 128.0
        %v1797 = vmin.f32 %v1781, %v1785
        %v1798 = vmin.f32 %v1782, %v1786
        %v1799 = vmin.f32 %v1783, %v1787
        %v1800 = vmin.f32 %v1784, %v1788
        %v1801 = vmin.f32 %v1797, %v1789
        %v1802 = vmin.f32 %v1798, %v1790
        %v1803 = vmin.f32 %v1799, %v1791
        %v1804 = vmin.f32 %v1800, %v1792
        %v1805 = vmin.f32 %v1801, %v1793
        %v1806 = vmin.f32 %v1802, %v1794
        %v1807 = vmin.f32 %v1803, %v1795
        %v1808 = vmin.f32 %v1804, %v1796
        %v1809 = vmin.f32 %v1805, %v1806
        %v1810 = vmin.f32 %v1807, %v1808
        %v1811 = vmin.f32 %v1809, %v1810
        %v1812 = vrot.slane %v1811, 4
        %v1813 = vmin.f32 %v1811, %v1812
        %v1814 = vrot.slane %v1813, 2
        %v1815 = vmin.f32 %v1813, %v1814
        %v1816 = vrot.slane %v1815, 1
        %v1817 = vmin.f32 %v1815, %v1816
        %vm1818 = vcmp.eq.f32.partialorder %v1000, %v1817
        %vm1819 = vcmp.eq.f32.partialorder %v1001, %v1817
        %vm1820 = vcmp.eq.f32.partialorder %v1002, %v1817
        %vm1821 = vcmp.eq.f32.partialorder %v1003, %v1817
        %vm1822 = vcmp.eq.f32.partialorder %v1004, %v1817
        %vm1823 = vcmp.eq.f32.partialorder %v1005, %v1817
        %vm1824 = vcmp.eq.f32.partialorder %v1006, %v1817
        %vm1825 = vcmp.eq.f32.partialorder %v1007, %v1817
        %vm1826 = vcmp.eq.f32.partialorder %v1008, %v1817
        %vm1827 = vcmp.eq.f32.partialorder %v1009, %v1817
        %vm1828 = vcmp.eq.f32.partialorder %v1010, %v1817
        %vm1829 = vcmp.eq.f32.partialorder %v1011, %v1817
        %vm1830 = vcmp.eq.f32.partialorder %v1012, %v1817
        %vm1831 = vcmp.eq.f32.partialorder %v1013, %v1817
        %vm1832 = vcmp.eq.f32.partialorder %v1014, %v1817
        %vm1833 = vcmp.eq.f32.partialorder %v1015, %v1817
        %v1834 = vsel %vm1818, 1, 0
        %v1835 = vsel %vm1819, 1, 0
        %v1836 = vsel %vm1820, 1, 0
        %v1837 = vsel %vm1821, 1, 0
        %v1838 = vsel %vm1822, 1, 0
        %v1839 = vsel %vm1823, 1, 0
        %v1840 = vsel %vm1824, 1, 0
        %v1841 = vsel %vm1825, 1, 0
        %v1842 = vsel %vm1826, 1, 0
        %v1843 = vsel %vm1827, 1, 0
        %v1844 = vsel %vm1828, 1, 0
        %v1845 = vsel %vm1829, 1, 0
        %v1846 = vsel %vm1830, 1, 0
        %v1847 = vsel %vm1831, 1, 0
        %v1848 = vsel %vm1832, 1, 0
        %v1849 = vsel %vm1833, 1, 0
        %v1850 = vcvt.s32.f32 %v1834
        %v1851 = vcvt.s32.f32 %v1835
        %v1852 = vcvt.s32.f32 %v1836
        %v1853 = vcvt.s32.f32 %v1837
        %v1854 = vcvt.s32.f32 %v1838
        %v1855 = vcvt.s32.f32 %v1839
        %v1856 = vcvt.s32.f32 %v1840
        %v1857 = vcvt.s32.f32 %v1841
        %v1858 = vcvt.s32.f32 %v1842
        %v1859 = vcvt.s32.f32 %v1843
        %v1860 = vcvt.s32.f32 %v1844
        %v1861 = vcvt.s32.f32 %v1845
        %v1862 = vcvt.s32.f32 %v1846
        %v1863 = vcvt.s32.f32 %v1847
        %v1864 = vcvt.s32.f32 %v1848
        %v1865 = vcvt.s32.f32 %v1849
        %v1866 = vsub.f32 %v1850, %v1048
        %v1867 = vsub.f32 %v1851, %v1049
        %v1868 = vsub.f32 %v1852, %v1050
        %v1869 = vsub.f32 %v1853, %v1051
        %v1870 = vsub.f32 %v1854, %v1052
        %v1871 = vsub.f32 %v1855, %v1053
        %v1872 = vsub.f32 %v1856, %v1054
        %v1873 = vsub.f32 %v1857, %v1055
        %v1874 = vsub.f32 %v1858, %v1056
        %v1875 = vsub.f32 %v1859, %v1057
        %v1876 = vsub.f32 %v1860, %v1058
        %v1877 = vsub.f32 %v1861, %v1059
        %v1878 = vsub.f32 %v1862, %v1060
        %v1879 = vsub.f32 %v1863, %v1061
        %v1880 = vsub.f32 %v1864, %v1062
        %v1881 = vsub.f32 %v1865, %v1063
        %v1882 = vpack.c.bf16 %v1867, %v1866
        %v1883 = vpack.c.bf16 %v1869, %v1868
        %v1884 = vpack.c.bf16 %v1871, %v1870
        %v1885 = vpack.c.bf16 %v1873, %v1872
        %v1886 = vpack.c.bf16 %v1875, %v1874
        %v1887 = vpack.c.bf16 %v1877, %v1876
        %v1888 = vpack.c.bf16 %v1879, %v1878
        %v1889 = vpack.c.bf16 %v1881, %v1880
        %1890 = vst [vmem:[#allocation2 + $0x20] sm:$0xff] %v1882
        %1891 = vst [vmem:[#allocation2 + $0x80] sm:$0xff] %v1883
        %1892 = vst [vmem:[#allocation2 + $0xe0] sm:$0xff] %v1884
        %1893 = vst [vmem:[#allocation2 + $0x140] sm:$0xff] %v1885
        %1894 = vst [vmem:[#allocation2 + $0x1a0] sm:$0xff] %v1886
        %1895 = vst [vmem:[#allocation2 + $0x200] sm:$0xff] %v1887
        %1896 = vst [vmem:[#allocation2 + $0x260] sm:$0xff] %v1888
        %1897 = vst [vmem:[#allocation2 + $0x2c0] sm:$0xff] %v1889
        %v1898 = vsel %vm1818, -1e+30, %v1728
        %v1899 = vsel %vm1819, -1e+30, %v1729
        %v1900 = vsel %vm1820, -1e+30, %v1730
        %v1901 = vsel %vm1821, -1e+30, %v1731
        %v1902 = vsel %vm1822, -1e+30, %v1732
        %v1903 = vsel %vm1823, -1e+30, %v1733
        %v1904 = vsel %vm1824, -1e+30, %v1734
        %v1905 = vsel %vm1825, -1e+30, %v1735
        %v1906 = vsel %vm1826, -1e+30, %v1736
        %v1907 = vsel %vm1827, -1e+30, %v1737
        %v1908 = vsel %vm1828, -1e+30, %v1738
        %v1909 = vsel %vm1829, -1e+30, %v1739
        %v1910 = vsel %vm1830, -1e+30, %v1740
        %v1911 = vsel %vm1831, -1e+30, %v1741
        %v1912 = vsel %vm1832, -1e+30, %v1742
        %v1913 = vsel %vm1833, -1e+30, %v1743
        %v1914 = vmax.f32 %v1898, %v1902
        %v1915 = vmax.f32 %v1899, %v1903
        %v1916 = vmax.f32 %v1900, %v1904
        %v1917 = vmax.f32 %v1901, %v1905
        %v1918 = vmax.f32 %v1914, %v1906
        %v1919 = vmax.f32 %v1915, %v1907
        %v1920 = vmax.f32 %v1916, %v1908
        %v1921 = vmax.f32 %v1917, %v1909
        %v1922 = vmax.f32 %v1918, %v1910
        %v1923 = vmax.f32 %v1919, %v1911
        %v1924 = vmax.f32 %v1920, %v1912
        %v1925 = vmax.f32 %v1921, %v1913
        %v1926 = vmax.f32 %v1922, %v1923
        %v1927 = vmax.f32 %v1924, %v1925
        %v1928 = vmax.f32 %v1926, %v1927
        %v1929 = vrot.slane %v1928, 4
        %v1930 = vmax.f32 %v1928, %v1929
        %v1931 = vrot.slane %v1930, 2
        %v1932 = vmax.f32 %v1930, %v1931
        %v1933 = vrot.slane %v1932, 1
        %v1934 = vmax.f32 %v1932, %v1933
        %vm1935 = vcmp.ge.f32.partialorder %v1898, %v1934
        %vm1936 = vcmp.ge.f32.partialorder %v1899, %v1934
        %vm1937 = vcmp.ge.f32.partialorder %v1900, %v1934
        %vm1938 = vcmp.ge.f32.partialorder %v1901, %v1934
        %vm1939 = vcmp.ge.f32.partialorder %v1902, %v1934
        %vm1940 = vcmp.ge.f32.partialorder %v1903, %v1934
        %vm1941 = vcmp.ge.f32.partialorder %v1904, %v1934
        %vm1942 = vcmp.ge.f32.partialorder %v1905, %v1934
        %vm1943 = vcmp.ge.f32.partialorder %v1906, %v1934
        %vm1944 = vcmp.ge.f32.partialorder %v1907, %v1934
        %vm1945 = vcmp.ge.f32.partialorder %v1908, %v1934
        %vm1946 = vcmp.ge.f32.partialorder %v1909, %v1934
        %vm1947 = vcmp.ge.f32.partialorder %v1910, %v1934
        %vm1948 = vcmp.ge.f32.partialorder %v1911, %v1934
        %vm1949 = vcmp.ge.f32.partialorder %v1912, %v1934
        %vm1950 = vcmp.ge.f32.partialorder %v1913, %v1934
        %v1951 = vsel %vm1935, %v1000, 128.0
        %v1952 = vsel %vm1936, %v1001, 128.0
        %v1953 = vsel %vm1937, %v1002, 128.0
        %v1954 = vsel %vm1938, %v1003, 128.0
        %v1955 = vsel %vm1939, %v1004, 128.0
        %v1956 = vsel %vm1940, %v1005, 128.0
        %v1957 = vsel %vm1941, %v1006, 128.0
        %v1958 = vsel %vm1942, %v1007, 128.0
        %v1959 = vsel %vm1943, %v1008, 128.0
        %v1960 = vsel %vm1944, %v1009, 128.0
        %v1961 = vsel %vm1945, %v1010, 128.0
        %v1962 = vsel %vm1946, %v1011, 128.0
        %v1963 = vsel %vm1947, %v1012, 128.0
        %v1964 = vsel %vm1948, %v1013, 128.0
        %v1965 = vsel %vm1949, %v1014, 128.0
        %v1966 = vsel %vm1950, %v1015, 128.0
        %v1967 = vmin.f32 %v1951, %v1955
        %v1968 = vmin.f32 %v1952, %v1956
        %v1969 = vmin.f32 %v1953, %v1957
        %v1970 = vmin.f32 %v1954, %v1958
        %v1971 = vmin.f32 %v1967, %v1959
        %v1972 = vmin.f32 %v1968, %v1960
        %v1973 = vmin.f32 %v1969, %v1961
        %v1974 = vmin.f32 %v1970, %v1962
        %v1975 = vmin.f32 %v1971, %v1963
        %v1976 = vmin.f32 %v1972, %v1964
        %v1977 = vmin.f32 %v1973, %v1965
        %v1978 = vmin.f32 %v1974, %v1966
        %v1979 = vmin.f32 %v1975, %v1976
        %v1980 = vmin.f32 %v1977, %v1978
        %v1981 = vmin.f32 %v1979, %v1980
        %v1982 = vrot.slane %v1981, 4
        %v1983 = vmin.f32 %v1981, %v1982
        %v1984 = vrot.slane %v1983, 2
        %v1985 = vmin.f32 %v1983, %v1984
        %v1986 = vrot.slane %v1985, 1
        %v1987 = vmin.f32 %v1985, %v1986
        %vm1988 = vcmp.eq.f32.partialorder %v1000, %v1987
        %vm1989 = vcmp.eq.f32.partialorder %v1001, %v1987
        %vm1990 = vcmp.eq.f32.partialorder %v1002, %v1987
        %vm1991 = vcmp.eq.f32.partialorder %v1003, %v1987
        %vm1992 = vcmp.eq.f32.partialorder %v1004, %v1987
        %vm1993 = vcmp.eq.f32.partialorder %v1005, %v1987
        %vm1994 = vcmp.eq.f32.partialorder %v1006, %v1987
        %vm1995 = vcmp.eq.f32.partialorder %v1007, %v1987
        %vm1996 = vcmp.eq.f32.partialorder %v1008, %v1987
        %vm1997 = vcmp.eq.f32.partialorder %v1009, %v1987
        %vm1998 = vcmp.eq.f32.partialorder %v1010, %v1987
        %vm1999 = vcmp.eq.f32.partialorder %v1011, %v1987
        %vm2000 = vcmp.eq.f32.partialorder %v1012, %v1987
        %vm2001 = vcmp.eq.f32.partialorder %v1013, %v1987
        %vm2002 = vcmp.eq.f32.partialorder %v1014, %v1987
        %vm2003 = vcmp.eq.f32.partialorder %v1015, %v1987
        %v2004 = vsel %vm1988, 1, 0
        %v2005 = vsel %vm1989, 1, 0
        %v2006 = vsel %vm1990, 1, 0
        %v2007 = vsel %vm1991, 1, 0
        %v2008 = vsel %vm1992, 1, 0
        %v2009 = vsel %vm1993, 1, 0
        %v2010 = vsel %vm1994, 1, 0
        %v2011 = vsel %vm1995, 1, 0
        %v2012 = vsel %vm1996, 1, 0
        %v2013 = vsel %vm1997, 1, 0
        %v2014 = vsel %vm1998, 1, 0
        %v2015 = vsel %vm1999, 1, 0
        %v2016 = vsel %vm2000, 1, 0
        %v2017 = vsel %vm2001, 1, 0
        %v2018 = vsel %vm2002, 1, 0
        %v2019 = vsel %vm2003, 1, 0
        %v2020 = vcvt.s32.f32 %v2004
        %v2021 = vcvt.s32.f32 %v2005
        %v2022 = vcvt.s32.f32 %v2006
        %v2023 = vcvt.s32.f32 %v2007
        %v2024 = vcvt.s32.f32 %v2008
        %v2025 = vcvt.s32.f32 %v2009
        %v2026 = vcvt.s32.f32 %v2010
        %v2027 = vcvt.s32.f32 %v2011
        %v2028 = vcvt.s32.f32 %v2012
        %v2029 = vcvt.s32.f32 %v2013
        %v2030 = vcvt.s32.f32 %v2014
        %v2031 = vcvt.s32.f32 %v2015
        %v2032 = vcvt.s32.f32 %v2016
        %v2033 = vcvt.s32.f32 %v2017
        %v2034 = vcvt.s32.f32 %v2018
        %v2035 = vcvt.s32.f32 %v2019
        %v2036 = vsub.f32 %v2020, %v1048
        %v2037 = vsub.f32 %v2021, %v1049
        %v2038 = vsub.f32 %v2022, %v1050
        %v2039 = vsub.f32 %v2023, %v1051
        %v2040 = vsub.f32 %v2024, %v1052
        %v2041 = vsub.f32 %v2025, %v1053
        %v2042 = vsub.f32 %v2026, %v1054
        %v2043 = vsub.f32 %v2027, %v1055
        %v2044 = vsub.f32 %v2028, %v1056
        %v2045 = vsub.f32 %v2029, %v1057
        %v2046 = vsub.f32 %v2030, %v1058
        %v2047 = vsub.f32 %v2031, %v1059
        %v2048 = vsub.f32 %v2032, %v1060
        %v2049 = vsub.f32 %v2033, %v1061
        %v2050 = vsub.f32 %v2034, %v1062
        %v2051 = vsub.f32 %v2035, %v1063
        %v2052 = vpack.c.bf16 %v2037, %v2036
        %v2053 = vpack.c.bf16 %v2039, %v2038
        %v2054 = vpack.c.bf16 %v2041, %v2040
        %v2055 = vpack.c.bf16 %v2043, %v2042
        %v2056 = vpack.c.bf16 %v2045, %v2044
        %v2057 = vpack.c.bf16 %v2047, %v2046
        %v2058 = vpack.c.bf16 %v2049, %v2048
        %v2059 = vpack.c.bf16 %v2051, %v2050
        %2060 = vst [vmem:[#allocation2 + $0x28] sm:$0xff] %v2052
        %2061 = vst [vmem:[#allocation2 + $0x88] sm:$0xff] %v2053
        %2062 = vst [vmem:[#allocation2 + $0xe8] sm:$0xff] %v2054
        %2063 = vst [vmem:[#allocation2 + $0x148] sm:$0xff] %v2055
        %2064 = vst [vmem:[#allocation2 + $0x1a8] sm:$0xff] %v2056
        %2065 = vst [vmem:[#allocation2 + $0x208] sm:$0xff] %v2057
        %2066 = vst [vmem:[#allocation2 + $0x268] sm:$0xff] %v2058
        %2067 = vst [vmem:[#allocation2 + $0x2c8] sm:$0xff] %v2059
        %v2068 = vsel %vm1988, -1e+30, %v1898
        %v2069 = vsel %vm1989, -1e+30, %v1899
        %v2070 = vsel %vm1990, -1e+30, %v1900
        %v2071 = vsel %vm1991, -1e+30, %v1901
        %v2072 = vsel %vm1992, -1e+30, %v1902
        %v2073 = vsel %vm1993, -1e+30, %v1903
        %v2074 = vsel %vm1994, -1e+30, %v1904
        %v2075 = vsel %vm1995, -1e+30, %v1905
        %v2076 = vsel %vm1996, -1e+30, %v1906
        %v2077 = vsel %vm1997, -1e+30, %v1907
        %v2078 = vsel %vm1998, -1e+30, %v1908
        %v2079 = vsel %vm1999, -1e+30, %v1909
        %v2080 = vsel %vm2000, -1e+30, %v1910
        %v2081 = vsel %vm2001, -1e+30, %v1911
        %v2082 = vsel %vm2002, -1e+30, %v1912
        %v2083 = vsel %vm2003, -1e+30, %v1913
        %v2084 = vmax.f32 %v2068, %v2072
        %v2085 = vmax.f32 %v2069, %v2073
        %v2086 = vmax.f32 %v2070, %v2074
        %v2087 = vmax.f32 %v2071, %v2075
        %v2088 = vmax.f32 %v2084, %v2076
        %v2089 = vmax.f32 %v2085, %v2077
        %v2090 = vmax.f32 %v2086, %v2078
        %v2091 = vmax.f32 %v2087, %v2079
        %v2092 = vmax.f32 %v2088, %v2080
        %v2093 = vmax.f32 %v2089, %v2081
        %v2094 = vmax.f32 %v2090, %v2082
        %v2095 = vmax.f32 %v2091, %v2083
        %v2096 = vmax.f32 %v2092, %v2093
        %v2097 = vmax.f32 %v2094, %v2095
        %v2098 = vmax.f32 %v2096, %v2097
        %v2099 = vrot.slane %v2098, 4
        %v2100 = vmax.f32 %v2098, %v2099
        %v2101 = vrot.slane %v2100, 2
        %v2102 = vmax.f32 %v2100, %v2101
        %v2103 = vrot.slane %v2102, 1
        %v2104 = vmax.f32 %v2102, %v2103
        %vm2105 = vcmp.ge.f32.partialorder %v2068, %v2104
        %vm2106 = vcmp.ge.f32.partialorder %v2069, %v2104
        %vm2107 = vcmp.ge.f32.partialorder %v2070, %v2104
        %vm2108 = vcmp.ge.f32.partialorder %v2071, %v2104
        %vm2109 = vcmp.ge.f32.partialorder %v2072, %v2104
        %vm2110 = vcmp.ge.f32.partialorder %v2073, %v2104
        %vm2111 = vcmp.ge.f32.partialorder %v2074, %v2104
        %vm2112 = vcmp.ge.f32.partialorder %v2075, %v2104
        %vm2113 = vcmp.ge.f32.partialorder %v2076, %v2104
        %vm2114 = vcmp.ge.f32.partialorder %v2077, %v2104
        %vm2115 = vcmp.ge.f32.partialorder %v2078, %v2104
        %vm2116 = vcmp.ge.f32.partialorder %v2079, %v2104
        %vm2117 = vcmp.ge.f32.partialorder %v2080, %v2104
        %vm2118 = vcmp.ge.f32.partialorder %v2081, %v2104
        %vm2119 = vcmp.ge.f32.partialorder %v2082, %v2104
        %vm2120 = vcmp.ge.f32.partialorder %v2083, %v2104
        %v2121 = vsel %vm2105, %v1000, 128.0
        %v2122 = vsel %vm2106, %v1001, 128.0
        %v2123 = vsel %vm2107, %v1002, 128.0
        %v2124 = vsel %vm2108, %v1003, 128.0
        %v2125 = vsel %vm2109, %v1004, 128.0
        %v2126 = vsel %vm2110, %v1005, 128.0
        %v2127 = vsel %vm2111, %v1006, 128.0
        %v2128 = vsel %vm2112, %v1007, 128.0
        %v2129 = vsel %vm2113, %v1008, 128.0
        %v2130 = vsel %vm2114, %v1009, 128.0
        %v2131 = vsel %vm2115, %v1010, 128.0
        %v2132 = vsel %vm2116, %v1011, 128.0
        %v2133 = vsel %vm2117, %v1012, 128.0
        %v2134 = vsel %vm2118, %v1013, 128.0
        %v2135 = vsel %vm2119, %v1014, 128.0
        %v2136 = vsel %vm2120, %v1015, 128.0
        %v2137 = vmin.f32 %v2121, %v2125
        %v2138 = vmin.f32 %v2122, %v2126
        %v2139 = vmin.f32 %v2123, %v2127
        %v2140 = vmin.f32 %v2124, %v2128
        %v2141 = vmin.f32 %v2137, %v2129
        %v2142 = vmin.f32 %v2138, %v2130
        %v2143 = vmin.f32 %v2139, %v2131
        %v2144 = vmin.f32 %v2140, %v2132
        %v2145 = vmin.f32 %v2141, %v2133
        %v2146 = vmin.f32 %v2142, %v2134
        %v2147 = vmin.f32 %v2143, %v2135
        %v2148 = vmin.f32 %v2144, %v2136
        %v2149 = vmin.f32 %v2145, %v2146
        %v2150 = vmin.f32 %v2147, %v2148
        %v2151 = vmin.f32 %v2149, %v2150
        %v2152 = vrot.slane %v2151, 4
        %v2153 = vmin.f32 %v2151, %v2152
        %v2154 = vrot.slane %v2153, 2
        %v2155 = vmin.f32 %v2153, %v2154
        %v2156 = vrot.slane %v2155, 1
        %v2157 = vmin.f32 %v2155, %v2156
        %vm2158 = vcmp.eq.f32.partialorder %v1000, %v2157
        %vm2159 = vcmp.eq.f32.partialorder %v1001, %v2157
        %vm2160 = vcmp.eq.f32.partialorder %v1002, %v2157
        %vm2161 = vcmp.eq.f32.partialorder %v1003, %v2157
        %vm2162 = vcmp.eq.f32.partialorder %v1004, %v2157
        %vm2163 = vcmp.eq.f32.partialorder %v1005, %v2157
        %vm2164 = vcmp.eq.f32.partialorder %v1006, %v2157
        %vm2165 = vcmp.eq.f32.partialorder %v1007, %v2157
        %vm2166 = vcmp.eq.f32.partialorder %v1008, %v2157
        %vm2167 = vcmp.eq.f32.partialorder %v1009, %v2157
        %vm2168 = vcmp.eq.f32.partialorder %v1010, %v2157
        %vm2169 = vcmp.eq.f32.partialorder %v1011, %v2157
        %vm2170 = vcmp.eq.f32.partialorder %v1012, %v2157
        %vm2171 = vcmp.eq.f32.partialorder %v1013, %v2157
        %vm2172 = vcmp.eq.f32.partialorder %v1014, %v2157
        %vm2173 = vcmp.eq.f32.partialorder %v1015, %v2157
        %v2174 = vsel %vm2158, 1, 0
        %v2175 = vsel %vm2159, 1, 0
        %v2176 = vsel %vm2160, 1, 0
        %v2177 = vsel %vm2161, 1, 0
        %v2178 = vsel %vm2162, 1, 0
        %v2179 = vsel %vm2163, 1, 0
        %v2180 = vsel %vm2164, 1, 0
        %v2181 = vsel %vm2165, 1, 0
        %v2182 = vsel %vm2166, 1, 0
        %v2183 = vsel %vm2167, 1, 0
        %v2184 = vsel %vm2168, 1, 0
        %v2185 = vsel %vm2169, 1, 0
        %v2186 = vsel %vm2170, 1, 0
        %v2187 = vsel %vm2171, 1, 0
        %v2188 = vsel %vm2172, 1, 0
        %v2189 = vsel %vm2173, 1, 0
        %v2190 = vcvt.s32.f32 %v2174
        %v2191 = vcvt.s32.f32 %v2175
        %v2192 = vcvt.s32.f32 %v2176
        %v2193 = vcvt.s32.f32 %v2177
        %v2194 = vcvt.s32.f32 %v2178
        %v2195 = vcvt.s32.f32 %v2179
        %v2196 = vcvt.s32.f32 %v2180
        %v2197 = vcvt.s32.f32 %v2181
        %v2198 = vcvt.s32.f32 %v2182
        %v2199 = vcvt.s32.f32 %v2183
        %v2200 = vcvt.s32.f32 %v2184
        %v2201 = vcvt.s32.f32 %v2185
        %v2202 = vcvt.s32.f32 %v2186
        %v2203 = vcvt.s32.f32 %v2187
        %v2204 = vcvt.s32.f32 %v2188
        %v2205 = vcvt.s32.f32 %v2189
        %v2206 = vsub.f32 %v2190, %v1048
        %v2207 = vsub.f32 %v2191, %v1049
        %v2208 = vsub.f32 %v2192, %v1050
        %v2209 = vsub.f32 %v2193, %v1051
        %v2210 = vsub.f32 %v2194, %v1052
        %v2211 = vsub.f32 %v2195, %v1053
        %v2212 = vsub.f32 %v2196, %v1054
        %v2213 = vsub.f32 %v2197, %v1055
        %v2214 = vsub.f32 %v2198, %v1056
        %v2215 = vsub.f32 %v2199, %v1057
        %v2216 = vsub.f32 %v2200, %v1058
        %v2217 = vsub.f32 %v2201, %v1059
        %v2218 = vsub.f32 %v2202, %v1060
        %v2219 = vsub.f32 %v2203, %v1061
        %v2220 = vsub.f32 %v2204, %v1062
        %v2221 = vsub.f32 %v2205, %v1063
        %v2222 = vpack.c.bf16 %v2207, %v2206
        %v2223 = vpack.c.bf16 %v2209, %v2208
        %v2224 = vpack.c.bf16 %v2211, %v2210
        %v2225 = vpack.c.bf16 %v2213, %v2212
        %v2226 = vpack.c.bf16 %v2215, %v2214
        %v2227 = vpack.c.bf16 %v2217, %v2216
        %v2228 = vpack.c.bf16 %v2219, %v2218
        %v2229 = vpack.c.bf16 %v2221, %v2220
        %2230 = vst [vmem:[#allocation2 + $0x30] sm:$0xff] %v2222
        %2231 = vst [vmem:[#allocation2 + $0x90] sm:$0xff] %v2223
        %2232 = vst [vmem:[#allocation2 + $0xf0] sm:$0xff] %v2224
        %2233 = vst [vmem:[#allocation2 + $0x150] sm:$0xff] %v2225
        %2234 = vst [vmem:[#allocation2 + $0x1b0] sm:$0xff] %v2226
        %2235 = vst [vmem:[#allocation2 + $0x210] sm:$0xff] %v2227
        %2236 = vst [vmem:[#allocation2 + $0x270] sm:$0xff] %v2228
        %2237 = vst [vmem:[#allocation2 + $0x2d0] sm:$0xff] %v2229
        %v2238 = vsel %vm2158, -1e+30, %v2068
        %v2239 = vsel %vm2159, -1e+30, %v2069
        %v2240 = vsel %vm2160, -1e+30, %v2070
        %v2241 = vsel %vm2161, -1e+30, %v2071
        %v2242 = vsel %vm2162, -1e+30, %v2072
        %v2243 = vsel %vm2163, -1e+30, %v2073
        %v2244 = vsel %vm2164, -1e+30, %v2074
        %v2245 = vsel %vm2165, -1e+30, %v2075
        %v2246 = vsel %vm2166, -1e+30, %v2076
        %v2247 = vsel %vm2167, -1e+30, %v2077
        %v2248 = vsel %vm2168, -1e+30, %v2078
        %v2249 = vsel %vm2169, -1e+30, %v2079
        %v2250 = vsel %vm2170, -1e+30, %v2080
        %v2251 = vsel %vm2171, -1e+30, %v2081
        %v2252 = vsel %vm2172, -1e+30, %v2082
        %v2253 = vsel %vm2173, -1e+30, %v2083
        %v2254 = vmax.f32 %v2238, %v2242
        %v2255 = vmax.f32 %v2239, %v2243
        %v2256 = vmax.f32 %v2240, %v2244
        %v2257 = vmax.f32 %v2241, %v2245
        %v2258 = vmax.f32 %v2254, %v2246
        %v2259 = vmax.f32 %v2255, %v2247
        %v2260 = vmax.f32 %v2256, %v2248
        %v2261 = vmax.f32 %v2257, %v2249
        %v2262 = vmax.f32 %v2258, %v2250
        %v2263 = vmax.f32 %v2259, %v2251
        %v2264 = vmax.f32 %v2260, %v2252
        %v2265 = vmax.f32 %v2261, %v2253
        %v2266 = vmax.f32 %v2262, %v2263
        %v2267 = vmax.f32 %v2264, %v2265
        %v2268 = vmax.f32 %v2266, %v2267
        %v2269 = vrot.slane %v2268, 4
        %v2270 = vmax.f32 %v2268, %v2269
        %v2271 = vrot.slane %v2270, 2
        %v2272 = vmax.f32 %v2270, %v2271
        %v2273 = vrot.slane %v2272, 1
        %v2274 = vmax.f32 %v2272, %v2273
        %vm2275 = vcmp.ge.f32.partialorder %v2238, %v2274
        %vm2276 = vcmp.ge.f32.partialorder %v2239, %v2274
        %vm2277 = vcmp.ge.f32.partialorder %v2240, %v2274
        %vm2278 = vcmp.ge.f32.partialorder %v2241, %v2274
        %vm2279 = vcmp.ge.f32.partialorder %v2242, %v2274
        %vm2280 = vcmp.ge.f32.partialorder %v2243, %v2274
        %vm2281 = vcmp.ge.f32.partialorder %v2244, %v2274
        %vm2282 = vcmp.ge.f32.partialorder %v2245, %v2274
        %vm2283 = vcmp.ge.f32.partialorder %v2246, %v2274
        %vm2284 = vcmp.ge.f32.partialorder %v2247, %v2274
        %vm2285 = vcmp.ge.f32.partialorder %v2248, %v2274
        %vm2286 = vcmp.ge.f32.partialorder %v2249, %v2274
        %vm2287 = vcmp.ge.f32.partialorder %v2250, %v2274
        %vm2288 = vcmp.ge.f32.partialorder %v2251, %v2274
        %vm2289 = vcmp.ge.f32.partialorder %v2252, %v2274
        %vm2290 = vcmp.ge.f32.partialorder %v2253, %v2274
        %v2291 = vsel %vm2275, %v1000, 128.0
        %v2292 = vsel %vm2276, %v1001, 128.0
        %v2293 = vsel %vm2277, %v1002, 128.0
        %v2294 = vsel %vm2278, %v1003, 128.0
        %v2295 = vsel %vm2279, %v1004, 128.0
        %v2296 = vsel %vm2280, %v1005, 128.0
        %v2297 = vsel %vm2281, %v1006, 128.0
        %v2298 = vsel %vm2282, %v1007, 128.0
        %v2299 = vsel %vm2283, %v1008, 128.0
        %v2300 = vsel %vm2284, %v1009, 128.0
        %v2301 = vsel %vm2285, %v1010, 128.0
        %v2302 = vsel %vm2286, %v1011, 128.0
        %v2303 = vsel %vm2287, %v1012, 128.0
        %v2304 = vsel %vm2288, %v1013, 128.0
        %v2305 = vsel %vm2289, %v1014, 128.0
        %v2306 = vsel %vm2290, %v1015, 128.0
        %v2307 = vmin.f32 %v2291, %v2295
        %v2308 = vmin.f32 %v2292, %v2296
        %v2309 = vmin.f32 %v2293, %v2297
        %v2310 = vmin.f32 %v2294, %v2298
        %v2311 = vmin.f32 %v2307, %v2299
        %v2312 = vmin.f32 %v2308, %v2300
        %v2313 = vmin.f32 %v2309, %v2301
        %v2314 = vmin.f32 %v2310, %v2302
        %v2315 = vmin.f32 %v2311, %v2303
        %v2316 = vmin.f32 %v2312, %v2304
        %v2317 = vmin.f32 %v2313, %v2305
        %v2318 = vmin.f32 %v2314, %v2306
        %v2319 = vmin.f32 %v2315, %v2316
        %v2320 = vmin.f32 %v2317, %v2318
        %v2321 = vmin.f32 %v2319, %v2320
        %v2322 = vrot.slane %v2321, 4
        %v2323 = vmin.f32 %v2321, %v2322
        %v2324 = vrot.slane %v2323, 2
        %v2325 = vmin.f32 %v2323, %v2324
        %v2326 = vrot.slane %v2325, 1
        %v2327 = vmin.f32 %v2325, %v2326
        %vm2328 = vcmp.eq.f32.partialorder %v1000, %v2327
        %vm2329 = vcmp.eq.f32.partialorder %v1001, %v2327
        %vm2330 = vcmp.eq.f32.partialorder %v1002, %v2327
        %vm2331 = vcmp.eq.f32.partialorder %v1003, %v2327
        %vm2332 = vcmp.eq.f32.partialorder %v1004, %v2327
        %vm2333 = vcmp.eq.f32.partialorder %v1005, %v2327
        %vm2334 = vcmp.eq.f32.partialorder %v1006, %v2327
        %vm2335 = vcmp.eq.f32.partialorder %v1007, %v2327
        %vm2336 = vcmp.eq.f32.partialorder %v1008, %v2327
        %vm2337 = vcmp.eq.f32.partialorder %v1009, %v2327
        %vm2338 = vcmp.eq.f32.partialorder %v1010, %v2327
        %vm2339 = vcmp.eq.f32.partialorder %v1011, %v2327
        %vm2340 = vcmp.eq.f32.partialorder %v1012, %v2327
        %vm2341 = vcmp.eq.f32.partialorder %v1013, %v2327
        %vm2342 = vcmp.eq.f32.partialorder %v1014, %v2327
        %vm2343 = vcmp.eq.f32.partialorder %v1015, %v2327
        %v2344 = vsel %vm2328, 1, 0
        %v2345 = vsel %vm2329, 1, 0
        %v2346 = vsel %vm2330, 1, 0
        %v2347 = vsel %vm2331, 1, 0
        %v2348 = vsel %vm2332, 1, 0
        %v2349 = vsel %vm2333, 1, 0
        %v2350 = vsel %vm2334, 1, 0
        %v2351 = vsel %vm2335, 1, 0
        %v2352 = vsel %vm2336, 1, 0
        %v2353 = vsel %vm2337, 1, 0
        %v2354 = vsel %vm2338, 1, 0
        %v2355 = vsel %vm2339, 1, 0
        %v2356 = vsel %vm2340, 1, 0
        %v2357 = vsel %vm2341, 1, 0
        %v2358 = vsel %vm2342, 1, 0
        %v2359 = vsel %vm2343, 1, 0
        %v2360 = vcvt.s32.f32 %v2344
        %v2361 = vcvt.s32.f32 %v2345
        %v2362 = vcvt.s32.f32 %v2346
        %v2363 = vcvt.s32.f32 %v2347
        %v2364 = vcvt.s32.f32 %v2348
        %v2365 = vcvt.s32.f32 %v2349
        %v2366 = vcvt.s32.f32 %v2350
        %v2367 = vcvt.s32.f32 %v2351
        %v2368 = vcvt.s32.f32 %v2352
        %v2369 = vcvt.s32.f32 %v2353
        %v2370 = vcvt.s32.f32 %v2354
        %v2371 = vcvt.s32.f32 %v2355
        %v2372 = vcvt.s32.f32 %v2356
        %v2373 = vcvt.s32.f32 %v2357
        %v2374 = vcvt.s32.f32 %v2358
        %v2375 = vcvt.s32.f32 %v2359
        %v2376 = vsub.f32 %v2360, %v1048
        %v2377 = vsub.f32 %v2361, %v1049
        %v2378 = vsub.f32 %v2362, %v1050
        %v2379 = vsub.f32 %v2363, %v1051
        %v2380 = vsub.f32 %v2364, %v1052
        %v2381 = vsub.f32 %v2365, %v1053
        %v2382 = vsub.f32 %v2366, %v1054
        %v2383 = vsub.f32 %v2367, %v1055
        %v2384 = vsub.f32 %v2368, %v1056
        %v2385 = vsub.f32 %v2369, %v1057
        %v2386 = vsub.f32 %v2370, %v1058
        %v2387 = vsub.f32 %v2371, %v1059
        %v2388 = vsub.f32 %v2372, %v1060
        %v2389 = vsub.f32 %v2373, %v1061
        %v2390 = vsub.f32 %v2374, %v1062
        %v2391 = vsub.f32 %v2375, %v1063
        %v2392 = vpack.c.bf16 %v2377, %v2376
        %v2393 = vpack.c.bf16 %v2379, %v2378
        %v2394 = vpack.c.bf16 %v2381, %v2380
        %v2395 = vpack.c.bf16 %v2383, %v2382
        %v2396 = vpack.c.bf16 %v2385, %v2384
        %v2397 = vpack.c.bf16 %v2387, %v2386
        %v2398 = vpack.c.bf16 %v2389, %v2388
        %v2399 = vpack.c.bf16 %v2391, %v2390
        %2400 = vst [vmem:[#allocation2 + $0x38] sm:$0xff] %v2392
        %2401 = vst [vmem:[#allocation2 + $0x98] sm:$0xff] %v2393
        %2402 = vst [vmem:[#allocation2 + $0xf8] sm:$0xff] %v2394
        %2403 = vst [vmem:[#allocation2 + $0x158] sm:$0xff] %v2395
        %2404 = vst [vmem:[#allocation2 + $0x1b8] sm:$0xff] %v2396
        %2405 = vst [vmem:[#allocation2 + $0x218] sm:$0xff] %v2397
        %2406 = vst [vmem:[#allocation2 + $0x278] sm:$0xff] %v2398
        %2407 = vst [vmem:[#allocation2 + $0x2d8] sm:$0xff] %v2399
        %v2408 = vsel %vm2328, -1e+30, %v2238
        %v2409 = vsel %vm2329, -1e+30, %v2239
        %v2410 = vsel %vm2330, -1e+30, %v2240
        %v2411 = vsel %vm2331, -1e+30, %v2241
        %v2412 = vsel %vm2332, -1e+30, %v2242
        %v2413 = vsel %vm2333, -1e+30, %v2243
        %v2414 = vsel %vm2334, -1e+30, %v2244
        %v2415 = vsel %vm2335, -1e+30, %v2245
        %v2416 = vsel %vm2336, -1e+30, %v2246
        %v2417 = vsel %vm2337, -1e+30, %v2247
        %v2418 = vsel %vm2338, -1e+30, %v2248
        %v2419 = vsel %vm2339, -1e+30, %v2249
        %v2420 = vsel %vm2340, -1e+30, %v2250
        %v2421 = vsel %vm2341, -1e+30, %v2251
        %v2422 = vsel %vm2342, -1e+30, %v2252
        %v2423 = vsel %vm2343, -1e+30, %v2253
        %v2424 = vmax.f32 %v2408, %v2412
        %v2425 = vmax.f32 %v2409, %v2413
        %v2426 = vmax.f32 %v2410, %v2414
        %v2427 = vmax.f32 %v2411, %v2415
        %v2428 = vmax.f32 %v2424, %v2416
        %v2429 = vmax.f32 %v2425, %v2417
        %v2430 = vmax.f32 %v2426, %v2418
        %v2431 = vmax.f32 %v2427, %v2419
        %v2432 = vmax.f32 %v2428, %v2420
        %v2433 = vmax.f32 %v2429, %v2421
        %v2434 = vmax.f32 %v2430, %v2422
        %v2435 = vmax.f32 %v2431, %v2423
        %v2436 = vmax.f32 %v2432, %v2433
        %v2437 = vmax.f32 %v2434, %v2435
        %v2438 = vmax.f32 %v2436, %v2437
        %v2439 = vrot.slane %v2438, 4
        %v2440 = vmax.f32 %v2438, %v2439
        %v2441 = vrot.slane %v2440, 2
        %v2442 = vmax.f32 %v2440, %v2441
        %v2443 = vrot.slane %v2442, 1
        %v2444 = vmax.f32 %v2442, %v2443
        %vm2445 = vcmp.ge.f32.partialorder %v2408, %v2444
        %vm2446 = vcmp.ge.f32.partialorder %v2409, %v2444
        %vm2447 = vcmp.ge.f32.partialorder %v2410, %v2444
        %vm2448 = vcmp.ge.f32.partialorder %v2411, %v2444
        %vm2449 = vcmp.ge.f32.partialorder %v2412, %v2444
        %vm2450 = vcmp.ge.f32.partialorder %v2413, %v2444
        %vm2451 = vcmp.ge.f32.partialorder %v2414, %v2444
        %vm2452 = vcmp.ge.f32.partialorder %v2415, %v2444
        %vm2453 = vcmp.ge.f32.partialorder %v2416, %v2444
        %vm2454 = vcmp.ge.f32.partialorder %v2417, %v2444
        %vm2455 = vcmp.ge.f32.partialorder %v2418, %v2444
        %vm2456 = vcmp.ge.f32.partialorder %v2419, %v2444
        %vm2457 = vcmp.ge.f32.partialorder %v2420, %v2444
        %vm2458 = vcmp.ge.f32.partialorder %v2421, %v2444
        %vm2459 = vcmp.ge.f32.partialorder %v2422, %v2444
        %vm2460 = vcmp.ge.f32.partialorder %v2423, %v2444
        %v2461 = vsel %vm2445, %v1000, 128.0
        %v2462 = vsel %vm2446, %v1001, 128.0
        %v2463 = vsel %vm2447, %v1002, 128.0
        %v2464 = vsel %vm2448, %v1003, 128.0
        %v2465 = vsel %vm2449, %v1004, 128.0
        %v2466 = vsel %vm2450, %v1005, 128.0
        %v2467 = vsel %vm2451, %v1006, 128.0
        %v2468 = vsel %vm2452, %v1007, 128.0
        %v2469 = vsel %vm2453, %v1008, 128.0
        %v2470 = vsel %vm2454, %v1009, 128.0
        %v2471 = vsel %vm2455, %v1010, 128.0
        %v2472 = vsel %vm2456, %v1011, 128.0
        %v2473 = vsel %vm2457, %v1012, 128.0
        %v2474 = vsel %vm2458, %v1013, 128.0
        %v2475 = vsel %vm2459, %v1014, 128.0
        %v2476 = vsel %vm2460, %v1015, 128.0
        %v2477 = vmin.f32 %v2461, %v2465
        %v2478 = vmin.f32 %v2462, %v2466
        %v2479 = vmin.f32 %v2463, %v2467
        %v2480 = vmin.f32 %v2464, %v2468
        %v2481 = vmin.f32 %v2477, %v2469
        %v2482 = vmin.f32 %v2478, %v2470
        %v2483 = vmin.f32 %v2479, %v2471
        %v2484 = vmin.f32 %v2480, %v2472
        %v2485 = vmin.f32 %v2481, %v2473
        %v2486 = vmin.f32 %v2482, %v2474
        %v2487 = vmin.f32 %v2483, %v2475
        %v2488 = vmin.f32 %v2484, %v2476
        %v2489 = vmin.f32 %v2485, %v2486
        %v2490 = vmin.f32 %v2487, %v2488
        %v2491 = vmin.f32 %v2489, %v2490
        %v2492 = vrot.slane %v2491, 4
        %v2493 = vmin.f32 %v2491, %v2492
        %v2494 = vrot.slane %v2493, 2
        %v2495 = vmin.f32 %v2493, %v2494
        %v2496 = vrot.slane %v2495, 1
        %v2497 = vmin.f32 %v2495, %v2496
        %vm2498 = vcmp.eq.f32.partialorder %v1000, %v2497
        %vm2499 = vcmp.eq.f32.partialorder %v1001, %v2497
        %vm2500 = vcmp.eq.f32.partialorder %v1002, %v2497
        %vm2501 = vcmp.eq.f32.partialorder %v1003, %v2497
        %vm2502 = vcmp.eq.f32.partialorder %v1004, %v2497
        %vm2503 = vcmp.eq.f32.partialorder %v1005, %v2497
        %vm2504 = vcmp.eq.f32.partialorder %v1006, %v2497
        %vm2505 = vcmp.eq.f32.partialorder %v1007, %v2497
        %vm2506 = vcmp.eq.f32.partialorder %v1008, %v2497
        %vm2507 = vcmp.eq.f32.partialorder %v1009, %v2497
        %vm2508 = vcmp.eq.f32.partialorder %v1010, %v2497
        %vm2509 = vcmp.eq.f32.partialorder %v1011, %v2497
        %vm2510 = vcmp.eq.f32.partialorder %v1012, %v2497
        %vm2511 = vcmp.eq.f32.partialorder %v1013, %v2497
        %vm2512 = vcmp.eq.f32.partialorder %v1014, %v2497
        %vm2513 = vcmp.eq.f32.partialorder %v1015, %v2497
        %v2514 = vsel %vm2498, 1, 0
        %v2515 = vsel %vm2499, 1, 0
        %v2516 = vsel %vm2500, 1, 0
        %v2517 = vsel %vm2501, 1, 0
        %v2518 = vsel %vm2502, 1, 0
        %v2519 = vsel %vm2503, 1, 0
        %v2520 = vsel %vm2504, 1, 0
        %v2521 = vsel %vm2505, 1, 0
        %v2522 = vsel %vm2506, 1, 0
        %v2523 = vsel %vm2507, 1, 0
        %v2524 = vsel %vm2508, 1, 0
        %v2525 = vsel %vm2509, 1, 0
        %v2526 = vsel %vm2510, 1, 0
        %v2527 = vsel %vm2511, 1, 0
        %v2528 = vsel %vm2512, 1, 0
        %v2529 = vsel %vm2513, 1, 0
        %v2530 = vcvt.s32.f32 %v2514
        %v2531 = vcvt.s32.f32 %v2515
        %v2532 = vcvt.s32.f32 %v2516
        %v2533 = vcvt.s32.f32 %v2517
        %v2534 = vcvt.s32.f32 %v2518
        %v2535 = vcvt.s32.f32 %v2519
        %v2536 = vcvt.s32.f32 %v2520
        %v2537 = vcvt.s32.f32 %v2521
        %v2538 = vcvt.s32.f32 %v2522
        %v2539 = vcvt.s32.f32 %v2523
        %v2540 = vcvt.s32.f32 %v2524
        %v2541 = vcvt.s32.f32 %v2525
        %v2542 = vcvt.s32.f32 %v2526
        %v2543 = vcvt.s32.f32 %v2527
        %v2544 = vcvt.s32.f32 %v2528
        %v2545 = vcvt.s32.f32 %v2529
        %v2546 = vsub.f32 %v2530, %v1048
        %v2547 = vsub.f32 %v2531, %v1049
        %v2548 = vsub.f32 %v2532, %v1050
        %v2549 = vsub.f32 %v2533, %v1051
        %v2550 = vsub.f32 %v2534, %v1052
        %v2551 = vsub.f32 %v2535, %v1053
        %v2552 = vsub.f32 %v2536, %v1054
        %v2553 = vsub.f32 %v2537, %v1055
        %v2554 = vsub.f32 %v2538, %v1056
        %v2555 = vsub.f32 %v2539, %v1057
        %v2556 = vsub.f32 %v2540, %v1058
        %v2557 = vsub.f32 %v2541, %v1059
        %v2558 = vsub.f32 %v2542, %v1060
        %v2559 = vsub.f32 %v2543, %v1061
        %v2560 = vsub.f32 %v2544, %v1062
        %v2561 = vsub.f32 %v2545, %v1063
        %v2562 = vpack.c.bf16 %v2547, %v2546
        %v2563 = vpack.c.bf16 %v2549, %v2548
        %v2564 = vpack.c.bf16 %v2551, %v2550
        %v2565 = vpack.c.bf16 %v2553, %v2552
        %v2566 = vpack.c.bf16 %v2555, %v2554
        %v2567 = vpack.c.bf16 %v2557, %v2556
        %v2568 = vpack.c.bf16 %v2559, %v2558
        %v2569 = vpack.c.bf16 %v2561, %v2560
        %2570 = vst [vmem:[#allocation2 + $0x40] sm:$0xff] %v2562
        %2571 = vst [vmem:[#allocation2 + $0xa0] sm:$0xff] %v2563
        %2572 = vst [vmem:[#allocation2 + $0x100] sm:$0xff] %v2564
        %2573 = vst [vmem:[#allocation2 + $0x160] sm:$0xff] %v2565
        %2574 = vst [vmem:[#allocation2 + $0x1c0] sm:$0xff] %v2566
        %2575 = vst [vmem:[#allocation2 + $0x220] sm:$0xff] %v2567
        %2576 = vst [vmem:[#allocation2 + $0x280] sm:$0xff] %v2568
        %2577 = vst [vmem:[#allocation2 + $0x2e0] sm:$0xff] %v2569
        %v2578 = vsel %vm2498, -1e+30, %v2408
        %v2579 = vsel %vm2499, -1e+30, %v2409
        %v2580 = vsel %vm2500, -1e+30, %v2410
        %v2581 = vsel %vm2501, -1e+30, %v2411
        %v2582 = vsel %vm2502, -1e+30, %v2412
        %v2583 = vsel %vm2503, -1e+30, %v2413
        %v2584 = vsel %vm2504, -1e+30, %v2414
        %v2585 = vsel %vm2505, -1e+30, %v2415
        %v2586 = vsel %vm2506, -1e+30, %v2416
        %v2587 = vsel %vm2507, -1e+30, %v2417
        %v2588 = vsel %vm2508, -1e+30, %v2418
        %v2589 = vsel %vm2509, -1e+30, %v2419
        %v2590 = vsel %vm2510, -1e+30, %v2420
        %v2591 = vsel %vm2511, -1e+30, %v2421
        %v2592 = vsel %vm2512, -1e+30, %v2422
        %v2593 = vsel %vm2513, -1e+30, %v2423
        %v2594 = vmax.f32 %v2578, %v2582
        %v2595 = vmax.f32 %v2579, %v2583
        %v2596 = vmax.f32 %v2580, %v2584
        %v2597 = vmax.f32 %v2581, %v2585
        %v2598 = vmax.f32 %v2594, %v2586
        %v2599 = vmax.f32 %v2595, %v2587
        %v2600 = vmax.f32 %v2596, %v2588
        %v2601 = vmax.f32 %v2597, %v2589
        %v2602 = vmax.f32 %v2598, %v2590
        %v2603 = vmax.f32 %v2599, %v2591
        %v2604 = vmax.f32 %v2600, %v2592
        %v2605 = vmax.f32 %v2601, %v2593
        %v2606 = vmax.f32 %v2602, %v2603
        %v2607 = vmax.f32 %v2604, %v2605
        %v2608 = vmax.f32 %v2606, %v2607
        %v2609 = vrot.slane %v2608, 4
        %v2610 = vmax.f32 %v2608, %v2609
        %v2611 = vrot.slane %v2610, 2
        %v2612 = vmax.f32 %v2610, %v2611
        %v2613 = vrot.slane %v2612, 1
        %v2614 = vmax.f32 %v2612, %v2613
        %vm2615 = vcmp.ge.f32.partialorder %v2578, %v2614
        %vm2616 = vcmp.ge.f32.partialorder %v2579, %v2614
        %vm2617 = vcmp.ge.f32.partialorder %v2580, %v2614
        %vm2618 = vcmp.ge.f32.partialorder %v2581, %v2614
        %vm2619 = vcmp.ge.f32.partialorder %v2582, %v2614
        %vm2620 = vcmp.ge.f32.partialorder %v2583, %v2614
        %vm2621 = vcmp.ge.f32.partialorder %v2584, %v2614
        %vm2622 = vcmp.ge.f32.partialorder %v2585, %v2614
        %vm2623 = vcmp.ge.f32.partialorder %v2586, %v2614
        %vm2624 = vcmp.ge.f32.partialorder %v2587, %v2614
        %vm2625 = vcmp.ge.f32.partialorder %v2588, %v2614
        %vm2626 = vcmp.ge.f32.partialorder %v2589, %v2614
        %vm2627 = vcmp.ge.f32.partialorder %v2590, %v2614
        %vm2628 = vcmp.ge.f32.partialorder %v2591, %v2614
        %vm2629 = vcmp.ge.f32.partialorder %v2592, %v2614
        %vm2630 = vcmp.ge.f32.partialorder %v2593, %v2614
        %v2631 = vsel %vm2615, %v1000, 128.0
        %v2632 = vsel %vm2616, %v1001, 128.0
        %v2633 = vsel %vm2617, %v1002, 128.0
        %v2634 = vsel %vm2618, %v1003, 128.0
        %v2635 = vsel %vm2619, %v1004, 128.0
        %v2636 = vsel %vm2620, %v1005, 128.0
        %v2637 = vsel %vm2621, %v1006, 128.0
        %v2638 = vsel %vm2622, %v1007, 128.0
        %v2639 = vsel %vm2623, %v1008, 128.0
        %v2640 = vsel %vm2624, %v1009, 128.0
        %v2641 = vsel %vm2625, %v1010, 128.0
        %v2642 = vsel %vm2626, %v1011, 128.0
        %v2643 = vsel %vm2627, %v1012, 128.0
        %v2644 = vsel %vm2628, %v1013, 128.0
        %v2645 = vsel %vm2629, %v1014, 128.0
        %v2646 = vsel %vm2630, %v1015, 128.0
        %v2647 = vmin.f32 %v2631, %v2635
        %v2648 = vmin.f32 %v2632, %v2636
        %v2649 = vmin.f32 %v2633, %v2637
        %v2650 = vmin.f32 %v2634, %v2638
        %v2651 = vmin.f32 %v2647, %v2639
        %v2652 = vmin.f32 %v2648, %v2640
        %v2653 = vmin.f32 %v2649, %v2641
        %v2654 = vmin.f32 %v2650, %v2642
        %v2655 = vmin.f32 %v2651, %v2643
        %v2656 = vmin.f32 %v2652, %v2644
        %v2657 = vmin.f32 %v2653, %v2645
        %v2658 = vmin.f32 %v2654, %v2646
        %v2659 = vmin.f32 %v2655, %v2656
        %v2660 = vmin.f32 %v2657, %v2658
        %v2661 = vmin.f32 %v2659, %v2660
        %v2662 = vrot.slane %v2661, 4
        %v2663 = vmin.f32 %v2661, %v2662
        %v2664 = vrot.slane %v2663, 2
        %v2665 = vmin.f32 %v2663, %v2664
        %v2666 = vrot.slane %v2665, 1
        %v2667 = vmin.f32 %v2665, %v2666
        %vm2668 = vcmp.eq.f32.partialorder %v1000, %v2667
        %vm2669 = vcmp.eq.f32.partialorder %v1001, %v2667
        %vm2670 = vcmp.eq.f32.partialorder %v1002, %v2667
        %vm2671 = vcmp.eq.f32.partialorder %v1003, %v2667
        %vm2672 = vcmp.eq.f32.partialorder %v1004, %v2667
        %vm2673 = vcmp.eq.f32.partialorder %v1005, %v2667
        %vm2674 = vcmp.eq.f32.partialorder %v1006, %v2667
        %vm2675 = vcmp.eq.f32.partialorder %v1007, %v2667
        %vm2676 = vcmp.eq.f32.partialorder %v1008, %v2667
        %vm2677 = vcmp.eq.f32.partialorder %v1009, %v2667
        %vm2678 = vcmp.eq.f32.partialorder %v1010, %v2667
        %vm2679 = vcmp.eq.f32.partialorder %v1011, %v2667
        %vm2680 = vcmp.eq.f32.partialorder %v1012, %v2667
        %vm2681 = vcmp.eq.f32.partialorder %v1013, %v2667
        %vm2682 = vcmp.eq.f32.partialorder %v1014, %v2667
        %vm2683 = vcmp.eq.f32.partialorder %v1015, %v2667
        %v2684 = vsel %vm2668, 1, 0
        %v2685 = vsel %vm2669, 1, 0
        %v2686 = vsel %vm2670, 1, 0
        %v2687 = vsel %vm2671, 1, 0
        %v2688 = vsel %vm2672, 1, 0
        %v2689 = vsel %vm2673, 1, 0
        %v2690 = vsel %vm2674, 1, 0
        %v2691 = vsel %vm2675, 1, 0
        %v2692 = vsel %vm2676, 1, 0
        %v2693 = vsel %vm2677, 1, 0
        %v2694 = vsel %vm2678, 1, 0
        %v2695 = vsel %vm2679, 1, 0
        %v2696 = vsel %vm2680, 1, 0
        %v2697 = vsel %vm2681, 1, 0
        %v2698 = vsel %vm2682, 1, 0
        %v2699 = vsel %vm2683, 1, 0
        %v2700 = vcvt.s32.f32 %v2684
        %v2701 = vcvt.s32.f32 %v2685
        %v2702 = vcvt.s32.f32 %v2686
        %v2703 = vcvt.s32.f32 %v2687
        %v2704 = vcvt.s32.f32 %v2688
        %v2705 = vcvt.s32.f32 %v2689
        %v2706 = vcvt.s32.f32 %v2690
        %v2707 = vcvt.s32.f32 %v2691
        %v2708 = vcvt.s32.f32 %v2692
        %v2709 = vcvt.s32.f32 %v2693
        %v2710 = vcvt.s32.f32 %v2694
        %v2711 = vcvt.s32.f32 %v2695
        %v2712 = vcvt.s32.f32 %v2696
        %v2713 = vcvt.s32.f32 %v2697
        %v2714 = vcvt.s32.f32 %v2698
        %v2715 = vcvt.s32.f32 %v2699
        %v2716 = vsub.f32 %v2700, %v1048
        %v2717 = vsub.f32 %v2701, %v1049
        %v2718 = vsub.f32 %v2702, %v1050
        %v2719 = vsub.f32 %v2703, %v1051
        %v2720 = vsub.f32 %v2704, %v1052
        %v2721 = vsub.f32 %v2705, %v1053
        %v2722 = vsub.f32 %v2706, %v1054
        %v2723 = vsub.f32 %v2707, %v1055
        %v2724 = vsub.f32 %v2708, %v1056
        %v2725 = vsub.f32 %v2709, %v1057
        %v2726 = vsub.f32 %v2710, %v1058
        %v2727 = vsub.f32 %v2711, %v1059
        %v2728 = vsub.f32 %v2712, %v1060
        %v2729 = vsub.f32 %v2713, %v1061
        %v2730 = vsub.f32 %v2714, %v1062
        %v2731 = vsub.f32 %v2715, %v1063
        %v2732 = vpack.c.bf16 %v2717, %v2716
        %v2733 = vpack.c.bf16 %v2719, %v2718
        %v2734 = vpack.c.bf16 %v2721, %v2720
        %v2735 = vpack.c.bf16 %v2723, %v2722
        %v2736 = vpack.c.bf16 %v2725, %v2724
        %v2737 = vpack.c.bf16 %v2727, %v2726
        %v2738 = vpack.c.bf16 %v2729, %v2728
        %v2739 = vpack.c.bf16 %v2731, %v2730
        %2740 = vst [vmem:[#allocation2 + $0x48] sm:$0xff] %v2732
        %2741 = vst [vmem:[#allocation2 + $0xa8] sm:$0xff] %v2733
        %2742 = vst [vmem:[#allocation2 + $0x108] sm:$0xff] %v2734
        %2743 = vst [vmem:[#allocation2 + $0x168] sm:$0xff] %v2735
        %2744 = vst [vmem:[#allocation2 + $0x1c8] sm:$0xff] %v2736
        %2745 = vst [vmem:[#allocation2 + $0x228] sm:$0xff] %v2737
        %2746 = vst [vmem:[#allocation2 + $0x288] sm:$0xff] %v2738
        %2747 = vst [vmem:[#allocation2 + $0x2e8] sm:$0xff] %v2739
        %v2748 = vsel %vm2668, -1e+30, %v2578
        %v2749 = vsel %vm2669, -1e+30, %v2579
        %v2750 = vsel %vm2670, -1e+30, %v2580
        %v2751 = vsel %vm2671, -1e+30, %v2581
        %v2752 = vsel %vm2672, -1e+30, %v2582
        %v2753 = vsel %vm2673, -1e+30, %v2583
        %v2754 = vsel %vm2674, -1e+30, %v2584
        %v2755 = vsel %vm2675, -1e+30, %v2585
        %v2756 = vsel %vm2676, -1e+30, %v2586
        %v2757 = vsel %vm2677, -1e+30, %v2587
        %v2758 = vsel %vm2678, -1e+30, %v2588
        %v2759 = vsel %vm2679, -1e+30, %v2589
        %v2760 = vsel %vm2680, -1e+30, %v2590
        %v2761 = vsel %vm2681, -1e+30, %v2591
        %v2762 = vsel %vm2682, -1e+30, %v2592
        %v2763 = vsel %vm2683, -1e+30, %v2593
        %v2764 = vmax.f32 %v2748, %v2752
        %v2765 = vmax.f32 %v2749, %v2753
        %v2766 = vmax.f32 %v2750, %v2754
        %v2767 = vmax.f32 %v2751, %v2755
        %v2768 = vmax.f32 %v2764, %v2756
        %v2769 = vmax.f32 %v2765, %v2757
        %v2770 = vmax.f32 %v2766, %v2758
        %v2771 = vmax.f32 %v2767, %v2759
        %v2772 = vmax.f32 %v2768, %v2760
        %v2773 = vmax.f32 %v2769, %v2761
        %v2774 = vmax.f32 %v2770, %v2762
        %v2775 = vmax.f32 %v2771, %v2763
        %v2776 = vmax.f32 %v2772, %v2773
        %v2777 = vmax.f32 %v2774, %v2775
        %v2778 = vmax.f32 %v2776, %v2777
        %v2779 = vrot.slane %v2778, 4
        %v2780 = vmax.f32 %v2778, %v2779
        %v2781 = vrot.slane %v2780, 2
        %v2782 = vmax.f32 %v2780, %v2781
        %v2783 = vrot.slane %v2782, 1
        %v2784 = vmax.f32 %v2782, %v2783
        %vm2785 = vcmp.ge.f32.partialorder %v2748, %v2784
        %vm2786 = vcmp.ge.f32.partialorder %v2749, %v2784
        %vm2787 = vcmp.ge.f32.partialorder %v2750, %v2784
        %vm2788 = vcmp.ge.f32.partialorder %v2751, %v2784
        %vm2789 = vcmp.ge.f32.partialorder %v2752, %v2784
        %vm2790 = vcmp.ge.f32.partialorder %v2753, %v2784
        %vm2791 = vcmp.ge.f32.partialorder %v2754, %v2784
        %vm2792 = vcmp.ge.f32.partialorder %v2755, %v2784
        %vm2793 = vcmp.ge.f32.partialorder %v2756, %v2784
        %vm2794 = vcmp.ge.f32.partialorder %v2757, %v2784
        %vm2795 = vcmp.ge.f32.partialorder %v2758, %v2784
        %vm2796 = vcmp.ge.f32.partialorder %v2759, %v2784
        %vm2797 = vcmp.ge.f32.partialorder %v2760, %v2784
        %vm2798 = vcmp.ge.f32.partialorder %v2761, %v2784
        %vm2799 = vcmp.ge.f32.partialorder %v2762, %v2784
        %vm2800 = vcmp.ge.f32.partialorder %v2763, %v2784
        %v2801 = vsel %vm2785, %v1000, 128.0
        %v2802 = vsel %vm2786, %v1001, 128.0
        %v2803 = vsel %vm2787, %v1002, 128.0
        %v2804 = vsel %vm2788, %v1003, 128.0
        %v2805 = vsel %vm2789, %v1004, 128.0
        %v2806 = vsel %vm2790, %v1005, 128.0
        %v2807 = vsel %vm2791, %v1006, 128.0
        %v2808 = vsel %vm2792, %v1007, 128.0
        %v2809 = vsel %vm2793, %v1008, 128.0
        %v2810 = vsel %vm2794, %v1009, 128.0
        %v2811 = vsel %vm2795, %v1010, 128.0
        %v2812 = vsel %vm2796, %v1011, 128.0
        %v2813 = vsel %vm2797, %v1012, 128.0
        %v2814 = vsel %vm2798, %v1013, 128.0
        %v2815 = vsel %vm2799, %v1014, 128.0
        %v2816 = vsel %vm2800, %v1015, 128.0
        %v2817 = vmin.f32 %v2801, %v2805
        %v2818 = vmin.f32 %v2802, %v2806
        %v2819 = vmin.f32 %v2803, %v2807
        %v2820 = vmin.f32 %v2804, %v2808
        %v2821 = vmin.f32 %v2817, %v2809
        %v2822 = vmin.f32 %v2818, %v2810
        %v2823 = vmin.f32 %v2819, %v2811
        %v2824 = vmin.f32 %v2820, %v2812
        %v2825 = vmin.f32 %v2821, %v2813
        %v2826 = vmin.f32 %v2822, %v2814
        %v2827 = vmin.f32 %v2823, %v2815
        %v2828 = vmin.f32 %v2824, %v2816
        %v2829 = vmin.f32 %v2825, %v2826
        %v2830 = vmin.f32 %v2827, %v2828
        %v2831 = vmin.f32 %v2829, %v2830
        %v2832 = vrot.slane %v2831, 4
        %v2833 = vmin.f32 %v2831, %v2832
        %v2834 = vrot.slane %v2833, 2
        %v2835 = vmin.f32 %v2833, %v2834
        %v2836 = vrot.slane %v2835, 1
        %v2837 = vmin.f32 %v2835, %v2836
        %vm2838 = vcmp.eq.f32.partialorder %v1000, %v2837
        %vm2839 = vcmp.eq.f32.partialorder %v1001, %v2837
        %vm2840 = vcmp.eq.f32.partialorder %v1002, %v2837
        %vm2841 = vcmp.eq.f32.partialorder %v1003, %v2837
        %vm2842 = vcmp.eq.f32.partialorder %v1004, %v2837
        %vm2843 = vcmp.eq.f32.partialorder %v1005, %v2837
        %vm2844 = vcmp.eq.f32.partialorder %v1006, %v2837
        %vm2845 = vcmp.eq.f32.partialorder %v1007, %v2837
        %vm2846 = vcmp.eq.f32.partialorder %v1008, %v2837
        %vm2847 = vcmp.eq.f32.partialorder %v1009, %v2837
        %vm2848 = vcmp.eq.f32.partialorder %v1010, %v2837
        %vm2849 = vcmp.eq.f32.partialorder %v1011, %v2837
        %vm2850 = vcmp.eq.f32.partialorder %v1012, %v2837
        %vm2851 = vcmp.eq.f32.partialorder %v1013, %v2837
        %vm2852 = vcmp.eq.f32.partialorder %v1014, %v2837
        %vm2853 = vcmp.eq.f32.partialorder %v1015, %v2837
        %v2854 = vsel %vm2838, 1, 0
        %v2855 = vsel %vm2839, 1, 0
        %v2856 = vsel %vm2840, 1, 0
        %v2857 = vsel %vm2841, 1, 0
        %v2858 = vsel %vm2842, 1, 0
        %v2859 = vsel %vm2843, 1, 0
        %v2860 = vsel %vm2844, 1, 0
        %v2861 = vsel %vm2845, 1, 0
        %v2862 = vsel %vm2846, 1, 0
        %v2863 = vsel %vm2847, 1, 0
        %v2864 = vsel %vm2848, 1, 0
        %v2865 = vsel %vm2849, 1, 0
        %v2866 = vsel %vm2850, 1, 0
        %v2867 = vsel %vm2851, 1, 0
        %v2868 = vsel %vm2852, 1, 0
        %v2869 = vsel %vm2853, 1, 0
        %v2870 = vcvt.s32.f32 %v2854
        %v2871 = vcvt.s32.f32 %v2855
        %v2872 = vcvt.s32.f32 %v2856
        %v2873 = vcvt.s32.f32 %v2857
        %v2874 = vcvt.s32.f32 %v2858
        %v2875 = vcvt.s32.f32 %v2859
        %v2876 = vcvt.s32.f32 %v2860
        %v2877 = vcvt.s32.f32 %v2861
        %v2878 = vcvt.s32.f32 %v2862
        %v2879 = vcvt.s32.f32 %v2863
        %v2880 = vcvt.s32.f32 %v2864
        %v2881 = vcvt.s32.f32 %v2865
        %v2882 = vcvt.s32.f32 %v2866
        %v2883 = vcvt.s32.f32 %v2867
        %v2884 = vcvt.s32.f32 %v2868
        %v2885 = vcvt.s32.f32 %v2869
        %v2886 = vsub.f32 %v2870, %v1048
        %v2887 = vsub.f32 %v2871, %v1049
        %v2888 = vsub.f32 %v2872, %v1050
        %v2889 = vsub.f32 %v2873, %v1051
        %v2890 = vsub.f32 %v2874, %v1052
        %v2891 = vsub.f32 %v2875, %v1053
        %v2892 = vsub.f32 %v2876, %v1054
        %v2893 = vsub.f32 %v2877, %v1055
        %v2894 = vsub.f32 %v2878, %v1056
        %v2895 = vsub.f32 %v2879, %v1057
        %v2896 = vsub.f32 %v2880, %v1058
        %v2897 = vsub.f32 %v2881, %v1059
        %v2898 = vsub.f32 %v2882, %v1060
        %v2899 = vsub.f32 %v2883, %v1061
        %v2900 = vsub.f32 %v2884, %v1062
        %v2901 = vsub.f32 %v2885, %v1063
        %v2902 = vpack.c.bf16 %v2887, %v2886
        %v2903 = vpack.c.bf16 %v2889, %v2888
        %v2904 = vpack.c.bf16 %v2891, %v2890
        %v2905 = vpack.c.bf16 %v2893, %v2892
        %v2906 = vpack.c.bf16 %v2895, %v2894
        %v2907 = vpack.c.bf16 %v2897, %v2896
        %v2908 = vpack.c.bf16 %v2899, %v2898
        %v2909 = vpack.c.bf16 %v2901, %v2900
        %2910 = vst [vmem:[#allocation2 + $0x50] sm:$0xff] %v2902
        %2911 = vst [vmem:[#allocation2 + $0xb0] sm:$0xff] %v2903
        %2912 = vst [vmem:[#allocation2 + $0x110] sm:$0xff] %v2904
        %2913 = vst [vmem:[#allocation2 + $0x170] sm:$0xff] %v2905
        %2914 = vst [vmem:[#allocation2 + $0x1d0] sm:$0xff] %v2906
        %2915 = vst [vmem:[#allocation2 + $0x230] sm:$0xff] %v2907
        %2916 = vst [vmem:[#allocation2 + $0x290] sm:$0xff] %v2908
        %2917 = vst [vmem:[#allocation2 + $0x2f0] sm:$0xff] %v2909
        %v2918 = vsel %vm2838, -1e+30, %v2748
        %v2919 = vsel %vm2839, -1e+30, %v2749
        %v2920 = vsel %vm2840, -1e+30, %v2750
        %v2921 = vsel %vm2841, -1e+30, %v2751
        %v2922 = vsel %vm2842, -1e+30, %v2752
        %v2923 = vsel %vm2843, -1e+30, %v2753
        %v2924 = vsel %vm2844, -1e+30, %v2754
        %v2925 = vsel %vm2845, -1e+30, %v2755
        %v2926 = vsel %vm2846, -1e+30, %v2756
        %v2927 = vsel %vm2847, -1e+30, %v2757
        %v2928 = vsel %vm2848, -1e+30, %v2758
        %v2929 = vsel %vm2849, -1e+30, %v2759
        %v2930 = vsel %vm2850, -1e+30, %v2760
        %v2931 = vsel %vm2851, -1e+30, %v2761
        %v2932 = vsel %vm2852, -1e+30, %v2762
        %v2933 = vsel %vm2853, -1e+30, %v2763
        %v2934 = vmax.f32 %v2918, %v2922
        %v2935 = vmax.f32 %v2919, %v2923
        %v2936 = vmax.f32 %v2920, %v2924
        %v2937 = vmax.f32 %v2921, %v2925
        %v2938 = vmax.f32 %v2934, %v2926
        %v2939 = vmax.f32 %v2935, %v2927
        %v2940 = vmax.f32 %v2936, %v2928
        %v2941 = vmax.f32 %v2937, %v2929
        %v2942 = vmax.f32 %v2938, %v2930
        %v2943 = vmax.f32 %v2939, %v2931
        %v2944 = vmax.f32 %v2940, %v2932
        %v2945 = vmax.f32 %v2941, %v2933
        %v2946 = vmax.f32 %v2942, %v2943
        %v2947 = vmax.f32 %v2944, %v2945
        %v2948 = vmax.f32 %v2946, %v2947
        %v2949 = vrot.slane %v2948, 4
        %v2950 = vmax.f32 %v2948, %v2949
        %v2951 = vrot.slane %v2950, 2
        %v2952 = vmax.f32 %v2950, %v2951
        %v2953 = vrot.slane %v2952, 1
        %v2954 = vmax.f32 %v2952, %v2953
        %vm2955 = vcmp.ge.f32.partialorder %v2918, %v2954
        %vm2956 = vcmp.ge.f32.partialorder %v2919, %v2954
        %vm2957 = vcmp.ge.f32.partialorder %v2920, %v2954
        %vm2958 = vcmp.ge.f32.partialorder %v2921, %v2954
        %vm2959 = vcmp.ge.f32.partialorder %v2922, %v2954
        %vm2960 = vcmp.ge.f32.partialorder %v2923, %v2954
        %vm2961 = vcmp.ge.f32.partialorder %v2924, %v2954
        %vm2962 = vcmp.ge.f32.partialorder %v2925, %v2954
        %vm2963 = vcmp.ge.f32.partialorder %v2926, %v2954
        %vm2964 = vcmp.ge.f32.partialorder %v2927, %v2954
        %vm2965 = vcmp.ge.f32.partialorder %v2928, %v2954
        %vm2966 = vcmp.ge.f32.partialorder %v2929, %v2954
        %vm2967 = vcmp.ge.f32.partialorder %v2930, %v2954
        %vm2968 = vcmp.ge.f32.partialorder %v2931, %v2954
        %vm2969 = vcmp.ge.f32.partialorder %v2932, %v2954
        %vm2970 = vcmp.ge.f32.partialorder %v2933, %v2954
        %v2971 = vsel %vm2955, %v1000, 128.0
        %v2972 = vsel %vm2956, %v1001, 128.0
        %v2973 = vsel %vm2957, %v1002, 128.0
        %v2974 = vsel %vm2958, %v1003, 128.0
        %v2975 = vsel %vm2959, %v1004, 128.0
        %v2976 = vsel %vm2960, %v1005, 128.0
        %v2977 = vsel %vm2961, %v1006, 128.0
        %v2978 = vsel %vm2962, %v1007, 128.0
        %v2979 = vsel %vm2963, %v1008, 128.0
        %v2980 = vsel %vm2964, %v1009, 128.0
        %v2981 = vsel %vm2965, %v1010, 128.0
        %v2982 = vsel %vm2966, %v1011, 128.0
        %v2983 = vsel %vm2967, %v1012, 128.0
        %v2984 = vsel %vm2968, %v1013, 128.0
        %v2985 = vsel %vm2969, %v1014, 128.0
        %v2986 = vsel %vm2970, %v1015, 128.0
        %v2987 = vmin.f32 %v2971, %v2975
        %v2988 = vmin.f32 %v2972, %v2976
        %v2989 = vmin.f32 %v2973, %v2977
        %v2990 = vmin.f32 %v2974, %v2978
        %v2991 = vmin.f32 %v2987, %v2979
        %v2992 = vmin.f32 %v2988, %v2980
        %v2993 = vmin.f32 %v2989, %v2981
        %v2994 = vmin.f32 %v2990, %v2982
        %v2995 = vmin.f32 %v2991, %v2983
        %v2996 = vmin.f32 %v2992, %v2984
        %v2997 = vmin.f32 %v2993, %v2985
        %v2998 = vmin.f32 %v2994, %v2986
        %v2999 = vmin.f32 %v2995, %v2996
        %v3000 = vmin.f32 %v2997, %v2998
        %v3001 = vmin.f32 %v2999, %v3000
        %v3002 = vrot.slane %v3001, 4
        %v3003 = vmin.f32 %v3001, %v3002
        %v3004 = vrot.slane %v3003, 2
        %v3005 = vmin.f32 %v3003, %v3004
        %v3006 = vrot.slane %v3005, 1
        %v3007 = vmin.f32 %v3005, %v3006
        %vm3008 = vcmp.eq.f32.partialorder %v1000, %v3007
        %vm3009 = vcmp.eq.f32.partialorder %v1001, %v3007
        %vm3010 = vcmp.eq.f32.partialorder %v1002, %v3007
        %vm3011 = vcmp.eq.f32.partialorder %v1003, %v3007
        %vm3012 = vcmp.eq.f32.partialorder %v1004, %v3007
        %vm3013 = vcmp.eq.f32.partialorder %v1005, %v3007
        %vm3014 = vcmp.eq.f32.partialorder %v1006, %v3007
        %vm3015 = vcmp.eq.f32.partialorder %v1007, %v3007
        %vm3016 = vcmp.eq.f32.partialorder %v1008, %v3007
        %vm3017 = vcmp.eq.f32.partialorder %v1009, %v3007
        %vm3018 = vcmp.eq.f32.partialorder %v1010, %v3007
        %vm3019 = vcmp.eq.f32.partialorder %v1011, %v3007
        %vm3020 = vcmp.eq.f32.partialorder %v1012, %v3007
        %vm3021 = vcmp.eq.f32.partialorder %v1013, %v3007
        %vm3022 = vcmp.eq.f32.partialorder %v1014, %v3007
        %vm3023 = vcmp.eq.f32.partialorder %v1015, %v3007
        %v3024 = vsel %vm3008, 1, 0
        %v3025 = vsel %vm3009, 1, 0
        %v3026 = vsel %vm3010, 1, 0
        %v3027 = vsel %vm3011, 1, 0
        %v3028 = vsel %vm3012, 1, 0
        %v3029 = vsel %vm3013, 1, 0
        %v3030 = vsel %vm3014, 1, 0
        %v3031 = vsel %vm3015, 1, 0
        %v3032 = vsel %vm3016, 1, 0
        %v3033 = vsel %vm3017, 1, 0
        %v3034 = vsel %vm3018, 1, 0
        %v3035 = vsel %vm3019, 1, 0
        %v3036 = vsel %vm3020, 1, 0
        %v3037 = vsel %vm3021, 1, 0
        %v3038 = vsel %vm3022, 1, 0
        %v3039 = vsel %vm3023, 1, 0
        %v3040 = vcvt.s32.f32 %v3024
        %v3041 = vcvt.s32.f32 %v3025
        %v3042 = vcvt.s32.f32 %v3026
        %v3043 = vcvt.s32.f32 %v3027
        %v3044 = vcvt.s32.f32 %v3028
        %v3045 = vcvt.s32.f32 %v3029
        %v3046 = vcvt.s32.f32 %v3030
        %v3047 = vcvt.s32.f32 %v3031
        %v3048 = vcvt.s32.f32 %v3032
        %v3049 = vcvt.s32.f32 %v3033
        %v3050 = vcvt.s32.f32 %v3034
        %v3051 = vcvt.s32.f32 %v3035
        %v3052 = vcvt.s32.f32 %v3036
        %v3053 = vcvt.s32.f32 %v3037
        %v3054 = vcvt.s32.f32 %v3038
        %v3055 = vcvt.s32.f32 %v3039
        %v3056 = vsub.f32 %v3040, %v1048
        %v3057 = vsub.f32 %v3041, %v1049
        %v3058 = vsub.f32 %v3042, %v1050
        %v3059 = vsub.f32 %v3043, %v1051
        %v3060 = vsub.f32 %v3044, %v1052
        %v3061 = vsub.f32 %v3045, %v1053
        %v3062 = vsub.f32 %v3046, %v1054
        %v3063 = vsub.f32 %v3047, %v1055
        %v3064 = vsub.f32 %v3048, %v1056
        %v3065 = vsub.f32 %v3049, %v1057
        %v3066 = vsub.f32 %v3050, %v1058
        %v3067 = vsub.f32 %v3051, %v1059
        %v3068 = vsub.f32 %v3052, %v1060
        %v3069 = vsub.f32 %v3053, %v1061
        %v3070 = vsub.f32 %v3054, %v1062
        %v3071 = vsub.f32 %v3055, %v1063
        %v3072 = vpack.c.bf16 %v3057, %v3056
        %v3073 = vpack.c.bf16 %v3059, %v3058
        %v3074 = vpack.c.bf16 %v3061, %v3060
        %v3075 = vpack.c.bf16 %v3063, %v3062
        %v3076 = vpack.c.bf16 %v3065, %v3064
        %v3077 = vpack.c.bf16 %v3067, %v3066
        %v3078 = vpack.c.bf16 %v3069, %v3068
        %v3079 = vpack.c.bf16 %v3071, %v3070
        %3080 = vst [vmem:[#allocation2 + $0x58] sm:$0xff] %v3072
        %3081 = vst [vmem:[#allocation2 + $0xb8] sm:$0xff] %v3073
        %3082 = vst [vmem:[#allocation2 + $0x118] sm:$0xff] %v3074
        %3083 = vst [vmem:[#allocation2 + $0x178] sm:$0xff] %v3075
        %3084 = vst [vmem:[#allocation2 + $0x1d8] sm:$0xff] %v3076
        %3085 = vst [vmem:[#allocation2 + $0x238] sm:$0xff] %v3077
        %3086 = vst [vmem:[#allocation2 + $0x298] sm:$0xff] %v3078
        %3087 = vst [vmem:[#allocation2 + $0x2f8] sm:$0xff] %v3079
        %v3088 = vld [vmem:[%s1] sm:$0xff]
        %v3089 = vld [vmem:[%s1 + $0x8] sm:$0xff]
        %v3090 = vld [vmem:[%s1 + $0x10] sm:$0xff]
        %v3091 = vld [vmem:[%s1 + $0x18] sm:$0xff]
        %v3092 = vld [vmem:[%s1 + $0x20] sm:$0xff]
        %v3093 = vld [vmem:[%s1 + $0x28] sm:$0xff]
        %v3094 = vld [vmem:[%s1 + $0x30] sm:$0xff]
        %v3095 = vld [vmem:[%s1 + $0x38] sm:$0xff]
        %v3096 = vld [vmem:[%s2] sm:$0xff]
        %v3097 = vld [vmem:[%s2 + $0x8] sm:$0xff]
        %v3098 = vld [vmem:[%s2 + $0x10] sm:$0xff]
        %v3099 = vld [vmem:[%s2 + $0x18] sm:$0xff]
        %v3100 = vld [vmem:[%s2 + $0x20] sm:$0xff]
        %v3101 = vld [vmem:[%s2 + $0x28] sm:$0xff]
        %v3102 = vld [vmem:[%s2 + $0x30] sm:$0xff]
        %v3103 = vld [vmem:[%s2 + $0x38] sm:$0xff]
        %v3104 = vld [vmem:[%s3] sm:$0xff]
        %v3105 = vld [vmem:[%s3 + $0x8] sm:$0xff]
        %v3106 = vld [vmem:[%s3 + $0x10] sm:$0xff]
        %v3107 = vld [vmem:[%s3 + $0x18] sm:$0xff]
        %v3108 = vld [vmem:[%s3 + $0x20] sm:$0xff]
        %v3109 = vld [vmem:[%s3 + $0x28] sm:$0xff]
        %v3110 = vld [vmem:[%s3 + $0x30] sm:$0xff]
        %v3111 = vld [vmem:[%s3 + $0x38] sm:$0xff]
        %v3112 = vld [vmem:[%s4] sm:$0xff]
        %v3113 = vld [vmem:[%s4 + $0x8] sm:$0xff]
        %v3114 = vld [vmem:[%s4 + $0x10] sm:$0xff]
        %v3115 = vld [vmem:[%s4 + $0x18] sm:$0xff]
        %v3116 = vld [vmem:[%s4 + $0x20] sm:$0xff]
        %v3117 = vld [vmem:[%s4 + $0x28] sm:$0xff]
        %v3118 = vld [vmem:[%s4 + $0x30] sm:$0xff]
        %v3119 = vld [vmem:[%s4 + $0x38] sm:$0xff]
        %v3120 = vld [vmem:[%s5] sm:$0xff]
        %v3121 = vld [vmem:[%s5 + $0x8] sm:$0xff]
        %v3122 = vld [vmem:[%s5 + $0x10] sm:$0xff]
        %v3123 = vld [vmem:[%s5 + $0x18] sm:$0xff]
        %v3124 = vld [vmem:[%s5 + $0x20] sm:$0xff]
        %v3125 = vld [vmem:[%s5 + $0x28] sm:$0xff]
        %v3126 = vld [vmem:[%s5 + $0x30] sm:$0xff]
        %v3127 = vld [vmem:[%s5 + $0x38] sm:$0xff]
        %v3128 = vld [vmem:[%s6] sm:$0xff]
        %v3129 = vld [vmem:[%s6 + $0x8] sm:$0xff]
        %v3130 = vld [vmem:[%s6 + $0x10] sm:$0xff]
        %v3131 = vld [vmem:[%s6 + $0x18] sm:$0xff]
        %v3132 = vld [vmem:[%s6 + $0x20] sm:$0xff]
        %v3133 = vld [vmem:[%s6 + $0x28] sm:$0xff]
        %v3134 = vld [vmem:[%s6 + $0x30] sm:$0xff]
        %v3135 = vld [vmem:[%s6 + $0x38] sm:$0xff]
        %v3137 = vsel %vm631, %v3088, 0
        %v3140 = vsel %vm631, %v3089, 0
        %v3143 = vsel %vm631, %v3090, 0
        %v3146 = vsel %vm631, %v3091, 0
        %v3149 = vsel %vm631, %v3092, 0
        %v3152 = vsel %vm631, %v3093, 0
        %v3155 = vsel %vm631, %v3094, 0
        %v3158 = vsel %vm631, %v3095, 0
        %3160 = vmatprep.subr.mxu0 0.0
        %3161 = vmatpush1.msra.mxu0 %v682
        %3162 = vmatprep.subr.mxu0 0.0
        %3163 = vmatpush1.msra.mxu0 0.0
        %3164 = vmatprep.subr.mxu0 0.0
        %3165 = vmatpush1.msra.mxu0 0.0
        %3166 = vmatprep.subr.mxu0 0.0
        %3167 = vmatpush1.msra.mxu0 0.0
        %3168 = vmatprep.subr.mxu0 0.0
        %3169 = vmatpush1.msra.mxu0 0.0
        %3170 = vmatprep.subr.mxu0 0.0
        %3171 = vmatpush1.msra.mxu0 0.0
        %3172 = vmatprep.subr.mxu0 0.0
        %3173 = vmatpush1.msra.mxu0 0.0
        %3174 = vmatprep.subr.mxu0 0.0
        %3175 = vmatpush1.msra.mxu0 0.0
        %3176 = vmatprep.subr.mxu0 0.0
        %3177 = vmatpush1.msra.mxu0 0.0
        %3178 = vmatprep.subr.mxu0 0.0
        %3179 = vmatpush1.msra.mxu0 0.0
        %3180 = vmatprep.subr.mxu0 0.0
        %3181 = vmatpush1.msra.mxu0 0.0
        %3182 = vmatprep.subr.mxu0 0.0
        %3183 = vmatpush1.msra.mxu0 0.0
        %3184 = vmatprep.subr.mxu0 0.0
        %3185 = vmatpush1.msra.mxu0 0.0
        %3186 = vmatprep.subr.mxu0 0.0
        %3187 = vmatpush1.msra.mxu0 0.0
        %3188 = vmatprep.subr.mxu0 0.0
        %3189 = vmatpush1.msra.mxu0 0.0
        %3190 = vmatprep.subr.mxu0 0.0
        %3191 = vmatpush1.msra.mxu0 0.0
        %3192 = vmatprep.subr.mxu0 0.0
        %3193 = vmatpush1.msra.mxu0 0.0
        %3194 = vmatprep.subr.mxu0 0.0
        %3195 = vmatpush1.msra.mxu0 0.0
        %3196 = vmatprep.subr.mxu0 0.0
        %3197 = vmatpush1.msra.mxu0 0.0
        %3198 = vmatprep.subr.mxu0 0.0
        %3199 = vmatpush1.msra.mxu0 0.0
        %3200 = vmatprep.subr.mxu0 0.0
        %3201 = vmatpush1.msra.mxu0 0.0
        %3202 = vmatprep.subr.mxu0 0.0
        %3203 = vmatpush1.msra.mxu0 0.0
        %3204 = vmatprep.subr.mxu0 0.0
        %3205 = vmatpush1.msra.mxu0 0.0
        %3206 = vmatprep.subr.mxu0 0.0
        %3207 = vmatpush1.msra.mxu0 0.0
        %3208 = vmatprep.subr.mxu0 0.0
        %3209 = vmatpush1.msra.mxu0 0.0
        %3210 = vmatprep.subr.mxu0 0.0
        %3211 = vmatpush1.msra.mxu0 0.0
        %3212 = vmatprep.subr.mxu0 0.0
        %3213 = vmatpush1.msra.mxu0 0.0
        %3214 = vmatprep.subr.mxu0 0.0
        %3215 = vmatpush1.msra.mxu0 0.0
        %3216 = vmatprep.subr.mxu0 0.0
        %3217 = vmatpush1.msra.mxu0 0.0
        %3218 = vmatprep.subr.mxu0 0.0
        %3219 = vmatpush1.msra.mxu0 0.0
        %3220 = vmatprep.subr.mxu0 0.0
        %3221 = vmatpush1.msra.mxu0 0.0
        %3222 = vmatprep.subr.mxu0 0.0
        %3223 = vmatpush1.msra.mxu0 0.0
        %3224 = vmatprep.mubr.f32.mxu0 0.0
        %3225 = vmatmul.mubr.f32.gmra.mrb[0].mxu0 %v3137
        %v3226 = vpop.f32.mrb[0].mxu0
        %v3227 = vadd.f32 0.0, %v3226
        %v3228 = vpop.f32.mrb[0].mxu0
        %3229 = vmatprep.mubr.f32.mxu0 0.0
        %3230 = vmatmul.mubr.f32.gmra.mrb[0].mxu0 %v3140
        %v3231 = vpop.f32.mrb[0].mxu0
        %v3232 = vadd.f32 0.0, %v3231
        %v3233 = vpop.f32.mrb[0].mxu0
        %3234 = vmatprep.mubr.f32.mxu0 0.0
        %3235 = vmatmul.mubr.f32.gmra.mrb[0].mxu0 %v3143
        %v3236 = vpop.f32.mrb[0].mxu0
        %v3237 = vadd.f32 0.0, %v3236
        %v3238 = vpop.f32.mrb[0].mxu0
        %3239 = vmatprep.mubr.f32.mxu0 0.0
        %3240 = vmatmul.mubr.f32.gmra.mrb[0].mxu0 %v3146
        %v3241 = vpop.f32.mrb[0].mxu0
        %v3242 = vadd.f32 0.0, %v3241
        %v3243 = vpop.f32.mrb[0].mxu0
        %3244 = vmatprep.mubr.f32.mxu0 0.0
        %3245 = vmatmul.mubr.f32.gmra.mrb[0].mxu0 %v3149
        %v3246 = vpop.f32.mrb[0].mxu0
        %v3247 = vadd.f32 0.0, %v3246
        %v3248 = vpop.f32.mrb[0].mxu0
        %3249 = vmatprep.mubr.f32.mxu0 0.0
        %3250 = vmatmul.mubr.f32.gmra.mrb[0].mxu0 %v3152
        %v3251 = vpop.f32.mrb[0].mxu0
        %v3252 = vadd.f32 0.0, %v3251
        %v3253 = vpop.f32.mrb[0].mxu0
        %3254 = vmatprep.mubr.f32.mxu0 0.0
        %3255 = vmatmul.mubr.f32.gmra.mrb[0].mxu0 %v3155
        %v3256 = vpop.f32.mrb[0].mxu0
        %v3257 = vadd.f32 0.0, %v3256
        %v3258 = vpop.f32.mrb[0].mxu0
        %3259 = vmatprep.mubr.f32.mxu0 0.0
        %3260 = vmatmul.mubr.f32.gmra.mrb[0].mxu0 %v3158
        %v3261 = vpop.f32.mrb[0].mxu0
        %v3262 = vadd.f32 0.0, %v3261
        %v3263 = vpop.f32.mrb[0].mxu0
        %3264 = vdwg.mxu0
        %v3265 = vld [vmem:[#allocation2] sm:$0xff]
        %v3266 = vld [vmem:[#allocation2 + $0x8] sm:$0xff]
        %v3267 = vld [vmem:[#allocation2 + $0x60] sm:$0xff]
        %v3268 = vld [vmem:[#allocation2 + $0x68] sm:$0xff]
        %v3269 = vld [vmem:[#allocation2 + $0xc0] sm:$0xff]
        %v3270 = vld [vmem:[#allocation2 + $0xc8] sm:$0xff]
        %v3271 = vld [vmem:[#allocation2 + $0x120] sm:$0xff]
        %v3272 = vld [vmem:[#allocation2 + $0x128] sm:$0xff]
        %v3273 = vld [vmem:[#allocation2 + $0x180] sm:$0xff]
        %v3274 = vld [vmem:[#allocation2 + $0x188] sm:$0xff]
        %v3275 = vld [vmem:[#allocation2 + $0x1e0] sm:$0xff]
        %v3276 = vld [vmem:[#allocation2 + $0x1e8] sm:$0xff]
        %v3277 = vld [vmem:[#allocation2 + $0x240] sm:$0xff]
        %v3278 = vld [vmem:[#allocation2 + $0x248] sm:$0xff]
        %v3279 = vld [vmem:[#allocation2 + $0x2a0] sm:$0xff]
        %v3280 = vld [vmem:[#allocation2 + $0x2a8] sm:$0xff]
        %v3281 = vunpack.c.l.bf16 %v3265
        %v3282 = vunpack.c.l.bf16 %v3266
        %v3283 = vunpack.c.h.bf16 %v3265
        %v3284 = vunpack.c.h.bf16 %v3266
        %v3285 = vunpack.c.l.bf16 %v3267
        %v3286 = vunpack.c.l.bf16 %v3268
        %v3287 = vunpack.c.h.bf16 %v3267
        %v3288 = vunpack.c.h.bf16 %v3268
        %v3289 = vunpack.c.l.bf16 %v3269
        %v3290 = vunpack.c.l.bf16 %v3270
        %v3291 = vunpack.c.h.bf16 %v3269
        %v3292 = vunpack.c.h.bf16 %v3270
        %v3293 = vunpack.c.l.bf16 %v3271
        %v3294 = vunpack.c.l.bf16 %v3272
        %v3295 = vunpack.c.h.bf16 %v3271
        %v3296 = vunpack.c.h.bf16 %v3272
        %v3297 = vunpack.c.l.bf16 %v3273
        %v3298 = vunpack.c.l.bf16 %v3274
        %v3299 = vunpack.c.h.bf16 %v3273
        %v3300 = vunpack.c.h.bf16 %v3274
        %v3301 = vunpack.c.l.bf16 %v3275
        %v3302 = vunpack.c.l.bf16 %v3276
        %v3303 = vunpack.c.h.bf16 %v3275
        %v3304 = vunpack.c.h.bf16 %v3276
        %v3305 = vunpack.c.l.bf16 %v3277
        %v3306 = vunpack.c.l.bf16 %v3278
        %v3307 = vunpack.c.h.bf16 %v3277
        %v3308 = vunpack.c.h.bf16 %v3278
        %v3309 = vunpack.c.l.bf16 %v3279
        %v3310 = vunpack.c.l.bf16 %v3280
        %v3311 = vunpack.c.h.bf16 %v3279
        %v3312 = vunpack.c.h.bf16 %v3280
        %3314 = vset.pattern.permute.xlu0 0
        %3315 = vperm.xlu0 %3314, %v3096
        %v3316 = vpop.permute.xlu0 %3315
        %3319 = vset.pattern.permute.xlu0 0
        %3320 = vperm.xlu0 %3319, %v3097
        %v3321 = vpop.permute.xlu0 %3320
        %3324 = vset.pattern.permute.xlu0 0
        %3325 = vperm.xlu0 %3324, %v3098
        %v3326 = vpop.permute.xlu0 %3325
        %3329 = vset.pattern.permute.xlu0 0
        %3330 = vperm.xlu0 %3329, %v3099
        %v3331 = vpop.permute.xlu0 %3330
        %3334 = vset.pattern.permute.xlu0 0
        %3335 = vperm.xlu0 %3334, %v3100
        %v3336 = vpop.permute.xlu0 %3335
        %3339 = vset.pattern.permute.xlu0 0
        %3340 = vperm.xlu0 %3339, %v3101
        %v3341 = vpop.permute.xlu0 %3340
        %3344 = vset.pattern.permute.xlu0 0
        %3345 = vperm.xlu0 %3344, %v3102
        %v3346 = vpop.permute.xlu0 %3345
        %3349 = vset.pattern.permute.xlu0 0
        %3350 = vperm.xlu0 %3349, %v3103
        %v3351 = vpop.permute.xlu0 %3350
        %3353 = vmatprep.subr.mxu0 %v3282
        %3354 = vmatpush1.msra.mxu0 %v3281
        %3355 = vmatprep.subr.mxu0 %v3284
        %3356 = vmatpush1.msra.mxu0 %v3283
        %3357 = vmatprep.subr.mxu0 %v3286
        %3358 = vmatpush1.msra.mxu0 %v3285
        %3359 = vmatprep.subr.mxu0 %v3288
        %3360 = vmatpush1.msra.mxu0 %v3287
        %3361 = vmatprep.subr.mxu0 %v3290
        %3362 = vmatpush1.msra.mxu0 %v3289
        %3363 = vmatprep.subr.mxu0 %v3292
        %3364 = vmatpush1.msra.mxu0 %v3291
        %3365 = vmatprep.subr.mxu0 %v3294
        %3366 = vmatpush1.msra.mxu0 %v3293
        %3367 = vmatprep.subr.mxu0 %v3296
        %3368 = vmatpush1.msra.mxu0 %v3295
        %3369 = vmatprep.subr.mxu0 %v3298
        %3370 = vmatpush1.msra.mxu0 %v3297
        %3371 = vmatprep.subr.mxu0 %v3300
        %3372 = vmatpush1.msra.mxu0 %v3299
        %3373 = vmatprep.subr.mxu0 %v3302
        %3374 = vmatpush1.msra.mxu0 %v3301
        %3375 = vmatprep.subr.mxu0 %v3304
        %3376 = vmatpush1.msra.mxu0 %v3303
        %3377 = vmatprep.subr.mxu0 %v3306
        %3378 = vmatpush1.msra.mxu0 %v3305
        %3379 = vmatprep.subr.mxu0 %v3308
        %3380 = vmatpush1.msra.mxu0 %v3307
        %3381 = vmatprep.subr.mxu0 %v3310
        %3382 = vmatpush1.msra.mxu0 %v3309
        %3383 = vmatprep.subr.mxu0 %v3312
        %3384 = vmatpush1.msra.mxu0 %v3311
        %3385 = vmatprep.subr.mxu0 0.0
        %3386 = vmatpush1.msra.mxu0 0.0
        %3387 = vmatprep.subr.mxu0 0.0
        %3388 = vmatpush1.msra.mxu0 0.0
        %3389 = vmatprep.subr.mxu0 0.0
        %3390 = vmatpush1.msra.mxu0 0.0
        %3391 = vmatprep.subr.mxu0 0.0
        %3392 = vmatpush1.msra.mxu0 0.0
        %3393 = vmatprep.subr.mxu0 0.0
        %3394 = vmatpush1.msra.mxu0 0.0
        %3395 = vmatprep.subr.mxu0 0.0
        %3396 = vmatpush1.msra.mxu0 0.0
        %3397 = vmatprep.subr.mxu0 0.0
        %3398 = vmatpush1.msra.mxu0 0.0
        %3399 = vmatprep.subr.mxu0 0.0
        %3400 = vmatpush1.msra.mxu0 0.0
        %3401 = vmatprep.subr.mxu0 0.0
        %3402 = vmatpush1.msra.mxu0 0.0
        %3403 = vmatprep.subr.mxu0 0.0
        %3404 = vmatpush1.msra.mxu0 0.0
        %3405 = vmatprep.subr.mxu0 0.0
        %3406 = vmatpush1.msra.mxu0 0.0
        %3407 = vmatprep.subr.mxu0 0.0
        %3408 = vmatpush1.msra.mxu0 0.0
        %3409 = vmatprep.subr.mxu0 0.0
        %3410 = vmatpush1.msra.mxu0 0.0
        %3411 = vmatprep.subr.mxu0 0.0
        %3412 = vmatpush1.msra.mxu0 0.0
        %3413 = vmatprep.subr.mxu0 0.0
        %3414 = vmatpush1.msra.mxu0 0.0
        %3415 = vmatprep.subr.mxu0 0.0
        %3416 = vmatpush1.msra.mxu0 0.0
        %3417 = vmatprep.mubr.f32.mxu0 0.0
        %3418 = vmatmul.mubr.f32.gmra.mrb[0].mxu0 %v3227
        %v3419 = vpop.f32.mrb[0].mxu0
        %v3420 = vadd.f32 %v3316, %v3419
        %v3421 = vpop.f32.mrb[0].mxu0
        %v3422 = vadd.f32 %v3316, %v3421
        %3423 = vmatprep.mubr.f32.mxu0 0.0
        %3424 = vmatmul.mubr.f32.gmra.mrb[0].mxu0 %v3232
        %v3425 = vpop.f32.mrb[0].mxu0
        %v3426 = vadd.f32 %v3321, %v3425
        %v3427 = vpop.f32.mrb[0].mxu0
        %v3428 = vadd.f32 %v3321, %v3427
        %3429 = vmatprep.mubr.f32.mxu0 0.0
        %3430 = vmatmul.mubr.f32.gmra.mrb[0].mxu0 %v3237
        %v3431 = vpop.f32.mrb[0].mxu0
        %v3432 = vadd.f32 %v3326, %v3431
        %v3433 = vpop.f32.mrb[0].mxu0
        %v3434 = vadd.f32 %v3326, %v3433
        %3435 = vmatprep.mubr.f32.mxu0 0.0
        %3436 = vmatmul.mubr.f32.gmra.mrb[0].mxu0 %v3242
        %v3437 = vpop.f32.mrb[0].mxu0
        %v3438 = vadd.f32 %v3331, %v3437
        %v3439 = vpop.f32.mrb[0].mxu0
        %v3440 = vadd.f32 %v3331, %v3439
        %3441 = vmatprep.mubr.f32.mxu0 0.0
        %3442 = vmatmul.mubr.f32.gmra.mrb[0].mxu0 %v3247
        %v3443 = vpop.f32.mrb[0].mxu0
        %v3444 = vadd.f32 %v3336, %v3443
        %v3445 = vpop.f32.mrb[0].mxu0
        %v3446 = vadd.f32 %v3336, %v3445
        %3447 = vmatprep.mubr.f32.mxu0 0.0
        %3448 = vmatmul.mubr.f32.gmra.mrb[0].mxu0 %v3252
        %v3449 = vpop.f32.mrb[0].mxu0
        %v3450 = vadd.f32 %v3341, %v3449
        %v3451 = vpop.f32.mrb[0].mxu0
        %v3452 = vadd.f32 %v3341, %v3451
        %3453 = vmatprep.mubr.f32.mxu0 0.0
        %3454 = vmatmul.mubr.f32.gmra.mrb[0].mxu0 %v3257
        %v3455 = vpop.f32.mrb[0].mxu0
        %v3456 = vadd.f32 %v3346, %v3455
        %v3457 = vpop.f32.mrb[0].mxu0
        %v3458 = vadd.f32 %v3346, %v3457
        %3459 = vmatprep.mubr.f32.mxu0 0.0
        %3460 = vmatmul.mubr.f32.gmra.mrb[0].mxu0 %v3262
        %v3461 = vpop.f32.mrb[0].mxu0
        %v3462 = vadd.f32 %v3351, %v3461
        %v3463 = vpop.f32.mrb[0].mxu0
        %v3464 = vadd.f32 %v3351, %v3463
        %3465 = vdwg.mxu0
        %v3466 = vmax.f32 %v3420, 0.0
        %v3467 = vmax.f32 %v3422, 0.0
        %v3468 = vmax.f32 %v3426, 0.0
        %v3469 = vmax.f32 %v3428, 0.0
        %v3470 = vmax.f32 %v3432, 0.0
        %v3471 = vmax.f32 %v3434, 0.0
        %v3472 = vmax.f32 %v3438, 0.0
        %v3473 = vmax.f32 %v3440, 0.0
        %v3474 = vmax.f32 %v3444, 0.0
        %v3475 = vmax.f32 %v3446, 0.0
        %v3476 = vmax.f32 %v3450, 0.0
        %v3477 = vmax.f32 %v3452, 0.0
        %v3478 = vmax.f32 %v3456, 0.0
        %v3479 = vmax.f32 %v3458, 0.0
        %v3480 = vmax.f32 %v3462, 0.0
        %v3481 = vmax.f32 %v3464, 0.0
        %vm3482 = vcmask 523264
        %v3484 = vsel %vm3482, %v3104, 0
        %v3487 = vsel %vm3482, %v3105, 0
        %v3490 = vsel %vm3482, %v3106, 0
        %v3493 = vsel %vm3482, %v3107, 0
        %v3496 = vsel %vm3482, %v3108, 0
        %v3499 = vsel %vm3482, %v3109, 0
        %v3502 = vsel %vm3482, %v3110, 0
        %v3505 = vsel %vm3482, %v3111, 0
        %3507 = vmatprep.subr.mxu0 %v3467
        %3508 = vmatpush1.msra.mxu0 %v3466
        %3509 = vmatprep.subr.mxu0 %v3469
        %3510 = vmatpush1.msra.mxu0 %v3468
        %3511 = vmatprep.subr.mxu0 %v3471
        %3512 = vmatpush1.msra.mxu0 %v3470
        %3513 = vmatprep.subr.mxu0 %v3473
        %3514 = vmatpush1.msra.mxu0 %v3472
        %3515 = vmatprep.subr.mxu0 %v3475
        %3516 = vmatpush1.msra.mxu0 %v3474
        %3517 = vmatprep.subr.mxu0 %v3477
        %3518 = vmatpush1.msra.mxu0 %v3476
        %3519 = vmatprep.subr.mxu0 %v3479
        %3520 = vmatpush1.msra.mxu0 %v3478
        %3521 = vmatprep.subr.mxu0 %v3481
        %3522 = vmatpush1.msra.mxu0 %v3480
        %3523 = vmatprep.subr.mxu0 0.0
        %3524 = vmatpush1.msra.mxu0 0.0
        %3525 = vmatprep.subr.mxu0 0.0
        %3526 = vmatpush1.msra.mxu0 0.0
        %3527 = vmatprep.subr.mxu0 0.0
        %3528 = vmatpush1.msra.mxu0 0.0
        %3529 = vmatprep.subr.mxu0 0.0
        %3530 = vmatpush1.msra.mxu0 0.0
        %3531 = vmatprep.subr.mxu0 0.0
        %3532 = vmatpush1.msra.mxu0 0.0
        %3533 = vmatprep.subr.mxu0 0.0
        %3534 = vmatpush1.msra.mxu0 0.0
        %3535 = vmatprep.subr.mxu0 0.0
        %3536 = vmatpush1.msra.mxu0 0.0
        %3537 = vmatprep.subr.mxu0 0.0
        %3538 = vmatpush1.msra.mxu0 0.0
        %3539 = vmatprep.subr.mxu0 0.0
        %3540 = vmatpush1.msra.mxu0 0.0
        %3541 = vmatprep.subr.mxu0 0.0
        %3542 = vmatpush1.msra.mxu0 0.0
        %3543 = vmatprep.subr.mxu0 0.0
        %3544 = vmatpush1.msra.mxu0 0.0
        %3545 = vmatprep.subr.mxu0 0.0
        %3546 = vmatpush1.msra.mxu0 0.0
        %3547 = vmatprep.subr.mxu0 0.0
        %3548 = vmatpush1.msra.mxu0 0.0
        %3549 = vmatprep.subr.mxu0 0.0
        %3550 = vmatpush1.msra.mxu0 0.0
        %3551 = vmatprep.subr.mxu0 0.0
        %3552 = vmatpush1.msra.mxu0 0.0
        %3553 = vmatprep.subr.mxu0 0.0
        %3554 = vmatpush1.msra.mxu0 0.0
        %3555 = vmatprep.subr.mxu0 0.0
        %3556 = vmatpush1.msra.mxu0 0.0
        %3557 = vmatprep.subr.mxu0 0.0
        %3558 = vmatpush1.msra.mxu0 0.0
        %3559 = vmatprep.subr.mxu0 0.0
        %3560 = vmatpush1.msra.mxu0 0.0
        %3561 = vmatprep.subr.mxu0 0.0
        %3562 = vmatpush1.msra.mxu0 0.0
        %3563 = vmatprep.subr.mxu0 0.0
        %3564 = vmatpush1.msra.mxu0 0.0
        %3565 = vmatprep.subr.mxu0 0.0
        %3566 = vmatpush1.msra.mxu0 0.0
        %3567 = vmatprep.subr.mxu0 0.0
        %3568 = vmatpush1.msra.mxu0 0.0
        %3569 = vmatprep.subr.mxu0 0.0
        %3570 = vmatpush1.msra.mxu0 0.0
        %3571 = vmatprep.mubr.f32.mxu0 0.0
        %3572 = vmatmul.mubr.f32.gmra.mrb[0].mxu0 %v3484
        %v3573 = vpop.f32.mrb[0].mxu0
        %v3574 = vadd.f32 0.0, %v3573
        %v3575 = vpop.f32.mrb[0].mxu0
        %v3576 = vadd.f32 0.0, %v3575
        %3577 = vmatprep.mubr.f32.mxu0 0.0
        %3578 = vmatmul.mubr.f32.gmra.mrb[0].mxu0 %v3487
        %v3579 = vpop.f32.mrb[0].mxu0
        %v3580 = vadd.f32 0.0, %v3579
        %v3581 = vpop.f32.mrb[0].mxu0
        %v3582 = vadd.f32 0.0, %v3581
        %3583 = vmatprep.mubr.f32.mxu0 0.0
        %3584 = vmatmul.mubr.f32.gmra.mrb[0].mxu0 %v3490
        %v3585 = vpop.f32.mrb[0].mxu0
        %v3586 = vadd.f32 0.0, %v3585
        %v3587 = vpop.f32.mrb[0].mxu0
        %v3588 = vadd.f32 0.0, %v3587
        %3589 = vmatprep.mubr.f32.mxu0 0.0
        %3590 = vmatmul.mubr.f32.gmra.mrb[0].mxu0 %v3493
        %v3591 = vpop.f32.mrb[0].mxu0
        %v3592 = vadd.f32 0.0, %v3591
        %v3593 = vpop.f32.mrb[0].mxu0
        %v3594 = vadd.f32 0.0, %v3593
        %3595 = vmatprep.mubr.f32.mxu0 0.0
        %3596 = vmatmul.mubr.f32.gmra.mrb[0].mxu0 %v3496
        %v3597 = vpop.f32.mrb[0].mxu0
        %v3598 = vadd.f32 0.0, %v3597
        %v3599 = vpop.f32.mrb[0].mxu0
        %v3600 = vadd.f32 0.0, %v3599
        %3601 = vmatprep.mubr.f32.mxu0 0.0
        %3602 = vmatmul.mubr.f32.gmra.mrb[0].mxu0 %v3499
        %v3603 = vpop.f32.mrb[0].mxu0
        %v3604 = vadd.f32 0.0, %v3603
        %v3605 = vpop.f32.mrb[0].mxu0
        %v3606 = vadd.f32 0.0, %v3605
        %3607 = vmatprep.mubr.f32.mxu0 0.0
        %3608 = vmatmul.mubr.f32.gmra.mrb[0].mxu0 %v3502
        %v3609 = vpop.f32.mrb[0].mxu0
        %v3610 = vadd.f32 0.0, %v3609
        %v3611 = vpop.f32.mrb[0].mxu0
        %v3612 = vadd.f32 0.0, %v3611
        %3613 = vmatprep.mubr.f32.mxu0 0.0
        %3614 = vmatmul.mubr.f32.gmra.mrb[0].mxu0 %v3505
        %v3615 = vpop.f32.mrb[0].mxu0
        %v3616 = vadd.f32 0.0, %v3615
        %v3617 = vpop.f32.mrb[0].mxu0
        %v3618 = vadd.f32 0.0, %v3617
        %3619 = vdwg.mxu0
        %v3620 = vld [vmem:[#allocation2 + $0x10] sm:$0xff]
        %v3621 = vld [vmem:[#allocation2 + $0x18] sm:$0xff]
        %v3622 = vld [vmem:[#allocation2 + $0x70] sm:$0xff]
        %v3623 = vld [vmem:[#allocation2 + $0x78] sm:$0xff]
        %v3624 = vld [vmem:[#allocation2 + $0xd0] sm:$0xff]
        %v3625 = vld [vmem:[#allocation2 + $0xd8] sm:$0xff]
        %v3626 = vld [vmem:[#allocation2 + $0x130] sm:$0xff]
        %v3627 = vld [vmem:[#allocation2 + $0x138] sm:$0xff]
        %v3628 = vld [vmem:[#allocation2 + $0x190] sm:$0xff]
        %v3629 = vld [vmem:[#allocation2 + $0x198] sm:$0xff]
        %v3630 = vld [vmem:[#allocation2 + $0x1f0] sm:$0xff]
        %v3631 = vld [vmem:[#allocation2 + $0x1f8] sm:$0xff]
        %v3632 = vld [vmem:[#allocation2 + $0x250] sm:$0xff]
        %v3633 = vld [vmem:[#allocation2 + $0x258] sm:$0xff]
        %v3634 = vld [vmem:[#allocation2 + $0x2b0] sm:$0xff]
        %v3635 = vld [vmem:[#allocation2 + $0x2b8] sm:$0xff]
        %v3636 = vunpack.c.l.bf16 %v3620
        %v3637 = vunpack.c.l.bf16 %v3621
        %v3638 = vunpack.c.h.bf16 %v3620
        %v3639 = vunpack.c.h.bf16 %v3621
        %v3640 = vunpack.c.l.bf16 %v3622
        %v3641 = vunpack.c.l.bf16 %v3623
        %v3642 = vunpack.c.h.bf16 %v3622
        %v3643 = vunpack.c.h.bf16 %v3623
        %v3644 = vunpack.c.l.bf16 %v3624
        %v3645 = vunpack.c.l.bf16 %v3625
        %v3646 = vunpack.c.h.bf16 %v3624
        %v3647 = vunpack.c.h.bf16 %v3625
        %v3648 = vunpack.c.l.bf16 %v3626
        %v3649 = vunpack.c.l.bf16 %v3627
        %v3650 = vunpack.c.h.bf16 %v3626
        %v3651 = vunpack.c.h.bf16 %v3627
        %v3652 = vunpack.c.l.bf16 %v3628
        %v3653 = vunpack.c.l.bf16 %v3629
        %v3654 = vunpack.c.h.bf16 %v3628
        %v3655 = vunpack.c.h.bf16 %v3629
        %v3656 = vunpack.c.l.bf16 %v3630
        %v3657 = vunpack.c.l.bf16 %v3631
        %v3658 = vunpack.c.h.bf16 %v3630
        %v3659 = vunpack.c.h.bf16 %v3631
        %v3660 = vunpack.c.l.bf16 %v3632
        %v3661 = vunpack.c.l.bf16 %v3633
        %v3662 = vunpack.c.h.bf16 %v3632
        %v3663 = vunpack.c.h.bf16 %v3633
        %v3664 = vunpack.c.l.bf16 %v3634
        %v3665 = vunpack.c.l.bf16 %v3635
        %v3666 = vunpack.c.h.bf16 %v3634
        %v3667 = vunpack.c.h.bf16 %v3635
        %3668 = vmatprep.subr.mxu0 %v3637
        %3669 = vmatpush1.msra.mxu0 %v3636
        %3670 = vmatprep.subr.mxu0 %v3639
        %3671 = vmatpush1.msra.mxu0 %v3638
        %3672 = vmatprep.subr.mxu0 %v3641
        %3673 = vmatpush1.msra.mxu0 %v3640
        %3674 = vmatprep.subr.mxu0 %v3643
        %3675 = vmatpush1.msra.mxu0 %v3642
        %3676 = vmatprep.subr.mxu0 %v3645
        %3677 = vmatpush1.msra.mxu0 %v3644
        %3678 = vmatprep.subr.mxu0 %v3647
        %3679 = vmatpush1.msra.mxu0 %v3646
        %3680 = vmatprep.subr.mxu0 %v3649
        %3681 = vmatpush1.msra.mxu0 %v3648
        %3682 = vmatprep.subr.mxu0 %v3651
        %3683 = vmatpush1.msra.mxu0 %v3650
        %3684 = vmatprep.subr.mxu0 %v3653
        %3685 = vmatpush1.msra.mxu0 %v3652
        %3686 = vmatprep.subr.mxu0 %v3655
        %3687 = vmatpush1.msra.mxu0 %v3654
        %3688 = vmatprep.subr.mxu0 %v3657
        %3689 = vmatpush1.msra.mxu0 %v3656
        %3690 = vmatprep.subr.mxu0 %v3659
        %3691 = vmatpush1.msra.mxu0 %v3658
        %3692 = vmatprep.subr.mxu0 %v3661
        %3693 = vmatpush1.msra.mxu0 %v3660
        %3694 = vmatprep.subr.mxu0 %v3663
        %3695 = vmatpush1.msra.mxu0 %v3662
        %3696 = vmatprep.subr.mxu0 %v3665
        %3697 = vmatpush1.msra.mxu0 %v3664
        %3698 = vmatprep.subr.mxu0 %v3667
        %3699 = vmatpush1.msra.mxu0 %v3666
        %3700 = vmatprep.subr.mxu0 0.0
        %3701 = vmatpush1.msra.mxu0 0.0
        %3702 = vmatprep.subr.mxu0 0.0
        %3703 = vmatpush1.msra.mxu0 0.0
        %3704 = vmatprep.subr.mxu0 0.0
        %3705 = vmatpush1.msra.mxu0 0.0
        %3706 = vmatprep.subr.mxu0 0.0
        %3707 = vmatpush1.msra.mxu0 0.0
        %3708 = vmatprep.subr.mxu0 0.0
        %3709 = vmatpush1.msra.mxu0 0.0
        %3710 = vmatprep.subr.mxu0 0.0
        %3711 = vmatpush1.msra.mxu0 0.0
        %3712 = vmatprep.subr.mxu0 0.0
        %3713 = vmatpush1.msra.mxu0 0.0
        %3714 = vmatprep.subr.mxu0 0.0
        %3715 = vmatpush1.msra.mxu0 0.0
        %3716 = vmatprep.subr.mxu0 0.0
        %3717 = vmatpush1.msra.mxu0 0.0
        %3718 = vmatprep.subr.mxu0 0.0
        %3719 = vmatpush1.msra.mxu0 0.0
        %3720 = vmatprep.subr.mxu0 0.0
        %3721 = vmatpush1.msra.mxu0 0.0
        %3722 = vmatprep.subr.mxu0 0.0
        %3723 = vmatpush1.msra.mxu0 0.0
        %3724 = vmatprep.subr.mxu0 0.0
        %3725 = vmatpush1.msra.mxu0 0.0
        %3726 = vmatprep.subr.mxu0 0.0
        %3727 = vmatpush1.msra.mxu0 0.0
        %3728 = vmatprep.subr.mxu0 0.0
        %3729 = vmatpush1.msra.mxu0 0.0
        %3730 = vmatprep.subr.mxu0 0.0
        %3731 = vmatpush1.msra.mxu0 0.0
        %3732 = vmatprep.mubr.f32.mxu0 0.0
        %3733 = vmatmul.mubr.f32.gmra.mrb[0].mxu0 %v3227
        %v3734 = vpop.f32.mrb[0].mxu0
        %v3735 = vadd.f32 %v3316, %v3734
        %v3736 = vpop.f32.mrb[0].mxu0
        %v3737 = vadd.f32 %v3316, %v3736
        %3738 = vmatprep.mubr.f32.mxu0 0.0
        %3739 = vmatmul.mubr.f32.gmra.mrb[0].mxu0 %v3232
        %v3740 = vpop.f32.mrb[0].mxu0
        %v3741 = vadd.f32 %v3321, %v3740
        %v3742 = vpop.f32.mrb[0].mxu0
        %v3743 = vadd.f32 %v3321, %v3742
        %3744 = vmatprep.mubr.f32.mxu0 0.0
        %3745 = vmatmul.mubr.f32.gmra.mrb[0].mxu0 %v3237
        %v3746 = vpop.f32.mrb[0].mxu0
        %v3747 = vadd.f32 %v3326, %v3746
        %v3748 = vpop.f32.mrb[0].mxu0
        %v3749 = vadd.f32 %v3326, %v3748
        %3750 = vmatprep.mubr.f32.mxu0 0.0
        %3751 = vmatmul.mubr.f32.gmra.mrb[0].mxu0 %v3242
        %v3752 = vpop.f32.mrb[0].mxu0
        %v3753 = vadd.f32 %v3331, %v3752
        %v3754 = vpop.f32.mrb[0].mxu0
        %v3755 = vadd.f32 %v3331, %v3754
        %3756 = vmatprep.mubr.f32.mxu0 0.0
        %3757 = vmatmul.mubr.f32.gmra.mrb[0].mxu0 %v3247
        %v3758 = vpop.f32.mrb[0].mxu0
        %v3759 = vadd.f32 %v3336, %v3758
        %v3760 = vpop.f32.mrb[0].mxu0
        %v3761 = vadd.f32 %v3336, %v3760
        %3762 = vmatprep.mubr.f32.mxu0 0.0
        %3763 = vmatmul.mubr.f32.gmra.mrb[0].mxu0 %v3252
        %v3764 = vpop.f32.mrb[0].mxu0
        %v3765 = vadd.f32 %v3341, %v3764
        %v3766 = vpop.f32.mrb[0].mxu0
        %v3767 = vadd.f32 %v3341, %v3766
        %3768 = vmatprep.mubr.f32.mxu0 0.0
        %3769 = vmatmul.mubr.f32.gmra.mrb[0].mxu0 %v3257
        %v3770 = vpop.f32.mrb[0].mxu0
        %v3771 = vadd.f32 %v3346, %v3770
        %v3772 = vpop.f32.mrb[0].mxu0
        %v3773 = vadd.f32 %v3346, %v3772
        %3774 = vmatprep.mubr.f32.mxu0 0.0
        %3775 = vmatmul.mubr.f32.gmra.mrb[0].mxu0 %v3262
        %v3776 = vpop.f32.mrb[0].mxu0
        %v3777 = vadd.f32 %v3351, %v3776
        %v3778 = vpop.f32.mrb[0].mxu0
        %v3779 = vadd.f32 %v3351, %v3778
        %3780 = vdwg.mxu0
        %v3781 = vmax.f32 %v3735, 0.0
        %v3782 = vmax.f32 %v3737, 0.0
        %v3783 = vmax.f32 %v3741, 0.0
        %v3784 = vmax.f32 %v3743, 0.0
        %v3785 = vmax.f32 %v3747, 0.0
        %v3786 = vmax.f32 %v3749, 0.0
        %v3787 = vmax.f32 %v3753, 0.0
        %v3788 = vmax.f32 %v3755, 0.0
        %v3789 = vmax.f32 %v3759, 0.0
        %v3790 = vmax.f32 %v3761, 0.0
        %v3791 = vmax.f32 %v3765, 0.0
        %v3792 = vmax.f32 %v3767, 0.0
        %v3793 = vmax.f32 %v3771, 0.0
        %v3794 = vmax.f32 %v3773, 0.0
        %v3795 = vmax.f32 %v3777, 0.0
        %v3796 = vmax.f32 %v3779, 0.0
        %3797 = vmatprep.subr.mxu0 %v3782
        %3798 = vmatpush1.msra.mxu0 %v3781
        %3799 = vmatprep.subr.mxu0 %v3784
        %3800 = vmatpush1.msra.mxu0 %v3783
        %3801 = vmatprep.subr.mxu0 %v3786
        %3802 = vmatpush1.msra.mxu0 %v3785
        %3803 = vmatprep.subr.mxu0 %v3788
        %3804 = vmatpush1.msra.mxu0 %v3787
        %3805 = vmatprep.subr.mxu0 %v3790
        %3806 = vmatpush1.msra.mxu0 %v3789
        %3807 = vmatprep.subr.mxu0 %v3792
        %3808 = vmatpush1.msra.mxu0 %v3791
        %3809 = vmatprep.subr.mxu0 %v3794
        %3810 = vmatpush1.msra.mxu0 %v3793
        %3811 = vmatprep.subr.mxu0 %v3796
        %3812 = vmatpush1.msra.mxu0 %v3795
        %3813 = vmatprep.subr.mxu0 0.0
        %3814 = vmatpush1.msra.mxu0 0.0
        %3815 = vmatprep.subr.mxu0 0.0
        %3816 = vmatpush1.msra.mxu0 0.0
        %3817 = vmatprep.subr.mxu0 0.0
        %3818 = vmatpush1.msra.mxu0 0.0
        %3819 = vmatprep.subr.mxu0 0.0
        %3820 = vmatpush1.msra.mxu0 0.0
        %3821 = vmatprep.subr.mxu0 0.0
        %3822 = vmatpush1.msra.mxu0 0.0
        %3823 = vmatprep.subr.mxu0 0.0
        %3824 = vmatpush1.msra.mxu0 0.0
        %3825 = vmatprep.subr.mxu0 0.0
        %3826 = vmatpush1.msra.mxu0 0.0
        %3827 = vmatprep.subr.mxu0 0.0
        %3828 = vmatpush1.msra.mxu0 0.0
        %3829 = vmatprep.subr.mxu0 0.0
        %3830 = vmatpush1.msra.mxu0 0.0
        %3831 = vmatprep.subr.mxu0 0.0
        %3832 = vmatpush1.msra.mxu0 0.0
        %3833 = vmatprep.subr.mxu0 0.0
        %3834 = vmatpush1.msra.mxu0 0.0
        %3835 = vmatprep.subr.mxu0 0.0
        %3836 = vmatpush1.msra.mxu0 0.0
        %3837 = vmatprep.subr.mxu0 0.0
        %3838 = vmatpush1.msra.mxu0 0.0
        %3839 = vmatprep.subr.mxu0 0.0
        %3840 = vmatpush1.msra.mxu0 0.0
        %3841 = vmatprep.subr.mxu0 0.0
        %3842 = vmatpush1.msra.mxu0 0.0
        %3843 = vmatprep.subr.mxu0 0.0
        %3844 = vmatpush1.msra.mxu0 0.0
        %3845 = vmatprep.subr.mxu0 0.0
        %3846 = vmatpush1.msra.mxu0 0.0
        %3847 = vmatprep.subr.mxu0 0.0
        %3848 = vmatpush1.msra.mxu0 0.0
        %3849 = vmatprep.subr.mxu0 0.0
        %3850 = vmatpush1.msra.mxu0 0.0
        %3851 = vmatprep.subr.mxu0 0.0
        %3852 = vmatpush1.msra.mxu0 0.0
        %3853 = vmatprep.subr.mxu0 0.0
        %3854 = vmatpush1.msra.mxu0 0.0
        %3855 = vmatprep.subr.mxu0 0.0
        %3856 = vmatpush1.msra.mxu0 0.0
        %3857 = vmatprep.subr.mxu0 0.0
        %3858 = vmatpush1.msra.mxu0 0.0
        %3859 = vmatprep.subr.mxu0 0.0
        %3860 = vmatpush1.msra.mxu0 0.0
        %3861 = vmatprep.mubr.f32.mxu0 0.0
        %3862 = vmatmul.mubr.f32.gmra.mrb[0].mxu0 %v3484
        %v3863 = vpop.f32.mrb[0].mxu0
        %v3864 = vadd.f32 0.0, %v3863
        %v3865 = vpop.f32.mrb[0].mxu0
        %v3866 = vadd.f32 0.0, %v3865
        %3867 = vmatprep.mubr.f32.mxu0 0.0
        %3868 = vmatmul.mubr.f32.gmra.mrb[0].mxu0 %v3487
        %v3869 = vpop.f32.mrb[0].mxu0
        %v3870 = vadd.f32 0.0, %v3869
        %v3871 = vpop.f32.mrb[0].mxu0
        %v3872 = vadd.f32 0.0, %v3871
        %3873 = vmatprep.mubr.f32.mxu0 0.0
        %3874 = vmatmul.mubr.f32.gmra.mrb[0].mxu0 %v3490
        %v3875 = vpop.f32.mrb[0].mxu0
        %v3876 = vadd.f32 0.0, %v3875
        %v3877 = vpop.f32.mrb[0].mxu0
        %v3878 = vadd.f32 0.0, %v3877
        %3879 = vmatprep.mubr.f32.mxu0 0.0
        %3880 = vmatmul.mubr.f32.gmra.mrb[0].mxu0 %v3493
        %v3881 = vpop.f32.mrb[0].mxu0
        %v3882 = vadd.f32 0.0, %v3881
        %v3883 = vpop.f32.mrb[0].mxu0
        %v3884 = vadd.f32 0.0, %v3883
        %3885 = vmatprep.mubr.f32.mxu0 0.0
        %3886 = vmatmul.mubr.f32.gmra.mrb[0].mxu0 %v3496
        %v3887 = vpop.f32.mrb[0].mxu0
        %v3888 = vadd.f32 0.0, %v3887
        %v3889 = vpop.f32.mrb[0].mxu0
        %v3890 = vadd.f32 0.0, %v3889
        %3891 = vmatprep.mubr.f32.mxu0 0.0
        %3892 = vmatmul.mubr.f32.gmra.mrb[0].mxu0 %v3499
        %v3893 = vpop.f32.mrb[0].mxu0
        %v3894 = vadd.f32 0.0, %v3893
        %v3895 = vpop.f32.mrb[0].mxu0
        %v3896 = vadd.f32 0.0, %v3895
        %3897 = vmatprep.mubr.f32.mxu0 0.0
        %3898 = vmatmul.mubr.f32.gmra.mrb[0].mxu0 %v3502
        %v3899 = vpop.f32.mrb[0].mxu0
        %v3900 = vadd.f32 0.0, %v3899
        %v3901 = vpop.f32.mrb[0].mxu0
        %v3902 = vadd.f32 0.0, %v3901
        %3903 = vmatprep.mubr.f32.mxu0 0.0
        %3904 = vmatmul.mubr.f32.gmra.mrb[0].mxu0 %v3505
        %v3905 = vpop.f32.mrb[0].mxu0
        %v3906 = vadd.f32 0.0, %v3905
        %v3907 = vpop.f32.mrb[0].mxu0
        %v3908 = vadd.f32 0.0, %v3907
        %3909 = vdwg.mxu0
        %v3910 = vmax.f32 %v3574, %v3864
        %v3911 = vmax.f32 %v3576, %v3866
        %v3912 = vmax.f32 %v3580, %v3870
        %v3913 = vmax.f32 %v3582, %v3872
        %v3914 = vmax.f32 %v3586, %v3876
        %v3915 = vmax.f32 %v3588, %v3878
        %v3916 = vmax.f32 %v3592, %v3882
        %v3917 = vmax.f32 %v3594, %v3884
        %v3918 = vmax.f32 %v3598, %v3888
        %v3919 = vmax.f32 %v3600, %v3890
        %v3920 = vmax.f32 %v3604, %v3894
        %v3921 = vmax.f32 %v3606, %v3896
        %v3922 = vmax.f32 %v3610, %v3900
        %v3923 = vmax.f32 %v3612, %v3902
        %v3924 = vmax.f32 %v3616, %v3906
        %v3925 = vmax.f32 %v3618, %v3908
        %v3926 = vld [vmem:[#allocation2 + $0x20] sm:$0xff]
        %v3927 = vld [vmem:[#allocation2 + $0x28] sm:$0xff]
        %v3928 = vld [vmem:[#allocation2 + $0x80] sm:$0xff]
        %v3929 = vld [vmem:[#allocation2 + $0x88] sm:$0xff]
        %v3930 = vld [vmem:[#allocation2 + $0xe0] sm:$0xff]
        %v3931 = vld [vmem:[#allocation2 + $0xe8] sm:$0xff]
        %v3932 = vld [vmem:[#allocation2 + $0x140] sm:$0xff]
        %v3933 = vld [vmem:[#allocation2 + $0x148] sm:$0xff]
        %v3934 = vld [vmem:[#allocation2 + $0x1a0] sm:$0xff]
        %v3935 = vld [vmem:[#allocation2 + $0x1a8] sm:$0xff]
        %v3936 = vld [vmem:[#allocation2 + $0x200] sm:$0xff]
        %v3937 = vld [vmem:[#allocation2 + $0x208] sm:$0xff]
        %v3938 = vld [vmem:[#allocation2 + $0x260] sm:$0xff]
        %v3939 = vld [vmem:[#allocation2 + $0x268] sm:$0xff]
        %v3940 = vld [vmem:[#allocation2 + $0x2c0] sm:$0xff]
        %v3941 = vld [vmem:[#allocation2 + $0x2c8] sm:$0xff]
        %v3942 = vunpack.c.l.bf16 %v3926
        %v3943 = vunpack.c.l.bf16 %v3927
        %v3944 = vunpack.c.h.bf16 %v3926
        %v3945 = vunpack.c.h.bf16 %v3927
        %v3946 = vunpack.c.l.bf16 %v3928
        %v3947 = vunpack.c.l.bf16 %v3929
        %v3948 = vunpack.c.h.bf16 %v3928
        %v3949 = vunpack.c.h.bf16 %v3929
        %v3950 = vunpack.c.l.bf16 %v3930
        %v3951 = vunpack.c.l.bf16 %v3931
        %v3952 = vunpack.c.h.bf16 %v3930
        %v3953 = vunpack.c.h.bf16 %v3931
        %v3954 = vunpack.c.l.bf16 %v3932
        %v3955 = vunpack.c.l.bf16 %v3933
        %v3956 = vunpack.c.h.bf16 %v3932
        %v3957 = vunpack.c.h.bf16 %v3933
        %v3958 = vunpack.c.l.bf16 %v3934
        %v3959 = vunpack.c.l.bf16 %v3935
        %v3960 = vunpack.c.h.bf16 %v3934
        %v3961 = vunpack.c.h.bf16 %v3935
        %v3962 = vunpack.c.l.bf16 %v3936
        %v3963 = vunpack.c.l.bf16 %v3937
        %v3964 = vunpack.c.h.bf16 %v3936
        %v3965 = vunpack.c.h.bf16 %v3937
        %v3966 = vunpack.c.l.bf16 %v3938
        %v3967 = vunpack.c.l.bf16 %v3939
        %v3968 = vunpack.c.h.bf16 %v3938
        %v3969 = vunpack.c.h.bf16 %v3939
        %v3970 = vunpack.c.l.bf16 %v3940
        %v3971 = vunpack.c.l.bf16 %v3941
        %v3972 = vunpack.c.h.bf16 %v3940
        %v3973 = vunpack.c.h.bf16 %v3941
        %3974 = vmatprep.subr.mxu0 %v3943
        %3975 = vmatpush1.msra.mxu0 %v3942
        %3976 = vmatprep.subr.mxu0 %v3945
        %3977 = vmatpush1.msra.mxu0 %v3944
        %3978 = vmatprep.subr.mxu0 %v3947
        %3979 = vmatpush1.msra.mxu0 %v3946
        %3980 = vmatprep.subr.mxu0 %v3949
        %3981 = vmatpush1.msra.mxu0 %v3948
        %3982 = vmatprep.subr.mxu0 %v3951
        %3983 = vmatpush1.msra.mxu0 %v3950
        %3984 = vmatprep.subr.mxu0 %v3953
        %3985 = vmatpush1.msra.mxu0 %v3952
        %3986 = vmatprep.subr.mxu0 %v3955
        %3987 = vmatpush1.msra.mxu0 %v3954
        %3988 = vmatprep.subr.mxu0 %v3957
        %3989 = vmatpush1.msra.mxu0 %v3956
        %3990 = vmatprep.subr.mxu0 %v3959
        %3991 = vmatpush1.msra.mxu0 %v3958
        %3992 = vmatprep.subr.mxu0 %v3961
        %3993 = vmatpush1.msra.mxu0 %v3960
        %3994 = vmatprep.subr.mxu0 %v3963
        %3995 = vmatpush1.msra.mxu0 %v3962
        %3996 = vmatprep.subr.mxu0 %v3965
        %3997 = vmatpush1.msra.mxu0 %v3964
        %3998 = vmatprep.subr.mxu0 %v3967
        %3999 = vmatpush1.msra.mxu0 %v3966
        %4000 = vmatprep.subr.mxu0 %v3969
        %4001 = vmatpush1.msra.mxu0 %v3968
        %4002 = vmatprep.subr.mxu0 %v3971
        %4003 = vmatpush1.msra.mxu0 %v3970
        %4004 = vmatprep.subr.mxu0 %v3973
        %4005 = vmatpush1.msra.mxu0 %v3972
        %4006 = vmatprep.subr.mxu0 0.0
        %4007 = vmatpush1.msra.mxu0 0.0
        %4008 = vmatprep.subr.mxu0 0.0
        %4009 = vmatpush1.msra.mxu0 0.0
        %4010 = vmatprep.subr.mxu0 0.0
        %4011 = vmatpush1.msra.mxu0 0.0
        %4012 = vmatprep.subr.mxu0 0.0
        %4013 = vmatpush1.msra.mxu0 0.0
        %4014 = vmatprep.subr.mxu0 0.0
        %4015 = vmatpush1.msra.mxu0 0.0
        %4016 = vmatprep.subr.mxu0 0.0
        %4017 = vmatpush1.msra.mxu0 0.0
        %4018 = vmatprep.subr.mxu0 0.0
        %4019 = vmatpush1.msra.mxu0 0.0
        %4020 = vmatprep.subr.mxu0 0.0
        %4021 = vmatpush1.msra.mxu0 0.0
        %4022 = vmatprep.subr.mxu0 0.0
        %4023 = vmatpush1.msra.mxu0 0.0
        %4024 = vmatprep.subr.mxu0 0.0
        %4025 = vmatpush1.msra.mxu0 0.0
        %4026 = vmatprep.subr.mxu0 0.0
        %4027 = vmatpush1.msra.mxu0 0.0
        %4028 = vmatprep.subr.mxu0 0.0
        %4029 = vmatpush1.msra.mxu0 0.0
        %4030 = vmatprep.subr.mxu0 0.0
        %4031 = vmatpush1.msra.mxu0 0.0
        %4032 = vmatprep.subr.mxu0 0.0
        %4033 = vmatpush1.msra.mxu0 0.0
        %4034 = vmatprep.subr.mxu0 0.0
        %4035 = vmatpush1.msra.mxu0 0.0
        %4036 = vmatprep.subr.mxu0 0.0
        %4037 = vmatpush1.msra.mxu0 0.0
        %4038 = vmatprep.mubr.f32.mxu0 0.0
        %4039 = vmatmul.mubr.f32.gmra.mrb[0].mxu0 %v3227
        %v4040 = vpop.f32.mrb[0].mxu0
        %v4041 = vadd.f32 %v3316, %v4040
        %v4042 = vpop.f32.mrb[0].mxu0
        %v4043 = vadd.f32 %v3316, %v4042
        %4044 = vmatprep.mubr.f32.mxu0 0.0
        %4045 = vmatmul.mubr.f32.gmra.mrb[0].mxu0 %v3232
        %v4046 = vpop.f32.mrb[0].mxu0
        %v4047 = vadd.f32 %v3321, %v4046
        %v4048 = vpop.f32.mrb[0].mxu0
        %v4049 = vadd.f32 %v3321, %v4048
        %4050 = vmatprep.mubr.f32.mxu0 0.0
        %4051 = vmatmul.mubr.f32.gmra.mrb[0].mxu0 %v3237
        %v4052 = vpop.f32.mrb[0].mxu0
        %v4053 = vadd.f32 %v3326, %v4052
        %v4054 = vpop.f32.mrb[0].mxu0
        %v4055 = vadd.f32 %v3326, %v4054
        %4056 = vmatprep.mubr.f32.mxu0 0.0
        %4057 = vmatmul.mubr.f32.gmra.mrb[0].mxu0 %v3242
        %v4058 = vpop.f32.mrb[0].mxu0
        %v4059 = vadd.f32 %v3331, %v4058
        %v4060 = vpop.f32.mrb[0].mxu0
        %v4061 = vadd.f32 %v3331, %v4060
        %4062 = vmatprep.mubr.f32.mxu0 0.0
        %4063 = vmatmul.mubr.f32.gmra.mrb[0].mxu0 %v3247
        %v4064 = vpop.f32.mrb[0].mxu0
        %v4065 = vadd.f32 %v3336, %v4064
        %v4066 = vpop.f32.mrb[0].mxu0
        %v4067 = vadd.f32 %v3336, %v4066
        %4068 = vmatprep.mubr.f32.mxu0 0.0
        %4069 = vmatmul.mubr.f32.gmra.mrb[0].mxu0 %v3252
        %v4070 = vpop.f32.mrb[0].mxu0
        %v4071 = vadd.f32 %v3341, %v4070
        %v4072 = vpop.f32.mrb[0].mxu0
        %v4073 = vadd.f32 %v3341, %v4072
        %4074 = vmatprep.mubr.f32.mxu0 0.0
        %4075 = vmatmul.mubr.f32.gmra.mrb[0].mxu0 %v3257
        %v4076 = vpop.f32.mrb[0].mxu0
        %v4077 = vadd.f32 %v3346, %v4076
        %v4078 = vpop.f32.mrb[0].mxu0
        %v4079 = vadd.f32 %v3346, %v4078
        %4080 = vmatprep.mubr.f32.mxu0 0.0
        %4081 = vmatmul.mubr.f32.gmra.mrb[0].mxu0 %v3262
        %v4082 = vpop.f32.mrb[0].mxu0
        %v4083 = vadd.f32 %v3351, %v4082
        %v4084 = vpop.f32.mrb[0].mxu0
        %v4085 = vadd.f32 %v3351, %v4084
        %4086 = vdwg.mxu0
        %v4087 = vmax.f32 %v4041, 0.0
        %v4088 = vmax.f32 %v4043, 0.0
        %v4089 = vmax.f32 %v4047, 0.0
        %v4090 = vmax.f32 %v4049, 0.0
        %v4091 = vmax.f32 %v4053, 0.0
        %v4092 = vmax.f32 %v4055, 0.0
        %v4093 = vmax.f32 %v4059, 0.0
        %v4094 = vmax.f32 %v4061, 0.0
        %v4095 = vmax.f32 %v4065, 0.0
        %v4096 = vmax.f32 %v4067, 0.0
        %v4097 = vmax.f32 %v4071, 0.0
        %v4098 = vmax.f32 %v4073, 0.0
        %v4099 = vmax.f32 %v4077, 0.0
        %v4100 = vmax.f32 %v4079, 0.0
        %v4101 = vmax.f32 %v4083, 0.0
        %v4102 = vmax.f32 %v4085, 0.0
        %4103 = vmatprep.subr.mxu0 %v4088
        %4104 = vmatpush1.msra.mxu0 %v4087
        %4105 = vmatprep.subr.mxu0 %v4090
        %4106 = vmatpush1.msra.mxu0 %v4089
        %4107 = vmatprep.subr.mxu0 %v4092
        %4108 = vmatpush1.msra.mxu0 %v4091
        %4109 = vmatprep.subr.mxu0 %v4094
        %4110 = vmatpush1.msra.mxu0 %v4093
        %4111 = vmatprep.subr.mxu0 %v4096
        %4112 = vmatpush1.msra.mxu0 %v4095
        %4113 = vmatprep.subr.mxu0 %v4098
        %4114 = vmatpush1.msra.mxu0 %v4097
        %4115 = vmatprep.subr.mxu0 %v4100
        %4116 = vmatpush1.msra.mxu0 %v4099
        %4117 = vmatprep.subr.mxu0 %v4102
        %4118 = vmatpush1.msra.mxu0 %v4101
        %4119 = vmatprep.subr.mxu0 0.0
        %4120 = vmatpush1.msra.mxu0 0.0
        %4121 = vmatprep.subr.mxu0 0.0
        %4122 = vmatpush1.msra.mxu0 0.0
        %4123 = vmatprep.subr.mxu0 0.0
        %4124 = vmatpush1.msra.mxu0 0.0
        %4125 = vmatprep.subr.mxu0 0.0
        %4126 = vmatpush1.msra.mxu0 0.0
        %4127 = vmatprep.subr.mxu0 0.0
        %4128 = vmatpush1.msra.mxu0 0.0
        %4129 = vmatprep.subr.mxu0 0.0
        %4130 = vmatpush1.msra.mxu0 0.0
        %4131 = vmatprep.subr.mxu0 0.0
        %4132 = vmatpush1.msra.mxu0 0.0
        %4133 = vmatprep.subr.mxu0 0.0
        %4134 = vmatpush1.msra.mxu0 0.0
        %4135 = vmatprep.subr.mxu0 0.0
        %4136 = vmatpush1.msra.mxu0 0.0
        %4137 = vmatprep.subr.mxu0 0.0
        %4138 = vmatpush1.msra.mxu0 0.0
        %4139 = vmatprep.subr.mxu0 0.0
        %4140 = vmatpush1.msra.mxu0 0.0
        %4141 = vmatprep.subr.mxu0 0.0
        %4142 = vmatpush1.msra.mxu0 0.0
        %4143 = vmatprep.subr.mxu0 0.0
        %4144 = vmatpush1.msra.mxu0 0.0
        %4145 = vmatprep.subr.mxu0 0.0
        %4146 = vmatpush1.msra.mxu0 0.0
        %4147 = vmatprep.subr.mxu0 0.0
        %4148 = vmatpush1.msra.mxu0 0.0
        %4149 = vmatprep.subr.mxu0 0.0
        %4150 = vmatpush1.msra.mxu0 0.0
        %4151 = vmatprep.subr.mxu0 0.0
        %4152 = vmatpush1.msra.mxu0 0.0
        %4153 = vmatprep.subr.mxu0 0.0
        %4154 = vmatpush1.msra.mxu0 0.0
        %4155 = vmatprep.subr.mxu0 0.0
        %4156 = vmatpush1.msra.mxu0 0.0
        %4157 = vmatprep.subr.mxu0 0.0
        %4158 = vmatpush1.msra.mxu0 0.0
        %4159 = vmatprep.subr.mxu0 0.0
        %4160 = vmatpush1.msra.mxu0 0.0
        %4161 = vmatprep.subr.mxu0 0.0
        %4162 = vmatpush1.msra.mxu0 0.0
        %4163 = vmatprep.subr.mxu0 0.0
        %4164 = vmatpush1.msra.mxu0 0.0
        %4165 = vmatprep.subr.mxu0 0.0
        %4166 = vmatpush1.msra.mxu0 0.0
        %4167 = vmatprep.mubr.f32.mxu0 0.0
        %4168 = vmatmul.mubr.f32.gmra.mrb[0].mxu0 %v3484
        %v4169 = vpop.f32.mrb[0].mxu0
        %v4170 = vadd.f32 0.0, %v4169
        %v4171 = vpop.f32.mrb[0].mxu0
        %v4172 = vadd.f32 0.0, %v4171
        %4173 = vmatprep.mubr.f32.mxu0 0.0
        %4174 = vmatmul.mubr.f32.gmra.mrb[0].mxu0 %v3487
        %v4175 = vpop.f32.mrb[0].mxu0
        %v4176 = vadd.f32 0.0, %v4175
        %v4177 = vpop.f32.mrb[0].mxu0
        %v4178 = vadd.f32 0.0, %v4177
        %4179 = vmatprep.mubr.f32.mxu0 0.0
        %4180 = vmatmul.mubr.f32.gmra.mrb[0].mxu0 %v3490
        %v4181 = vpop.f32.mrb[0].mxu0
        %v4182 = vadd.f32 0.0, %v4181
        %v4183 = vpop.f32.mrb[0].mxu0
        %v4184 = vadd.f32 0.0, %v4183
        %4185 = vmatprep.mubr.f32.mxu0 0.0
        %4186 = vmatmul.mubr.f32.gmra.mrb[0].mxu0 %v3493
        %v4187 = vpop.f32.mrb[0].mxu0
        %v4188 = vadd.f32 0.0, %v4187
        %v4189 = vpop.f32.mrb[0].mxu0
        %v4190 = vadd.f32 0.0, %v4189
        %4191 = vmatprep.mubr.f32.mxu0 0.0
        %4192 = vmatmul.mubr.f32.gmra.mrb[0].mxu0 %v3496
        %v4193 = vpop.f32.mrb[0].mxu0
        %v4194 = vadd.f32 0.0, %v4193
        %v4195 = vpop.f32.mrb[0].mxu0
        %v4196 = vadd.f32 0.0, %v4195
        %4197 = vmatprep.mubr.f32.mxu0 0.0
        %4198 = vmatmul.mubr.f32.gmra.mrb[0].mxu0 %v3499
        %v4199 = vpop.f32.mrb[0].mxu0
        %v4200 = vadd.f32 0.0, %v4199
        %v4201 = vpop.f32.mrb[0].mxu0
        %v4202 = vadd.f32 0.0, %v4201
        %4203 = vmatprep.mubr.f32.mxu0 0.0
        %4204 = vmatmul.mubr.f32.gmra.mrb[0].mxu0 %v3502
        %v4205 = vpop.f32.mrb[0].mxu0
        %v4206 = vadd.f32 0.0, %v4205
        %v4207 = vpop.f32.mrb[0].mxu0
        %v4208 = vadd.f32 0.0, %v4207
        %4209 = vmatprep.mubr.f32.mxu0 0.0
        %4210 = vmatmul.mubr.f32.gmra.mrb[0].mxu0 %v3505
        %v4211 = vpop.f32.mrb[0].mxu0
        %v4212 = vadd.f32 0.0, %v4211
        %v4213 = vpop.f32.mrb[0].mxu0
        %v4214 = vadd.f32 0.0, %v4213
        %4215 = vdwg.mxu0
        %v4216 = vmax.f32 %v3910, %v4170
        %v4217 = vmax.f32 %v3911, %v4172
        %v4218 = vmax.f32 %v3912, %v4176
        %v4219 = vmax.f32 %v3913, %v4178
        %v4220 = vmax.f32 %v3914, %v4182
        %v4221 = vmax.f32 %v3915, %v4184
        %v4222 = vmax.f32 %v3916, %v4188
        %v4223 = vmax.f32 %v3917, %v4190
        %v4224 = vmax.f32 %v3918, %v4194
        %v4225 = vmax.f32 %v3919, %v4196
        %v4226 = vmax.f32 %v3920, %v4200
        %v4227 = vmax.f32 %v3921, %v4202
        %v4228 = vmax.f32 %v3922, %v4206
        %v4229 = vmax.f32 %v3923, %v4208
        %v4230 = vmax.f32 %v3924, %v4212
        %v4231 = vmax.f32 %v3925, %v4214
        %v4232 = vld [vmem:[#allocation2 + $0x30] sm:$0xff]
        %v4233 = vld [vmem:[#allocation2 + $0x38] sm:$0xff]
        %v4234 = vld [vmem:[#allocation2 + $0x90] sm:$0xff]
        %v4235 = vld [vmem:[#allocation2 + $0x98] sm:$0xff]
        %v4236 = vld [vmem:[#allocation2 + $0xf0] sm:$0xff]
        %v4237 = vld [vmem:[#allocation2 + $0xf8] sm:$0xff]
        %v4238 = vld [vmem:[#allocation2 + $0x150] sm:$0xff]
        %v4239 = vld [vmem:[#allocation2 + $0x158] sm:$0xff]
        %v4240 = vld [vmem:[#allocation2 + $0x1b0] sm:$0xff]
        %v4241 = vld [vmem:[#allocation2 + $0x1b8] sm:$0xff]
        %v4242 = vld [vmem:[#allocation2 + $0x210] sm:$0xff]
        %v4243 = vld [vmem:[#allocation2 + $0x218] sm:$0xff]
        %v4244 = vld [vmem:[#allocation2 + $0x270] sm:$0xff]
        %v4245 = vld [vmem:[#allocation2 + $0x278] sm:$0xff]
        %v4246 = vld [vmem:[#allocation2 + $0x2d0] sm:$0xff]
        %v4247 = vld [vmem:[#allocation2 + $0x2d8] sm:$0xff]
        %v4248 = vunpack.c.l.bf16 %v4232
        %v4249 = vunpack.c.l.bf16 %v4233
        %v4250 = vunpack.c.h.bf16 %v4232
        %v4251 = vunpack.c.h.bf16 %v4233
        %v4252 = vunpack.c.l.bf16 %v4234
        %v4253 = vunpack.c.l.bf16 %v4235
        %v4254 = vunpack.c.h.bf16 %v4234
        %v4255 = vunpack.c.h.bf16 %v4235
        %v4256 = vunpack.c.l.bf16 %v4236
        %v4257 = vunpack.c.l.bf16 %v4237
        %v4258 = vunpack.c.h.bf16 %v4236
        %v4259 = vunpack.c.h.bf16 %v4237
        %v4260 = vunpack.c.l.bf16 %v4238
        %v4261 = vunpack.c.l.bf16 %v4239
        %v4262 = vunpack.c.h.bf16 %v4238
        %v4263 = vunpack.c.h.bf16 %v4239
        %v4264 = vunpack.c.l.bf16 %v4240
        %v4265 = vunpack.c.l.bf16 %v4241
        %v4266 = vunpack.c.h.bf16 %v4240
        %v4267 = vunpack.c.h.bf16 %v4241
        %v4268 = vunpack.c.l.bf16 %v4242
        %v4269 = vunpack.c.l.bf16 %v4243
        %v4270 = vunpack.c.h.bf16 %v4242
        %v4271 = vunpack.c.h.bf16 %v4243
        %v4272 = vunpack.c.l.bf16 %v4244
        %v4273 = vunpack.c.l.bf16 %v4245
        %v4274 = vunpack.c.h.bf16 %v4244
        %v4275 = vunpack.c.h.bf16 %v4245
        %v4276 = vunpack.c.l.bf16 %v4246
        %v4277 = vunpack.c.l.bf16 %v4247
        %v4278 = vunpack.c.h.bf16 %v4246
        %v4279 = vunpack.c.h.bf16 %v4247
        %4280 = vmatprep.subr.mxu0 %v4249
        %4281 = vmatpush1.msra.mxu0 %v4248
        %4282 = vmatprep.subr.mxu0 %v4251
        %4283 = vmatpush1.msra.mxu0 %v4250
        %4284 = vmatprep.subr.mxu0 %v4253
        %4285 = vmatpush1.msra.mxu0 %v4252
        %4286 = vmatprep.subr.mxu0 %v4255
        %4287 = vmatpush1.msra.mxu0 %v4254
        %4288 = vmatprep.subr.mxu0 %v4257
        %4289 = vmatpush1.msra.mxu0 %v4256
        %4290 = vmatprep.subr.mxu0 %v4259
        %4291 = vmatpush1.msra.mxu0 %v4258
        %4292 = vmatprep.subr.mxu0 %v4261
        %4293 = vmatpush1.msra.mxu0 %v4260
        %4294 = vmatprep.subr.mxu0 %v4263
        %4295 = vmatpush1.msra.mxu0 %v4262
        %4296 = vmatprep.subr.mxu0 %v4265
        %4297 = vmatpush1.msra.mxu0 %v4264
        %4298 = vmatprep.subr.mxu0 %v4267
        %4299 = vmatpush1.msra.mxu0 %v4266
        %4300 = vmatprep.subr.mxu0 %v4269
        %4301 = vmatpush1.msra.mxu0 %v4268
        %4302 = vmatprep.subr.mxu0 %v4271
        %4303 = vmatpush1.msra.mxu0 %v4270
        %4304 = vmatprep.subr.mxu0 %v4273
        %4305 = vmatpush1.msra.mxu0 %v4272
        %4306 = vmatprep.subr.mxu0 %v4275
        %4307 = vmatpush1.msra.mxu0 %v4274
        %4308 = vmatprep.subr.mxu0 %v4277
        %4309 = vmatpush1.msra.mxu0 %v4276
        %4310 = vmatprep.subr.mxu0 %v4279
        %4311 = vmatpush1.msra.mxu0 %v4278
        %4312 = vmatprep.subr.mxu0 0.0
        %4313 = vmatpush1.msra.mxu0 0.0
        %4314 = vmatprep.subr.mxu0 0.0
        %4315 = vmatpush1.msra.mxu0 0.0
        %4316 = vmatprep.subr.mxu0 0.0
        %4317 = vmatpush1.msra.mxu0 0.0
        %4318 = vmatprep.subr.mxu0 0.0
        %4319 = vmatpush1.msra.mxu0 0.0
        %4320 = vmatprep.subr.mxu0 0.0
        %4321 = vmatpush1.msra.mxu0 0.0
        %4322 = vmatprep.subr.mxu0 0.0
        %4323 = vmatpush1.msra.mxu0 0.0
        %4324 = vmatprep.subr.mxu0 0.0
        %4325 = vmatpush1.msra.mxu0 0.0
        %4326 = vmatprep.subr.mxu0 0.0
        %4327 = vmatpush1.msra.mxu0 0.0
        %4328 = vmatprep.subr.mxu0 0.0
        %4329 = vmatpush1.msra.mxu0 0.0
        %4330 = vmatprep.subr.mxu0 0.0
        %4331 = vmatpush1.msra.mxu0 0.0
        %4332 = vmatprep.subr.mxu0 0.0
        %4333 = vmatpush1.msra.mxu0 0.0
        %4334 = vmatprep.subr.mxu0 0.0
        %4335 = vmatpush1.msra.mxu0 0.0
        %4336 = vmatprep.subr.mxu0 0.0
        %4337 = vmatpush1.msra.mxu0 0.0
        %4338 = vmatprep.subr.mxu0 0.0
        %4339 = vmatpush1.msra.mxu0 0.0
        %4340 = vmatprep.subr.mxu0 0.0
        %4341 = vmatpush1.msra.mxu0 0.0
        %4342 = vmatprep.subr.mxu0 0.0
        %4343 = vmatpush1.msra.mxu0 0.0
        %4344 = vmatprep.mubr.f32.mxu0 0.0
        %4345 = vmatmul.mubr.f32.gmra.mrb[0].mxu0 %v3227
        %v4346 = vpop.f32.mrb[0].mxu0
        %v4347 = vadd.f32 %v3316, %v4346
        %v4348 = vpop.f32.mrb[0].mxu0
        %v4349 = vadd.f32 %v3316, %v4348
        %4350 = vmatprep.mubr.f32.mxu0 0.0
        %4351 = vmatmul.mubr.f32.gmra.mrb[0].mxu0 %v3232
        %v4352 = vpop.f32.mrb[0].mxu0
        %v4353 = vadd.f32 %v3321, %v4352
        %v4354 = vpop.f32.mrb[0].mxu0
        %v4355 = vadd.f32 %v3321, %v4354
        %4356 = vmatprep.mubr.f32.mxu0 0.0
        %4357 = vmatmul.mubr.f32.gmra.mrb[0].mxu0 %v3237
        %v4358 = vpop.f32.mrb[0].mxu0
        %v4359 = vadd.f32 %v3326, %v4358
        %v4360 = vpop.f32.mrb[0].mxu0
        %v4361 = vadd.f32 %v3326, %v4360
        %4362 = vmatprep.mubr.f32.mxu0 0.0
        %4363 = vmatmul.mubr.f32.gmra.mrb[0].mxu0 %v3242
        %v4364 = vpop.f32.mrb[0].mxu0
        %v4365 = vadd.f32 %v3331, %v4364
        %v4366 = vpop.f32.mrb[0].mxu0
        %v4367 = vadd.f32 %v3331, %v4366
        %4368 = vmatprep.mubr.f32.mxu0 0.0
        %4369 = vmatmul.mubr.f32.gmra.mrb[0].mxu0 %v3247
        %v4370 = vpop.f32.mrb[0].mxu0
        %v4371 = vadd.f32 %v3336, %v4370
        %v4372 = vpop.f32.mrb[0].mxu0
        %v4373 = vadd.f32 %v3336, %v4372
        %4374 = vmatprep.mubr.f32.mxu0 0.0
        %4375 = vmatmul.mubr.f32.gmra.mrb[0].mxu0 %v3252
        %v4376 = vpop.f32.mrb[0].mxu0
        %v4377 = vadd.f32 %v3341, %v4376
        %v4378 = vpop.f32.mrb[0].mxu0
        %v4379 = vadd.f32 %v3341, %v4378
        %4380 = vmatprep.mubr.f32.mxu0 0.0
        %4381 = vmatmul.mubr.f32.gmra.mrb[0].mxu0 %v3257
        %v4382 = vpop.f32.mrb[0].mxu0
        %v4383 = vadd.f32 %v3346, %v4382
        %v4384 = vpop.f32.mrb[0].mxu0
        %v4385 = vadd.f32 %v3346, %v4384
        %4386 = vmatprep.mubr.f32.mxu0 0.0
        %4387 = vmatmul.mubr.f32.gmra.mrb[0].mxu0 %v3262
        %v4388 = vpop.f32.mrb[0].mxu0
        %v4389 = vadd.f32 %v3351, %v4388
        %v4390 = vpop.f32.mrb[0].mxu0
        %v4391 = vadd.f32 %v3351, %v4390
        %4392 = vdwg.mxu0
        %v4393 = vmax.f32 %v4347, 0.0
        %v4394 = vmax.f32 %v4349, 0.0
        %v4395 = vmax.f32 %v4353, 0.0
        %v4396 = vmax.f32 %v4355, 0.0
        %v4397 = vmax.f32 %v4359, 0.0
        %v4398 = vmax.f32 %v4361, 0.0
        %v4399 = vmax.f32 %v4365, 0.0
        %v4400 = vmax.f32 %v4367, 0.0
        %v4401 = vmax.f32 %v4371, 0.0
        %v4402 = vmax.f32 %v4373, 0.0
        %v4403 = vmax.f32 %v4377, 0.0
        %v4404 = vmax.f32 %v4379, 0.0
        %v4405 = vmax.f32 %v4383, 0.0
        %v4406 = vmax.f32 %v4385, 0.0
        %v4407 = vmax.f32 %v4389, 0.0
        %v4408 = vmax.f32 %v4391, 0.0
        %4409 = vmatprep.subr.mxu0 %v4394
        %4410 = vmatpush1.msra.mxu0 %v4393
        %4411 = vmatprep.subr.mxu0 %v4396
        %4412 = vmatpush1.msra.mxu0 %v4395
        %4413 = vmatprep.subr.mxu0 %v4398
        %4414 = vmatpush1.msra.mxu0 %v4397
        %4415 = vmatprep.subr.mxu0 %v4400
        %4416 = vmatpush1.msra.mxu0 %v4399
        %4417 = vmatprep.subr.mxu0 %v4402
        %4418 = vmatpush1.msra.mxu0 %v4401
        %4419 = vmatprep.subr.mxu0 %v4404
        %4420 = vmatpush1.msra.mxu0 %v4403
        %4421 = vmatprep.subr.mxu0 %v4406
        %4422 = vmatpush1.msra.mxu0 %v4405
        %4423 = vmatprep.subr.mxu0 %v4408
        %4424 = vmatpush1.msra.mxu0 %v4407
        %4425 = vmatprep.subr.mxu0 0.0
        %4426 = vmatpush1.msra.mxu0 0.0
        %4427 = vmatprep.subr.mxu0 0.0
        %4428 = vmatpush1.msra.mxu0 0.0
        %4429 = vmatprep.subr.mxu0 0.0
        %4430 = vmatpush1.msra.mxu0 0.0
        %4431 = vmatprep.subr.mxu0 0.0
        %4432 = vmatpush1.msra.mxu0 0.0
        %4433 = vmatprep.subr.mxu0 0.0
        %4434 = vmatpush1.msra.mxu0 0.0
        %4435 = vmatprep.subr.mxu0 0.0
        %4436 = vmatpush1.msra.mxu0 0.0
        %4437 = vmatprep.subr.mxu0 0.0
        %4438 = vmatpush1.msra.mxu0 0.0
        %4439 = vmatprep.subr.mxu0 0.0
        %4440 = vmatpush1.msra.mxu0 0.0
        %4441 = vmatprep.subr.mxu0 0.0
        %4442 = vmatpush1.msra.mxu0 0.0
        %4443 = vmatprep.subr.mxu0 0.0
        %4444 = vmatpush1.msra.mxu0 0.0
        %4445 = vmatprep.subr.mxu0 0.0
        %4446 = vmatpush1.msra.mxu0 0.0
        %4447 = vmatprep.subr.mxu0 0.0
        %4448 = vmatpush1.msra.mxu0 0.0
        %4449 = vmatprep.subr.mxu0 0.0
        %4450 = vmatpush1.msra.mxu0 0.0
        %4451 = vmatprep.subr.mxu0 0.0
        %4452 = vmatpush1.msra.mxu0 0.0
        %4453 = vmatprep.subr.mxu0 0.0
        %4454 = vmatpush1.msra.mxu0 0.0
        %4455 = vmatprep.subr.mxu0 0.0
        %4456 = vmatpush1.msra.mxu0 0.0
        %4457 = vmatprep.subr.mxu0 0.0
        %4458 = vmatpush1.msra.mxu0 0.0
        %4459 = vmatprep.subr.mxu0 0.0
        %4460 = vmatpush1.msra.mxu0 0.0
        %4461 = vmatprep.subr.mxu0 0.0
        %4462 = vmatpush1.msra.mxu0 0.0
        %4463 = vmatprep.subr.mxu0 0.0
        %4464 = vmatpush1.msra.mxu0 0.0
        %4465 = vmatprep.subr.mxu0 0.0
        %4466 = vmatpush1.msra.mxu0 0.0
        %4467 = vmatprep.subr.mxu0 0.0
        %4468 = vmatpush1.msra.mxu0 0.0
        %4469 = vmatprep.subr.mxu0 0.0
        %4470 = vmatpush1.msra.mxu0 0.0
        %4471 = vmatprep.subr.mxu0 0.0
        %4472 = vmatpush1.msra.mxu0 0.0
        %4473 = vmatprep.mubr.f32.mxu0 0.0
        %4474 = vmatmul.mubr.f32.gmra.mrb[0].mxu0 %v3484
        %v4475 = vpop.f32.mrb[0].mxu0
        %v4476 = vadd.f32 0.0, %v4475
        %v4477 = vpop.f32.mrb[0].mxu0
        %v4478 = vadd.f32 0.0, %v4477
        %4479 = vmatprep.mubr.f32.mxu0 0.0
        %4480 = vmatmul.mubr.f32.gmra.mrb[0].mxu0 %v3487
        %v4481 = vpop.f32.mrb[0].mxu0
        %v4482 = vadd.f32 0.0, %v4481
        %v4483 = vpop.f32.mrb[0].mxu0
        %v4484 = vadd.f32 0.0, %v4483
        %4485 = vmatprep.mubr.f32.mxu0 0.0
        %4486 = vmatmul.mubr.f32.gmra.mrb[0].mxu0 %v3490
        %v4487 = vpop.f32.mrb[0].mxu0
        %v4488 = vadd.f32 0.0, %v4487
        %v4489 = vpop.f32.mrb[0].mxu0
        %v4490 = vadd.f32 0.0, %v4489
        %4491 = vmatprep.mubr.f32.mxu0 0.0
        %4492 = vmatmul.mubr.f32.gmra.mrb[0].mxu0 %v3493
        %v4493 = vpop.f32.mrb[0].mxu0
        %v4494 = vadd.f32 0.0, %v4493
        %v4495 = vpop.f32.mrb[0].mxu0
        %v4496 = vadd.f32 0.0, %v4495
        %4497 = vmatprep.mubr.f32.mxu0 0.0
        %4498 = vmatmul.mubr.f32.gmra.mrb[0].mxu0 %v3496
        %v4499 = vpop.f32.mrb[0].mxu0
        %v4500 = vadd.f32 0.0, %v4499
        %v4501 = vpop.f32.mrb[0].mxu0
        %v4502 = vadd.f32 0.0, %v4501
        %4503 = vmatprep.mubr.f32.mxu0 0.0
        %4504 = vmatmul.mubr.f32.gmra.mrb[0].mxu0 %v3499
        %v4505 = vpop.f32.mrb[0].mxu0
        %v4506 = vadd.f32 0.0, %v4505
        %v4507 = vpop.f32.mrb[0].mxu0
        %v4508 = vadd.f32 0.0, %v4507
        %4509 = vmatprep.mubr.f32.mxu0 0.0
        %4510 = vmatmul.mubr.f32.gmra.mrb[0].mxu0 %v3502
        %v4511 = vpop.f32.mrb[0].mxu0
        %v4512 = vadd.f32 0.0, %v4511
        %v4513 = vpop.f32.mrb[0].mxu0
        %v4514 = vadd.f32 0.0, %v4513
        %4515 = vmatprep.mubr.f32.mxu0 0.0
        %4516 = vmatmul.mubr.f32.gmra.mrb[0].mxu0 %v3505
        %v4517 = vpop.f32.mrb[0].mxu0
        %v4518 = vadd.f32 0.0, %v4517
        %v4519 = vpop.f32.mrb[0].mxu0
        %v4520 = vadd.f32 0.0, %v4519
        %4521 = vdwg.mxu0
        %v4522 = vmax.f32 %v4216, %v4476
        %v4523 = vmax.f32 %v4217, %v4478
        %v4524 = vmax.f32 %v4218, %v4482
        %v4525 = vmax.f32 %v4219, %v4484
        %v4526 = vmax.f32 %v4220, %v4488
        %v4527 = vmax.f32 %v4221, %v4490
        %v4528 = vmax.f32 %v4222, %v4494
        %v4529 = vmax.f32 %v4223, %v4496
        %v4530 = vmax.f32 %v4224, %v4500
        %v4531 = vmax.f32 %v4225, %v4502
        %v4532 = vmax.f32 %v4226, %v4506
        %v4533 = vmax.f32 %v4227, %v4508
        %v4534 = vmax.f32 %v4228, %v4512
        %v4535 = vmax.f32 %v4229, %v4514
        %v4536 = vmax.f32 %v4230, %v4518
        %v4537 = vmax.f32 %v4231, %v4520
        %v4538 = vld [vmem:[#allocation2 + $0x40] sm:$0xff]
        %v4539 = vld [vmem:[#allocation2 + $0x48] sm:$0xff]
        %v4540 = vld [vmem:[#allocation2 + $0xa0] sm:$0xff]
        %v4541 = vld [vmem:[#allocation2 + $0xa8] sm:$0xff]
        %v4542 = vld [vmem:[#allocation2 + $0x100] sm:$0xff]
        %v4543 = vld [vmem:[#allocation2 + $0x108] sm:$0xff]
        %v4544 = vld [vmem:[#allocation2 + $0x160] sm:$0xff]
        %v4545 = vld [vmem:[#allocation2 + $0x168] sm:$0xff]
        %v4546 = vld [vmem:[#allocation2 + $0x1c0] sm:$0xff]
        %v4547 = vld [vmem:[#allocation2 + $0x1c8] sm:$0xff]
        %v4548 = vld [vmem:[#allocation2 + $0x220] sm:$0xff]
        %v4549 = vld [vmem:[#allocation2 + $0x228] sm:$0xff]
        %v4550 = vld [vmem:[#allocation2 + $0x280] sm:$0xff]
        %v4551 = vld [vmem:[#allocation2 + $0x288] sm:$0xff]
        %v4552 = vld [vmem:[#allocation2 + $0x2e0] sm:$0xff]
        %v4553 = vld [vmem:[#allocation2 + $0x2e8] sm:$0xff]
        %v4554 = vunpack.c.l.bf16 %v4538
        %v4555 = vunpack.c.l.bf16 %v4539
        %v4556 = vunpack.c.h.bf16 %v4538
        %v4557 = vunpack.c.h.bf16 %v4539
        %v4558 = vunpack.c.l.bf16 %v4540
        %v4559 = vunpack.c.l.bf16 %v4541
        %v4560 = vunpack.c.h.bf16 %v4540
        %v4561 = vunpack.c.h.bf16 %v4541
        %v4562 = vunpack.c.l.bf16 %v4542
        %v4563 = vunpack.c.l.bf16 %v4543
        %v4564 = vunpack.c.h.bf16 %v4542
        %v4565 = vunpack.c.h.bf16 %v4543
        %v4566 = vunpack.c.l.bf16 %v4544
        %v4567 = vunpack.c.l.bf16 %v4545
        %v4568 = vunpack.c.h.bf16 %v4544
        %v4569 = vunpack.c.h.bf16 %v4545
        %v4570 = vunpack.c.l.bf16 %v4546
        %v4571 = vunpack.c.l.bf16 %v4547
        %v4572 = vunpack.c.h.bf16 %v4546
        %v4573 = vunpack.c.h.bf16 %v4547
        %v4574 = vunpack.c.l.bf16 %v4548
        %v4575 = vunpack.c.l.bf16 %v4549
        %v4576 = vunpack.c.h.bf16 %v4548
        %v4577 = vunpack.c.h.bf16 %v4549
        %v4578 = vunpack.c.l.bf16 %v4550
        %v4579 = vunpack.c.l.bf16 %v4551
        %v4580 = vunpack.c.h.bf16 %v4550
        %v4581 = vunpack.c.h.bf16 %v4551
        %v4582 = vunpack.c.l.bf16 %v4552
        %v4583 = vunpack.c.l.bf16 %v4553
        %v4584 = vunpack.c.h.bf16 %v4552
        %v4585 = vunpack.c.h.bf16 %v4553
        %4586 = vmatprep.subr.mxu0 %v4555
        %4587 = vmatpush1.msra.mxu0 %v4554
        %4588 = vmatprep.subr.mxu0 %v4557
        %4589 = vmatpush1.msra.mxu0 %v4556
        %4590 = vmatprep.subr.mxu0 %v4559
        %4591 = vmatpush1.msra.mxu0 %v4558
        %4592 = vmatprep.subr.mxu0 %v4561
        %4593 = vmatpush1.msra.mxu0 %v4560
        %4594 = vmatprep.subr.mxu0 %v4563
        %4595 = vmatpush1.msra.mxu0 %v4562
        %4596 = vmatprep.subr.mxu0 %v4565
        %4597 = vmatpush1.msra.mxu0 %v4564
        %4598 = vmatprep.subr.mxu0 %v4567
        %4599 = vmatpush1.msra.mxu0 %v4566
        %4600 = vmatprep.subr.mxu0 %v4569
        %4601 = vmatpush1.msra.mxu0 %v4568
        %4602 = vmatprep.subr.mxu0 %v4571
        %4603 = vmatpush1.msra.mxu0 %v4570
        %4604 = vmatprep.subr.mxu0 %v4573
        %4605 = vmatpush1.msra.mxu0 %v4572
        %4606 = vmatprep.subr.mxu0 %v4575
        %4607 = vmatpush1.msra.mxu0 %v4574
        %4608 = vmatprep.subr.mxu0 %v4577
        %4609 = vmatpush1.msra.mxu0 %v4576
        %4610 = vmatprep.subr.mxu0 %v4579
        %4611 = vmatpush1.msra.mxu0 %v4578
        %4612 = vmatprep.subr.mxu0 %v4581
        %4613 = vmatpush1.msra.mxu0 %v4580
        %4614 = vmatprep.subr.mxu0 %v4583
        %4615 = vmatpush1.msra.mxu0 %v4582
        %4616 = vmatprep.subr.mxu0 %v4585
        %4617 = vmatpush1.msra.mxu0 %v4584
        %4618 = vmatprep.subr.mxu0 0.0
        %4619 = vmatpush1.msra.mxu0 0.0
        %4620 = vmatprep.subr.mxu0 0.0
        %4621 = vmatpush1.msra.mxu0 0.0
        %4622 = vmatprep.subr.mxu0 0.0
        %4623 = vmatpush1.msra.mxu0 0.0
        %4624 = vmatprep.subr.mxu0 0.0
        %4625 = vmatpush1.msra.mxu0 0.0
        %4626 = vmatprep.subr.mxu0 0.0
        %4627 = vmatpush1.msra.mxu0 0.0
        %4628 = vmatprep.subr.mxu0 0.0
        %4629 = vmatpush1.msra.mxu0 0.0
        %4630 = vmatprep.subr.mxu0 0.0
        %4631 = vmatpush1.msra.mxu0 0.0
        %4632 = vmatprep.subr.mxu0 0.0
        %4633 = vmatpush1.msra.mxu0 0.0
        %4634 = vmatprep.subr.mxu0 0.0
        %4635 = vmatpush1.msra.mxu0 0.0
        %4636 = vmatprep.subr.mxu0 0.0
        %4637 = vmatpush1.msra.mxu0 0.0
        %4638 = vmatprep.subr.mxu0 0.0
        %4639 = vmatpush1.msra.mxu0 0.0
        %4640 = vmatprep.subr.mxu0 0.0
        %4641 = vmatpush1.msra.mxu0 0.0
        %4642 = vmatprep.subr.mxu0 0.0
        %4643 = vmatpush1.msra.mxu0 0.0
        %4644 = vmatprep.subr.mxu0 0.0
        %4645 = vmatpush1.msra.mxu0 0.0
        %4646 = vmatprep.subr.mxu0 0.0
        %4647 = vmatpush1.msra.mxu0 0.0
        %4648 = vmatprep.subr.mxu0 0.0
        %4649 = vmatpush1.msra.mxu0 0.0
        %4650 = vmatprep.mubr.f32.mxu0 0.0
        %4651 = vmatmul.mubr.f32.gmra.mrb[0].mxu0 %v3227
        %v4652 = vpop.f32.mrb[0].mxu0
        %v4653 = vadd.f32 %v3316, %v4652
        %v4654 = vpop.f32.mrb[0].mxu0
        %v4655 = vadd.f32 %v3316, %v4654
        %4656 = vmatprep.mubr.f32.mxu0 0.0
        %4657 = vmatmul.mubr.f32.gmra.mrb[0].mxu0 %v3232
        %v4658 = vpop.f32.mrb[0].mxu0
        %v4659 = vadd.f32 %v3321, %v4658
        %v4660 = vpop.f32.mrb[0].mxu0
        %v4661 = vadd.f32 %v3321, %v4660
        %4662 = vmatprep.mubr.f32.mxu0 0.0
        %4663 = vmatmul.mubr.f32.gmra.mrb[0].mxu0 %v3237
        %v4664 = vpop.f32.mrb[0].mxu0
        %v4665 = vadd.f32 %v3326, %v4664
        %v4666 = vpop.f32.mrb[0].mxu0
        %v4667 = vadd.f32 %v3326, %v4666
        %4668 = vmatprep.mubr.f32.mxu0 0.0
        %4669 = vmatmul.mubr.f32.gmra.mrb[0].mxu0 %v3242
        %v4670 = vpop.f32.mrb[0].mxu0
        %v4671 = vadd.f32 %v3331, %v4670
        %v4672 = vpop.f32.mrb[0].mxu0
        %v4673 = vadd.f32 %v3331, %v4672
        %4674 = vmatprep.mubr.f32.mxu0 0.0
        %4675 = vmatmul.mubr.f32.gmra.mrb[0].mxu0 %v3247
        %v4676 = vpop.f32.mrb[0].mxu0
        %v4677 = vadd.f32 %v3336, %v4676
        %v4678 = vpop.f32.mrb[0].mxu0
        %v4679 = vadd.f32 %v3336, %v4678
        %4680 = vmatprep.mubr.f32.mxu0 0.0
        %4681 = vmatmul.mubr.f32.gmra.mrb[0].mxu0 %v3252
        %v4682 = vpop.f32.mrb[0].mxu0
        %v4683 = vadd.f32 %v3341, %v4682
        %v4684 = vpop.f32.mrb[0].mxu0
        %v4685 = vadd.f32 %v3341, %v4684
        %4686 = vmatprep.mubr.f32.mxu0 0.0
        %4687 = vmatmul.mubr.f32.gmra.mrb[0].mxu0 %v3257
        %v4688 = vpop.f32.mrb[0].mxu0
        %v4689 = vadd.f32 %v3346, %v4688
        %v4690 = vpop.f32.mrb[0].mxu0
        %v4691 = vadd.f32 %v3346, %v4690
        %4692 = vmatprep.mubr.f32.mxu0 0.0
        %4693 = vmatmul.mubr.f32.gmra.mrb[0].mxu0 %v3262
        %v4694 = vpop.f32.mrb[0].mxu0
        %v4695 = vadd.f32 %v3351, %v4694
        %v4696 = vpop.f32.mrb[0].mxu0
        %v4697 = vadd.f32 %v3351, %v4696
        %4698 = vdwg.mxu0
        %v4699 = vmax.f32 %v4653, 0.0
        %v4700 = vmax.f32 %v4655, 0.0
        %v4701 = vmax.f32 %v4659, 0.0
        %v4702 = vmax.f32 %v4661, 0.0
        %v4703 = vmax.f32 %v4665, 0.0
        %v4704 = vmax.f32 %v4667, 0.0
        %v4705 = vmax.f32 %v4671, 0.0
        %v4706 = vmax.f32 %v4673, 0.0
        %v4707 = vmax.f32 %v4677, 0.0
        %v4708 = vmax.f32 %v4679, 0.0
        %v4709 = vmax.f32 %v4683, 0.0
        %v4710 = vmax.f32 %v4685, 0.0
        %v4711 = vmax.f32 %v4689, 0.0
        %v4712 = vmax.f32 %v4691, 0.0
        %v4713 = vmax.f32 %v4695, 0.0
        %v4714 = vmax.f32 %v4697, 0.0
        %4715 = vmatprep.subr.mxu0 %v4700
        %4716 = vmatpush1.msra.mxu0 %v4699
        %4717 = vmatprep.subr.mxu0 %v4702
        %4718 = vmatpush1.msra.mxu0 %v4701
        %4719 = vmatprep.subr.mxu0 %v4704
        %4720 = vmatpush1.msra.mxu0 %v4703
        %4721 = vmatprep.subr.mxu0 %v4706
        %4722 = vmatpush1.msra.mxu0 %v4705
        %4723 = vmatprep.subr.mxu0 %v4708
        %4724 = vmatpush1.msra.mxu0 %v4707
        %4725 = vmatprep.subr.mxu0 %v4710
        %4726 = vmatpush1.msra.mxu0 %v4709
        %4727 = vmatprep.subr.mxu0 %v4712
        %4728 = vmatpush1.msra.mxu0 %v4711
        %4729 = vmatprep.subr.mxu0 %v4714
        %4730 = vmatpush1.msra.mxu0 %v4713
        %4731 = vmatprep.subr.mxu0 0.0
        %4732 = vmatpush1.msra.mxu0 0.0
        %4733 = vmatprep.subr.mxu0 0.0
        %4734 = vmatpush1.msra.mxu0 0.0
        %4735 = vmatprep.subr.mxu0 0.0
        %4736 = vmatpush1.msra.mxu0 0.0
        %4737 = vmatprep.subr.mxu0 0.0
        %4738 = vmatpush1.msra.mxu0 0.0
        %4739 = vmatprep.subr.mxu0 0.0
        %4740 = vmatpush1.msra.mxu0 0.0
        %4741 = vmatprep.subr.mxu0 0.0
        %4742 = vmatpush1.msra.mxu0 0.0
        %4743 = vmatprep.subr.mxu0 0.0
        %4744 = vmatpush1.msra.mxu0 0.0
        %4745 = vmatprep.subr.mxu0 0.0
        %4746 = vmatpush1.msra.mxu0 0.0
        %4747 = vmatprep.subr.mxu0 0.0
        %4748 = vmatpush1.msra.mxu0 0.0
        %4749 = vmatprep.subr.mxu0 0.0
        %4750 = vmatpush1.msra.mxu0 0.0
        %4751 = vmatprep.subr.mxu0 0.0
        %4752 = vmatpush1.msra.mxu0 0.0
        %4753 = vmatprep.subr.mxu0 0.0
        %4754 = vmatpush1.msra.mxu0 0.0
        %4755 = vmatprep.subr.mxu0 0.0
        %4756 = vmatpush1.msra.mxu0 0.0
        %4757 = vmatprep.subr.mxu0 0.0
        %4758 = vmatpush1.msra.mxu0 0.0
        %4759 = vmatprep.subr.mxu0 0.0
        %4760 = vmatpush1.msra.mxu0 0.0
        %4761 = vmatprep.subr.mxu0 0.0
        %4762 = vmatpush1.msra.mxu0 0.0
        %4763 = vmatprep.subr.mxu0 0.0
        %4764 = vmatpush1.msra.mxu0 0.0
        %4765 = vmatprep.subr.mxu0 0.0
        %4766 = vmatpush1.msra.mxu0 0.0
        %4767 = vmatprep.subr.mxu0 0.0
        %4768 = vmatpush1.msra.mxu0 0.0
        %4769 = vmatprep.subr.mxu0 0.0
        %4770 = vmatpush1.msra.mxu0 0.0
        %4771 = vmatprep.subr.mxu0 0.0
        %4772 = vmatpush1.msra.mxu0 0.0
        %4773 = vmatprep.subr.mxu0 0.0
        %4774 = vmatpush1.msra.mxu0 0.0
        %4775 = vmatprep.subr.mxu0 0.0
        %4776 = vmatpush1.msra.mxu0 0.0
        %4777 = vmatprep.subr.mxu0 0.0
        %4778 = vmatpush1.msra.mxu0 0.0
        %4779 = vmatprep.mubr.f32.mxu0 0.0
        %4780 = vmatmul.mubr.f32.gmra.mrb[0].mxu0 %v3484
        %v4781 = vpop.f32.mrb[0].mxu0
        %v4782 = vadd.f32 0.0, %v4781
        %v4783 = vpop.f32.mrb[0].mxu0
        %v4784 = vadd.f32 0.0, %v4783
        %4785 = vmatprep.mubr.f32.mxu0 0.0
        %4786 = vmatmul.mubr.f32.gmra.mrb[0].mxu0 %v3487
        %v4787 = vpop.f32.mrb[0].mxu0
        %v4788 = vadd.f32 0.0, %v4787
        %v4789 = vpop.f32.mrb[0].mxu0
        %v4790 = vadd.f32 0.0, %v4789
        %4791 = vmatprep.mubr.f32.mxu0 0.0
        %4792 = vmatmul.mubr.f32.gmra.mrb[0].mxu0 %v3490
        %v4793 = vpop.f32.mrb[0].mxu0
        %v4794 = vadd.f32 0.0, %v4793
        %v4795 = vpop.f32.mrb[0].mxu0
        %v4796 = vadd.f32 0.0, %v4795
        %4797 = vmatprep.mubr.f32.mxu0 0.0
        %4798 = vmatmul.mubr.f32.gmra.mrb[0].mxu0 %v3493
        %v4799 = vpop.f32.mrb[0].mxu0
        %v4800 = vadd.f32 0.0, %v4799
        %v4801 = vpop.f32.mrb[0].mxu0
        %v4802 = vadd.f32 0.0, %v4801
        %4803 = vmatprep.mubr.f32.mxu0 0.0
        %4804 = vmatmul.mubr.f32.gmra.mrb[0].mxu0 %v3496
        %v4805 = vpop.f32.mrb[0].mxu0
        %v4806 = vadd.f32 0.0, %v4805
        %v4807 = vpop.f32.mrb[0].mxu0
        %v4808 = vadd.f32 0.0, %v4807
        %4809 = vmatprep.mubr.f32.mxu0 0.0
        %4810 = vmatmul.mubr.f32.gmra.mrb[0].mxu0 %v3499
        %v4811 = vpop.f32.mrb[0].mxu0
        %v4812 = vadd.f32 0.0, %v4811
        %v4813 = vpop.f32.mrb[0].mxu0
        %v4814 = vadd.f32 0.0, %v4813
        %4815 = vmatprep.mubr.f32.mxu0 0.0
        %4816 = vmatmul.mubr.f32.gmra.mrb[0].mxu0 %v3502
        %v4817 = vpop.f32.mrb[0].mxu0
        %v4818 = vadd.f32 0.0, %v4817
        %v4819 = vpop.f32.mrb[0].mxu0
        %v4820 = vadd.f32 0.0, %v4819
        %4821 = vmatprep.mubr.f32.mxu0 0.0
        %4822 = vmatmul.mubr.f32.gmra.mrb[0].mxu0 %v3505
        %v4823 = vpop.f32.mrb[0].mxu0
        %v4824 = vadd.f32 0.0, %v4823
        %v4825 = vpop.f32.mrb[0].mxu0
        %v4826 = vadd.f32 0.0, %v4825
        %4827 = vdwg.mxu0
        %v4828 = vmax.f32 %v4522, %v4782
        %v4829 = vmax.f32 %v4523, %v4784
        %v4830 = vmax.f32 %v4524, %v4788
        %v4831 = vmax.f32 %v4525, %v4790
        %v4832 = vmax.f32 %v4526, %v4794
        %v4833 = vmax.f32 %v4527, %v4796
        %v4834 = vmax.f32 %v4528, %v4800
        %v4835 = vmax.f32 %v4529, %v4802
        %v4836 = vmax.f32 %v4530, %v4806
        %v4837 = vmax.f32 %v4531, %v4808
        %v4838 = vmax.f32 %v4532, %v4812
        %v4839 = vmax.f32 %v4533, %v4814
        %v4840 = vmax.f32 %v4534, %v4818
        %v4841 = vmax.f32 %v4535, %v4820
        %v4842 = vmax.f32 %v4536, %v4824
        %v4843 = vmax.f32 %v4537, %v4826
        %v4844 = vld [vmem:[#allocation2 + $0x50] sm:$0xff]
        %v4845 = vld [vmem:[#allocation2 + $0x58] sm:$0xff]
        %v4846 = vld [vmem:[#allocation2 + $0xb0] sm:$0xff]
        %v4847 = vld [vmem:[#allocation2 + $0xb8] sm:$0xff]
        %v4848 = vld [vmem:[#allocation2 + $0x110] sm:$0xff]
        %v4849 = vld [vmem:[#allocation2 + $0x118] sm:$0xff]
        %v4850 = vld [vmem:[#allocation2 + $0x170] sm:$0xff]
        %v4851 = vld [vmem:[#allocation2 + $0x178] sm:$0xff]
        %v4852 = vld [vmem:[#allocation2 + $0x1d0] sm:$0xff]
        %v4853 = vld [vmem:[#allocation2 + $0x1d8] sm:$0xff]
        %v4854 = vld [vmem:[#allocation2 + $0x230] sm:$0xff]
        %v4855 = vld [vmem:[#allocation2 + $0x238] sm:$0xff]
        %v4856 = vld [vmem:[#allocation2 + $0x290] sm:$0xff]
        %v4857 = vld [vmem:[#allocation2 + $0x298] sm:$0xff]
        %v4858 = vld [vmem:[#allocation2 + $0x2f0] sm:$0xff]
        %v4859 = vld [vmem:[#allocation2 + $0x2f8] sm:$0xff]
        %v4860 = vunpack.c.l.bf16 %v4844
        %v4861 = vunpack.c.l.bf16 %v4845
        %v4862 = vunpack.c.h.bf16 %v4844
        %v4863 = vunpack.c.h.bf16 %v4845
        %v4864 = vunpack.c.l.bf16 %v4846
        %v4865 = vunpack.c.l.bf16 %v4847
        %v4866 = vunpack.c.h.bf16 %v4846
        %v4867 = vunpack.c.h.bf16 %v4847
        %v4868 = vunpack.c.l.bf16 %v4848
        %v4869 = vunpack.c.l.bf16 %v4849
        %v4870 = vunpack.c.h.bf16 %v4848
        %v4871 = vunpack.c.h.bf16 %v4849
        %v4872 = vunpack.c.l.bf16 %v4850
        %v4873 = vunpack.c.l.bf16 %v4851
        %v4874 = vunpack.c.h.bf16 %v4850
        %v4875 = vunpack.c.h.bf16 %v4851
        %v4876 = vunpack.c.l.bf16 %v4852
        %v4877 = vunpack.c.l.bf16 %v4853
        %v4878 = vunpack.c.h.bf16 %v4852
        %v4879 = vunpack.c.h.bf16 %v4853
        %v4880 = vunpack.c.l.bf16 %v4854
        %v4881 = vunpack.c.l.bf16 %v4855
        %v4882 = vunpack.c.h.bf16 %v4854
        %v4883 = vunpack.c.h.bf16 %v4855
        %v4884 = vunpack.c.l.bf16 %v4856
        %v4885 = vunpack.c.l.bf16 %v4857
        %v4886 = vunpack.c.h.bf16 %v4856
        %v4887 = vunpack.c.h.bf16 %v4857
        %v4888 = vunpack.c.l.bf16 %v4858
        %v4889 = vunpack.c.l.bf16 %v4859
        %v4890 = vunpack.c.h.bf16 %v4858
        %v4891 = vunpack.c.h.bf16 %v4859
        %4892 = vmatprep.subr.mxu0 %v4861
        %4893 = vmatpush1.msra.mxu0 %v4860
        %4894 = vmatprep.subr.mxu0 %v4863
        %4895 = vmatpush1.msra.mxu0 %v4862
        %4896 = vmatprep.subr.mxu0 %v4865
        %4897 = vmatpush1.msra.mxu0 %v4864
        %4898 = vmatprep.subr.mxu0 %v4867
        %4899 = vmatpush1.msra.mxu0 %v4866
        %4900 = vmatprep.subr.mxu0 %v4869
        %4901 = vmatpush1.msra.mxu0 %v4868
        %4902 = vmatprep.subr.mxu0 %v4871
        %4903 = vmatpush1.msra.mxu0 %v4870
        %4904 = vmatprep.subr.mxu0 %v4873
        %4905 = vmatpush1.msra.mxu0 %v4872
        %4906 = vmatprep.subr.mxu0 %v4875
        %4907 = vmatpush1.msra.mxu0 %v4874
        %4908 = vmatprep.subr.mxu0 %v4877
        %4909 = vmatpush1.msra.mxu0 %v4876
        %4910 = vmatprep.subr.mxu0 %v4879
        %4911 = vmatpush1.msra.mxu0 %v4878
        %4912 = vmatprep.subr.mxu0 %v4881
        %4913 = vmatpush1.msra.mxu0 %v4880
        %4914 = vmatprep.subr.mxu0 %v4883
        %4915 = vmatpush1.msra.mxu0 %v4882
        %4916 = vmatprep.subr.mxu0 %v4885
        %4917 = vmatpush1.msra.mxu0 %v4884
        %4918 = vmatprep.subr.mxu0 %v4887
        %4919 = vmatpush1.msra.mxu0 %v4886
        %4920 = vmatprep.subr.mxu0 %v4889
        %4921 = vmatpush1.msra.mxu0 %v4888
        %4922 = vmatprep.subr.mxu0 %v4891
        %4923 = vmatpush1.msra.mxu0 %v4890
        %4924 = vmatprep.subr.mxu0 0.0
        %4925 = vmatpush1.msra.mxu0 0.0
        %4926 = vmatprep.subr.mxu0 0.0
        %4927 = vmatpush1.msra.mxu0 0.0
        %4928 = vmatprep.subr.mxu0 0.0
        %4929 = vmatpush1.msra.mxu0 0.0
        %4930 = vmatprep.subr.mxu0 0.0
        %4931 = vmatpush1.msra.mxu0 0.0
        %4932 = vmatprep.subr.mxu0 0.0
        %4933 = vmatpush1.msra.mxu0 0.0
        %4934 = vmatprep.subr.mxu0 0.0
        %4935 = vmatpush1.msra.mxu0 0.0
        %4936 = vmatprep.subr.mxu0 0.0
        %4937 = vmatpush1.msra.mxu0 0.0
        %4938 = vmatprep.subr.mxu0 0.0
        %4939 = vmatpush1.msra.mxu0 0.0
        %4940 = vmatprep.subr.mxu0 0.0
        %4941 = vmatpush1.msra.mxu0 0.0
        %4942 = vmatprep.subr.mxu0 0.0
        %4943 = vmatpush1.msra.mxu0 0.0
        %4944 = vmatprep.subr.mxu0 0.0
        %4945 = vmatpush1.msra.mxu0 0.0
        %4946 = vmatprep.subr.mxu0 0.0
        %4947 = vmatpush1.msra.mxu0 0.0
        %4948 = vmatprep.subr.mxu0 0.0
        %4949 = vmatpush1.msra.mxu0 0.0
        %4950 = vmatprep.subr.mxu0 0.0
        %4951 = vmatpush1.msra.mxu0 0.0
        %4952 = vmatprep.subr.mxu0 0.0
        %4953 = vmatpush1.msra.mxu0 0.0
        %4954 = vmatprep.subr.mxu0 0.0
        %4955 = vmatpush1.msra.mxu0 0.0
        %4956 = vmatprep.mubr.f32.mxu0 0.0
        %4957 = vmatmul.mubr.f32.gmra.mrb[0].mxu0 %v3227
        %v4958 = vpop.f32.mrb[0].mxu0
        %v4959 = vadd.f32 %v3316, %v4958
        %v4960 = vpop.f32.mrb[0].mxu0
        %v4961 = vadd.f32 %v3316, %v4960
        %4962 = vmatprep.mubr.f32.mxu0 0.0
        %4963 = vmatmul.mubr.f32.gmra.mrb[0].mxu0 %v3232
        %v4964 = vpop.f32.mrb[0].mxu0
        %v4965 = vadd.f32 %v3321, %v4964
        %v4966 = vpop.f32.mrb[0].mxu0
        %v4967 = vadd.f32 %v3321, %v4966
        %4968 = vmatprep.mubr.f32.mxu0 0.0
        %4969 = vmatmul.mubr.f32.gmra.mrb[0].mxu0 %v3237
        %v4970 = vpop.f32.mrb[0].mxu0
        %v4971 = vadd.f32 %v3326, %v4970
        %v4972 = vpop.f32.mrb[0].mxu0
        %v4973 = vadd.f32 %v3326, %v4972
        %4974 = vmatprep.mubr.f32.mxu0 0.0
        %4975 = vmatmul.mubr.f32.gmra.mrb[0].mxu0 %v3242
        %v4976 = vpop.f32.mrb[0].mxu0
        %v4977 = vadd.f32 %v3331, %v4976
        %v4978 = vpop.f32.mrb[0].mxu0
        %v4979 = vadd.f32 %v3331, %v4978
        %4980 = vmatprep.mubr.f32.mxu0 0.0
        %4981 = vmatmul.mubr.f32.gmra.mrb[0].mxu0 %v3247
        %v4982 = vpop.f32.mrb[0].mxu0
        %v4983 = vadd.f32 %v3336, %v4982
        %v4984 = vpop.f32.mrb[0].mxu0
        %v4985 = vadd.f32 %v3336, %v4984
        %4986 = vmatprep.mubr.f32.mxu0 0.0
        %4987 = vmatmul.mubr.f32.gmra.mrb[0].mxu0 %v3252
        %v4988 = vpop.f32.mrb[0].mxu0
        %v4989 = vadd.f32 %v3341, %v4988
        %v4990 = vpop.f32.mrb[0].mxu0
        %v4991 = vadd.f32 %v3341, %v4990
        %4992 = vmatprep.mubr.f32.mxu0 0.0
        %4993 = vmatmul.mubr.f32.gmra.mrb[0].mxu0 %v3257
        %v4994 = vpop.f32.mrb[0].mxu0
        %v4995 = vadd.f32 %v3346, %v4994
        %v4996 = vpop.f32.mrb[0].mxu0
        %v4997 = vadd.f32 %v3346, %v4996
        %4998 = vmatprep.mubr.f32.mxu0 0.0
        %4999 = vmatmul.mubr.f32.gmra.mrb[0].mxu0 %v3262
        %v5000 = vpop.f32.mrb[0].mxu0
        %v5001 = vadd.f32 %v3351, %v5000
        %v5002 = vpop.f32.mrb[0].mxu0
        %v5003 = vadd.f32 %v3351, %v5002
        %5004 = vdwg.mxu0
        %v5005 = vmax.f32 %v4959, 0.0
        %v5006 = vmax.f32 %v4961, 0.0
        %v5007 = vmax.f32 %v4965, 0.0
        %v5008 = vmax.f32 %v4967, 0.0
        %v5009 = vmax.f32 %v4971, 0.0
        %v5010 = vmax.f32 %v4973, 0.0
        %v5011 = vmax.f32 %v4977, 0.0
        %v5012 = vmax.f32 %v4979, 0.0
        %v5013 = vmax.f32 %v4983, 0.0
        %v5014 = vmax.f32 %v4985, 0.0
        %v5015 = vmax.f32 %v4989, 0.0
        %v5016 = vmax.f32 %v4991, 0.0
        %v5017 = vmax.f32 %v4995, 0.0
        %v5018 = vmax.f32 %v4997, 0.0
        %v5019 = vmax.f32 %v5001, 0.0
        %v5020 = vmax.f32 %v5003, 0.0
        %5021 = vmatprep.subr.mxu0 %v5006
        %5022 = vmatpush1.msra.mxu0 %v5005
        %5023 = vmatprep.subr.mxu0 %v5008
        %5024 = vmatpush1.msra.mxu0 %v5007
        %5025 = vmatprep.subr.mxu0 %v5010
        %5026 = vmatpush1.msra.mxu0 %v5009
        %5027 = vmatprep.subr.mxu0 %v5012
        %5028 = vmatpush1.msra.mxu0 %v5011
        %5029 = vmatprep.subr.mxu0 %v5014
        %5030 = vmatpush1.msra.mxu0 %v5013
        %5031 = vmatprep.subr.mxu0 %v5016
        %5032 = vmatpush1.msra.mxu0 %v5015
        %5033 = vmatprep.subr.mxu0 %v5018
        %5034 = vmatpush1.msra.mxu0 %v5017
        %5035 = vmatprep.subr.mxu0 %v5020
        %5036 = vmatpush1.msra.mxu0 %v5019
        %5037 = vmatprep.subr.mxu0 0.0
        %5038 = vmatpush1.msra.mxu0 0.0
        %5039 = vmatprep.subr.mxu0 0.0
        %5040 = vmatpush1.msra.mxu0 0.0
        %5041 = vmatprep.subr.mxu0 0.0
        %5042 = vmatpush1.msra.mxu0 0.0
        %5043 = vmatprep.subr.mxu0 0.0
        %5044 = vmatpush1.msra.mxu0 0.0
        %5045 = vmatprep.subr.mxu0 0.0
        %5046 = vmatpush1.msra.mxu0 0.0
        %5047 = vmatprep.subr.mxu0 0.0
        %5048 = vmatpush1.msra.mxu0 0.0
        %5049 = vmatprep.subr.mxu0 0.0
        %5050 = vmatpush1.msra.mxu0 0.0
        %5051 = vmatprep.subr.mxu0 0.0
        %5052 = vmatpush1.msra.mxu0 0.0
        %5053 = vmatprep.subr.mxu0 0.0
        %5054 = vmatpush1.msra.mxu0 0.0
        %5055 = vmatprep.subr.mxu0 0.0
        %5056 = vmatpush1.msra.mxu0 0.0
        %5057 = vmatprep.subr.mxu0 0.0
        %5058 = vmatpush1.msra.mxu0 0.0
        %5059 = vmatprep.subr.mxu0 0.0
        %5060 = vmatpush1.msra.mxu0 0.0
        %5061 = vmatprep.subr.mxu0 0.0
        %5062 = vmatpush1.msra.mxu0 0.0
        %5063 = vmatprep.subr.mxu0 0.0
        %5064 = vmatpush1.msra.mxu0 0.0
        %5065 = vmatprep.subr.mxu0 0.0
        %5066 = vmatpush1.msra.mxu0 0.0
        %5067 = vmatprep.subr.mxu0 0.0
        %5068 = vmatpush1.msra.mxu0 0.0
        %5069 = vmatprep.subr.mxu0 0.0
        %5070 = vmatpush1.msra.mxu0 0.0
        %5071 = vmatprep.subr.mxu0 0.0
        %5072 = vmatpush1.msra.mxu0 0.0
        %5073 = vmatprep.subr.mxu0 0.0
        %5074 = vmatpush1.msra.mxu0 0.0
        %5075 = vmatprep.subr.mxu0 0.0
        %5076 = vmatpush1.msra.mxu0 0.0
        %5077 = vmatprep.subr.mxu0 0.0
        %5078 = vmatpush1.msra.mxu0 0.0
        %5079 = vmatprep.subr.mxu0 0.0
        %5080 = vmatpush1.msra.mxu0 0.0
        %5081 = vmatprep.subr.mxu0 0.0
        %5082 = vmatpush1.msra.mxu0 0.0
        %5083 = vmatprep.subr.mxu0 0.0
        %5084 = vmatpush1.msra.mxu0 0.0
        %5085 = vmatprep.mubr.f32.mxu0 0.0
        %5086 = vmatmul.mubr.f32.gmra.mrb[0].mxu0 %v3484
        %v5087 = vpop.f32.mrb[0].mxu0
        %v5088 = vadd.f32 0.0, %v5087
        %v5089 = vpop.f32.mrb[0].mxu0
        %v5090 = vadd.f32 0.0, %v5089
        %5091 = vmatprep.mubr.f32.mxu0 0.0
        %5092 = vmatmul.mubr.f32.gmra.mrb[0].mxu0 %v3487
        %v5093 = vpop.f32.mrb[0].mxu0
        %v5094 = vadd.f32 0.0, %v5093
        %v5095 = vpop.f32.mrb[0].mxu0
        %v5096 = vadd.f32 0.0, %v5095
        %5097 = vmatprep.mubr.f32.mxu0 0.0
        %5098 = vmatmul.mubr.f32.gmra.mrb[0].mxu0 %v3490
        %v5099 = vpop.f32.mrb[0].mxu0
        %v5100 = vadd.f32 0.0, %v5099
        %v5101 = vpop.f32.mrb[0].mxu0
        %v5102 = vadd.f32 0.0, %v5101
        %5103 = vmatprep.mubr.f32.mxu0 0.0
        %5104 = vmatmul.mubr.f32.gmra.mrb[0].mxu0 %v3493
        %v5105 = vpop.f32.mrb[0].mxu0
        %v5106 = vadd.f32 0.0, %v5105
        %v5107 = vpop.f32.mrb[0].mxu0
        %v5108 = vadd.f32 0.0, %v5107
        %5109 = vmatprep.mubr.f32.mxu0 0.0
        %5110 = vmatmul.mubr.f32.gmra.mrb[0].mxu0 %v3496
        %v5111 = vpop.f32.mrb[0].mxu0
        %v5112 = vadd.f32 0.0, %v5111
        %v5113 = vpop.f32.mrb[0].mxu0
        %v5114 = vadd.f32 0.0, %v5113
        %5115 = vmatprep.mubr.f32.mxu0 0.0
        %5116 = vmatmul.mubr.f32.gmra.mrb[0].mxu0 %v3499
        %v5117 = vpop.f32.mrb[0].mxu0
        %v5118 = vadd.f32 0.0, %v5117
        %v5119 = vpop.f32.mrb[0].mxu0
        %v5120 = vadd.f32 0.0, %v5119
        %5121 = vmatprep.mubr.f32.mxu0 0.0
        %5122 = vmatmul.mubr.f32.gmra.mrb[0].mxu0 %v3502
        %v5123 = vpop.f32.mrb[0].mxu0
        %v5124 = vadd.f32 0.0, %v5123
        %v5125 = vpop.f32.mrb[0].mxu0
        %v5126 = vadd.f32 0.0, %v5125
        %5127 = vmatprep.mubr.f32.mxu0 0.0
        %5128 = vmatmul.mubr.f32.gmra.mrb[0].mxu0 %v3505
        %v5129 = vpop.f32.mrb[0].mxu0
        %v5130 = vadd.f32 0.0, %v5129
        %v5131 = vpop.f32.mrb[0].mxu0
        %v5132 = vadd.f32 0.0, %v5131
        %5133 = vdwg.mxu0
        %v5134 = vmax.f32 %v4828, %v5088
        %v5135 = vmax.f32 %v4829, %v5090
        %v5136 = vmax.f32 %v4830, %v5094
        %v5137 = vmax.f32 %v4831, %v5096
        %v5138 = vmax.f32 %v4832, %v5100
        %v5139 = vmax.f32 %v4833, %v5102
        %v5140 = vmax.f32 %v4834, %v5106
        %v5141 = vmax.f32 %v4835, %v5108
        %v5142 = vmax.f32 %v4836, %v5112
        %v5143 = vmax.f32 %v4837, %v5114
        %v5144 = vmax.f32 %v4838, %v5118
        %v5145 = vmax.f32 %v4839, %v5120
        %v5146 = vmax.f32 %v4840, %v5124
        %v5147 = vmax.f32 %v4841, %v5126
        %v5148 = vmax.f32 %v4842, %v5130
        %v5149 = vmax.f32 %v4843, %v5132
        %v5150 = vmax.f32 %v5134, %v5135
        %v5151 = vmax.f32 %v5136, %v5137
        %v5152 = vmax.f32 %v5138, %v5139
        %v5153 = vmax.f32 %v5140, %v5141
        %v5154 = vmax.f32 %v5142, %v5143
        %v5155 = vmax.f32 %v5144, %v5145
        %v5156 = vmax.f32 %v5146, %v5147
        %v5157 = vmax.f32 %v5148, %v5149
        %5159 = vset.pattern.permute.xlu0 0
        %5160 = vperm.xlu0 %5159, %v3112
        %v5161 = vpop.permute.xlu0 %5160
        %5164 = vset.pattern.permute.xlu0 0
        %5165 = vperm.xlu0 %5164, %v3113
        %v5166 = vpop.permute.xlu0 %5165
        %5169 = vset.pattern.permute.xlu0 0
        %5170 = vperm.xlu0 %5169, %v3114
        %v5171 = vpop.permute.xlu0 %5170
        %5174 = vset.pattern.permute.xlu0 0
        %5175 = vperm.xlu0 %5174, %v3115
        %v5176 = vpop.permute.xlu0 %5175
        %5179 = vset.pattern.permute.xlu0 0
        %5180 = vperm.xlu0 %5179, %v3116
        %v5181 = vpop.permute.xlu0 %5180
        %5184 = vset.pattern.permute.xlu0 0
        %5185 = vperm.xlu0 %5184, %v3117
        %v5186 = vpop.permute.xlu0 %5185
        %5189 = vset.pattern.permute.xlu0 0
        %5190 = vperm.xlu0 %5189, %v3118
        %v5191 = vpop.permute.xlu0 %5190
        %5194 = vset.pattern.permute.xlu0 0
        %5195 = vperm.xlu0 %5194, %v3119
        %v5196 = vpop.permute.xlu0 %5195
        %v5198 = vadd.f32 %v5150, %v5161
        %v5199 = vadd.f32 %v5151, %v5166
        %v5200 = vadd.f32 %v5152, %v5171
        %v5201 = vadd.f32 %v5153, %v5176
        %v5202 = vadd.f32 %v5154, %v5181
        %v5203 = vadd.f32 %v5155, %v5186
        %v5204 = vadd.f32 %v5156, %v5191
        %v5205 = vadd.f32 %v5157, %v5196
        %5207 = vset.pattern.permute.xlu0 0
        %5208 = vperm.xlu0 %5207, %v3128
        %v5209 = vpop.permute.xlu0 %5208
        %5212 = vset.pattern.permute.xlu0 0
        %5213 = vperm.xlu0 %5212, %v3129
        %v5214 = vpop.permute.xlu0 %5213
        %5217 = vset.pattern.permute.xlu0 0
        %5218 = vperm.xlu0 %5217, %v3130
        %v5219 = vpop.permute.xlu0 %5218
        %5222 = vset.pattern.permute.xlu0 0
        %5223 = vperm.xlu0 %5222, %v3131
        %v5224 = vpop.permute.xlu0 %5223
        %5227 = vset.pattern.permute.xlu0 0
        %5228 = vperm.xlu0 %5227, %v3132
        %v5229 = vpop.permute.xlu0 %5228
        %5232 = vset.pattern.permute.xlu0 0
        %5233 = vperm.xlu0 %5232, %v3133
        %v5234 = vpop.permute.xlu0 %5233
        %5237 = vset.pattern.permute.xlu0 0
        %5238 = vperm.xlu0 %5237, %v3134
        %v5239 = vpop.permute.xlu0 %5238
        %5242 = vset.pattern.permute.xlu0 0
        %5243 = vperm.xlu0 %5242, %v3135
        %v5244 = vpop.permute.xlu0 %5243
        %v5247 = vsel %vm3482, %v3120, 0
        %v5250 = vsel %vm3482, %v3121, 0
        %v5253 = vsel %vm3482, %v3122, 0
        %v5256 = vsel %vm3482, %v3123, 0
        %v5259 = vsel %vm3482, %v3124, 0
        %v5262 = vsel %vm3482, %v3125, 0
        %v5265 = vsel %vm3482, %v3126, 0
        %v5268 = vsel %vm3482, %v3127, 0
        %5270 = vmatprep.subr.mxu0 0.0
        %5271 = vmatpush1.msra.mxu0 %v5198
        %5272 = vmatprep.subr.mxu0 0.0
        %5273 = vmatpush1.msra.mxu0 %v5199
        %5274 = vmatprep.subr.mxu0 0.0
        %5275 = vmatpush1.msra.mxu0 %v5200
        %5276 = vmatprep.subr.mxu0 0.0
        %5277 = vmatpush1.msra.mxu0 %v5201
        %5278 = vmatprep.subr.mxu0 0.0
        %5279 = vmatpush1.msra.mxu0 %v5202
        %5280 = vmatprep.subr.mxu0 0.0
        %5281 = vmatpush1.msra.mxu0 %v5203
        %5282 = vmatprep.subr.mxu0 0.0
        %5283 = vmatpush1.msra.mxu0 %v5204
        %5284 = vmatprep.subr.mxu0 0.0
        %5285 = vmatpush1.msra.mxu0 %v5205
        %5286 = vmatprep.subr.mxu0 0.0
        %5287 = vmatpush1.msra.mxu0 0.0
        %5288 = vmatprep.subr.mxu0 0.0
        %5289 = vmatpush1.msra.mxu0 0.0
        %5290 = vmatprep.subr.mxu0 0.0
        %5291 = vmatpush1.msra.mxu0 0.0
        %5292 = vmatprep.subr.mxu0 0.0
        %5293 = vmatpush1.msra.mxu0 0.0
        %5294 = vmatprep.subr.mxu0 0.0
        %5295 = vmatpush1.msra.mxu0 0.0
        %5296 = vmatprep.subr.mxu0 0.0
        %5297 = vmatpush1.msra.mxu0 0.0
        %5298 = vmatprep.subr.mxu0 0.0
        %5299 = vmatpush1.msra.mxu0 0.0
        %5300 = vmatprep.subr.mxu0 0.0
        %5301 = vmatpush1.msra.mxu0 0.0
        %5302 = vmatprep.subr.mxu0 0.0
        %5303 = vmatpush1.msra.mxu0 0.0
        %5304 = vmatprep.subr.mxu0 0.0
        %5305 = vmatpush1.msra.mxu0 0.0
        %5306 = vmatprep.subr.mxu0 0.0
        %5307 = vmatpush1.msra.mxu0 0.0
        %5308 = vmatprep.subr.mxu0 0.0
        %5309 = vmatpush1.msra.mxu0 0.0
        %5310 = vmatprep.subr.mxu0 0.0
        %5311 = vmatpush1.msra.mxu0 0.0
        %5312 = vmatprep.subr.mxu0 0.0
        %5313 = vmatpush1.msra.mxu0 0.0
        %5314 = vmatprep.subr.mxu0 0.0
        %5315 = vmatpush1.msra.mxu0 0.0
        %5316 = vmatprep.subr.mxu0 0.0
        %5317 = vmatpush1.msra.mxu0 0.0
        %5318 = vmatprep.subr.mxu0 0.0
        %5319 = vmatpush1.msra.mxu0 0.0
        %5320 = vmatprep.subr.mxu0 0.0
        %5321 = vmatpush1.msra.mxu0 0.0
        %5322 = vmatprep.subr.mxu0 0.0
        %5323 = vmatpush1.msra.mxu0 0.0
        %5324 = vmatprep.subr.mxu0 0.0
        %5325 = vmatpush1.msra.mxu0 0.0
        %5326 = vmatprep.subr.mxu0 0.0
        %5327 = vmatpush1.msra.mxu0 0.0
        %5328 = vmatprep.subr.mxu0 0.0
        %5329 = vmatpush1.msra.mxu0 0.0
        %5330 = vmatprep.subr.mxu0 0.0
        %5331 = vmatpush1.msra.mxu0 0.0
        %5332 = vmatprep.subr.mxu0 0.0
        %5333 = vmatpush1.msra.mxu0 0.0
        %5334 = vmatprep.mubr.f32.mxu0 0.0
        %5335 = vmatmul.mubr.f32.gmra.mrb[0].mxu0 %v5247
        %v5336 = vpop.f32.mrb[0].mxu0
        %v5337 = vadd.f32 %v5209, %v5336
        %v5338 = vpop.f32.mrb[0].mxu0
        %5339 = vmatprep.mubr.f32.mxu0 0.0
        %5340 = vmatmul.mubr.f32.gmra.mrb[0].mxu0 %v5250
        %v5341 = vpop.f32.mrb[0].mxu0
        %v5342 = vadd.f32 %v5214, %v5341
        %v5343 = vpop.f32.mrb[0].mxu0
        %5344 = vmatprep.mubr.f32.mxu0 0.0
        %5345 = vmatmul.mubr.f32.gmra.mrb[0].mxu0 %v5253
        %v5346 = vpop.f32.mrb[0].mxu0
        %v5347 = vadd.f32 %v5219, %v5346
        %v5348 = vpop.f32.mrb[0].mxu0
        %5349 = vmatprep.mubr.f32.mxu0 0.0
        %5350 = vmatmul.mubr.f32.gmra.mrb[0].mxu0 %v5256
        %v5351 = vpop.f32.mrb[0].mxu0
        %v5352 = vadd.f32 %v5224, %v5351
        %v5353 = vpop.f32.mrb[0].mxu0
        %5354 = vmatprep.mubr.f32.mxu0 0.0
        %5355 = vmatmul.mubr.f32.gmra.mrb[0].mxu0 %v5259
        %v5356 = vpop.f32.mrb[0].mxu0
        %v5357 = vadd.f32 %v5229, %v5356
        %v5358 = vpop.f32.mrb[0].mxu0
        %5359 = vmatprep.mubr.f32.mxu0 0.0
        %5360 = vmatmul.mubr.f32.gmra.mrb[0].mxu0 %v5262
        %v5361 = vpop.f32.mrb[0].mxu0
        %v5362 = vadd.f32 %v5234, %v5361
        %v5363 = vpop.f32.mrb[0].mxu0
        %5364 = vmatprep.mubr.f32.mxu0 0.0
        %5365 = vmatmul.mubr.f32.gmra.mrb[0].mxu0 %v5265
        %v5366 = vpop.f32.mrb[0].mxu0
        %v5367 = vadd.f32 %v5239, %v5366
        %v5368 = vpop.f32.mrb[0].mxu0
        %5369 = vmatprep.mubr.f32.mxu0 0.0
        %5370 = vmatmul.mubr.f32.gmra.mrb[0].mxu0 %v5268
        %v5371 = vpop.f32.mrb[0].mxu0
        %v5372 = vadd.f32 %v5244, %v5371
        %v5373 = vpop.f32.mrb[0].mxu0
        %5374 = vdwg.mxu0
        %v5375 = vld [vmem:[%s7] sm:$0xff]
        %v5376 = vld [vmem:[%s7 + $0x8] sm:$0xff]
        %v5377 = vld [vmem:[%s7 + $0x10] sm:$0xff]
        %v5378 = vld [vmem:[%s7 + $0x18] sm:$0xff]
        %v5379 = vld [vmem:[%s7 + $0x20] sm:$0xff]
        %v5380 = vld [vmem:[%s7 + $0x28] sm:$0xff]
        %v5381 = vld [vmem:[%s7 + $0x30] sm:$0xff]
        %v5382 = vld [vmem:[%s7 + $0x38] sm:$0xff]
        %v5383 = vld [vmem:[%s8] sm:$0xff]
        %v5384 = vld [vmem:[%s8 + $0x8] sm:$0xff]
        %v5385 = vld [vmem:[%s8 + $0x10] sm:$0xff]
        %v5386 = vld [vmem:[%s8 + $0x18] sm:$0xff]
        %v5387 = vld [vmem:[%s8 + $0x20] sm:$0xff]
        %v5388 = vld [vmem:[%s8 + $0x28] sm:$0xff]
        %v5389 = vld [vmem:[%s8 + $0x30] sm:$0xff]
        %v5390 = vld [vmem:[%s8 + $0x38] sm:$0xff]
        %v5391 = vld [vmem:[%s9] sm:$0xff]
        %v5392 = vld [vmem:[%s9 + $0x8] sm:$0xff]
        %v5393 = vld [vmem:[%s9 + $0x10] sm:$0xff]
        %v5394 = vld [vmem:[%s9 + $0x18] sm:$0xff]
        %v5395 = vld [vmem:[%s9 + $0x20] sm:$0xff]
        %v5396 = vld [vmem:[%s9 + $0x28] sm:$0xff]
        %v5397 = vld [vmem:[%s9 + $0x30] sm:$0xff]
        %v5398 = vld [vmem:[%s9 + $0x38] sm:$0xff]
        %v5399 = vld [vmem:[%s10] sm:$0xff]
        %v5400 = vld [vmem:[%s10 + $0x8] sm:$0xff]
        %v5401 = vld [vmem:[%s10 + $0x10] sm:$0xff]
        %v5402 = vld [vmem:[%s10 + $0x18] sm:$0xff]
        %v5403 = vld [vmem:[%s10 + $0x20] sm:$0xff]
        %v5404 = vld [vmem:[%s10 + $0x28] sm:$0xff]
        %v5405 = vld [vmem:[%s10 + $0x30] sm:$0xff]
        %v5406 = vld [vmem:[%s10 + $0x38] sm:$0xff]
        %v5407 = vld [vmem:[%s11] sm:$0xff]
        %v5408 = vld [vmem:[%s11 + $0x8] sm:$0xff]
        %v5409 = vld [vmem:[%s11 + $0x10] sm:$0xff]
        %v5410 = vld [vmem:[%s11 + $0x18] sm:$0xff]
        %v5411 = vld [vmem:[%s11 + $0x20] sm:$0xff]
        %v5412 = vld [vmem:[%s11 + $0x28] sm:$0xff]
        %v5413 = vld [vmem:[%s11 + $0x30] sm:$0xff]
        %v5414 = vld [vmem:[%s11 + $0x38] sm:$0xff]
        %v5415 = vld [vmem:[%s12] sm:$0xff]
        %v5416 = vld [vmem:[%s12 + $0x8] sm:$0xff]
        %v5417 = vld [vmem:[%s12 + $0x10] sm:$0xff]
        %v5418 = vld [vmem:[%s12 + $0x18] sm:$0xff]
        %v5419 = vld [vmem:[%s12 + $0x20] sm:$0xff]
        %v5420 = vld [vmem:[%s12 + $0x28] sm:$0xff]
        %v5421 = vld [vmem:[%s12 + $0x30] sm:$0xff]
        %v5422 = vld [vmem:[%s12 + $0x38] sm:$0xff]
        %v5424 = vsel %vm3482, %v5375, 0
        %v5427 = vsel %vm3482, %v5376, 0
        %v5430 = vsel %vm3482, %v5377, 0
        %v5433 = vsel %vm3482, %v5378, 0
        %v5436 = vsel %vm3482, %v5379, 0
        %v5439 = vsel %vm3482, %v5380, 0
        %v5442 = vsel %vm3482, %v5381, 0
        %v5445 = vsel %vm3482, %v5382, 0
        %5447 = vmatprep.subr.mxu0 0.0
        %5448 = vmatpush1.msra.mxu0 %v5337
        %5449 = vmatprep.subr.mxu0 0.0
        %5450 = vmatpush1.msra.mxu0 %v5342
        %5451 = vmatprep.subr.mxu0 0.0
        %5452 = vmatpush1.msra.mxu0 %v5347
        %5453 = vmatprep.subr.mxu0 0.0
        %5454 = vmatpush1.msra.mxu0 %v5352
        %5455 = vmatprep.subr.mxu0 0.0
        %5456 = vmatpush1.msra.mxu0 %v5357
        %5457 = vmatprep.subr.mxu0 0.0
        %5458 = vmatpush1.msra.mxu0 %v5362
        %5459 = vmatprep.subr.mxu0 0.0
        %5460 = vmatpush1.msra.mxu0 %v5367
        %5461 = vmatprep.subr.mxu0 0.0
        %5462 = vmatpush1.msra.mxu0 %v5372
        %5463 = vmatprep.subr.mxu0 0.0
        %5464 = vmatpush1.msra.mxu0 0.0
        %5465 = vmatprep.subr.mxu0 0.0
        %5466 = vmatpush1.msra.mxu0 0.0
        %5467 = vmatprep.subr.mxu0 0.0
        %5468 = vmatpush1.msra.mxu0 0.0
        %5469 = vmatprep.subr.mxu0 0.0
        %5470 = vmatpush1.msra.mxu0 0.0
        %5471 = vmatprep.subr.mxu0 0.0
        %5472 = vmatpush1.msra.mxu0 0.0
        %5473 = vmatprep.subr.mxu0 0.0
        %5474 = vmatpush1.msra.mxu0 0.0
        %5475 = vmatprep.subr.mxu0 0.0
        %5476 = vmatpush1.msra.mxu0 0.0
        %5477 = vmatprep.subr.mxu0 0.0
        %5478 = vmatpush1.msra.mxu0 0.0
        %5479 = vmatprep.subr.mxu0 0.0
        %5480 = vmatpush1.msra.mxu0 0.0
        %5481 = vmatprep.subr.mxu0 0.0
        %5482 = vmatpush1.msra.mxu0 0.0
        %5483 = vmatprep.subr.mxu0 0.0
        %5484 = vmatpush1.msra.mxu0 0.0
        %5485 = vmatprep.subr.mxu0 0.0
        %5486 = vmatpush1.msra.mxu0 0.0
        %5487 = vmatprep.subr.mxu0 0.0
        %5488 = vmatpush1.msra.mxu0 0.0
        %5489 = vmatprep.subr.mxu0 0.0
        %5490 = vmatpush1.msra.mxu0 0.0
        %5491 = vmatprep.subr.mxu0 0.0
        %5492 = vmatpush1.msra.mxu0 0.0
        %5493 = vmatprep.subr.mxu0 0.0
        %5494 = vmatpush1.msra.mxu0 0.0
        %5495 = vmatprep.subr.mxu0 0.0
        %5496 = vmatpush1.msra.mxu0 0.0
        %5497 = vmatprep.subr.mxu0 0.0
        %5498 = vmatpush1.msra.mxu0 0.0
        %5499 = vmatprep.subr.mxu0 0.0
        %5500 = vmatpush1.msra.mxu0 0.0
        %5501 = vmatprep.subr.mxu0 0.0
        %5502 = vmatpush1.msra.mxu0 0.0
        %5503 = vmatprep.subr.mxu0 0.0
        %5504 = vmatpush1.msra.mxu0 0.0
        %5505 = vmatprep.subr.mxu0 0.0
        %5506 = vmatpush1.msra.mxu0 0.0
        %5507 = vmatprep.subr.mxu0 0.0
        %5508 = vmatpush1.msra.mxu0 0.0
        %5509 = vmatprep.subr.mxu0 0.0
        %5510 = vmatpush1.msra.mxu0 0.0
        %5511 = vmatprep.mubr.f32.mxu0 0.0
        %5512 = vmatmul.mubr.f32.gmra.mrb[0].mxu0 %v5424
        %v5513 = vpop.f32.mrb[0].mxu0
        %v5514 = vadd.f32 0.0, %v5513
        %v5515 = vpop.f32.mrb[0].mxu0
        %5516 = vmatprep.mubr.f32.mxu0 0.0
        %5517 = vmatmul.mubr.f32.gmra.mrb[0].mxu0 %v5427
        %v5518 = vpop.f32.mrb[0].mxu0
        %v5519 = vadd.f32 0.0, %v5518
        %v5520 = vpop.f32.mrb[0].mxu0
        %5521 = vmatprep.mubr.f32.mxu0 0.0
        %5522 = vmatmul.mubr.f32.gmra.mrb[0].mxu0 %v5430
        %v5523 = vpop.f32.mrb[0].mxu0
        %v5524 = vadd.f32 0.0, %v5523
        %v5525 = vpop.f32.mrb[0].mxu0
        %5526 = vmatprep.mubr.f32.mxu0 0.0
        %5527 = vmatmul.mubr.f32.gmra.mrb[0].mxu0 %v5433
        %v5528 = vpop.f32.mrb[0].mxu0
        %v5529 = vadd.f32 0.0, %v5528
        %v5530 = vpop.f32.mrb[0].mxu0
        %5531 = vmatprep.mubr.f32.mxu0 0.0
        %5532 = vmatmul.mubr.f32.gmra.mrb[0].mxu0 %v5436
        %v5533 = vpop.f32.mrb[0].mxu0
        %v5534 = vadd.f32 0.0, %v5533
        %v5535 = vpop.f32.mrb[0].mxu0
        %5536 = vmatprep.mubr.f32.mxu0 0.0
        %5537 = vmatmul.mubr.f32.gmra.mrb[0].mxu0 %v5439
        %v5538 = vpop.f32.mrb[0].mxu0
        %v5539 = vadd.f32 0.0, %v5538
        %v5540 = vpop.f32.mrb[0].mxu0
        %5541 = vmatprep.mubr.f32.mxu0 0.0
        %5542 = vmatmul.mubr.f32.gmra.mrb[0].mxu0 %v5442
        %v5543 = vpop.f32.mrb[0].mxu0
        %v5544 = vadd.f32 0.0, %v5543
        %v5545 = vpop.f32.mrb[0].mxu0
        %5546 = vmatprep.mubr.f32.mxu0 0.0
        %5547 = vmatmul.mubr.f32.gmra.mrb[0].mxu0 %v5445
        %v5548 = vpop.f32.mrb[0].mxu0
        %v5549 = vadd.f32 0.0, %v5548
        %v5550 = vpop.f32.mrb[0].mxu0
        %5551 = vdwg.mxu0
        %5553 = vset.pattern.permute.xlu0 0
        %5554 = vperm.xlu0 %5553, %v5383
        %v5555 = vpop.permute.xlu0 %5554
        %5558 = vset.pattern.permute.xlu0 0
        %5559 = vperm.xlu0 %5558, %v5384
        %v5560 = vpop.permute.xlu0 %5559
        %5563 = vset.pattern.permute.xlu0 0
        %5564 = vperm.xlu0 %5563, %v5385
        %v5565 = vpop.permute.xlu0 %5564
        %5568 = vset.pattern.permute.xlu0 0
        %5569 = vperm.xlu0 %5568, %v5386
        %v5570 = vpop.permute.xlu0 %5569
        %5573 = vset.pattern.permute.xlu0 0
        %5574 = vperm.xlu0 %5573, %v5387
        %v5575 = vpop.permute.xlu0 %5574
        %5578 = vset.pattern.permute.xlu0 0
        %5579 = vperm.xlu0 %5578, %v5388
        %v5580 = vpop.permute.xlu0 %5579
        %5583 = vset.pattern.permute.xlu0 0
        %5584 = vperm.xlu0 %5583, %v5389
        %v5585 = vpop.permute.xlu0 %5584
        %5588 = vset.pattern.permute.xlu0 0
        %5589 = vperm.xlu0 %5588, %v5390
        %v5590 = vpop.permute.xlu0 %5589
        %5592 = vmatprep.subr.mxu0 %v3282
        %5593 = vmatpush1.msra.mxu0 %v3281
        %5594 = vmatprep.subr.mxu0 %v3284
        %5595 = vmatpush1.msra.mxu0 %v3283
        %5596 = vmatprep.subr.mxu0 %v3286
        %5597 = vmatpush1.msra.mxu0 %v3285
        %5598 = vmatprep.subr.mxu0 %v3288
        %5599 = vmatpush1.msra.mxu0 %v3287
        %5600 = vmatprep.subr.mxu0 %v3290
        %5601 = vmatpush1.msra.mxu0 %v3289
        %5602 = vmatprep.subr.mxu0 %v3292
        %5603 = vmatpush1.msra.mxu0 %v3291
        %5604 = vmatprep.subr.mxu0 %v3294
        %5605 = vmatpush1.msra.mxu0 %v3293
        %5606 = vmatprep.subr.mxu0 %v3296
        %5607 = vmatpush1.msra.mxu0 %v3295
        %5608 = vmatprep.subr.mxu0 %v3298
        %5609 = vmatpush1.msra.mxu0 %v3297
        %5610 = vmatprep.subr.mxu0 %v3300
        %5611 = vmatpush1.msra.mxu0 %v3299
        %5612 = vmatprep.subr.mxu0 %v3302
        %5613 = vmatpush1.msra.mxu0 %v3301
        %5614 = vmatprep.subr.mxu0 %v3304
        %5615 = vmatpush1.msra.mxu0 %v3303
        %5616 = vmatprep.subr.mxu0 %v3306
        %5617 = vmatpush1.msra.mxu0 %v3305
        %5618 = vmatprep.subr.mxu0 %v3308
        %5619 = vmatpush1.msra.mxu0 %v3307
        %5620 = vmatprep.subr.mxu0 %v3310
        %5621 = vmatpush1.msra.mxu0 %v3309
        %5622 = vmatprep.subr.mxu0 %v3312
        %5623 = vmatpush1.msra.mxu0 %v3311
        %5624 = vmatprep.subr.mxu0 0.0
        %5625 = vmatpush1.msra.mxu0 0.0
        %5626 = vmatprep.subr.mxu0 0.0
        %5627 = vmatpush1.msra.mxu0 0.0
        %5628 = vmatprep.subr.mxu0 0.0
        %5629 = vmatpush1.msra.mxu0 0.0
        %5630 = vmatprep.subr.mxu0 0.0
        %5631 = vmatpush1.msra.mxu0 0.0
        %5632 = vmatprep.subr.mxu0 0.0
        %5633 = vmatpush1.msra.mxu0 0.0
        %5634 = vmatprep.subr.mxu0 0.0
        %5635 = vmatpush1.msra.mxu0 0.0
        %5636 = vmatprep.subr.mxu0 0.0
        %5637 = vmatpush1.msra.mxu0 0.0
        %5638 = vmatprep.subr.mxu0 0.0
        %5639 = vmatpush1.msra.mxu0 0.0
        %5640 = vmatprep.subr.mxu0 0.0
        %5641 = vmatpush1.msra.mxu0 0.0
        %5642 = vmatprep.subr.mxu0 0.0
        %5643 = vmatpush1.msra.mxu0 0.0
        %5644 = vmatprep.subr.mxu0 0.0
        %5645 = vmatpush1.msra.mxu0 0.0
        %5646 = vmatprep.subr.mxu0 0.0
        %5647 = vmatpush1.msra.mxu0 0.0
        %5648 = vmatprep.subr.mxu0 0.0
        %5649 = vmatpush1.msra.mxu0 0.0
        %5650 = vmatprep.subr.mxu0 0.0
        %5651 = vmatpush1.msra.mxu0 0.0
        %5652 = vmatprep.subr.mxu0 0.0
        %5653 = vmatpush1.msra.mxu0 0.0
        %5654 = vmatprep.subr.mxu0 0.0
        %5655 = vmatpush1.msra.mxu0 0.0
        %5656 = vmatprep.mubr.f32.mxu0 0.0
        %5657 = vmatmul.mubr.f32.gmra.mrb[0].mxu0 %v5514
        %v5658 = vpop.f32.mrb[0].mxu0
        %v5659 = vadd.f32 %v5555, %v5658
        %v5660 = vpop.f32.mrb[0].mxu0
        %v5661 = vadd.f32 %v5555, %v5660
        %5662 = vmatprep.mubr.f32.mxu0 0.0
        %5663 = vmatmul.mubr.f32.gmra.mrb[0].mxu0 %v5519
        %v5664 = vpop.f32.mrb[0].mxu0
        %v5665 = vadd.f32 %v5560, %v5664
        %v5666 = vpop.f32.mrb[0].mxu0
        %v5667 = vadd.f32 %v5560, %v5666
        %5668 = vmatprep.mubr.f32.mxu0 0.0
        %5669 = vmatmul.mubr.f32.gmra.mrb[0].mxu0 %v5524
        %v5670 = vpop.f32.mrb[0].mxu0
        %v5671 = vadd.f32 %v5565, %v5670
        %v5672 = vpop.f32.mrb[0].mxu0
        %v5673 = vadd.f32 %v5565, %v5672
        %5674 = vmatprep.mubr.f32.mxu0 0.0
        %5675 = vmatmul.mubr.f32.gmra.mrb[0].mxu0 %v5529
        %v5676 = vpop.f32.mrb[0].mxu0
        %v5677 = vadd.f32 %v5570, %v5676
        %v5678 = vpop.f32.mrb[0].mxu0
        %v5679 = vadd.f32 %v5570, %v5678
        %5680 = vmatprep.mubr.f32.mxu0 0.0
        %5681 = vmatmul.mubr.f32.gmra.mrb[0].mxu0 %v5534
        %v5682 = vpop.f32.mrb[0].mxu0
        %v5683 = vadd.f32 %v5575, %v5682
        %v5684 = vpop.f32.mrb[0].mxu0
        %v5685 = vadd.f32 %v5575, %v5684
        %5686 = vmatprep.mubr.f32.mxu0 0.0
        %5687 = vmatmul.mubr.f32.gmra.mrb[0].mxu0 %v5539
        %v5688 = vpop.f32.mrb[0].mxu0
        %v5689 = vadd.f32 %v5580, %v5688
        %v5690 = vpop.f32.mrb[0].mxu0
        %v5691 = vadd.f32 %v5580, %v5690
        %5692 = vmatprep.mubr.f32.mxu0 0.0
        %5693 = vmatmul.mubr.f32.gmra.mrb[0].mxu0 %v5544
        %v5694 = vpop.f32.mrb[0].mxu0
        %v5695 = vadd.f32 %v5585, %v5694
        %v5696 = vpop.f32.mrb[0].mxu0
        %v5697 = vadd.f32 %v5585, %v5696
        %5698 = vmatprep.mubr.f32.mxu0 0.0
        %5699 = vmatmul.mubr.f32.gmra.mrb[0].mxu0 %v5549
        %v5700 = vpop.f32.mrb[0].mxu0
        %v5701 = vadd.f32 %v5590, %v5700
        %v5702 = vpop.f32.mrb[0].mxu0
        %v5703 = vadd.f32 %v5590, %v5702
        %5704 = vdwg.mxu0
        %v5705 = vmax.f32 %v5659, 0.0
        %v5706 = vmax.f32 %v5661, 0.0
        %v5707 = vmax.f32 %v5665, 0.0
        %v5708 = vmax.f32 %v5667, 0.0
        %v5709 = vmax.f32 %v5671, 0.0
        %v5710 = vmax.f32 %v5673, 0.0
        %v5711 = vmax.f32 %v5677, 0.0
        %v5712 = vmax.f32 %v5679, 0.0
        %v5713 = vmax.f32 %v5683, 0.0
        %v5714 = vmax.f32 %v5685, 0.0
        %v5715 = vmax.f32 %v5689, 0.0
        %v5716 = vmax.f32 %v5691, 0.0
        %v5717 = vmax.f32 %v5695, 0.0
        %v5718 = vmax.f32 %v5697, 0.0
        %v5719 = vmax.f32 %v5701, 0.0
        %v5720 = vmax.f32 %v5703, 0.0
        %v5722 = vsel %vm3482, %v5391, 0
        %v5725 = vsel %vm3482, %v5392, 0
        %v5728 = vsel %vm3482, %v5393, 0
        %v5731 = vsel %vm3482, %v5394, 0
        %v5734 = vsel %vm3482, %v5395, 0
        %v5737 = vsel %vm3482, %v5396, 0
        %v5740 = vsel %vm3482, %v5397, 0
        %v5743 = vsel %vm3482, %v5398, 0
        %5745 = vmatprep.subr.mxu0 %v5706
        %5746 = vmatpush1.msra.mxu0 %v5705
        %5747 = vmatprep.subr.mxu0 %v5708
        %5748 = vmatpush1.msra.mxu0 %v5707
        %5749 = vmatprep.subr.mxu0 %v5710
        %5750 = vmatpush1.msra.mxu0 %v5709
        %5751 = vmatprep.subr.mxu0 %v5712
        %5752 = vmatpush1.msra.mxu0 %v5711
        %5753 = vmatprep.subr.mxu0 %v5714
        %5754 = vmatpush1.msra.mxu0 %v5713
        %5755 = vmatprep.subr.mxu0 %v5716
        %5756 = vmatpush1.msra.mxu0 %v5715
        %5757 = vmatprep.subr.mxu0 %v5718
        %5758 = vmatpush1.msra.mxu0 %v5717
        %5759 = vmatprep.subr.mxu0 %v5720
        %5760 = vmatpush1.msra.mxu0 %v5719
        %5761 = vmatprep.subr.mxu0 0.0
        %5762 = vmatpush1.msra.mxu0 0.0
        %5763 = vmatprep.subr.mxu0 0.0
        %5764 = vmatpush1.msra.mxu0 0.0
        %5765 = vmatprep.subr.mxu0 0.0
        %5766 = vmatpush1.msra.mxu0 0.0
        %5767 = vmatprep.subr.mxu0 0.0
        %5768 = vmatpush1.msra.mxu0 0.0
        %5769 = vmatprep.subr.mxu0 0.0
        %5770 = vmatpush1.msra.mxu0 0.0
        %5771 = vmatprep.subr.mxu0 0.0
        %5772 = vmatpush1.msra.mxu0 0.0
        %5773 = vmatprep.subr.mxu0 0.0
        %5774 = vmatpush1.msra.mxu0 0.0
        %5775 = vmatprep.subr.mxu0 0.0
        %5776 = vmatpush1.msra.mxu0 0.0
        %5777 = vmatprep.subr.mxu0 0.0
        %5778 = vmatpush1.msra.mxu0 0.0
        %5779 = vmatprep.subr.mxu0 0.0
        %5780 = vmatpush1.msra.mxu0 0.0
        %5781 = vmatprep.subr.mxu0 0.0
        %5782 = vmatpush1.msra.mxu0 0.0
        %5783 = vmatprep.subr.mxu0 0.0
        %5784 = vmatpush1.msra.mxu0 0.0
        %5785 = vmatprep.subr.mxu0 0.0
        %5786 = vmatpush1.msra.mxu0 0.0
        %5787 = vmatprep.subr.mxu0 0.0
        %5788 = vmatpush1.msra.mxu0 0.0
        %5789 = vmatprep.subr.mxu0 0.0
        %5790 = vmatpush1.msra.mxu0 0.0
        %5791 = vmatprep.subr.mxu0 0.0
        %5792 = vmatpush1.msra.mxu0 0.0
        %5793 = vmatprep.subr.mxu0 0.0
        %5794 = vmatpush1.msra.mxu0 0.0
        %5795 = vmatprep.subr.mxu0 0.0
        %5796 = vmatpush1.msra.mxu0 0.0
        %5797 = vmatprep.subr.mxu0 0.0
        %5798 = vmatpush1.msra.mxu0 0.0
        %5799 = vmatprep.subr.mxu0 0.0
        %5800 = vmatpush1.msra.mxu0 0.0
        %5801 = vmatprep.subr.mxu0 0.0
        %5802 = vmatpush1.msra.mxu0 0.0
        %5803 = vmatprep.subr.mxu0 0.0
        %5804 = vmatpush1.msra.mxu0 0.0
        %5805 = vmatprep.subr.mxu0 0.0
        %5806 = vmatpush1.msra.mxu0 0.0
        %5807 = vmatprep.subr.mxu0 0.0
        %5808 = vmatpush1.msra.mxu0 0.0
        %5809 = vmatprep.mubr.f32.mxu0 0.0
        %5810 = vmatmul.mubr.f32.gmra.mrb[0].mxu0 %v5722
        %v5811 = vpop.f32.mrb[0].mxu0
        %v5812 = vadd.f32 0.0, %v5811
        %v5813 = vpop.f32.mrb[0].mxu0
        %v5814 = vadd.f32 0.0, %v5813
        %5815 = vmatprep.mubr.f32.mxu0 0.0
        %5816 = vmatmul.mubr.f32.gmra.mrb[0].mxu0 %v5725
        %v5817 = vpop.f32.mrb[0].mxu0
        %v5818 = vadd.f32 0.0, %v5817
        %v5819 = vpop.f32.mrb[0].mxu0
        %v5820 = vadd.f32 0.0, %v5819
        %5821 = vmatprep.mubr.f32.mxu0 0.0
        %5822 = vmatmul.mubr.f32.gmra.mrb[0].mxu0 %v5728
        %v5823 = vpop.f32.mrb[0].mxu0
        %v5824 = vadd.f32 0.0, %v5823
        %v5825 = vpop.f32.mrb[0].mxu0
        %v5826 = vadd.f32 0.0, %v5825
        %5827 = vmatprep.mubr.f32.mxu0 0.0
        %5828 = vmatmul.mubr.f32.gmra.mrb[0].mxu0 %v5731
        %v5829 = vpop.f32.mrb[0].mxu0
        %v5830 = vadd.f32 0.0, %v5829
        %v5831 = vpop.f32.mrb[0].mxu0
        %v5832 = vadd.f32 0.0, %v5831
        %5833 = vmatprep.mubr.f32.mxu0 0.0
        %5834 = vmatmul.mubr.f32.gmra.mrb[0].mxu0 %v5734
        %v5835 = vpop.f32.mrb[0].mxu0
        %v5836 = vadd.f32 0.0, %v5835
        %v5837 = vpop.f32.mrb[0].mxu0
        %v5838 = vadd.f32 0.0, %v5837
        %5839 = vmatprep.mubr.f32.mxu0 0.0
        %5840 = vmatmul.mubr.f32.gmra.mrb[0].mxu0 %v5737
        %v5841 = vpop.f32.mrb[0].mxu0
        %v5842 = vadd.f32 0.0, %v5841
        %v5843 = vpop.f32.mrb[0].mxu0
        %v5844 = vadd.f32 0.0, %v5843
        %5845 = vmatprep.mubr.f32.mxu0 0.0
        %5846 = vmatmul.mubr.f32.gmra.mrb[0].mxu0 %v5740
        %v5847 = vpop.f32.mrb[0].mxu0
        %v5848 = vadd.f32 0.0, %v5847
        %v5849 = vpop.f32.mrb[0].mxu0
        %v5850 = vadd.f32 0.0, %v5849
        %5851 = vmatprep.mubr.f32.mxu0 0.0
        %5852 = vmatmul.mubr.f32.gmra.mrb[0].mxu0 %v5743
        %v5853 = vpop.f32.mrb[0].mxu0
        %v5854 = vadd.f32 0.0, %v5853
        %v5855 = vpop.f32.mrb[0].mxu0
        %v5856 = vadd.f32 0.0, %v5855
        %5857 = vdwg.mxu0
        %5858 = vmatprep.subr.mxu0 %v3637
        %5859 = vmatpush1.msra.mxu0 %v3636
        %5860 = vmatprep.subr.mxu0 %v3639
        %5861 = vmatpush1.msra.mxu0 %v3638
        %5862 = vmatprep.subr.mxu0 %v3641
        %5863 = vmatpush1.msra.mxu0 %v3640
        %5864 = vmatprep.subr.mxu0 %v3643
        %5865 = vmatpush1.msra.mxu0 %v3642
        %5866 = vmatprep.subr.mxu0 %v3645
        %5867 = vmatpush1.msra.mxu0 %v3644
        %5868 = vmatprep.subr.mxu0 %v3647
        %5869 = vmatpush1.msra.mxu0 %v3646
        %5870 = vmatprep.subr.mxu0 %v3649
        %5871 = vmatpush1.msra.mxu0 %v3648
        %5872 = vmatprep.subr.mxu0 %v3651
        %5873 = vmatpush1.msra.mxu0 %v3650
        %5874 = vmatprep.subr.mxu0 %v3653
        %5875 = vmatpush1.msra.mxu0 %v3652
        %5876 = vmatprep.subr.mxu0 %v3655
        %5877 = vmatpush1.msra.mxu0 %v3654
        %5878 = vmatprep.subr.mxu0 %v3657
        %5879 = vmatpush1.msra.mxu0 %v3656
        %5880 = vmatprep.subr.mxu0 %v3659
        %5881 = vmatpush1.msra.mxu0 %v3658
        %5882 = vmatprep.subr.mxu0 %v3661
        %5883 = vmatpush1.msra.mxu0 %v3660
        %5884 = vmatprep.subr.mxu0 %v3663
        %5885 = vmatpush1.msra.mxu0 %v3662
        %5886 = vmatprep.subr.mxu0 %v3665
        %5887 = vmatpush1.msra.mxu0 %v3664
        %5888 = vmatprep.subr.mxu0 %v3667
        %5889 = vmatpush1.msra.mxu0 %v3666
        %5890 = vmatprep.subr.mxu0 0.0
        %5891 = vmatpush1.msra.mxu0 0.0
        %5892 = vmatprep.subr.mxu0 0.0
        %5893 = vmatpush1.msra.mxu0 0.0
        %5894 = vmatprep.subr.mxu0 0.0
        %5895 = vmatpush1.msra.mxu0 0.0
        %5896 = vmatprep.subr.mxu0 0.0
        %5897 = vmatpush1.msra.mxu0 0.0
        %5898 = vmatprep.subr.mxu0 0.0
        %5899 = vmatpush1.msra.mxu0 0.0
        %5900 = vmatprep.subr.mxu0 0.0
        %5901 = vmatpush1.msra.mxu0 0.0
        %5902 = vmatprep.subr.mxu0 0.0
        %5903 = vmatpush1.msra.mxu0 0.0
        %5904 = vmatprep.subr.mxu0 0.0
        %5905 = vmatpush1.msra.mxu0 0.0
        %5906 = vmatprep.subr.mxu0 0.0
        %5907 = vmatpush1.msra.mxu0 0.0
        %5908 = vmatprep.subr.mxu0 0.0
        %5909 = vmatpush1.msra.mxu0 0.0
        %5910 = vmatprep.subr.mxu0 0.0
        %5911 = vmatpush1.msra.mxu0 0.0
        %5912 = vmatprep.subr.mxu0 0.0
        %5913 = vmatpush1.msra.mxu0 0.0
        %5914 = vmatprep.subr.mxu0 0.0
        %5915 = vmatpush1.msra.mxu0 0.0
        %5916 = vmatprep.subr.mxu0 0.0
        %5917 = vmatpush1.msra.mxu0 0.0
        %5918 = vmatprep.subr.mxu0 0.0
        %5919 = vmatpush1.msra.mxu0 0.0
        %5920 = vmatprep.subr.mxu0 0.0
        %5921 = vmatpush1.msra.mxu0 0.0
        %5922 = vmatprep.mubr.f32.mxu0 0.0
        %5923 = vmatmul.mubr.f32.gmra.mrb[0].mxu0 %v5514
        %v5924 = vpop.f32.mrb[0].mxu0
        %v5925 = vadd.f32 %v5555, %v5924
        %v5926 = vpop.f32.mrb[0].mxu0
        %v5927 = vadd.f32 %v5555, %v5926
        %5928 = vmatprep.mubr.f32.mxu0 0.0
        %5929 = vmatmul.mubr.f32.gmra.mrb[0].mxu0 %v5519
        %v5930 = vpop.f32.mrb[0].mxu0
        %v5931 = vadd.f32 %v5560, %v5930
        %v5932 = vpop.f32.mrb[0].mxu0
        %v5933 = vadd.f32 %v5560, %v5932
        %5934 = vmatprep.mubr.f32.mxu0 0.0
        %5935 = vmatmul.mubr.f32.gmra.mrb[0].mxu0 %v5524
        %v5936 = vpop.f32.mrb[0].mxu0
        %v5937 = vadd.f32 %v5565, %v5936
        %v5938 = vpop.f32.mrb[0].mxu0
        %v5939 = vadd.f32 %v5565, %v5938
        %5940 = vmatprep.mubr.f32.mxu0 0.0
        %5941 = vmatmul.mubr.f32.gmra.mrb[0].mxu0 %v5529
        %v5942 = vpop.f32.mrb[0].mxu0
        %v5943 = vadd.f32 %v5570, %v5942
        %v5944 = vpop.f32.mrb[0].mxu0
        %v5945 = vadd.f32 %v5570, %v5944
        %5946 = vmatprep.mubr.f32.mxu0 0.0
        %5947 = vmatmul.mubr.f32.gmra.mrb[0].mxu0 %v5534
        %v5948 = vpop.f32.mrb[0].mxu0
        %v5949 = vadd.f32 %v5575, %v5948
        %v5950 = vpop.f32.mrb[0].mxu0
        %v5951 = vadd.f32 %v5575, %v5950
        %5952 = vmatprep.mubr.f32.mxu0 0.0
        %5953 = vmatmul.mubr.f32.gmra.mrb[0].mxu0 %v5539
        %v5954 = vpop.f32.mrb[0].mxu0
        %v5955 = vadd.f32 %v5580, %v5954
        %v5956 = vpop.f32.mrb[0].mxu0
        %v5957 = vadd.f32 %v5580, %v5956
        %5958 = vmatprep.mubr.f32.mxu0 0.0
        %5959 = vmatmul.mubr.f32.gmra.mrb[0].mxu0 %v5544
        %v5960 = vpop.f32.mrb[0].mxu0
        %v5961 = vadd.f32 %v5585, %v5960
        %v5962 = vpop.f32.mrb[0].mxu0
        %v5963 = vadd.f32 %v5585, %v5962
        %5964 = vmatprep.mubr.f32.mxu0 0.0
        %5965 = vmatmul.mubr.f32.gmra.mrb[0].mxu0 %v5549
        %v5966 = vpop.f32.mrb[0].mxu0
        %v5967 = vadd.f32 %v5590, %v5966
        %v5968 = vpop.f32.mrb[0].mxu0
        %v5969 = vadd.f32 %v5590, %v5968
        %5970 = vdwg.mxu0
        %v5971 = vmax.f32 %v5925, 0.0
        %v5972 = vmax.f32 %v5927, 0.0
        %v5973 = vmax.f32 %v5931, 0.0
        %v5974 = vmax.f32 %v5933, 0.0
        %v5975 = vmax.f32 %v5937, 0.0
        %v5976 = vmax.f32 %v5939, 0.0
        %v5977 = vmax.f32 %v5943, 0.0
        %v5978 = vmax.f32 %v5945, 0.0
        %v5979 = vmax.f32 %v5949, 0.0
        %v5980 = vmax.f32 %v5951, 0.0
        %v5981 = vmax.f32 %v5955, 0.0
        %v5982 = vmax.f32 %v5957, 0.0
        %v5983 = vmax.f32 %v5961, 0.0
        %v5984 = vmax.f32 %v5963, 0.0
        %v5985 = vmax.f32 %v5967, 0.0
        %v5986 = vmax.f32 %v5969, 0.0
        %5987 = vmatprep.subr.mxu0 %v5972
        %5988 = vmatpush1.msra.mxu0 %v5971
        %5989 = vmatprep.subr.mxu0 %v5974
        %5990 = vmatpush1.msra.mxu0 %v5973
        %5991 = vmatprep.subr.mxu0 %v5976
        %5992 = vmatpush1.msra.mxu0 %v5975
        %5993 = vmatprep.subr.mxu0 %v5978
        %5994 = vmatpush1.msra.mxu0 %v5977
        %5995 = vmatprep.subr.mxu0 %v5980
        %5996 = vmatpush1.msra.mxu0 %v5979
        %5997 = vmatprep.subr.mxu0 %v5982
        %5998 = vmatpush1.msra.mxu0 %v5981
        %5999 = vmatprep.subr.mxu0 %v5984
        %6000 = vmatpush1.msra.mxu0 %v5983
        %6001 = vmatprep.subr.mxu0 %v5986
        %6002 = vmatpush1.msra.mxu0 %v5985
        %6003 = vmatprep.subr.mxu0 0.0
        %6004 = vmatpush1.msra.mxu0 0.0
        %6005 = vmatprep.subr.mxu0 0.0
        %6006 = vmatpush1.msra.mxu0 0.0
        %6007 = vmatprep.subr.mxu0 0.0
        %6008 = vmatpush1.msra.mxu0 0.0
        %6009 = vmatprep.subr.mxu0 0.0
        %6010 = vmatpush1.msra.mxu0 0.0
        %6011 = vmatprep.subr.mxu0 0.0
        %6012 = vmatpush1.msra.mxu0 0.0
        %6013 = vmatprep.subr.mxu0 0.0
        %6014 = vmatpush1.msra.mxu0 0.0
        %6015 = vmatprep.subr.mxu0 0.0
        %6016 = vmatpush1.msra.mxu0 0.0
        %6017 = vmatprep.subr.mxu0 0.0
        %6018 = vmatpush1.msra.mxu0 0.0
        %6019 = vmatprep.subr.mxu0 0.0
        %6020 = vmatpush1.msra.mxu0 0.0
        %6021 = vmatprep.subr.mxu0 0.0
        %6022 = vmatpush1.msra.mxu0 0.0
        %6023 = vmatprep.subr.mxu0 0.0
        %6024 = vmatpush1.msra.mxu0 0.0
        %6025 = vmatprep.subr.mxu0 0.0
        %6026 = vmatpush1.msra.mxu0 0.0
        %6027 = vmatprep.subr.mxu0 0.0
        %6028 = vmatpush1.msra.mxu0 0.0
        %6029 = vmatprep.subr.mxu0 0.0
        %6030 = vmatpush1.msra.mxu0 0.0
        %6031 = vmatprep.subr.mxu0 0.0
        %6032 = vmatpush1.msra.mxu0 0.0
        %6033 = vmatprep.subr.mxu0 0.0
        %6034 = vmatpush1.msra.mxu0 0.0
        %6035 = vmatprep.subr.mxu0 0.0
        %6036 = vmatpush1.msra.mxu0 0.0
        %6037 = vmatprep.subr.mxu0 0.0
        %6038 = vmatpush1.msra.mxu0 0.0
        %6039 = vmatprep.subr.mxu0 0.0
        %6040 = vmatpush1.msra.mxu0 0.0
        %6041 = vmatprep.subr.mxu0 0.0
        %6042 = vmatpush1.msra.mxu0 0.0
        %6043 = vmatprep.subr.mxu0 0.0
        %6044 = vmatpush1.msra.mxu0 0.0
        %6045 = vmatprep.subr.mxu0 0.0
        %6046 = vmatpush1.msra.mxu0 0.0
        %6047 = vmatprep.subr.mxu0 0.0
        %6048 = vmatpush1.msra.mxu0 0.0
        %6049 = vmatprep.subr.mxu0 0.0
        %6050 = vmatpush1.msra.mxu0 0.0
        %6051 = vmatprep.mubr.f32.mxu0 0.0
        %6052 = vmatmul.mubr.f32.gmra.mrb[0].mxu0 %v5722
        %v6053 = vpop.f32.mrb[0].mxu0
        %v6054 = vadd.f32 0.0, %v6053
        %v6055 = vpop.f32.mrb[0].mxu0
        %v6056 = vadd.f32 0.0, %v6055
        %6057 = vmatprep.mubr.f32.mxu0 0.0
        %6058 = vmatmul.mubr.f32.gmra.mrb[0].mxu0 %v5725
        %v6059 = vpop.f32.mrb[0].mxu0
        %v6060 = vadd.f32 0.0, %v6059
        %v6061 = vpop.f32.mrb[0].mxu0
        %v6062 = vadd.f32 0.0, %v6061
        %6063 = vmatprep.mubr.f32.mxu0 0.0
        %6064 = vmatmul.mubr.f32.gmra.mrb[0].mxu0 %v5728
        %v6065 = vpop.f32.mrb[0].mxu0
        %v6066 = vadd.f32 0.0, %v6065
        %v6067 = vpop.f32.mrb[0].mxu0
        %v6068 = vadd.f32 0.0, %v6067
        %6069 = vmatprep.mubr.f32.mxu0 0.0
        %6070 = vmatmul.mubr.f32.gmra.mrb[0].mxu0 %v5731
        %v6071 = vpop.f32.mrb[0].mxu0
        %v6072 = vadd.f32 0.0, %v6071
        %v6073 = vpop.f32.mrb[0].mxu0
        %v6074 = vadd.f32 0.0, %v6073
        %6075 = vmatprep.mubr.f32.mxu0 0.0
        %6076 = vmatmul.mubr.f32.gmra.mrb[0].mxu0 %v5734
        %v6077 = vpop.f32.mrb[0].mxu0
        %v6078 = vadd.f32 0.0, %v6077
        %v6079 = vpop.f32.mrb[0].mxu0
        %v6080 = vadd.f32 0.0, %v6079
        %6081 = vmatprep.mubr.f32.mxu0 0.0
        %6082 = vmatmul.mubr.f32.gmra.mrb[0].mxu0 %v5737
        %v6083 = vpop.f32.mrb[0].mxu0
        %v6084 = vadd.f32 0.0, %v6083
        %v6085 = vpop.f32.mrb[0].mxu0
        %v6086 = vadd.f32 0.0, %v6085
        %6087 = vmatprep.mubr.f32.mxu0 0.0
        %6088 = vmatmul.mubr.f32.gmra.mrb[0].mxu0 %v5740
        %v6089 = vpop.f32.mrb[0].mxu0
        %v6090 = vadd.f32 0.0, %v6089
        %v6091 = vpop.f32.mrb[0].mxu0
        %v6092 = vadd.f32 0.0, %v6091
        %6093 = vmatprep.mubr.f32.mxu0 0.0
        %6094 = vmatmul.mubr.f32.gmra.mrb[0].mxu0 %v5743
        %v6095 = vpop.f32.mrb[0].mxu0
        %v6096 = vadd.f32 0.0, %v6095
        %v6097 = vpop.f32.mrb[0].mxu0
        %v6098 = vadd.f32 0.0, %v6097
        %6099 = vdwg.mxu0
        %v6100 = vmax.f32 %v5812, %v6054
        %v6101 = vmax.f32 %v5814, %v6056
        %v6102 = vmax.f32 %v5818, %v6060
        %v6103 = vmax.f32 %v5820, %v6062
        %v6104 = vmax.f32 %v5824, %v6066
        %v6105 = vmax.f32 %v5826, %v6068
        %v6106 = vmax.f32 %v5830, %v6072
        %v6107 = vmax.f32 %v5832, %v6074
        %v6108 = vmax.f32 %v5836, %v6078
        %v6109 = vmax.f32 %v5838, %v6080
        %v6110 = vmax.f32 %v5842, %v6084
        %v6111 = vmax.f32 %v5844, %v6086
        %v6112 = vmax.f32 %v5848, %v6090
        %v6113 = vmax.f32 %v5850, %v6092
        %v6114 = vmax.f32 %v5854, %v6096
        %v6115 = vmax.f32 %v5856, %v6098
        %6116 = vmatprep.subr.mxu0 %v3943
        %6117 = vmatpush1.msra.mxu0 %v3942
        %6118 = vmatprep.subr.mxu0 %v3945
        %6119 = vmatpush1.msra.mxu0 %v3944
        %6120 = vmatprep.subr.mxu0 %v3947
        %6121 = vmatpush1.msra.mxu0 %v3946
        %6122 = vmatprep.subr.mxu0 %v3949
        %6123 = vmatpush1.msra.mxu0 %v3948
        %6124 = vmatprep.subr.mxu0 %v3951
        %6125 = vmatpush1.msra.mxu0 %v3950
        %6126 = vmatprep.subr.mxu0 %v3953
        %6127 = vmatpush1.msra.mxu0 %v3952
        %6128 = vmatprep.subr.mxu0 %v3955
        %6129 = vmatpush1.msra.mxu0 %v3954
        %6130 = vmatprep.subr.mxu0 %v3957
        %6131 = vmatpush1.msra.mxu0 %v3956
        %6132 = vmatprep.subr.mxu0 %v3959
        %6133 = vmatpush1.msra.mxu0 %v3958
        %6134 = vmatprep.subr.mxu0 %v3961
        %6135 = vmatpush1.msra.mxu0 %v3960
        %6136 = vmatprep.subr.mxu0 %v3963
        %6137 = vmatpush1.msra.mxu0 %v3962
        %6138 = vmatprep.subr.mxu0 %v3965
        %6139 = vmatpush1.msra.mxu0 %v3964
        %6140 = vmatprep.subr.mxu0 %v3967
        %6141 = vmatpush1.msra.mxu0 %v3966
        %6142 = vmatprep.subr.mxu0 %v3969
        %6143 = vmatpush1.msra.mxu0 %v3968
        %6144 = vmatprep.subr.mxu0 %v3971
        %6145 = vmatpush1.msra.mxu0 %v3970
        %6146 = vmatprep.subr.mxu0 %v3973
        %6147 = vmatpush1.msra.mxu0 %v3972
        %6148 = vmatprep.subr.mxu0 0.0
        %6149 = vmatpush1.msra.mxu0 0.0
        %6150 = vmatprep.subr.mxu0 0.0
        %6151 = vmatpush1.msra.mxu0 0.0
        %6152 = vmatprep.subr.mxu0 0.0
        %6153 = vmatpush1.msra.mxu0 0.0
        %6154 = vmatprep.subr.mxu0 0.0
        %6155 = vmatpush1.msra.mxu0 0.0
        %6156 = vmatprep.subr.mxu0 0.0
        %6157 = vmatpush1.msra.mxu0 0.0
        %6158 = vmatprep.subr.mxu0 0.0
        %6159 = vmatpush1.msra.mxu0 0.0
        %6160 = vmatprep.subr.mxu0 0.0
        %6161 = vmatpush1.msra.mxu0 0.0
        %6162 = vmatprep.subr.mxu0 0.0
        %6163 = vmatpush1.msra.mxu0 0.0
        %6164 = vmatprep.subr.mxu0 0.0
        %6165 = vmatpush1.msra.mxu0 0.0
        %6166 = vmatprep.subr.mxu0 0.0
        %6167 = vmatpush1.msra.mxu0 0.0
        %6168 = vmatprep.subr.mxu0 0.0
        %6169 = vmatpush1.msra.mxu0 0.0
        %6170 = vmatprep.subr.mxu0 0.0
        %6171 = vmatpush1.msra.mxu0 0.0
        %6172 = vmatprep.subr.mxu0 0.0
        %6173 = vmatpush1.msra.mxu0 0.0
        %6174 = vmatprep.subr.mxu0 0.0
        %6175 = vmatpush1.msra.mxu0 0.0
        %6176 = vmatprep.subr.mxu0 0.0
        %6177 = vmatpush1.msra.mxu0 0.0
        %6178 = vmatprep.subr.mxu0 0.0
        %6179 = vmatpush1.msra.mxu0 0.0
        %6180 = vmatprep.mubr.f32.mxu0 0.0
        %6181 = vmatmul.mubr.f32.gmra.mrb[0].mxu0 %v5514
        %v6182 = vpop.f32.mrb[0].mxu0
        %v6183 = vadd.f32 %v5555, %v6182
        %v6184 = vpop.f32.mrb[0].mxu0
        %v6185 = vadd.f32 %v5555, %v6184
        %6186 = vmatprep.mubr.f32.mxu0 0.0
        %6187 = vmatmul.mubr.f32.gmra.mrb[0].mxu0 %v5519
        %v6188 = vpop.f32.mrb[0].mxu0
        %v6189 = vadd.f32 %v5560, %v6188
        %v6190 = vpop.f32.mrb[0].mxu0
        %v6191 = vadd.f32 %v5560, %v6190
        %6192 = vmatprep.mubr.f32.mxu0 0.0
        %6193 = vmatmul.mubr.f32.gmra.mrb[0].mxu0 %v5524
        %v6194 = vpop.f32.mrb[0].mxu0
        %v6195 = vadd.f32 %v5565, %v6194
        %v6196 = vpop.f32.mrb[0].mxu0
        %v6197 = vadd.f32 %v5565, %v6196
        %6198 = vmatprep.mubr.f32.mxu0 0.0
        %6199 = vmatmul.mubr.f32.gmra.mrb[0].mxu0 %v5529
        %v6200 = vpop.f32.mrb[0].mxu0
        %v6201 = vadd.f32 %v5570, %v6200
        %v6202 = vpop.f32.mrb[0].mxu0
        %v6203 = vadd.f32 %v5570, %v6202
        %6204 = vmatprep.mubr.f32.mxu0 0.0
        %6205 = vmatmul.mubr.f32.gmra.mrb[0].mxu0 %v5534
        %v6206 = vpop.f32.mrb[0].mxu0
        %v6207 = vadd.f32 %v5575, %v6206
        %v6208 = vpop.f32.mrb[0].mxu0
        %v6209 = vadd.f32 %v5575, %v6208
        %6210 = vmatprep.mubr.f32.mxu0 0.0
        %6211 = vmatmul.mubr.f32.gmra.mrb[0].mxu0 %v5539
        %v6212 = vpop.f32.mrb[0].mxu0
        %v6213 = vadd.f32 %v5580, %v6212
        %v6214 = vpop.f32.mrb[0].mxu0
        %v6215 = vadd.f32 %v5580, %v6214
        %6216 = vmatprep.mubr.f32.mxu0 0.0
        %6217 = vmatmul.mubr.f32.gmra.mrb[0].mxu0 %v5544
        %v6218 = vpop.f32.mrb[0].mxu0
        %v6219 = vadd.f32 %v5585, %v6218
        %v6220 = vpop.f32.mrb[0].mxu0
        %v6221 = vadd.f32 %v5585, %v6220
        %6222 = vmatprep.mubr.f32.mxu0 0.0
        %6223 = vmatmul.mubr.f32.gmra.mrb[0].mxu0 %v5549
        %v6224 = vpop.f32.mrb[0].mxu0
        %v6225 = vadd.f32 %v5590, %v6224
        %v6226 = vpop.f32.mrb[0].mxu0
        %v6227 = vadd.f32 %v5590, %v6226
        %6228 = vdwg.mxu0
        %v6229 = vmax.f32 %v6183, 0.0
        %v6230 = vmax.f32 %v6185, 0.0
        %v6231 = vmax.f32 %v6189, 0.0
        %v6232 = vmax.f32 %v6191, 0.0
        %v6233 = vmax.f32 %v6195, 0.0
        %v6234 = vmax.f32 %v6197, 0.0
        %v6235 = vmax.f32 %v6201, 0.0
        %v6236 = vmax.f32 %v6203, 0.0
        %v6237 = vmax.f32 %v6207, 0.0
        %v6238 = vmax.f32 %v6209, 0.0
        %v6239 = vmax.f32 %v6213, 0.0
        %v6240 = vmax.f32 %v6215, 0.0
        %v6241 = vmax.f32 %v6219, 0.0
        %v6242 = vmax.f32 %v6221, 0.0
        %v6243 = vmax.f32 %v6225, 0.0
        %v6244 = vmax.f32 %v6227, 0.0
        %6245 = vmatprep.subr.mxu0 %v6230
        %6246 = vmatpush1.msra.mxu0 %v6229
        %6247 = vmatprep.subr.mxu0 %v6232
        %6248 = vmatpush1.msra.mxu0 %v6231
        %6249 = vmatprep.subr.mxu0 %v6234
        %6250 = vmatpush1.msra.mxu0 %v6233
        %6251 = vmatprep.subr.mxu0 %v6236
        %6252 = vmatpush1.msra.mxu0 %v6235
        %6253 = vmatprep.subr.mxu0 %v6238
        %6254 = vmatpush1.msra.mxu0 %v6237
        %6255 = vmatprep.subr.mxu0 %v6240
        %6256 = vmatpush1.msra.mxu0 %v6239
        %6257 = vmatprep.subr.mxu0 %v6242
        %6258 = vmatpush1.msra.mxu0 %v6241
        %6259 = vmatprep.subr.mxu0 %v6244
        %6260 = vmatpush1.msra.mxu0 %v6243
        %6261 = vmatprep.subr.mxu0 0.0
        %6262 = vmatpush1.msra.mxu0 0.0
        %6263 = vmatprep.subr.mxu0 0.0
        %6264 = vmatpush1.msra.mxu0 0.0
        %6265 = vmatprep.subr.mxu0 0.0
        %6266 = vmatpush1.msra.mxu0 0.0
        %6267 = vmatprep.subr.mxu0 0.0
        %6268 = vmatpush1.msra.mxu0 0.0
        %6269 = vmatprep.subr.mxu0 0.0
        %6270 = vmatpush1.msra.mxu0 0.0
        %6271 = vmatprep.subr.mxu0 0.0
        %6272 = vmatpush1.msra.mxu0 0.0
        %6273 = vmatprep.subr.mxu0 0.0
        %6274 = vmatpush1.msra.mxu0 0.0
        %6275 = vmatprep.subr.mxu0 0.0
        %6276 = vmatpush1.msra.mxu0 0.0
        %6277 = vmatprep.subr.mxu0 0.0
        %6278 = vmatpush1.msra.mxu0 0.0
        %6279 = vmatprep.subr.mxu0 0.0
        %6280 = vmatpush1.msra.mxu0 0.0
        %6281 = vmatprep.subr.mxu0 0.0
        %6282 = vmatpush1.msra.mxu0 0.0
        %6283 = vmatprep.subr.mxu0 0.0
        %6284 = vmatpush1.msra.mxu0 0.0
        %6285 = vmatprep.subr.mxu0 0.0
        %6286 = vmatpush1.msra.mxu0 0.0
        %6287 = vmatprep.subr.mxu0 0.0
        %6288 = vmatpush1.msra.mxu0 0.0
        %6289 = vmatprep.subr.mxu0 0.0
        %6290 = vmatpush1.msra.mxu0 0.0
        %6291 = vmatprep.subr.mxu0 0.0
        %6292 = vmatpush1.msra.mxu0 0.0
        %6293 = vmatprep.subr.mxu0 0.0
        %6294 = vmatpush1.msra.mxu0 0.0
        %6295 = vmatprep.subr.mxu0 0.0
        %6296 = vmatpush1.msra.mxu0 0.0
        %6297 = vmatprep.subr.mxu0 0.0
        %6298 = vmatpush1.msra.mxu0 0.0
        %6299 = vmatprep.subr.mxu0 0.0
        %6300 = vmatpush1.msra.mxu0 0.0
        %6301 = vmatprep.subr.mxu0 0.0
        %6302 = vmatpush1.msra.mxu0 0.0
        %6303 = vmatprep.subr.mxu0 0.0
        %6304 = vmatpush1.msra.mxu0 0.0
        %6305 = vmatprep.subr.mxu0 0.0
        %6306 = vmatpush1.msra.mxu0 0.0
        %6307 = vmatprep.subr.mxu0 0.0
        %6308 = vmatpush1.msra.mxu0 0.0
        %6309 = vmatprep.mubr.f32.mxu0 0.0
        %6310 = vmatmul.mubr.f32.gmra.mrb[0].mxu0 %v5722
        %v6311 = vpop.f32.mrb[0].mxu0
        %v6312 = vadd.f32 0.0, %v6311
        %v6313 = vpop.f32.mrb[0].mxu0
        %v6314 = vadd.f32 0.0, %v6313
        %6315 = vmatprep.mubr.f32.mxu0 0.0
        %6316 = vmatmul.mubr.f32.gmra.mrb[0].mxu0 %v5725
        %v6317 = vpop.f32.mrb[0].mxu0
        %v6318 = vadd.f32 0.0, %v6317
        %v6319 = vpop.f32.mrb[0].mxu0
        %v6320 = vadd.f32 0.0, %v6319
        %6321 = vmatprep.mubr.f32.mxu0 0.0
        %6322 = vmatmul.mubr.f32.gmra.mrb[0].mxu0 %v5728
        %v6323 = vpop.f32.mrb[0].mxu0
        %v6324 = vadd.f32 0.0, %v6323
        %v6325 = vpop.f32.mrb[0].mxu0
        %v6326 = vadd.f32 0.0, %v6325
        %6327 = vmatprep.mubr.f32.mxu0 0.0
        %6328 = vmatmul.mubr.f32.gmra.mrb[0].mxu0 %v5731
        %v6329 = vpop.f32.mrb[0].mxu0
        %v6330 = vadd.f32 0.0, %v6329
        %v6331 = vpop.f32.mrb[0].mxu0
        %v6332 = vadd.f32 0.0, %v6331
        %6333 = vmatprep.mubr.f32.mxu0 0.0
        %6334 = vmatmul.mubr.f32.gmra.mrb[0].mxu0 %v5734
        %v6335 = vpop.f32.mrb[0].mxu0
        %v6336 = vadd.f32 0.0, %v6335
        %v6337 = vpop.f32.mrb[0].mxu0
        %v6338 = vadd.f32 0.0, %v6337
        %6339 = vmatprep.mubr.f32.mxu0 0.0
        %6340 = vmatmul.mubr.f32.gmra.mrb[0].mxu0 %v5737
        %v6341 = vpop.f32.mrb[0].mxu0
        %v6342 = vadd.f32 0.0, %v6341
        %v6343 = vpop.f32.mrb[0].mxu0
        %v6344 = vadd.f32 0.0, %v6343
        %6345 = vmatprep.mubr.f32.mxu0 0.0
        %6346 = vmatmul.mubr.f32.gmra.mrb[0].mxu0 %v5740
        %v6347 = vpop.f32.mrb[0].mxu0
        %v6348 = vadd.f32 0.0, %v6347
        %v6349 = vpop.f32.mrb[0].mxu0
        %v6350 = vadd.f32 0.0, %v6349
        %6351 = vmatprep.mubr.f32.mxu0 0.0
        %6352 = vmatmul.mubr.f32.gmra.mrb[0].mxu0 %v5743
        %v6353 = vpop.f32.mrb[0].mxu0
        %v6354 = vadd.f32 0.0, %v6353
        %v6355 = vpop.f32.mrb[0].mxu0
        %v6356 = vadd.f32 0.0, %v6355
        %6357 = vdwg.mxu0
        %v6358 = vmax.f32 %v6100, %v6312
        %v6359 = vmax.f32 %v6101, %v6314
        %v6360 = vmax.f32 %v6102, %v6318
        %v6361 = vmax.f32 %v6103, %v6320
        %v6362 = vmax.f32 %v6104, %v6324
        %v6363 = vmax.f32 %v6105, %v6326
        %v6364 = vmax.f32 %v6106, %v6330
        %v6365 = vmax.f32 %v6107, %v6332
        %v6366 = vmax.f32 %v6108, %v6336
        %v6367 = vmax.f32 %v6109, %v6338
        %v6368 = vmax.f32 %v6110, %v6342
        %v6369 = vmax.f32 %v6111, %v6344
        %v6370 = vmax.f32 %v6112, %v6348
        %v6371 = vmax.f32 %v6113, %v6350
        %v6372 = vmax.f32 %v6114, %v6354
        %v6373 = vmax.f32 %v6115, %v6356
        %6374 = vmatprep.subr.mxu0 %v4249
        %6375 = vmatpush1.msra.mxu0 %v4248
        %6376 = vmatprep.subr.mxu0 %v4251
        %6377 = vmatpush1.msra.mxu0 %v4250
        %6378 = vmatprep.subr.mxu0 %v4253
        %6379 = vmatpush1.msra.mxu0 %v4252
        %6380 = vmatprep.subr.mxu0 %v4255
        %6381 = vmatpush1.msra.mxu0 %v4254
        %6382 = vmatprep.subr.mxu0 %v4257
        %6383 = vmatpush1.msra.mxu0 %v4256
        %6384 = vmatprep.subr.mxu0 %v4259
        %6385 = vmatpush1.msra.mxu0 %v4258
        %6386 = vmatprep.subr.mxu0 %v4261
        %6387 = vmatpush1.msra.mxu0 %v4260
        %6388 = vmatprep.subr.mxu0 %v4263
        %6389 = vmatpush1.msra.mxu0 %v4262
        %6390 = vmatprep.subr.mxu0 %v4265
        %6391 = vmatpush1.msra.mxu0 %v4264
        %6392 = vmatprep.subr.mxu0 %v4267
        %6393 = vmatpush1.msra.mxu0 %v4266
        %6394 = vmatprep.subr.mxu0 %v4269
        %6395 = vmatpush1.msra.mxu0 %v4268
        %6396 = vmatprep.subr.mxu0 %v4271
        %6397 = vmatpush1.msra.mxu0 %v4270
        %6398 = vmatprep.subr.mxu0 %v4273
        %6399 = vmatpush1.msra.mxu0 %v4272
        %6400 = vmatprep.subr.mxu0 %v4275
        %6401 = vmatpush1.msra.mxu0 %v4274
        %6402 = vmatprep.subr.mxu0 %v4277
        %6403 = vmatpush1.msra.mxu0 %v4276
        %6404 = vmatprep.subr.mxu0 %v4279
        %6405 = vmatpush1.msra.mxu0 %v4278
        %6406 = vmatprep.subr.mxu0 0.0
        %6407 = vmatpush1.msra.mxu0 0.0
        %6408 = vmatprep.subr.mxu0 0.0
        %6409 = vmatpush1.msra.mxu0 0.0
        %6410 = vmatprep.subr.mxu0 0.0
        %6411 = vmatpush1.msra.mxu0 0.0
        %6412 = vmatprep.subr.mxu0 0.0
        %6413 = vmatpush1.msra.mxu0 0.0
        %6414 = vmatprep.subr.mxu0 0.0
        %6415 = vmatpush1.msra.mxu0 0.0
        %6416 = vmatprep.subr.mxu0 0.0
        %6417 = vmatpush1.msra.mxu0 0.0
        %6418 = vmatprep.subr.mxu0 0.0
        %6419 = vmatpush1.msra.mxu0 0.0
        %6420 = vmatprep.subr.mxu0 0.0
        %6421 = vmatpush1.msra.mxu0 0.0
        %6422 = vmatprep.subr.mxu0 0.0
        %6423 = vmatpush1.msra.mxu0 0.0
        %6424 = vmatprep.subr.mxu0 0.0
        %6425 = vmatpush1.msra.mxu0 0.0
        %6426 = vmatprep.subr.mxu0 0.0
        %6427 = vmatpush1.msra.mxu0 0.0
        %6428 = vmatprep.subr.mxu0 0.0
        %6429 = vmatpush1.msra.mxu0 0.0
        %6430 = vmatprep.subr.mxu0 0.0
        %6431 = vmatpush1.msra.mxu0 0.0
        %6432 = vmatprep.subr.mxu0 0.0
        %6433 = vmatpush1.msra.mxu0 0.0
        %6434 = vmatprep.subr.mxu0 0.0
        %6435 = vmatpush1.msra.mxu0 0.0
        %6436 = vmatprep.subr.mxu0 0.0
        %6437 = vmatpush1.msra.mxu0 0.0
        %6438 = vmatprep.mubr.f32.mxu0 0.0
        %6439 = vmatmul.mubr.f32.gmra.mrb[0].mxu0 %v5514
        %v6440 = vpop.f32.mrb[0].mxu0
        %v6441 = vadd.f32 %v5555, %v6440
        %v6442 = vpop.f32.mrb[0].mxu0
        %v6443 = vadd.f32 %v5555, %v6442
        %6444 = vmatprep.mubr.f32.mxu0 0.0
        %6445 = vmatmul.mubr.f32.gmra.mrb[0].mxu0 %v5519
        %v6446 = vpop.f32.mrb[0].mxu0
        %v6447 = vadd.f32 %v5560, %v6446
        %v6448 = vpop.f32.mrb[0].mxu0
        %v6449 = vadd.f32 %v5560, %v6448
        %6450 = vmatprep.mubr.f32.mxu0 0.0
        %6451 = vmatmul.mubr.f32.gmra.mrb[0].mxu0 %v5524
        %v6452 = vpop.f32.mrb[0].mxu0
        %v6453 = vadd.f32 %v5565, %v6452
        %v6454 = vpop.f32.mrb[0].mxu0
        %v6455 = vadd.f32 %v5565, %v6454
        %6456 = vmatprep.mubr.f32.mxu0 0.0
        %6457 = vmatmul.mubr.f32.gmra.mrb[0].mxu0 %v5529
        %v6458 = vpop.f32.mrb[0].mxu0
        %v6459 = vadd.f32 %v5570, %v6458
        %v6460 = vpop.f32.mrb[0].mxu0
        %v6461 = vadd.f32 %v5570, %v6460
        %6462 = vmatprep.mubr.f32.mxu0 0.0
        %6463 = vmatmul.mubr.f32.gmra.mrb[0].mxu0 %v5534
        %v6464 = vpop.f32.mrb[0].mxu0
        %v6465 = vadd.f32 %v5575, %v6464
        %v6466 = vpop.f32.mrb[0].mxu0
        %v6467 = vadd.f32 %v5575, %v6466
        %6468 = vmatprep.mubr.f32.mxu0 0.0
        %6469 = vmatmul.mubr.f32.gmra.mrb[0].mxu0 %v5539
        %v6470 = vpop.f32.mrb[0].mxu0
        %v6471 = vadd.f32 %v5580, %v6470
        %v6472 = vpop.f32.mrb[0].mxu0
        %v6473 = vadd.f32 %v5580, %v6472
        %6474 = vmatprep.mubr.f32.mxu0 0.0
        %6475 = vmatmul.mubr.f32.gmra.mrb[0].mxu0 %v5544
        %v6476 = vpop.f32.mrb[0].mxu0
        %v6477 = vadd.f32 %v5585, %v6476
        %v6478 = vpop.f32.mrb[0].mxu0
        %v6479 = vadd.f32 %v5585, %v6478
        %6480 = vmatprep.mubr.f32.mxu0 0.0
        %6481 = vmatmul.mubr.f32.gmra.mrb[0].mxu0 %v5549
        %v6482 = vpop.f32.mrb[0].mxu0
        %v6483 = vadd.f32 %v5590, %v6482
        %v6484 = vpop.f32.mrb[0].mxu0
        %v6485 = vadd.f32 %v5590, %v6484
        %6486 = vdwg.mxu0
        %v6487 = vmax.f32 %v6441, 0.0
        %v6488 = vmax.f32 %v6443, 0.0
        %v6489 = vmax.f32 %v6447, 0.0
        %v6490 = vmax.f32 %v6449, 0.0
        %v6491 = vmax.f32 %v6453, 0.0
        %v6492 = vmax.f32 %v6455, 0.0
        %v6493 = vmax.f32 %v6459, 0.0
        %v6494 = vmax.f32 %v6461, 0.0
        %v6495 = vmax.f32 %v6465, 0.0
        %v6496 = vmax.f32 %v6467, 0.0
        %v6497 = vmax.f32 %v6471, 0.0
        %v6498 = vmax.f32 %v6473, 0.0
        %v6499 = vmax.f32 %v6477, 0.0
        %v6500 = vmax.f32 %v6479, 0.0
        %v6501 = vmax.f32 %v6483, 0.0
        %v6502 = vmax.f32 %v6485, 0.0
        %6503 = vmatprep.subr.mxu0 %v6488
        %6504 = vmatpush1.msra.mxu0 %v6487
        %6505 = vmatprep.subr.mxu0 %v6490
        %6506 = vmatpush1.msra.mxu0 %v6489
        %6507 = vmatprep.subr.mxu0 %v6492
        %6508 = vmatpush1.msra.mxu0 %v6491
        %6509 = vmatprep.subr.mxu0 %v6494
        %6510 = vmatpush1.msra.mxu0 %v6493
        %6511 = vmatprep.subr.mxu0 %v6496
        %6512 = vmatpush1.msra.mxu0 %v6495
        %6513 = vmatprep.subr.mxu0 %v6498
        %6514 = vmatpush1.msra.mxu0 %v6497
        %6515 = vmatprep.subr.mxu0 %v6500
        %6516 = vmatpush1.msra.mxu0 %v6499
        %6517 = vmatprep.subr.mxu0 %v6502
        %6518 = vmatpush1.msra.mxu0 %v6501
        %6519 = vmatprep.subr.mxu0 0.0
        %6520 = vmatpush1.msra.mxu0 0.0
        %6521 = vmatprep.subr.mxu0 0.0
        %6522 = vmatpush1.msra.mxu0 0.0
        %6523 = vmatprep.subr.mxu0 0.0
        %6524 = vmatpush1.msra.mxu0 0.0
        %6525 = vmatprep.subr.mxu0 0.0
        %6526 = vmatpush1.msra.mxu0 0.0
        %6527 = vmatprep.subr.mxu0 0.0
        %6528 = vmatpush1.msra.mxu0 0.0
        %6529 = vmatprep.subr.mxu0 0.0
        %6530 = vmatpush1.msra.mxu0 0.0
        %6531 = vmatprep.subr.mxu0 0.0
        %6532 = vmatpush1.msra.mxu0 0.0
        %6533 = vmatprep.subr.mxu0 0.0
        %6534 = vmatpush1.msra.mxu0 0.0
        %6535 = vmatprep.subr.mxu0 0.0
        %6536 = vmatpush1.msra.mxu0 0.0
        %6537 = vmatprep.subr.mxu0 0.0
        %6538 = vmatpush1.msra.mxu0 0.0
        %6539 = vmatprep.subr.mxu0 0.0
        %6540 = vmatpush1.msra.mxu0 0.0
        %6541 = vmatprep.subr.mxu0 0.0
        %6542 = vmatpush1.msra.mxu0 0.0
        %6543 = vmatprep.subr.mxu0 0.0
        %6544 = vmatpush1.msra.mxu0 0.0
        %6545 = vmatprep.subr.mxu0 0.0
        %6546 = vmatpush1.msra.mxu0 0.0
        %6547 = vmatprep.subr.mxu0 0.0
        %6548 = vmatpush1.msra.mxu0 0.0
        %6549 = vmatprep.subr.mxu0 0.0
        %6550 = vmatpush1.msra.mxu0 0.0
        %6551 = vmatprep.subr.mxu0 0.0
        %6552 = vmatpush1.msra.mxu0 0.0
        %6553 = vmatprep.subr.mxu0 0.0
        %6554 = vmatpush1.msra.mxu0 0.0
        %6555 = vmatprep.subr.mxu0 0.0
        %6556 = vmatpush1.msra.mxu0 0.0
        %6557 = vmatprep.subr.mxu0 0.0
        %6558 = vmatpush1.msra.mxu0 0.0
        %6559 = vmatprep.subr.mxu0 0.0
        %6560 = vmatpush1.msra.mxu0 0.0
        %6561 = vmatprep.subr.mxu0 0.0
        %6562 = vmatpush1.msra.mxu0 0.0
        %6563 = vmatprep.subr.mxu0 0.0
        %6564 = vmatpush1.msra.mxu0 0.0
        %6565 = vmatprep.subr.mxu0 0.0
        %6566 = vmatpush1.msra.mxu0 0.0
        %6567 = vmatprep.mubr.f32.mxu0 0.0
        %6568 = vmatmul.mubr.f32.gmra.mrb[0].mxu0 %v5722
        %v6569 = vpop.f32.mrb[0].mxu0
        %v6570 = vadd.f32 0.0, %v6569
        %v6571 = vpop.f32.mrb[0].mxu0
        %v6572 = vadd.f32 0.0, %v6571
        %6573 = vmatprep.mubr.f32.mxu0 0.0
        %6574 = vmatmul.mubr.f32.gmra.mrb[0].mxu0 %v5725
        %v6575 = vpop.f32.mrb[0].mxu0
        %v6576 = vadd.f32 0.0, %v6575
        %v6577 = vpop.f32.mrb[0].mxu0
        %v6578 = vadd.f32 0.0, %v6577
        %6579 = vmatprep.mubr.f32.mxu0 0.0
        %6580 = vmatmul.mubr.f32.gmra.mrb[0].mxu0 %v5728
        %v6581 = vpop.f32.mrb[0].mxu0
        %v6582 = vadd.f32 0.0, %v6581
        %v6583 = vpop.f32.mrb[0].mxu0
        %v6584 = vadd.f32 0.0, %v6583
        %6585 = vmatprep.mubr.f32.mxu0 0.0
        %6586 = vmatmul.mubr.f32.gmra.mrb[0].mxu0 %v5731
        %v6587 = vpop.f32.mrb[0].mxu0
        %v6588 = vadd.f32 0.0, %v6587
        %v6589 = vpop.f32.mrb[0].mxu0
        %v6590 = vadd.f32 0.0, %v6589
        %6591 = vmatprep.mubr.f32.mxu0 0.0
        %6592 = vmatmul.mubr.f32.gmra.mrb[0].mxu0 %v5734
        %v6593 = vpop.f32.mrb[0].mxu0
        %v6594 = vadd.f32 0.0, %v6593
        %v6595 = vpop.f32.mrb[0].mxu0
        %v6596 = vadd.f32 0.0, %v6595
        %6597 = vmatprep.mubr.f32.mxu0 0.0
        %6598 = vmatmul.mubr.f32.gmra.mrb[0].mxu0 %v5737
        %v6599 = vpop.f32.mrb[0].mxu0
        %v6600 = vadd.f32 0.0, %v6599
        %v6601 = vpop.f32.mrb[0].mxu0
        %v6602 = vadd.f32 0.0, %v6601
        %6603 = vmatprep.mubr.f32.mxu0 0.0
        %6604 = vmatmul.mubr.f32.gmra.mrb[0].mxu0 %v5740
        %v6605 = vpop.f32.mrb[0].mxu0
        %v6606 = vadd.f32 0.0, %v6605
        %v6607 = vpop.f32.mrb[0].mxu0
        %v6608 = vadd.f32 0.0, %v6607
        %6609 = vmatprep.mubr.f32.mxu0 0.0
        %6610 = vmatmul.mubr.f32.gmra.mrb[0].mxu0 %v5743
        %v6611 = vpop.f32.mrb[0].mxu0
        %v6612 = vadd.f32 0.0, %v6611
        %v6613 = vpop.f32.mrb[0].mxu0
        %v6614 = vadd.f32 0.0, %v6613
        %6615 = vdwg.mxu0
        %v6616 = vmax.f32 %v6358, %v6570
        %v6617 = vmax.f32 %v6359, %v6572
        %v6618 = vmax.f32 %v6360, %v6576
        %v6619 = vmax.f32 %v6361, %v6578
        %v6620 = vmax.f32 %v6362, %v6582
        %v6621 = vmax.f32 %v6363, %v6584
        %v6622 = vmax.f32 %v6364, %v6588
        %v6623 = vmax.f32 %v6365, %v6590
        %v6624 = vmax.f32 %v6366, %v6594
        %v6625 = vmax.f32 %v6367, %v6596
        %v6626 = vmax.f32 %v6368, %v6600
        %v6627 = vmax.f32 %v6369, %v6602
        %v6628 = vmax.f32 %v6370, %v6606
        %v6629 = vmax.f32 %v6371, %v6608
        %v6630 = vmax.f32 %v6372, %v6612
        %v6631 = vmax.f32 %v6373, %v6614
        %6632 = vmatprep.subr.mxu0 %v4555
        %6633 = vmatpush1.msra.mxu0 %v4554
        %6634 = vmatprep.subr.mxu0 %v4557
        %6635 = vmatpush1.msra.mxu0 %v4556
        %6636 = vmatprep.subr.mxu0 %v4559
        %6637 = vmatpush1.msra.mxu0 %v4558
        %6638 = vmatprep.subr.mxu0 %v4561
        %6639 = vmatpush1.msra.mxu0 %v4560
        %6640 = vmatprep.subr.mxu0 %v4563
        %6641 = vmatpush1.msra.mxu0 %v4562
        %6642 = vmatprep.subr.mxu0 %v4565
        %6643 = vmatpush1.msra.mxu0 %v4564
        %6644 = vmatprep.subr.mxu0 %v4567
        %6645 = vmatpush1.msra.mxu0 %v4566
        %6646 = vmatprep.subr.mxu0 %v4569
        %6647 = vmatpush1.msra.mxu0 %v4568
        %6648 = vmatprep.subr.mxu0 %v4571
        %6649 = vmatpush1.msra.mxu0 %v4570
        %6650 = vmatprep.subr.mxu0 %v4573
        %6651 = vmatpush1.msra.mxu0 %v4572
        %6652 = vmatprep.subr.mxu0 %v4575
        %6653 = vmatpush1.msra.mxu0 %v4574
        %6654 = vmatprep.subr.mxu0 %v4577
        %6655 = vmatpush1.msra.mxu0 %v4576
        %6656 = vmatprep.subr.mxu0 %v4579
        %6657 = vmatpush1.msra.mxu0 %v4578
        %6658 = vmatprep.subr.mxu0 %v4581
        %6659 = vmatpush1.msra.mxu0 %v4580
        %6660 = vmatprep.subr.mxu0 %v4583
        %6661 = vmatpush1.msra.mxu0 %v4582
        %6662 = vmatprep.subr.mxu0 %v4585
        %6663 = vmatpush1.msra.mxu0 %v4584
        %6664 = vmatprep.subr.mxu0 0.0
        %6665 = vmatpush1.msra.mxu0 0.0
        %6666 = vmatprep.subr.mxu0 0.0
        %6667 = vmatpush1.msra.mxu0 0.0
        %6668 = vmatprep.subr.mxu0 0.0
        %6669 = vmatpush1.msra.mxu0 0.0
        %6670 = vmatprep.subr.mxu0 0.0
        %6671 = vmatpush1.msra.mxu0 0.0
        %6672 = vmatprep.subr.mxu0 0.0
        %6673 = vmatpush1.msra.mxu0 0.0
        %6674 = vmatprep.subr.mxu0 0.0
        %6675 = vmatpush1.msra.mxu0 0.0
        %6676 = vmatprep.subr.mxu0 0.0
        %6677 = vmatpush1.msra.mxu0 0.0
        %6678 = vmatprep.subr.mxu0 0.0
        %6679 = vmatpush1.msra.mxu0 0.0
        %6680 = vmatprep.subr.mxu0 0.0
        %6681 = vmatpush1.msra.mxu0 0.0
        %6682 = vmatprep.subr.mxu0 0.0
        %6683 = vmatpush1.msra.mxu0 0.0
        %6684 = vmatprep.subr.mxu0 0.0
        %6685 = vmatpush1.msra.mxu0 0.0
        %6686 = vmatprep.subr.mxu0 0.0
        %6687 = vmatpush1.msra.mxu0 0.0
        %6688 = vmatprep.subr.mxu0 0.0
        %6689 = vmatpush1.msra.mxu0 0.0
        %6690 = vmatprep.subr.mxu0 0.0
        %6691 = vmatpush1.msra.mxu0 0.0
        %6692 = vmatprep.subr.mxu0 0.0
        %6693 = vmatpush1.msra.mxu0 0.0
        %6694 = vmatprep.subr.mxu0 0.0
        %6695 = vmatpush1.msra.mxu0 0.0
        %6696 = vmatprep.mubr.f32.mxu0 0.0
        %6697 = vmatmul.mubr.f32.gmra.mrb[0].mxu0 %v5514
        %v6698 = vpop.f32.mrb[0].mxu0
        %v6699 = vadd.f32 %v5555, %v6698
        %v6700 = vpop.f32.mrb[0].mxu0
        %v6701 = vadd.f32 %v5555, %v6700
        %6702 = vmatprep.mubr.f32.mxu0 0.0
        %6703 = vmatmul.mubr.f32.gmra.mrb[0].mxu0 %v5519
        %v6704 = vpop.f32.mrb[0].mxu0
        %v6705 = vadd.f32 %v5560, %v6704
        %v6706 = vpop.f32.mrb[0].mxu0
        %v6707 = vadd.f32 %v5560, %v6706
        %6708 = vmatprep.mubr.f32.mxu0 0.0
        %6709 = vmatmul.mubr.f32.gmra.mrb[0].mxu0 %v5524
        %v6710 = vpop.f32.mrb[0].mxu0
        %v6711 = vadd.f32 %v5565, %v6710
        %v6712 = vpop.f32.mrb[0].mxu0
        %v6713 = vadd.f32 %v5565, %v6712
        %6714 = vmatprep.mubr.f32.mxu0 0.0
        %6715 = vmatmul.mubr.f32.gmra.mrb[0].mxu0 %v5529
        %v6716 = vpop.f32.mrb[0].mxu0
        %v6717 = vadd.f32 %v5570, %v6716
        %v6718 = vpop.f32.mrb[0].mxu0
        %v6719 = vadd.f32 %v5570, %v6718
        %6720 = vmatprep.mubr.f32.mxu0 0.0
        %6721 = vmatmul.mubr.f32.gmra.mrb[0].mxu0 %v5534
        %v6722 = vpop.f32.mrb[0].mxu0
        %v6723 = vadd.f32 %v5575, %v6722
        %v6724 = vpop.f32.mrb[0].mxu0
        %v6725 = vadd.f32 %v5575, %v6724
        %6726 = vmatprep.mubr.f32.mxu0 0.0
        %6727 = vmatmul.mubr.f32.gmra.mrb[0].mxu0 %v5539
        %v6728 = vpop.f32.mrb[0].mxu0
        %v6729 = vadd.f32 %v5580, %v6728
        %v6730 = vpop.f32.mrb[0].mxu0
        %v6731 = vadd.f32 %v5580, %v6730
        %6732 = vmatprep.mubr.f32.mxu0 0.0
        %6733 = vmatmul.mubr.f32.gmra.mrb[0].mxu0 %v5544
        %v6734 = vpop.f32.mrb[0].mxu0
        %v6735 = vadd.f32 %v5585, %v6734
        %v6736 = vpop.f32.mrb[0].mxu0
        %v6737 = vadd.f32 %v5585, %v6736
        %6738 = vmatprep.mubr.f32.mxu0 0.0
        %6739 = vmatmul.mubr.f32.gmra.mrb[0].mxu0 %v5549
        %v6740 = vpop.f32.mrb[0].mxu0
        %v6741 = vadd.f32 %v5590, %v6740
        %v6742 = vpop.f32.mrb[0].mxu0
        %v6743 = vadd.f32 %v5590, %v6742
        %6744 = vdwg.mxu0
        %v6745 = vmax.f32 %v6699, 0.0
        %v6746 = vmax.f32 %v6701, 0.0
        %v6747 = vmax.f32 %v6705, 0.0
        %v6748 = vmax.f32 %v6707, 0.0
        %v6749 = vmax.f32 %v6711, 0.0
        %v6750 = vmax.f32 %v6713, 0.0
        %v6751 = vmax.f32 %v6717, 0.0
        %v6752 = vmax.f32 %v6719, 0.0
        %v6753 = vmax.f32 %v6723, 0.0
        %v6754 = vmax.f32 %v6725, 0.0
        %v6755 = vmax.f32 %v6729, 0.0
        %v6756 = vmax.f32 %v6731, 0.0
        %v6757 = vmax.f32 %v6735, 0.0
        %v6758 = vmax.f32 %v6737, 0.0
        %v6759 = vmax.f32 %v6741, 0.0
        %v6760 = vmax.f32 %v6743, 0.0
        %6761 = vmatprep.subr.mxu0 %v6746
        %6762 = vmatpush1.msra.mxu0 %v6745
        %6763 = vmatprep.subr.mxu0 %v6748
        %6764 = vmatpush1.msra.mxu0 %v6747
        %6765 = vmatprep.subr.mxu0 %v6750
        %6766 = vmatpush1.msra.mxu0 %v6749
        %6767 = vmatprep.subr.mxu0 %v6752
        %6768 = vmatpush1.msra.mxu0 %v6751
        %6769 = vmatprep.subr.mxu0 %v6754
        %6770 = vmatpush1.msra.mxu0 %v6753
        %6771 = vmatprep.subr.mxu0 %v6756
        %6772 = vmatpush1.msra.mxu0 %v6755
        %6773 = vmatprep.subr.mxu0 %v6758
        %6774 = vmatpush1.msra.mxu0 %v6757
        %6775 = vmatprep.subr.mxu0 %v6760
        %6776 = vmatpush1.msra.mxu0 %v6759
        %6777 = vmatprep.subr.mxu0 0.0
        %6778 = vmatpush1.msra.mxu0 0.0
        %6779 = vmatprep.subr.mxu0 0.0
        %6780 = vmatpush1.msra.mxu0 0.0
        %6781 = vmatprep.subr.mxu0 0.0
        %6782 = vmatpush1.msra.mxu0 0.0
        %6783 = vmatprep.subr.mxu0 0.0
        %6784 = vmatpush1.msra.mxu0 0.0
        %6785 = vmatprep.subr.mxu0 0.0
        %6786 = vmatpush1.msra.mxu0 0.0
        %6787 = vmatprep.subr.mxu0 0.0
        %6788 = vmatpush1.msra.mxu0 0.0
        %6789 = vmatprep.subr.mxu0 0.0
        %6790 = vmatpush1.msra.mxu0 0.0
        %6791 = vmatprep.subr.mxu0 0.0
        %6792 = vmatpush1.msra.mxu0 0.0
        %6793 = vmatprep.subr.mxu0 0.0
        %6794 = vmatpush1.msra.mxu0 0.0
        %6795 = vmatprep.subr.mxu0 0.0
        %6796 = vmatpush1.msra.mxu0 0.0
        %6797 = vmatprep.subr.mxu0 0.0
        %6798 = vmatpush1.msra.mxu0 0.0
        %6799 = vmatprep.subr.mxu0 0.0
        %6800 = vmatpush1.msra.mxu0 0.0
        %6801 = vmatprep.subr.mxu0 0.0
        %6802 = vmatpush1.msra.mxu0 0.0
        %6803 = vmatprep.subr.mxu0 0.0
        %6804 = vmatpush1.msra.mxu0 0.0
        %6805 = vmatprep.subr.mxu0 0.0
        %6806 = vmatpush1.msra.mxu0 0.0
        %6807 = vmatprep.subr.mxu0 0.0
        %6808 = vmatpush1.msra.mxu0 0.0
        %6809 = vmatprep.subr.mxu0 0.0
        %6810 = vmatpush1.msra.mxu0 0.0
        %6811 = vmatprep.subr.mxu0 0.0
        %6812 = vmatpush1.msra.mxu0 0.0
        %6813 = vmatprep.subr.mxu0 0.0
        %6814 = vmatpush1.msra.mxu0 0.0
        %6815 = vmatprep.subr.mxu0 0.0
        %6816 = vmatpush1.msra.mxu0 0.0
        %6817 = vmatprep.subr.mxu0 0.0
        %6818 = vmatpush1.msra.mxu0 0.0
        %6819 = vmatprep.subr.mxu0 0.0
        %6820 = vmatpush1.msra.mxu0 0.0
        %6821 = vmatprep.subr.mxu0 0.0
        %6822 = vmatpush1.msra.mxu0 0.0
        %6823 = vmatprep.subr.mxu0 0.0
        %6824 = vmatpush1.msra.mxu0 0.0
        %6825 = vmatprep.mubr.f32.mxu0 0.0
        %6826 = vmatmul.mubr.f32.gmra.mrb[0].mxu0 %v5722
        %v6827 = vpop.f32.mrb[0].mxu0
        %v6828 = vadd.f32 0.0, %v6827
        %v6829 = vpop.f32.mrb[0].mxu0
        %v6830 = vadd.f32 0.0, %v6829
        %6831 = vmatprep.mubr.f32.mxu0 0.0
        %6832 = vmatmul.mubr.f32.gmra.mrb[0].mxu0 %v5725
        %v6833 = vpop.f32.mrb[0].mxu0
        %v6834 = vadd.f32 0.0, %v6833
        %v6835 = vpop.f32.mrb[0].mxu0
        %v6836 = vadd.f32 0.0, %v6835
        %6837 = vmatprep.mubr.f32.mxu0 0.0
        %6838 = vmatmul.mubr.f32.gmra.mrb[0].mxu0 %v5728
        %v6839 = vpop.f32.mrb[0].mxu0
        %v6840 = vadd.f32 0.0, %v6839
        %v6841 = vpop.f32.mrb[0].mxu0
        %v6842 = vadd.f32 0.0, %v6841
        %6843 = vmatprep.mubr.f32.mxu0 0.0
        %6844 = vmatmul.mubr.f32.gmra.mrb[0].mxu0 %v5731
        %v6845 = vpop.f32.mrb[0].mxu0
        %v6846 = vadd.f32 0.0, %v6845
        %v6847 = vpop.f32.mrb[0].mxu0
        %v6848 = vadd.f32 0.0, %v6847
        %6849 = vmatprep.mubr.f32.mxu0 0.0
        %6850 = vmatmul.mubr.f32.gmra.mrb[0].mxu0 %v5734
        %v6851 = vpop.f32.mrb[0].mxu0
        %v6852 = vadd.f32 0.0, %v6851
        %v6853 = vpop.f32.mrb[0].mxu0
        %v6854 = vadd.f32 0.0, %v6853
        %6855 = vmatprep.mubr.f32.mxu0 0.0
        %6856 = vmatmul.mubr.f32.gmra.mrb[0].mxu0 %v5737
        %v6857 = vpop.f32.mrb[0].mxu0
        %v6858 = vadd.f32 0.0, %v6857
        %v6859 = vpop.f32.mrb[0].mxu0
        %v6860 = vadd.f32 0.0, %v6859
        %6861 = vmatprep.mubr.f32.mxu0 0.0
        %6862 = vmatmul.mubr.f32.gmra.mrb[0].mxu0 %v5740
        %v6863 = vpop.f32.mrb[0].mxu0
        %v6864 = vadd.f32 0.0, %v6863
        %v6865 = vpop.f32.mrb[0].mxu0
        %v6866 = vadd.f32 0.0, %v6865
        %6867 = vmatprep.mubr.f32.mxu0 0.0
        %6868 = vmatmul.mubr.f32.gmra.mrb[0].mxu0 %v5743
        %v6869 = vpop.f32.mrb[0].mxu0
        %v6870 = vadd.f32 0.0, %v6869
        %v6871 = vpop.f32.mrb[0].mxu0
        %v6872 = vadd.f32 0.0, %v6871
        %6873 = vdwg.mxu0
        %v6874 = vmax.f32 %v6616, %v6828
        %v6875 = vmax.f32 %v6617, %v6830
        %v6876 = vmax.f32 %v6618, %v6834
        %v6877 = vmax.f32 %v6619, %v6836
        %v6878 = vmax.f32 %v6620, %v6840
        %v6879 = vmax.f32 %v6621, %v6842
        %v6880 = vmax.f32 %v6622, %v6846
        %v6881 = vmax.f32 %v6623, %v6848
        %v6882 = vmax.f32 %v6624, %v6852
        %v6883 = vmax.f32 %v6625, %v6854
        %v6884 = vmax.f32 %v6626, %v6858
        %v6885 = vmax.f32 %v6627, %v6860
        %v6886 = vmax.f32 %v6628, %v6864
        %v6887 = vmax.f32 %v6629, %v6866
        %v6888 = vmax.f32 %v6630, %v6870
        %v6889 = vmax.f32 %v6631, %v6872
        %6890 = vmatprep.subr.mxu0 %v4861
        %6891 = vmatpush1.msra.mxu0 %v4860
        %6892 = vmatprep.subr.mxu0 %v4863
        %6893 = vmatpush1.msra.mxu0 %v4862
        %6894 = vmatprep.subr.mxu0 %v4865
        %6895 = vmatpush1.msra.mxu0 %v4864
        %6896 = vmatprep.subr.mxu0 %v4867
        %6897 = vmatpush1.msra.mxu0 %v4866
        %6898 = vmatprep.subr.mxu0 %v4869
        %6899 = vmatpush1.msra.mxu0 %v4868
        %6900 = vmatprep.subr.mxu0 %v4871
        %6901 = vmatpush1.msra.mxu0 %v4870
        %6902 = vmatprep.subr.mxu0 %v4873
        %6903 = vmatpush1.msra.mxu0 %v4872
        %6904 = vmatprep.subr.mxu0 %v4875
        %6905 = vmatpush1.msra.mxu0 %v4874
        %6906 = vmatprep.subr.mxu0 %v4877
        %6907 = vmatpush1.msra.mxu0 %v4876
        %6908 = vmatprep.subr.mxu0 %v4879
        %6909 = vmatpush1.msra.mxu0 %v4878
        %6910 = vmatprep.subr.mxu0 %v4881
        %6911 = vmatpush1.msra.mxu0 %v4880
        %6912 = vmatprep.subr.mxu0 %v4883
        %6913 = vmatpush1.msra.mxu0 %v4882
        %6914 = vmatprep.subr.mxu0 %v4885
        %6915 = vmatpush1.msra.mxu0 %v4884
        %6916 = vmatprep.subr.mxu0 %v4887
        %6917 = vmatpush1.msra.mxu0 %v4886
        %6918 = vmatprep.subr.mxu0 %v4889
        %6919 = vmatpush1.msra.mxu0 %v4888
        %6920 = vmatprep.subr.mxu0 %v4891
        %6921 = vmatpush1.msra.mxu0 %v4890
        %6922 = vmatprep.subr.mxu0 0.0
        %6923 = vmatpush1.msra.mxu0 0.0
        %6924 = vmatprep.subr.mxu0 0.0
        %6925 = vmatpush1.msra.mxu0 0.0
        %6926 = vmatprep.subr.mxu0 0.0
        %6927 = vmatpush1.msra.mxu0 0.0
        %6928 = vmatprep.subr.mxu0 0.0
        %6929 = vmatpush1.msra.mxu0 0.0
        %6930 = vmatprep.subr.mxu0 0.0
        %6931 = vmatpush1.msra.mxu0 0.0
        %6932 = vmatprep.subr.mxu0 0.0
        %6933 = vmatpush1.msra.mxu0 0.0
        %6934 = vmatprep.subr.mxu0 0.0
        %6935 = vmatpush1.msra.mxu0 0.0
        %6936 = vmatprep.subr.mxu0 0.0
        %6937 = vmatpush1.msra.mxu0 0.0
        %6938 = vmatprep.subr.mxu0 0.0
        %6939 = vmatpush1.msra.mxu0 0.0
        %6940 = vmatprep.subr.mxu0 0.0
        %6941 = vmatpush1.msra.mxu0 0.0
        %6942 = vmatprep.subr.mxu0 0.0
        %6943 = vmatpush1.msra.mxu0 0.0
        %6944 = vmatprep.subr.mxu0 0.0
        %6945 = vmatpush1.msra.mxu0 0.0
        %6946 = vmatprep.subr.mxu0 0.0
        %6947 = vmatpush1.msra.mxu0 0.0
        %6948 = vmatprep.subr.mxu0 0.0
        %6949 = vmatpush1.msra.mxu0 0.0
        %6950 = vmatprep.subr.mxu0 0.0
        %6951 = vmatpush1.msra.mxu0 0.0
        %6952 = vmatprep.subr.mxu0 0.0
        %6953 = vmatpush1.msra.mxu0 0.0
        %6954 = vmatprep.mubr.f32.mxu0 0.0
        %6955 = vmatmul.mubr.f32.gmra.mrb[0].mxu0 %v5514
        %v6956 = vpop.f32.mrb[0].mxu0
        %v6957 = vadd.f32 %v5555, %v6956
        %v6958 = vpop.f32.mrb[0].mxu0
        %v6959 = vadd.f32 %v5555, %v6958
        %6960 = vmatprep.mubr.f32.mxu0 0.0
        %6961 = vmatmul.mubr.f32.gmra.mrb[0].mxu0 %v5519
        %v6962 = vpop.f32.mrb[0].mxu0
        %v6963 = vadd.f32 %v5560, %v6962
        %v6964 = vpop.f32.mrb[0].mxu0
        %v6965 = vadd.f32 %v5560, %v6964
        %6966 = vmatprep.mubr.f32.mxu0 0.0
        %6967 = vmatmul.mubr.f32.gmra.mrb[0].mxu0 %v5524
        %v6968 = vpop.f32.mrb[0].mxu0
        %v6969 = vadd.f32 %v5565, %v6968
        %v6970 = vpop.f32.mrb[0].mxu0
        %v6971 = vadd.f32 %v5565, %v6970
        %6972 = vmatprep.mubr.f32.mxu0 0.0
        %6973 = vmatmul.mubr.f32.gmra.mrb[0].mxu0 %v5529
        %v6974 = vpop.f32.mrb[0].mxu0
        %v6975 = vadd.f32 %v5570, %v6974
        %v6976 = vpop.f32.mrb[0].mxu0
        %v6977 = vadd.f32 %v5570, %v6976
        %6978 = vmatprep.mubr.f32.mxu0 0.0
        %6979 = vmatmul.mubr.f32.gmra.mrb[0].mxu0 %v5534
        %v6980 = vpop.f32.mrb[0].mxu0
        %v6981 = vadd.f32 %v5575, %v6980
        %v6982 = vpop.f32.mrb[0].mxu0
        %v6983 = vadd.f32 %v5575, %v6982
        %6984 = vmatprep.mubr.f32.mxu0 0.0
        %6985 = vmatmul.mubr.f32.gmra.mrb[0].mxu0 %v5539
        %v6986 = vpop.f32.mrb[0].mxu0
        %v6987 = vadd.f32 %v5580, %v6986
        %v6988 = vpop.f32.mrb[0].mxu0
        %v6989 = vadd.f32 %v5580, %v6988
        %6990 = vmatprep.mubr.f32.mxu0 0.0
        %6991 = vmatmul.mubr.f32.gmra.mrb[0].mxu0 %v5544
        %v6992 = vpop.f32.mrb[0].mxu0
        %v6993 = vadd.f32 %v5585, %v6992
        %v6994 = vpop.f32.mrb[0].mxu0
        %v6995 = vadd.f32 %v5585, %v6994
        %6996 = vmatprep.mubr.f32.mxu0 0.0
        %6997 = vmatmul.mubr.f32.gmra.mrb[0].mxu0 %v5549
        %v6998 = vpop.f32.mrb[0].mxu0
        %v6999 = vadd.f32 %v5590, %v6998
        %v7000 = vpop.f32.mrb[0].mxu0
        %v7001 = vadd.f32 %v5590, %v7000
        %7002 = vdwg.mxu0
        %v7003 = vmax.f32 %v6957, 0.0
        %v7004 = vmax.f32 %v6959, 0.0
        %v7005 = vmax.f32 %v6963, 0.0
        %v7006 = vmax.f32 %v6965, 0.0
        %v7007 = vmax.f32 %v6969, 0.0
        %v7008 = vmax.f32 %v6971, 0.0
        %v7009 = vmax.f32 %v6975, 0.0
        %v7010 = vmax.f32 %v6977, 0.0
        %v7011 = vmax.f32 %v6981, 0.0
        %v7012 = vmax.f32 %v6983, 0.0
        %v7013 = vmax.f32 %v6987, 0.0
        %v7014 = vmax.f32 %v6989, 0.0
        %v7015 = vmax.f32 %v6993, 0.0
        %v7016 = vmax.f32 %v6995, 0.0
        %v7017 = vmax.f32 %v6999, 0.0
        %v7018 = vmax.f32 %v7001, 0.0
        %7019 = vmatprep.subr.mxu0 %v7004
        %7020 = vmatpush1.msra.mxu0 %v7003
        %7021 = vmatprep.subr.mxu0 %v7006
        %7022 = vmatpush1.msra.mxu0 %v7005
        %7023 = vmatprep.subr.mxu0 %v7008
        %7024 = vmatpush1.msra.mxu0 %v7007
        %7025 = vmatprep.subr.mxu0 %v7010
        %7026 = vmatpush1.msra.mxu0 %v7009
        %7027 = vmatprep.subr.mxu0 %v7012
        %7028 = vmatpush1.msra.mxu0 %v7011
        %7029 = vmatprep.subr.mxu0 %v7014
        %7030 = vmatpush1.msra.mxu0 %v7013
        %7031 = vmatprep.subr.mxu0 %v7016
        %7032 = vmatpush1.msra.mxu0 %v7015
        %7033 = vmatprep.subr.mxu0 %v7018
        %7034 = vmatpush1.msra.mxu0 %v7017
        %7035 = vmatprep.subr.mxu0 0.0
        %7036 = vmatpush1.msra.mxu0 0.0
        %7037 = vmatprep.subr.mxu0 0.0
        %7038 = vmatpush1.msra.mxu0 0.0
        %7039 = vmatprep.subr.mxu0 0.0
        %7040 = vmatpush1.msra.mxu0 0.0
        %7041 = vmatprep.subr.mxu0 0.0
        %7042 = vmatpush1.msra.mxu0 0.0
        %7043 = vmatprep.subr.mxu0 0.0
        %7044 = vmatpush1.msra.mxu0 0.0
        %7045 = vmatprep.subr.mxu0 0.0
        %7046 = vmatpush1.msra.mxu0 0.0
        %7047 = vmatprep.subr.mxu0 0.0
        %7048 = vmatpush1.msra.mxu0 0.0
        %7049 = vmatprep.subr.mxu0 0.0
        %7050 = vmatpush1.msra.mxu0 0.0
        %7051 = vmatprep.subr.mxu0 0.0
        %7052 = vmatpush1.msra.mxu0 0.0
        %7053 = vmatprep.subr.mxu0 0.0
        %7054 = vmatpush1.msra.mxu0 0.0
        %7055 = vmatprep.subr.mxu0 0.0
        %7056 = vmatpush1.msra.mxu0 0.0
        %7057 = vmatprep.subr.mxu0 0.0
        %7058 = vmatpush1.msra.mxu0 0.0
        %7059 = vmatprep.subr.mxu0 0.0
        %7060 = vmatpush1.msra.mxu0 0.0
        %7061 = vmatprep.subr.mxu0 0.0
        %7062 = vmatpush1.msra.mxu0 0.0
        %7063 = vmatprep.subr.mxu0 0.0
        %7064 = vmatpush1.msra.mxu0 0.0
        %7065 = vmatprep.subr.mxu0 0.0
        %7066 = vmatpush1.msra.mxu0 0.0
        %7067 = vmatprep.subr.mxu0 0.0
        %7068 = vmatpush1.msra.mxu0 0.0
        %7069 = vmatprep.subr.mxu0 0.0
        %7070 = vmatpush1.msra.mxu0 0.0
        %7071 = vmatprep.subr.mxu0 0.0
        %7072 = vmatpush1.msra.mxu0 0.0
        %7073 = vmatprep.subr.mxu0 0.0
        %7074 = vmatpush1.msra.mxu0 0.0
        %7075 = vmatprep.subr.mxu0 0.0
        %7076 = vmatpush1.msra.mxu0 0.0
        %7077 = vmatprep.subr.mxu0 0.0
        %7078 = vmatpush1.msra.mxu0 0.0
        %7079 = vmatprep.subr.mxu0 0.0
        %7080 = vmatpush1.msra.mxu0 0.0
        %7081 = vmatprep.subr.mxu0 0.0
        %7082 = vmatpush1.msra.mxu0 0.0
        %7083 = vmatprep.mubr.f32.mxu0 0.0
        %7084 = vmatmul.mubr.f32.gmra.mrb[0].mxu0 %v5722
        %v7085 = vpop.f32.mrb[0].mxu0
        %v7086 = vadd.f32 0.0, %v7085
        %v7087 = vpop.f32.mrb[0].mxu0
        %v7088 = vadd.f32 0.0, %v7087
        %7089 = vmatprep.mubr.f32.mxu0 0.0
        %7090 = vmatmul.mubr.f32.gmra.mrb[0].mxu0 %v5725
        %v7091 = vpop.f32.mrb[0].mxu0
        %v7092 = vadd.f32 0.0, %v7091
        %v7093 = vpop.f32.mrb[0].mxu0
        %v7094 = vadd.f32 0.0, %v7093
        %7095 = vmatprep.mubr.f32.mxu0 0.0
        %7096 = vmatmul.mubr.f32.gmra.mrb[0].mxu0 %v5728
        %v7097 = vpop.f32.mrb[0].mxu0
        %v7098 = vadd.f32 0.0, %v7097
        %v7099 = vpop.f32.mrb[0].mxu0
        %v7100 = vadd.f32 0.0, %v7099
        %7101 = vmatprep.mubr.f32.mxu0 0.0
        %7102 = vmatmul.mubr.f32.gmra.mrb[0].mxu0 %v5731
        %v7103 = vpop.f32.mrb[0].mxu0
        %v7104 = vadd.f32 0.0, %v7103
        %v7105 = vpop.f32.mrb[0].mxu0
        %v7106 = vadd.f32 0.0, %v7105
        %7107 = vmatprep.mubr.f32.mxu0 0.0
        %7108 = vmatmul.mubr.f32.gmra.mrb[0].mxu0 %v5734
        %v7109 = vpop.f32.mrb[0].mxu0
        %v7110 = vadd.f32 0.0, %v7109
        %v7111 = vpop.f32.mrb[0].mxu0
        %v7112 = vadd.f32 0.0, %v7111
        %7113 = vmatprep.mubr.f32.mxu0 0.0
        %7114 = vmatmul.mubr.f32.gmra.mrb[0].mxu0 %v5737
        %v7115 = vpop.f32.mrb[0].mxu0
        %v7116 = vadd.f32 0.0, %v7115
        %v7117 = vpop.f32.mrb[0].mxu0
        %v7118 = vadd.f32 0.0, %v7117
        %7119 = vmatprep.mubr.f32.mxu0 0.0
        %7120 = vmatmul.mubr.f32.gmra.mrb[0].mxu0 %v5740
        %v7121 = vpop.f32.mrb[0].mxu0
        %v7122 = vadd.f32 0.0, %v7121
        %v7123 = vpop.f32.mrb[0].mxu0
        %v7124 = vadd.f32 0.0, %v7123
        %7125 = vmatprep.mubr.f32.mxu0 0.0
        %7126 = vmatmul.mubr.f32.gmra.mrb[0].mxu0 %v5743
        %v7127 = vpop.f32.mrb[0].mxu0
        %v7128 = vadd.f32 0.0, %v7127
        %v7129 = vpop.f32.mrb[0].mxu0
        %v7130 = vadd.f32 0.0, %v7129
        %7131 = vdwg.mxu0
        %v7132 = vmax.f32 %v6874, %v7086
        %v7133 = vmax.f32 %v6875, %v7088
        %v7134 = vmax.f32 %v6876, %v7092
        %v7135 = vmax.f32 %v6877, %v7094
        %v7136 = vmax.f32 %v6878, %v7098
        %v7137 = vmax.f32 %v6879, %v7100
        %v7138 = vmax.f32 %v6880, %v7104
        %v7139 = vmax.f32 %v6881, %v7106
        %v7140 = vmax.f32 %v6882, %v7110
        %v7141 = vmax.f32 %v6883, %v7112
        %v7142 = vmax.f32 %v6884, %v7116
        %v7143 = vmax.f32 %v6885, %v7118
        %v7144 = vmax.f32 %v6886, %v7122
        %v7145 = vmax.f32 %v6887, %v7124
        %v7146 = vmax.f32 %v6888, %v7128
        %v7147 = vmax.f32 %v6889, %v7130
        %v7148 = vmax.f32 %v7132, %v7133
        %v7149 = vmax.f32 %v7134, %v7135
        %v7150 = vmax.f32 %v7136, %v7137
        %v7151 = vmax.f32 %v7138, %v7139
        %v7152 = vmax.f32 %v7140, %v7141
        %v7153 = vmax.f32 %v7142, %v7143
        %v7154 = vmax.f32 %v7144, %v7145
        %v7155 = vmax.f32 %v7146, %v7147
        %7157 = vset.pattern.permute.xlu0 0
        %7158 = vperm.xlu0 %7157, %v5399
        %v7159 = vpop.permute.xlu0 %7158
        %7162 = vset.pattern.permute.xlu0 0
        %7163 = vperm.xlu0 %7162, %v5400
        %v7164 = vpop.permute.xlu0 %7163
        %7167 = vset.pattern.permute.xlu0 0
        %7168 = vperm.xlu0 %7167, %v5401
        %v7169 = vpop.permute.xlu0 %7168
        %7172 = vset.pattern.permute.xlu0 0
        %7173 = vperm.xlu0 %7172, %v5402
        %v7174 = vpop.permute.xlu0 %7173
        %7177 = vset.pattern.permute.xlu0 0
        %7178 = vperm.xlu0 %7177, %v5403
        %v7179 = vpop.permute.xlu0 %7178
        %7182 = vset.pattern.permute.xlu0 0
        %7183 = vperm.xlu0 %7182, %v5404
        %v7184 = vpop.permute.xlu0 %7183
        %7187 = vset.pattern.permute.xlu0 0
        %7188 = vperm.xlu0 %7187, %v5405
        %v7189 = vpop.permute.xlu0 %7188
        %7192 = vset.pattern.permute.xlu0 0
        %7193 = vperm.xlu0 %7192, %v5406
        %v7194 = vpop.permute.xlu0 %7193
        %v7196 = vadd.f32 %v7148, %v7159
        %v7197 = vadd.f32 %v7149, %v7164
        %v7198 = vadd.f32 %v7150, %v7169
        %v7199 = vadd.f32 %v7151, %v7174
        %v7200 = vadd.f32 %v7152, %v7179
        %v7201 = vadd.f32 %v7153, %v7184
        %v7202 = vadd.f32 %v7154, %v7189
        %v7203 = vadd.f32 %v7155, %v7194
        %7205 = vset.pattern.permute.xlu0 0
        %7206 = vperm.xlu0 %7205, %v5415
        %v7207 = vpop.permute.xlu0 %7206
        %7210 = vset.pattern.permute.xlu0 0
        %7211 = vperm.xlu0 %7210, %v5416
        %v7212 = vpop.permute.xlu0 %7211
        %7215 = vset.pattern.permute.xlu0 0
        %7216 = vperm.xlu0 %7215, %v5417
        %v7217 = vpop.permute.xlu0 %7216
        %7220 = vset.pattern.permute.xlu0 0
        %7221 = vperm.xlu0 %7220, %v5418
        %v7222 = vpop.permute.xlu0 %7221
        %7225 = vset.pattern.permute.xlu0 0
        %7226 = vperm.xlu0 %7225, %v5419
        %v7227 = vpop.permute.xlu0 %7226
        %7230 = vset.pattern.permute.xlu0 0
        %7231 = vperm.xlu0 %7230, %v5420
        %v7232 = vpop.permute.xlu0 %7231
        %7235 = vset.pattern.permute.xlu0 0
        %7236 = vperm.xlu0 %7235, %v5421
        %v7237 = vpop.permute.xlu0 %7236
        %7240 = vset.pattern.permute.xlu0 0
        %7241 = vperm.xlu0 %7240, %v5422
        %v7242 = vpop.permute.xlu0 %7241
        %v7245 = vsel %vm3482, %v5407, 0
        %v7248 = vsel %vm3482, %v5408, 0
        %v7251 = vsel %vm3482, %v5409, 0
        %v7254 = vsel %vm3482, %v5410, 0
        %v7257 = vsel %vm3482, %v5411, 0
        %v7260 = vsel %vm3482, %v5412, 0
        %v7263 = vsel %vm3482, %v5413, 0
        %v7266 = vsel %vm3482, %v5414, 0
        %7268 = vmatprep.subr.mxu0 0.0
        %7269 = vmatpush1.msra.mxu0 %v7196
        %7270 = vmatprep.subr.mxu0 0.0
        %7271 = vmatpush1.msra.mxu0 %v7197
        %7272 = vmatprep.subr.mxu0 0.0
        %7273 = vmatpush1.msra.mxu0 %v7198
        %7274 = vmatprep.subr.mxu0 0.0
        %7275 = vmatpush1.msra.mxu0 %v7199
        %7276 = vmatprep.subr.mxu0 0.0
        %7277 = vmatpush1.msra.mxu0 %v7200
        %7278 = vmatprep.subr.mxu0 0.0
        %7279 = vmatpush1.msra.mxu0 %v7201
        %7280 = vmatprep.subr.mxu0 0.0
        %7281 = vmatpush1.msra.mxu0 %v7202
        %7282 = vmatprep.subr.mxu0 0.0
        %7283 = vmatpush1.msra.mxu0 %v7203
        %7284 = vmatprep.subr.mxu0 0.0
        %7285 = vmatpush1.msra.mxu0 0.0
        %7286 = vmatprep.subr.mxu0 0.0
        %7287 = vmatpush1.msra.mxu0 0.0
        %7288 = vmatprep.subr.mxu0 0.0
        %7289 = vmatpush1.msra.mxu0 0.0
        %7290 = vmatprep.subr.mxu0 0.0
        %7291 = vmatpush1.msra.mxu0 0.0
        %7292 = vmatprep.subr.mxu0 0.0
        %7293 = vmatpush1.msra.mxu0 0.0
        %7294 = vmatprep.subr.mxu0 0.0
        %7295 = vmatpush1.msra.mxu0 0.0
        %7296 = vmatprep.subr.mxu0 0.0
        %7297 = vmatpush1.msra.mxu0 0.0
        %7298 = vmatprep.subr.mxu0 0.0
        %7299 = vmatpush1.msra.mxu0 0.0
        %7300 = vmatprep.subr.mxu0 0.0
        %7301 = vmatpush1.msra.mxu0 0.0
        %7302 = vmatprep.subr.mxu0 0.0
        %7303 = vmatpush1.msra.mxu0 0.0
        %7304 = vmatprep.subr.mxu0 0.0
        %7305 = vmatpush1.msra.mxu0 0.0
        %7306 = vmatprep.subr.mxu0 0.0
        %7307 = vmatpush1.msra.mxu0 0.0
        %7308 = vmatprep.subr.mxu0 0.0
        %7309 = vmatpush1.msra.mxu0 0.0
        %7310 = vmatprep.subr.mxu0 0.0
        %7311 = vmatpush1.msra.mxu0 0.0
        %7312 = vmatprep.subr.mxu0 0.0
        %7313 = vmatpush1.msra.mxu0 0.0
        %7314 = vmatprep.subr.mxu0 0.0
        %7315 = vmatpush1.msra.mxu0 0.0
        %7316 = vmatprep.subr.mxu0 0.0
        %7317 = vmatpush1.msra.mxu0 0.0
        %7318 = vmatprep.subr.mxu0 0.0
        %7319 = vmatpush1.msra.mxu0 0.0
        %7320 = vmatprep.subr.mxu0 0.0
        %7321 = vmatpush1.msra.mxu0 0.0
        %7322 = vmatprep.subr.mxu0 0.0
        %7323 = vmatpush1.msra.mxu0 0.0
        %7324 = vmatprep.subr.mxu0 0.0
        %7325 = vmatpush1.msra.mxu0 0.0
        %7326 = vmatprep.subr.mxu0 0.0
        %7327 = vmatpush1.msra.mxu0 0.0
        %7328 = vmatprep.subr.mxu0 0.0
        %7329 = vmatpush1.msra.mxu0 0.0
        %7330 = vmatprep.subr.mxu0 0.0
        %7331 = vmatpush1.msra.mxu0 0.0
        %7332 = vmatprep.mubr.f32.mxu0 0.0
        %7333 = vmatmul.mubr.f32.gmra.mrb[0].mxu0 %v7245
        %v7334 = vpop.f32.mrb[0].mxu0
        %v7335 = vadd.f32 %v7207, %v7334
        %v7336 = vpop.f32.mrb[0].mxu0
        %7337 = vmatprep.mubr.f32.mxu0 0.0
        %7338 = vmatmul.mubr.f32.gmra.mrb[0].mxu0 %v7248
        %v7339 = vpop.f32.mrb[0].mxu0
        %v7340 = vadd.f32 %v7212, %v7339
        %v7341 = vpop.f32.mrb[0].mxu0
        %7342 = vmatprep.mubr.f32.mxu0 0.0
        %7343 = vmatmul.mubr.f32.gmra.mrb[0].mxu0 %v7251
        %v7344 = vpop.f32.mrb[0].mxu0
        %v7345 = vadd.f32 %v7217, %v7344
        %v7346 = vpop.f32.mrb[0].mxu0
        %7347 = vmatprep.mubr.f32.mxu0 0.0
        %7348 = vmatmul.mubr.f32.gmra.mrb[0].mxu0 %v7254
        %v7349 = vpop.f32.mrb[0].mxu0
        %v7350 = vadd.f32 %v7222, %v7349
        %v7351 = vpop.f32.mrb[0].mxu0
        %7352 = vmatprep.mubr.f32.mxu0 0.0
        %7353 = vmatmul.mubr.f32.gmra.mrb[0].mxu0 %v7257
        %v7354 = vpop.f32.mrb[0].mxu0
        %v7355 = vadd.f32 %v7227, %v7354
        %v7356 = vpop.f32.mrb[0].mxu0
        %7357 = vmatprep.mubr.f32.mxu0 0.0
        %7358 = vmatmul.mubr.f32.gmra.mrb[0].mxu0 %v7260
        %v7359 = vpop.f32.mrb[0].mxu0
        %v7360 = vadd.f32 %v7232, %v7359
        %v7361 = vpop.f32.mrb[0].mxu0
        %7362 = vmatprep.mubr.f32.mxu0 0.0
        %7363 = vmatmul.mubr.f32.gmra.mrb[0].mxu0 %v7263
        %v7364 = vpop.f32.mrb[0].mxu0
        %v7365 = vadd.f32 %v7237, %v7364
        %v7366 = vpop.f32.mrb[0].mxu0
        %7367 = vmatprep.mubr.f32.mxu0 0.0
        %7368 = vmatmul.mubr.f32.gmra.mrb[0].mxu0 %v7266
        %v7369 = vpop.f32.mrb[0].mxu0
        %v7370 = vadd.f32 %v7242, %v7369
        %v7371 = vpop.f32.mrb[0].mxu0
        %7372 = vdwg.mxu0
        %v7373 = vadd.f32 %v5337, %v7335
        %v7374 = vadd.f32 %v5342, %v7340
        %v7375 = vadd.f32 %v5347, %v7345
        %v7376 = vadd.f32 %v5352, %v7350
        %v7377 = vadd.f32 %v5357, %v7355
        %v7378 = vadd.f32 %v5362, %v7360
        %v7379 = vadd.f32 %v5367, %v7365
        %v7380 = vadd.f32 %v5372, %v7370
        %v7381 = vadd.f32 %v5337, %v7373
        %v7382 = vadd.f32 %v5342, %v7374
        %v7383 = vadd.f32 %v5347, %v7375
        %v7384 = vadd.f32 %v5352, %v7376
        %v7385 = vadd.f32 %v5357, %v7377
        %v7386 = vadd.f32 %v5362, %v7378
        %v7387 = vadd.f32 %v5367, %v7379
        %v7388 = vadd.f32 %v5372, %v7380
        %v7389 = vld [vmem:[%s13] sm:$0xff]
        %v7390 = vld [vmem:[%s13 + $0x8] sm:$0xff]
        %v7391 = vld [vmem:[%s13 + $0x10] sm:$0xff]
        %v7392 = vld [vmem:[%s13 + $0x18] sm:$0xff]
        %v7393 = vld [vmem:[%s13 + $0x20] sm:$0xff]
        %v7394 = vld [vmem:[%s13 + $0x28] sm:$0xff]
        %v7395 = vld [vmem:[%s13 + $0x30] sm:$0xff]
        %v7396 = vld [vmem:[%s13 + $0x38] sm:$0xff]
        %v7397 = vld [vmem:[%s14] sm:$0xff]
        %v7398 = vld [vmem:[%s14 + $0x8] sm:$0xff]
        %v7399 = vld [vmem:[%s14 + $0x10] sm:$0xff]
        %v7400 = vld [vmem:[%s14 + $0x18] sm:$0xff]
        %v7401 = vld [vmem:[%s14 + $0x20] sm:$0xff]
        %v7402 = vld [vmem:[%s14 + $0x28] sm:$0xff]
        %v7403 = vld [vmem:[%s14 + $0x30] sm:$0xff]
        %v7404 = vld [vmem:[%s14 + $0x38] sm:$0xff]
        %v7405 = vld [vmem:[%s15] sm:$0xff]
        %v7406 = vld [vmem:[%s15 + $0x8] sm:$0xff]
        %v7407 = vld [vmem:[%s15 + $0x10] sm:$0xff]
        %v7408 = vld [vmem:[%s15 + $0x18] sm:$0xff]
        %v7409 = vld [vmem:[%s15 + $0x20] sm:$0xff]
        %v7410 = vld [vmem:[%s15 + $0x28] sm:$0xff]
        %v7411 = vld [vmem:[%s15 + $0x30] sm:$0xff]
        %v7412 = vld [vmem:[%s15 + $0x38] sm:$0xff]
        %v7413 = vld [vmem:[%s16] sm:$0xff]
        %v7414 = vld [vmem:[%s16 + $0x8] sm:$0xff]
        %v7415 = vld [vmem:[%s16 + $0x10] sm:$0xff]
        %v7416 = vld [vmem:[%s16 + $0x18] sm:$0xff]
        %v7417 = vld [vmem:[%s16 + $0x20] sm:$0xff]
        %v7418 = vld [vmem:[%s16 + $0x28] sm:$0xff]
        %v7419 = vld [vmem:[%s16 + $0x30] sm:$0xff]
        %v7420 = vld [vmem:[%s16 + $0x38] sm:$0xff]
        %v7421 = vld [vmem:[%s17] sm:$0xff]
        %v7422 = vld [vmem:[%s17 + $0x8] sm:$0xff]
        %v7423 = vld [vmem:[%s17 + $0x10] sm:$0xff]
        %v7424 = vld [vmem:[%s17 + $0x18] sm:$0xff]
        %v7425 = vld [vmem:[%s17 + $0x20] sm:$0xff]
        %v7426 = vld [vmem:[%s17 + $0x28] sm:$0xff]
        %v7427 = vld [vmem:[%s17 + $0x30] sm:$0xff]
        %v7428 = vld [vmem:[%s17 + $0x38] sm:$0xff]
        %v7429 = vld [vmem:[%s18] sm:$0xff]
        %v7430 = vld [vmem:[%s18 + $0x8] sm:$0xff]
        %v7431 = vld [vmem:[%s18 + $0x10] sm:$0xff]
        %v7432 = vld [vmem:[%s18 + $0x18] sm:$0xff]
        %v7433 = vld [vmem:[%s18 + $0x20] sm:$0xff]
        %v7434 = vld [vmem:[%s18 + $0x28] sm:$0xff]
        %v7435 = vld [vmem:[%s18 + $0x30] sm:$0xff]
        %v7436 = vld [vmem:[%s18 + $0x38] sm:$0xff]
        %v7438 = vsel %vm3482, %v7389, 0
        %v7441 = vsel %vm3482, %v7390, 0
        %v7444 = vsel %vm3482, %v7391, 0
        %v7447 = vsel %vm3482, %v7392, 0
        %v7450 = vsel %vm3482, %v7393, 0
        %v7453 = vsel %vm3482, %v7394, 0
        %v7456 = vsel %vm3482, %v7395, 0
        %v7459 = vsel %vm3482, %v7396, 0
        %7461 = vmatprep.subr.mxu0 0.0
        %7462 = vmatpush1.msra.mxu0 %v7373
        %7463 = vmatprep.subr.mxu0 0.0
        %7464 = vmatpush1.msra.mxu0 %v7374
        %7465 = vmatprep.subr.mxu0 0.0
        %7466 = vmatpush1.msra.mxu0 %v7375
        %7467 = vmatprep.subr.mxu0 0.0
        %7468 = vmatpush1.msra.mxu0 %v7376
        %7469 = vmatprep.subr.mxu0 0.0
        %7470 = vmatpush1.msra.mxu0 %v7377
        %7471 = vmatprep.subr.mxu0 0.0
        %7472 = vmatpush1.msra.mxu0 %v7378
        %7473 = vmatprep.subr.mxu0 0.0
        %7474 = vmatpush1.msra.mxu0 %v7379
        %7475 = vmatprep.subr.mxu0 0.0
        %7476 = vmatpush1.msra.mxu0 %v7380
        %7477 = vmatprep.subr.mxu0 0.0
        %7478 = vmatpush1.msra.mxu0 0.0
        %7479 = vmatprep.subr.mxu0 0.0
        %7480 = vmatpush1.msra.mxu0 0.0
        %7481 = vmatprep.subr.mxu0 0.0
        %7482 = vmatpush1.msra.mxu0 0.0
        %7483 = vmatprep.subr.mxu0 0.0
        %7484 = vmatpush1.msra.mxu0 0.0
        %7485 = vmatprep.subr.mxu0 0.0
        %7486 = vmatpush1.msra.mxu0 0.0
        %7487 = vmatprep.subr.mxu0 0.0
        %7488 = vmatpush1.msra.mxu0 0.0
        %7489 = vmatprep.subr.mxu0 0.0
        %7490 = vmatpush1.msra.mxu0 0.0
        %7491 = vmatprep.subr.mxu0 0.0
        %7492 = vmatpush1.msra.mxu0 0.0
        %7493 = vmatprep.subr.mxu0 0.0
        %7494 = vmatpush1.msra.mxu0 0.0
        %7495 = vmatprep.subr.mxu0 0.0
        %7496 = vmatpush1.msra.mxu0 0.0
        %7497 = vmatprep.subr.mxu0 0.0
        %7498 = vmatpush1.msra.mxu0 0.0
        %7499 = vmatprep.subr.mxu0 0.0
        %7500 = vmatpush1.msra.mxu0 0.0
        %7501 = vmatprep.subr.mxu0 0.0
        %7502 = vmatpush1.msra.mxu0 0.0
        %7503 = vmatprep.subr.mxu0 0.0
        %7504 = vmatpush1.msra.mxu0 0.0
        %7505 = vmatprep.subr.mxu0 0.0
        %7506 = vmatpush1.msra.mxu0 0.0
        %7507 = vmatprep.subr.mxu0 0.0
        %7508 = vmatpush1.msra.mxu0 0.0
        %7509 = vmatprep.subr.mxu0 0.0
        %7510 = vmatpush1.msra.mxu0 0.0
        %7511 = vmatprep.subr.mxu0 0.0
        %7512 = vmatpush1.msra.mxu0 0.0
        %7513 = vmatprep.subr.mxu0 0.0
        %7514 = vmatpush1.msra.mxu0 0.0
        %7515 = vmatprep.subr.mxu0 0.0
        %7516 = vmatpush1.msra.mxu0 0.0
        %7517 = vmatprep.subr.mxu0 0.0
        %7518 = vmatpush1.msra.mxu0 0.0
        %7519 = vmatprep.subr.mxu0 0.0
        %7520 = vmatpush1.msra.mxu0 0.0
        %7521 = vmatprep.subr.mxu0 0.0
        %7522 = vmatpush1.msra.mxu0 0.0
        %7523 = vmatprep.subr.mxu0 0.0
        %7524 = vmatpush1.msra.mxu0 0.0
        %7525 = vmatprep.mubr.f32.mxu0 0.0
        %7526 = vmatmul.mubr.f32.gmra.mrb[0].mxu0 %v7438
        %v7527 = vpop.f32.mrb[0].mxu0
        %v7528 = vadd.f32 0.0, %v7527
        %v7529 = vpop.f32.mrb[0].mxu0
        %7530 = vmatprep.mubr.f32.mxu0 0.0
        %7531 = vmatmul.mubr.f32.gmra.mrb[0].mxu0 %v7441
        %v7532 = vpop.f32.mrb[0].mxu0
        %v7533 = vadd.f32 0.0, %v7532
        %v7534 = vpop.f32.mrb[0].mxu0
        %7535 = vmatprep.mubr.f32.mxu0 0.0
        %7536 = vmatmul.mubr.f32.gmra.mrb[0].mxu0 %v7444
        %v7537 = vpop.f32.mrb[0].mxu0
        %v7538 = vadd.f32 0.0, %v7537
        %v7539 = vpop.f32.mrb[0].mxu0
        %7540 = vmatprep.mubr.f32.mxu0 0.0
        %7541 = vmatmul.mubr.f32.gmra.mrb[0].mxu0 %v7447
        %v7542 = vpop.f32.mrb[0].mxu0
        %v7543 = vadd.f32 0.0, %v7542
        %v7544 = vpop.f32.mrb[0].mxu0
        %7545 = vmatprep.mubr.f32.mxu0 0.0
        %7546 = vmatmul.mubr.f32.gmra.mrb[0].mxu0 %v7450
        %v7547 = vpop.f32.mrb[0].mxu0
        %v7548 = vadd.f32 0.0, %v7547
        %v7549 = vpop.f32.mrb[0].mxu0
        %7550 = vmatprep.mubr.f32.mxu0 0.0
        %7551 = vmatmul.mubr.f32.gmra.mrb[0].mxu0 %v7453
        %v7552 = vpop.f32.mrb[0].mxu0
        %v7553 = vadd.f32 0.0, %v7552
        %v7554 = vpop.f32.mrb[0].mxu0
        %7555 = vmatprep.mubr.f32.mxu0 0.0
        %7556 = vmatmul.mubr.f32.gmra.mrb[0].mxu0 %v7456
        %v7557 = vpop.f32.mrb[0].mxu0
        %v7558 = vadd.f32 0.0, %v7557
        %v7559 = vpop.f32.mrb[0].mxu0
        %7560 = vmatprep.mubr.f32.mxu0 0.0
        %7561 = vmatmul.mubr.f32.gmra.mrb[0].mxu0 %v7459
        %v7562 = vpop.f32.mrb[0].mxu0
        %v7563 = vadd.f32 0.0, %v7562
        %v7564 = vpop.f32.mrb[0].mxu0
        %7565 = vdwg.mxu0
        %7567 = vset.pattern.permute.xlu0 0
        %7568 = vperm.xlu0 %7567, %v7397
        %v7569 = vpop.permute.xlu0 %7568
        %7572 = vset.pattern.permute.xlu0 0
        %7573 = vperm.xlu0 %7572, %v7398
        %v7574 = vpop.permute.xlu0 %7573
        %7577 = vset.pattern.permute.xlu0 0
        %7578 = vperm.xlu0 %7577, %v7399
        %v7579 = vpop.permute.xlu0 %7578
        %7582 = vset.pattern.permute.xlu0 0
        %7583 = vperm.xlu0 %7582, %v7400
        %v7584 = vpop.permute.xlu0 %7583
        %7587 = vset.pattern.permute.xlu0 0
        %7588 = vperm.xlu0 %7587, %v7401
        %v7589 = vpop.permute.xlu0 %7588
        %7592 = vset.pattern.permute.xlu0 0
        %7593 = vperm.xlu0 %7592, %v7402
        %v7594 = vpop.permute.xlu0 %7593
        %7597 = vset.pattern.permute.xlu0 0
        %7598 = vperm.xlu0 %7597, %v7403
        %v7599 = vpop.permute.xlu0 %7598
        %7602 = vset.pattern.permute.xlu0 0
        %7603 = vperm.xlu0 %7602, %v7404
        %v7604 = vpop.permute.xlu0 %7603
        %7606 = vmatprep.subr.mxu0 %v3282
        %7607 = vmatpush1.msra.mxu0 %v3281
        %7608 = vmatprep.subr.mxu0 %v3284
        %7609 = vmatpush1.msra.mxu0 %v3283
        %7610 = vmatprep.subr.mxu0 %v3286
        %7611 = vmatpush1.msra.mxu0 %v3285
        %7612 = vmatprep.subr.mxu0 %v3288
        %7613 = vmatpush1.msra.mxu0 %v3287
        %7614 = vmatprep.subr.mxu0 %v3290
        %7615 = vmatpush1.msra.mxu0 %v3289
        %7616 = vmatprep.subr.mxu0 %v3292
        %7617 = vmatpush1.msra.mxu0 %v3291
        %7618 = vmatprep.subr.mxu0 %v3294
        %7619 = vmatpush1.msra.mxu0 %v3293
        %7620 = vmatprep.subr.mxu0 %v3296
        %7621 = vmatpush1.msra.mxu0 %v3295
        %7622 = vmatprep.subr.mxu0 %v3298
        %7623 = vmatpush1.msra.mxu0 %v3297
        %7624 = vmatprep.subr.mxu0 %v3300
        %7625 = vmatpush1.msra.mxu0 %v3299
        %7626 = vmatprep.subr.mxu0 %v3302
        %7627 = vmatpush1.msra.mxu0 %v3301
        %7628 = vmatprep.subr.mxu0 %v3304
        %7629 = vmatpush1.msra.mxu0 %v3303
        %7630 = vmatprep.subr.mxu0 %v3306
        %7631 = vmatpush1.msra.mxu0 %v3305
        %7632 = vmatprep.subr.mxu0 %v3308
        %7633 = vmatpush1.msra.mxu0 %v3307
        %7634 = vmatprep.subr.mxu0 %v3310
        %7635 = vmatpush1.msra.mxu0 %v3309
        %7636 = vmatprep.subr.mxu0 %v3312
        %7637 = vmatpush1.msra.mxu0 %v3311
        %7638 = vmatprep.subr.mxu0 0.0
        %7639 = vmatpush1.msra.mxu0 0.0
        %7640 = vmatprep.subr.mxu0 0.0
        %7641 = vmatpush1.msra.mxu0 0.0
        %7642 = vmatprep.subr.mxu0 0.0
        %7643 = vmatpush1.msra.mxu0 0.0
        %7644 = vmatprep.subr.mxu0 0.0
        %7645 = vmatpush1.msra.mxu0 0.0
        %7646 = vmatprep.subr.mxu0 0.0
        %7647 = vmatpush1.msra.mxu0 0.0
        %7648 = vmatprep.subr.mxu0 0.0
        %7649 = vmatpush1.msra.mxu0 0.0
        %7650 = vmatprep.subr.mxu0 0.0
        %7651 = vmatpush1.msra.mxu0 0.0
        %7652 = vmatprep.subr.mxu0 0.0
        %7653 = vmatpush1.msra.mxu0 0.0
        %7654 = vmatprep.subr.mxu0 0.0
        %7655 = vmatpush1.msra.mxu0 0.0
        %7656 = vmatprep.subr.mxu0 0.0
        %7657 = vmatpush1.msra.mxu0 0.0
        %7658 = vmatprep.subr.mxu0 0.0
        %7659 = vmatpush1.msra.mxu0 0.0
        %7660 = vmatprep.subr.mxu0 0.0
        %7661 = vmatpush1.msra.mxu0 0.0
        %7662 = vmatprep.subr.mxu0 0.0
        %7663 = vmatpush1.msra.mxu0 0.0
        %7664 = vmatprep.subr.mxu0 0.0
        %7665 = vmatpush1.msra.mxu0 0.0
        %7666 = vmatprep.subr.mxu0 0.0
        %7667 = vmatpush1.msra.mxu0 0.0
        %7668 = vmatprep.subr.mxu0 0.0
        %7669 = vmatpush1.msra.mxu0 0.0
        %7670 = vmatprep.mubr.f32.mxu0 0.0
        %7671 = vmatmul.mubr.f32.gmra.mrb[0].mxu0 %v7528
        %v7672 = vpop.f32.mrb[0].mxu0
        %v7673 = vadd.f32 %v7569, %v7672
        %v7674 = vpop.f32.mrb[0].mxu0
        %v7675 = vadd.f32 %v7569, %v7674
        %7676 = vmatprep.mubr.f32.mxu0 0.0
        %7677 = vmatmul.mubr.f32.gmra.mrb[0].mxu0 %v7533
        %v7678 = vpop.f32.mrb[0].mxu0
        %v7679 = vadd.f32 %v7574, %v7678
        %v7680 = vpop.f32.mrb[0].mxu0
        %v7681 = vadd.f32 %v7574, %v7680
        %7682 = vmatprep.mubr.f32.mxu0 0.0
        %7683 = vmatmul.mubr.f32.gmra.mrb[0].mxu0 %v7538
        %v7684 = vpop.f32.mrb[0].mxu0
        %v7685 = vadd.f32 %v7579, %v7684
        %v7686 = vpop.f32.mrb[0].mxu0
        %v7687 = vadd.f32 %v7579, %v7686
        %7688 = vmatprep.mubr.f32.mxu0 0.0
        %7689 = vmatmul.mubr.f32.gmra.mrb[0].mxu0 %v7543
        %v7690 = vpop.f32.mrb[0].mxu0
        %v7691 = vadd.f32 %v7584, %v7690
        %v7692 = vpop.f32.mrb[0].mxu0
        %v7693 = vadd.f32 %v7584, %v7692
        %7694 = vmatprep.mubr.f32.mxu0 0.0
        %7695 = vmatmul.mubr.f32.gmra.mrb[0].mxu0 %v7548
        %v7696 = vpop.f32.mrb[0].mxu0
        %v7697 = vadd.f32 %v7589, %v7696
        %v7698 = vpop.f32.mrb[0].mxu0
        %v7699 = vadd.f32 %v7589, %v7698
        %7700 = vmatprep.mubr.f32.mxu0 0.0
        %7701 = vmatmul.mubr.f32.gmra.mrb[0].mxu0 %v7553
        %v7702 = vpop.f32.mrb[0].mxu0
        %v7703 = vadd.f32 %v7594, %v7702
        %v7704 = vpop.f32.mrb[0].mxu0
        %v7705 = vadd.f32 %v7594, %v7704
        %7706 = vmatprep.mubr.f32.mxu0 0.0
        %7707 = vmatmul.mubr.f32.gmra.mrb[0].mxu0 %v7558
        %v7708 = vpop.f32.mrb[0].mxu0
        %v7709 = vadd.f32 %v7599, %v7708
        %v7710 = vpop.f32.mrb[0].mxu0
        %v7711 = vadd.f32 %v7599, %v7710
        %7712 = vmatprep.mubr.f32.mxu0 0.0
        %7713 = vmatmul.mubr.f32.gmra.mrb[0].mxu0 %v7563
        %v7714 = vpop.f32.mrb[0].mxu0
        %v7715 = vadd.f32 %v7604, %v7714
        %v7716 = vpop.f32.mrb[0].mxu0
        %v7717 = vadd.f32 %v7604, %v7716
        %7718 = vdwg.mxu0
        %v7719 = vmax.f32 %v7673, 0.0
        %v7720 = vmax.f32 %v7675, 0.0
        %v7721 = vmax.f32 %v7679, 0.0
        %v7722 = vmax.f32 %v7681, 0.0
        %v7723 = vmax.f32 %v7685, 0.0
        %v7724 = vmax.f32 %v7687, 0.0
        %v7725 = vmax.f32 %v7691, 0.0
        %v7726 = vmax.f32 %v7693, 0.0
        %v7727 = vmax.f32 %v7697, 0.0
        %v7728 = vmax.f32 %v7699, 0.0
        %v7729 = vmax.f32 %v7703, 0.0
        %v7730 = vmax.f32 %v7705, 0.0
        %v7731 = vmax.f32 %v7709, 0.0
        %v7732 = vmax.f32 %v7711, 0.0
        %v7733 = vmax.f32 %v7715, 0.0
        %v7734 = vmax.f32 %v7717, 0.0
        %v7736 = vsel %vm3482, %v7405, 0
        %v7739 = vsel %vm3482, %v7406, 0
        %v7742 = vsel %vm3482, %v7407, 0
        %v7745 = vsel %vm3482, %v7408, 0
        %v7748 = vsel %vm3482, %v7409, 0
        %v7751 = vsel %vm3482, %v7410, 0
        %v7754 = vsel %vm3482, %v7411, 0
        %v7757 = vsel %vm3482, %v7412, 0
        %7759 = vmatprep.subr.mxu0 %v7720
        %7760 = vmatpush1.msra.mxu0 %v7719
        %7761 = vmatprep.subr.mxu0 %v7722
        %7762 = vmatpush1.msra.mxu0 %v7721
        %7763 = vmatprep.subr.mxu0 %v7724
        %7764 = vmatpush1.msra.mxu0 %v7723
        %7765 = vmatprep.subr.mxu0 %v7726
        %7766 = vmatpush1.msra.mxu0 %v7725
        %7767 = vmatprep.subr.mxu0 %v7728
        %7768 = vmatpush1.msra.mxu0 %v7727
        %7769 = vmatprep.subr.mxu0 %v7730
        %7770 = vmatpush1.msra.mxu0 %v7729
        %7771 = vmatprep.subr.mxu0 %v7732
        %7772 = vmatpush1.msra.mxu0 %v7731
        %7773 = vmatprep.subr.mxu0 %v7734
        %7774 = vmatpush1.msra.mxu0 %v7733
        %7775 = vmatprep.subr.mxu0 0.0
        %7776 = vmatpush1.msra.mxu0 0.0
        %7777 = vmatprep.subr.mxu0 0.0
        %7778 = vmatpush1.msra.mxu0 0.0
        %7779 = vmatprep.subr.mxu0 0.0
        %7780 = vmatpush1.msra.mxu0 0.0
        %7781 = vmatprep.subr.mxu0 0.0
        %7782 = vmatpush1.msra.mxu0 0.0
        %7783 = vmatprep.subr.mxu0 0.0
        %7784 = vmatpush1.msra.mxu0 0.0
        %7785 = vmatprep.subr.mxu0 0.0
        %7786 = vmatpush1.msra.mxu0 0.0
        %7787 = vmatprep.subr.mxu0 0.0
        %7788 = vmatpush1.msra.mxu0 0.0
        %7789 = vmatprep.subr.mxu0 0.0
        %7790 = vmatpush1.msra.mxu0 0.0
        %7791 = vmatprep.subr.mxu0 0.0
        %7792 = vmatpush1.msra.mxu0 0.0
        %7793 = vmatprep.subr.mxu0 0.0
        %7794 = vmatpush1.msra.mxu0 0.0
        %7795 = vmatprep.subr.mxu0 0.0
        %7796 = vmatpush1.msra.mxu0 0.0
        %7797 = vmatprep.subr.mxu0 0.0
        %7798 = vmatpush1.msra.mxu0 0.0
        %7799 = vmatprep.subr.mxu0 0.0
        %7800 = vmatpush1.msra.mxu0 0.0
        %7801 = vmatprep.subr.mxu0 0.0
        %7802 = vmatpush1.msra.mxu0 0.0
        %7803 = vmatprep.subr.mxu0 0.0
        %7804 = vmatpush1.msra.mxu0 0.0
        %7805 = vmatprep.subr.mxu0 0.0
        %7806 = vmatpush1.msra.mxu0 0.0
        %7807 = vmatprep.subr.mxu0 0.0
        %7808 = vmatpush1.msra.mxu0 0.0
        %7809 = vmatprep.subr.mxu0 0.0
        %7810 = vmatpush1.msra.mxu0 0.0
        %7811 = vmatprep.subr.mxu0 0.0
        %7812 = vmatpush1.msra.mxu0 0.0
        %7813 = vmatprep.subr.mxu0 0.0
        %7814 = vmatpush1.msra.mxu0 0.0
        %7815 = vmatprep.subr.mxu0 0.0
        %7816 = vmatpush1.msra.mxu0 0.0
        %7817 = vmatprep.subr.mxu0 0.0
        %7818 = vmatpush1.msra.mxu0 0.0
        %7819 = vmatprep.subr.mxu0 0.0
        %7820 = vmatpush1.msra.mxu0 0.0
        %7821 = vmatprep.subr.mxu0 0.0
        %7822 = vmatpush1.msra.mxu0 0.0
        %7823 = vmatprep.mubr.f32.mxu0 0.0
        %7824 = vmatmul.mubr.f32.gmra.mrb[0].mxu0 %v7736
        %v7825 = vpop.f32.mrb[0].mxu0
        %v7826 = vadd.f32 0.0, %v7825
        %v7827 = vpop.f32.mrb[0].mxu0
        %v7828 = vadd.f32 0.0, %v7827
        %7829 = vmatprep.mubr.f32.mxu0 0.0
        %7830 = vmatmul.mubr.f32.gmra.mrb[0].mxu0 %v7739
        %v7831 = vpop.f32.mrb[0].mxu0
        %v7832 = vadd.f32 0.0, %v7831
        %v7833 = vpop.f32.mrb[0].mxu0
        %v7834 = vadd.f32 0.0, %v7833
        %7835 = vmatprep.mubr.f32.mxu0 0.0
        %7836 = vmatmul.mubr.f32.gmra.mrb[0].mxu0 %v7742
        %v7837 = vpop.f32.mrb[0].mxu0
        %v7838 = vadd.f32 0.0, %v7837
        %v7839 = vpop.f32.mrb[0].mxu0
        %v7840 = vadd.f32 0.0, %v7839
        %7841 = vmatprep.mubr.f32.mxu0 0.0
        %7842 = vmatmul.mubr.f32.gmra.mrb[0].mxu0 %v7745
        %v7843 = vpop.f32.mrb[0].mxu0
        %v7844 = vadd.f32 0.0, %v7843
        %v7845 = vpop.f32.mrb[0].mxu0
        %v7846 = vadd.f32 0.0, %v7845
        %7847 = vmatprep.mubr.f32.mxu0 0.0
        %7848 = vmatmul.mubr.f32.gmra.mrb[0].mxu0 %v7748
        %v7849 = vpop.f32.mrb[0].mxu0
        %v7850 = vadd.f32 0.0, %v7849
        %v7851 = vpop.f32.mrb[0].mxu0
        %v7852 = vadd.f32 0.0, %v7851
        %7853 = vmatprep.mubr.f32.mxu0 0.0
        %7854 = vmatmul.mubr.f32.gmra.mrb[0].mxu0 %v7751
        %v7855 = vpop.f32.mrb[0].mxu0
        %v7856 = vadd.f32 0.0, %v7855
        %v7857 = vpop.f32.mrb[0].mxu0
        %v7858 = vadd.f32 0.0, %v7857
        %7859 = vmatprep.mubr.f32.mxu0 0.0
        %7860 = vmatmul.mubr.f32.gmra.mrb[0].mxu0 %v7754
        %v7861 = vpop.f32.mrb[0].mxu0
        %v7862 = vadd.f32 0.0, %v7861
        %v7863 = vpop.f32.mrb[0].mxu0
        %v7864 = vadd.f32 0.0, %v7863
        %7865 = vmatprep.mubr.f32.mxu0 0.0
        %7866 = vmatmul.mubr.f32.gmra.mrb[0].mxu0 %v7757
        %v7867 = vpop.f32.mrb[0].mxu0
        %v7868 = vadd.f32 0.0, %v7867
        %v7869 = vpop.f32.mrb[0].mxu0
        %v7870 = vadd.f32 0.0, %v7869
        %7871 = vdwg.mxu0
        %7872 = vmatprep.subr.mxu0 %v3637
        %7873 = vmatpush1.msra.mxu0 %v3636
        %7874 = vmatprep.subr.mxu0 %v3639
        %7875 = vmatpush1.msra.mxu0 %v3638
        %7876 = vmatprep.subr.mxu0 %v3641
        %7877 = vmatpush1.msra.mxu0 %v3640
        %7878 = vmatprep.subr.mxu0 %v3643
        %7879 = vmatpush1.msra.mxu0 %v3642
        %7880 = vmatprep.subr.mxu0 %v3645
        %7881 = vmatpush1.msra.mxu0 %v3644
        %7882 = vmatprep.subr.mxu0 %v3647
        %7883 = vmatpush1.msra.mxu0 %v3646
        %7884 = vmatprep.subr.mxu0 %v3649
        %7885 = vmatpush1.msra.mxu0 %v3648
        %7886 = vmatprep.subr.mxu0 %v3651
        %7887 = vmatpush1.msra.mxu0 %v3650
        %7888 = vmatprep.subr.mxu0 %v3653
        %7889 = vmatpush1.msra.mxu0 %v3652
        %7890 = vmatprep.subr.mxu0 %v3655
        %7891 = vmatpush1.msra.mxu0 %v3654
        %7892 = vmatprep.subr.mxu0 %v3657
        %7893 = vmatpush1.msra.mxu0 %v3656
        %7894 = vmatprep.subr.mxu0 %v3659
        %7895 = vmatpush1.msra.mxu0 %v3658
        %7896 = vmatprep.subr.mxu0 %v3661
        %7897 = vmatpush1.msra.mxu0 %v3660
        %7898 = vmatprep.subr.mxu0 %v3663
        %7899 = vmatpush1.msra.mxu0 %v3662
        %7900 = vmatprep.subr.mxu0 %v3665
        %7901 = vmatpush1.msra.mxu0 %v3664
        %7902 = vmatprep.subr.mxu0 %v3667
        %7903 = vmatpush1.msra.mxu0 %v3666
        %7904 = vmatprep.subr.mxu0 0.0
        %7905 = vmatpush1.msra.mxu0 0.0
        %7906 = vmatprep.subr.mxu0 0.0
        %7907 = vmatpush1.msra.mxu0 0.0
        %7908 = vmatprep.subr.mxu0 0.0
        %7909 = vmatpush1.msra.mxu0 0.0
        %7910 = vmatprep.subr.mxu0 0.0
        %7911 = vmatpush1.msra.mxu0 0.0
        %7912 = vmatprep.subr.mxu0 0.0
        %7913 = vmatpush1.msra.mxu0 0.0
        %7914 = vmatprep.subr.mxu0 0.0
        %7915 = vmatpush1.msra.mxu0 0.0
        %7916 = vmatprep.subr.mxu0 0.0
        %7917 = vmatpush1.msra.mxu0 0.0
        %7918 = vmatprep.subr.mxu0 0.0
        %7919 = vmatpush1.msra.mxu0 0.0
        %7920 = vmatprep.subr.mxu0 0.0
        %7921 = vmatpush1.msra.mxu0 0.0
        %7922 = vmatprep.subr.mxu0 0.0
        %7923 = vmatpush1.msra.mxu0 0.0
        %7924 = vmatprep.subr.mxu0 0.0
        %7925 = vmatpush1.msra.mxu0 0.0
        %7926 = vmatprep.subr.mxu0 0.0
        %7927 = vmatpush1.msra.mxu0 0.0
        %7928 = vmatprep.subr.mxu0 0.0
        %7929 = vmatpush1.msra.mxu0 0.0
        %7930 = vmatprep.subr.mxu0 0.0
        %7931 = vmatpush1.msra.mxu0 0.0
        %7932 = vmatprep.subr.mxu0 0.0
        %7933 = vmatpush1.msra.mxu0 0.0
        %7934 = vmatprep.subr.mxu0 0.0
        %7935 = vmatpush1.msra.mxu0 0.0
        %7936 = vmatprep.mubr.f32.mxu0 0.0
        %7937 = vmatmul.mubr.f32.gmra.mrb[0].mxu0 %v7528
        %v7938 = vpop.f32.mrb[0].mxu0
        %v7939 = vadd.f32 %v7569, %v7938
        %v7940 = vpop.f32.mrb[0].mxu0
        %v7941 = vadd.f32 %v7569, %v7940
        %7942 = vmatprep.mubr.f32.mxu0 0.0
        %7943 = vmatmul.mubr.f32.gmra.mrb[0].mxu0 %v7533
        %v7944 = vpop.f32.mrb[0].mxu0
        %v7945 = vadd.f32 %v7574, %v7944
        %v7946 = vpop.f32.mrb[0].mxu0
        %v7947 = vadd.f32 %v7574, %v7946
        %7948 = vmatprep.mubr.f32.mxu0 0.0
        %7949 = vmatmul.mubr.f32.gmra.mrb[0].mxu0 %v7538
        %v7950 = vpop.f32.mrb[0].mxu0
        %v7951 = vadd.f32 %v7579, %v7950
        %v7952 = vpop.f32.mrb[0].mxu0
        %v7953 = vadd.f32 %v7579, %v7952
        %7954 = vmatprep.mubr.f32.mxu0 0.0
        %7955 = vmatmul.mubr.f32.gmra.mrb[0].mxu0 %v7543
        %v7956 = vpop.f32.mrb[0].mxu0
        %v7957 = vadd.f32 %v7584, %v7956
        %v7958 = vpop.f32.mrb[0].mxu0
        %v7959 = vadd.f32 %v7584, %v7958
        %7960 = vmatprep.mubr.f32.mxu0 0.0
        %7961 = vmatmul.mubr.f32.gmra.mrb[0].mxu0 %v7548
        %v7962 = vpop.f32.mrb[0].mxu0
        %v7963 = vadd.f32 %v7589, %v7962
        %v7964 = vpop.f32.mrb[0].mxu0
        %v7965 = vadd.f32 %v7589, %v7964
        %7966 = vmatprep.mubr.f32.mxu0 0.0
        %7967 = vmatmul.mubr.f32.gmra.mrb[0].mxu0 %v7553
        %v7968 = vpop.f32.mrb[0].mxu0
        %v7969 = vadd.f32 %v7594, %v7968
        %v7970 = vpop.f32.mrb[0].mxu0
        %v7971 = vadd.f32 %v7594, %v7970
        %7972 = vmatprep.mubr.f32.mxu0 0.0
        %7973 = vmatmul.mubr.f32.gmra.mrb[0].mxu0 %v7558
        %v7974 = vpop.f32.mrb[0].mxu0
        %v7975 = vadd.f32 %v7599, %v7974
        %v7976 = vpop.f32.mrb[0].mxu0
        %v7977 = vadd.f32 %v7599, %v7976
        %7978 = vmatprep.mubr.f32.mxu0 0.0
        %7979 = vmatmul.mubr.f32.gmra.mrb[0].mxu0 %v7563
        %v7980 = vpop.f32.mrb[0].mxu0
        %v7981 = vadd.f32 %v7604, %v7980
        %v7982 = vpop.f32.mrb[0].mxu0
        %v7983 = vadd.f32 %v7604, %v7982
        %7984 = vdwg.mxu0
        %v7985 = vmax.f32 %v7939, 0.0
        %v7986 = vmax.f32 %v7941, 0.0
        %v7987 = vmax.f32 %v7945, 0.0
        %v7988 = vmax.f32 %v7947, 0.0
        %v7989 = vmax.f32 %v7951, 0.0
        %v7990 = vmax.f32 %v7953, 0.0
        %v7991 = vmax.f32 %v7957, 0.0
        %v7992 = vmax.f32 %v7959, 0.0
        %v7993 = vmax.f32 %v7963, 0.0
        %v7994 = vmax.f32 %v7965, 0.0
        %v7995 = vmax.f32 %v7969, 0.0
        %v7996 = vmax.f32 %v7971, 0.0
        %v7997 = vmax.f32 %v7975, 0.0
        %v7998 = vmax.f32 %v7977, 0.0
        %v7999 = vmax.f32 %v7981, 0.0
        %v8000 = vmax.f32 %v7983, 0.0
        %8001 = vmatprep.subr.mxu0 %v7986
        %8002 = vmatpush1.msra.mxu0 %v7985
        %8003 = vmatprep.subr.mxu0 %v7988
        %8004 = vmatpush1.msra.mxu0 %v7987
        %8005 = vmatprep.subr.mxu0 %v7990
        %8006 = vmatpush1.msra.mxu0 %v7989
        %8007 = vmatprep.subr.mxu0 %v7992
        %8008 = vmatpush1.msra.mxu0 %v7991
        %8009 = vmatprep.subr.mxu0 %v7994
        %8010 = vmatpush1.msra.mxu0 %v7993
        %8011 = vmatprep.subr.mxu0 %v7996
        %8012 = vmatpush1.msra.mxu0 %v7995
        %8013 = vmatprep.subr.mxu0 %v7998
        %8014 = vmatpush1.msra.mxu0 %v7997
        %8015 = vmatprep.subr.mxu0 %v8000
        %8016 = vmatpush1.msra.mxu0 %v7999
        %8017 = vmatprep.subr.mxu0 0.0
        %8018 = vmatpush1.msra.mxu0 0.0
        %8019 = vmatprep.subr.mxu0 0.0
        %8020 = vmatpush1.msra.mxu0 0.0
        %8021 = vmatprep.subr.mxu0 0.0
        %8022 = vmatpush1.msra.mxu0 0.0
        %8023 = vmatprep.subr.mxu0 0.0
        %8024 = vmatpush1.msra.mxu0 0.0
        %8025 = vmatprep.subr.mxu0 0.0
        %8026 = vmatpush1.msra.mxu0 0.0
        %8027 = vmatprep.subr.mxu0 0.0
        %8028 = vmatpush1.msra.mxu0 0.0
        %8029 = vmatprep.subr.mxu0 0.0
        %8030 = vmatpush1.msra.mxu0 0.0
        %8031 = vmatprep.subr.mxu0 0.0
        %8032 = vmatpush1.msra.mxu0 0.0
        %8033 = vmatprep.subr.mxu0 0.0
        %8034 = vmatpush1.msra.mxu0 0.0
        %8035 = vmatprep.subr.mxu0 0.0
        %8036 = vmatpush1.msra.mxu0 0.0
        %8037 = vmatprep.subr.mxu0 0.0
        %8038 = vmatpush1.msra.mxu0 0.0
        %8039 = vmatprep.subr.mxu0 0.0
        %8040 = vmatpush1.msra.mxu0 0.0
        %8041 = vmatprep.subr.mxu0 0.0
        %8042 = vmatpush1.msra.mxu0 0.0
        %8043 = vmatprep.subr.mxu0 0.0
        %8044 = vmatpush1.msra.mxu0 0.0
        %8045 = vmatprep.subr.mxu0 0.0
        %8046 = vmatpush1.msra.mxu0 0.0
        %8047 = vmatprep.subr.mxu0 0.0
        %8048 = vmatpush1.msra.mxu0 0.0
        %8049 = vmatprep.subr.mxu0 0.0
        %8050 = vmatpush1.msra.mxu0 0.0
        %8051 = vmatprep.subr.mxu0 0.0
        %8052 = vmatpush1.msra.mxu0 0.0
        %8053 = vmatprep.subr.mxu0 0.0
        %8054 = vmatpush1.msra.mxu0 0.0
        %8055 = vmatprep.subr.mxu0 0.0
        %8056 = vmatpush1.msra.mxu0 0.0
        %8057 = vmatprep.subr.mxu0 0.0
        %8058 = vmatpush1.msra.mxu0 0.0
        %8059 = vmatprep.subr.mxu0 0.0
        %8060 = vmatpush1.msra.mxu0 0.0
        %8061 = vmatprep.subr.mxu0 0.0
        %8062 = vmatpush1.msra.mxu0 0.0
        %8063 = vmatprep.subr.mxu0 0.0
        %8064 = vmatpush1.msra.mxu0 0.0
        %8065 = vmatprep.mubr.f32.mxu0 0.0
        %8066 = vmatmul.mubr.f32.gmra.mrb[0].mxu0 %v7736
        %v8067 = vpop.f32.mrb[0].mxu0
        %v8068 = vadd.f32 0.0, %v8067
        %v8069 = vpop.f32.mrb[0].mxu0
        %v8070 = vadd.f32 0.0, %v8069
        %8071 = vmatprep.mubr.f32.mxu0 0.0
        %8072 = vmatmul.mubr.f32.gmra.mrb[0].mxu0 %v7739
        %v8073 = vpop.f32.mrb[0].mxu0
        %v8074 = vadd.f32 0.0, %v8073
        %v8075 = vpop.f32.mrb[0].mxu0
        %v8076 = vadd.f32 0.0, %v8075
        %8077 = vmatprep.mubr.f32.mxu0 0.0
        %8078 = vmatmul.mubr.f32.gmra.mrb[0].mxu0 %v7742
        %v8079 = vpop.f32.mrb[0].mxu0
        %v8080 = vadd.f32 0.0, %v8079
        %v8081 = vpop.f32.mrb[0].mxu0
        %v8082 = vadd.f32 0.0, %v8081
        %8083 = vmatprep.mubr.f32.mxu0 0.0
        %8084 = vmatmul.mubr.f32.gmra.mrb[0].mxu0 %v7745
        %v8085 = vpop.f32.mrb[0].mxu0
        %v8086 = vadd.f32 0.0, %v8085
        %v8087 = vpop.f32.mrb[0].mxu0
        %v8088 = vadd.f32 0.0, %v8087
        %8089 = vmatprep.mubr.f32.mxu0 0.0
        %8090 = vmatmul.mubr.f32.gmra.mrb[0].mxu0 %v7748
        %v8091 = vpop.f32.mrb[0].mxu0
        %v8092 = vadd.f32 0.0, %v8091
        %v8093 = vpop.f32.mrb[0].mxu0
        %v8094 = vadd.f32 0.0, %v8093
        %8095 = vmatprep.mubr.f32.mxu0 0.0
        %8096 = vmatmul.mubr.f32.gmra.mrb[0].mxu0 %v7751
        %v8097 = vpop.f32.mrb[0].mxu0
        %v8098 = vadd.f32 0.0, %v8097
        %v8099 = vpop.f32.mrb[0].mxu0
        %v8100 = vadd.f32 0.0, %v8099
        %8101 = vmatprep.mubr.f32.mxu0 0.0
        %8102 = vmatmul.mubr.f32.gmra.mrb[0].mxu0 %v7754
        %v8103 = vpop.f32.mrb[0].mxu0
        %v8104 = vadd.f32 0.0, %v8103
        %v8105 = vpop.f32.mrb[0].mxu0
        %v8106 = vadd.f32 0.0, %v8105
        %8107 = vmatprep.mubr.f32.mxu0 0.0
        %8108 = vmatmul.mubr.f32.gmra.mrb[0].mxu0 %v7757
        %v8109 = vpop.f32.mrb[0].mxu0
        %v8110 = vadd.f32 0.0, %v8109
        %v8111 = vpop.f32.mrb[0].mxu0
        %v8112 = vadd.f32 0.0, %v8111
        %8113 = vdwg.mxu0
        %v8114 = vmax.f32 %v7826, %v8068
        %v8115 = vmax.f32 %v7828, %v8070
        %v8116 = vmax.f32 %v7832, %v8074
        %v8117 = vmax.f32 %v7834, %v8076
        %v8118 = vmax.f32 %v7838, %v8080
        %v8119 = vmax.f32 %v7840, %v8082
        %v8120 = vmax.f32 %v7844, %v8086
        %v8121 = vmax.f32 %v7846, %v8088
        %v8122 = vmax.f32 %v7850, %v8092
        %v8123 = vmax.f32 %v7852, %v8094
        %v8124 = vmax.f32 %v7856, %v8098
        %v8125 = vmax.f32 %v7858, %v8100
        %v8126 = vmax.f32 %v7862, %v8104
        %v8127 = vmax.f32 %v7864, %v8106
        %v8128 = vmax.f32 %v7868, %v8110
        %v8129 = vmax.f32 %v7870, %v8112
        %8130 = vmatprep.subr.mxu0 %v3943
        %8131 = vmatpush1.msra.mxu0 %v3942
        %8132 = vmatprep.subr.mxu0 %v3945
        %8133 = vmatpush1.msra.mxu0 %v3944
        %8134 = vmatprep.subr.mxu0 %v3947
        %8135 = vmatpush1.msra.mxu0 %v3946
        %8136 = vmatprep.subr.mxu0 %v3949
        %8137 = vmatpush1.msra.mxu0 %v3948
        %8138 = vmatprep.subr.mxu0 %v3951
        %8139 = vmatpush1.msra.mxu0 %v3950
        %8140 = vmatprep.subr.mxu0 %v3953
        %8141 = vmatpush1.msra.mxu0 %v3952
        %8142 = vmatprep.subr.mxu0 %v3955
        %8143 = vmatpush1.msra.mxu0 %v3954
        %8144 = vmatprep.subr.mxu0 %v3957
        %8145 = vmatpush1.msra.mxu0 %v3956
        %8146 = vmatprep.subr.mxu0 %v3959
        %8147 = vmatpush1.msra.mxu0 %v3958
        %8148 = vmatprep.subr.mxu0 %v3961
        %8149 = vmatpush1.msra.mxu0 %v3960
        %8150 = vmatprep.subr.mxu0 %v3963
        %8151 = vmatpush1.msra.mxu0 %v3962
        %8152 = vmatprep.subr.mxu0 %v3965
        %8153 = vmatpush1.msra.mxu0 %v3964
        %8154 = vmatprep.subr.mxu0 %v3967
        %8155 = vmatpush1.msra.mxu0 %v3966
        %8156 = vmatprep.subr.mxu0 %v3969
        %8157 = vmatpush1.msra.mxu0 %v3968
        %8158 = vmatprep.subr.mxu0 %v3971
        %8159 = vmatpush1.msra.mxu0 %v3970
        %8160 = vmatprep.subr.mxu0 %v3973
        %8161 = vmatpush1.msra.mxu0 %v3972
        %8162 = vmatprep.subr.mxu0 0.0
        %8163 = vmatpush1.msra.mxu0 0.0
        %8164 = vmatprep.subr.mxu0 0.0
        %8165 = vmatpush1.msra.mxu0 0.0
        %8166 = vmatprep.subr.mxu0 0.0
        %8167 = vmatpush1.msra.mxu0 0.0
        %8168 = vmatprep.subr.mxu0 0.0
        %8169 = vmatpush1.msra.mxu0 0.0
        %8170 = vmatprep.subr.mxu0 0.0
        %8171 = vmatpush1.msra.mxu0 0.0
        %8172 = vmatprep.subr.mxu0 0.0
        %8173 = vmatpush1.msra.mxu0 0.0
        %8174 = vmatprep.subr.mxu0 0.0
        %8175 = vmatpush1.msra.mxu0 0.0
        %8176 = vmatprep.subr.mxu0 0.0
        %8177 = vmatpush1.msra.mxu0 0.0
        %8178 = vmatprep.subr.mxu0 0.0
        %8179 = vmatpush1.msra.mxu0 0.0
        %8180 = vmatprep.subr.mxu0 0.0
        %8181 = vmatpush1.msra.mxu0 0.0
        %8182 = vmatprep.subr.mxu0 0.0
        %8183 = vmatpush1.msra.mxu0 0.0
        %8184 = vmatprep.subr.mxu0 0.0
        %8185 = vmatpush1.msra.mxu0 0.0
        %8186 = vmatprep.subr.mxu0 0.0
        %8187 = vmatpush1.msra.mxu0 0.0
        %8188 = vmatprep.subr.mxu0 0.0
        %8189 = vmatpush1.msra.mxu0 0.0
        %8190 = vmatprep.subr.mxu0 0.0
        %8191 = vmatpush1.msra.mxu0 0.0
        %8192 = vmatprep.subr.mxu0 0.0
        %8193 = vmatpush1.msra.mxu0 0.0
        %8194 = vmatprep.mubr.f32.mxu0 0.0
        %8195 = vmatmul.mubr.f32.gmra.mrb[0].mxu0 %v7528
        %v8196 = vpop.f32.mrb[0].mxu0
        %v8197 = vadd.f32 %v7569, %v8196
        %v8198 = vpop.f32.mrb[0].mxu0
        %v8199 = vadd.f32 %v7569, %v8198
        %8200 = vmatprep.mubr.f32.mxu0 0.0
        %8201 = vmatmul.mubr.f32.gmra.mrb[0].mxu0 %v7533
        %v8202 = vpop.f32.mrb[0].mxu0
        %v8203 = vadd.f32 %v7574, %v8202
        %v8204 = vpop.f32.mrb[0].mxu0
        %v8205 = vadd.f32 %v7574, %v8204
        %8206 = vmatprep.mubr.f32.mxu0 0.0
        %8207 = vmatmul.mubr.f32.gmra.mrb[0].mxu0 %v7538
        %v8208 = vpop.f32.mrb[0].mxu0
        %v8209 = vadd.f32 %v7579, %v8208
        %v8210 = vpop.f32.mrb[0].mxu0
        %v8211 = vadd.f32 %v7579, %v8210
        %8212 = vmatprep.mubr.f32.mxu0 0.0
        %8213 = vmatmul.mubr.f32.gmra.mrb[0].mxu0 %v7543
        %v8214 = vpop.f32.mrb[0].mxu0
        %v8215 = vadd.f32 %v7584, %v8214
        %v8216 = vpop.f32.mrb[0].mxu0
        %v8217 = vadd.f32 %v7584, %v8216
        %8218 = vmatprep.mubr.f32.mxu0 0.0
        %8219 = vmatmul.mubr.f32.gmra.mrb[0].mxu0 %v7548
        %v8220 = vpop.f32.mrb[0].mxu0
        %v8221 = vadd.f32 %v7589, %v8220
        %v8222 = vpop.f32.mrb[0].mxu0
        %v8223 = vadd.f32 %v7589, %v8222
        %8224 = vmatprep.mubr.f32.mxu0 0.0
        %8225 = vmatmul.mubr.f32.gmra.mrb[0].mxu0 %v7553
        %v8226 = vpop.f32.mrb[0].mxu0
        %v8227 = vadd.f32 %v7594, %v8226
        %v8228 = vpop.f32.mrb[0].mxu0
        %v8229 = vadd.f32 %v7594, %v8228
        %8230 = vmatprep.mubr.f32.mxu0 0.0
        %8231 = vmatmul.mubr.f32.gmra.mrb[0].mxu0 %v7558
        %v8232 = vpop.f32.mrb[0].mxu0
        %v8233 = vadd.f32 %v7599, %v8232
        %v8234 = vpop.f32.mrb[0].mxu0
        %v8235 = vadd.f32 %v7599, %v8234
        %8236 = vmatprep.mubr.f32.mxu0 0.0
        %8237 = vmatmul.mubr.f32.gmra.mrb[0].mxu0 %v7563
        %v8238 = vpop.f32.mrb[0].mxu0
        %v8239 = vadd.f32 %v7604, %v8238
        %v8240 = vpop.f32.mrb[0].mxu0
        %v8241 = vadd.f32 %v7604, %v8240
        %8242 = vdwg.mxu0
        %v8243 = vmax.f32 %v8197, 0.0
        %v8244 = vmax.f32 %v8199, 0.0
        %v8245 = vmax.f32 %v8203, 0.0
        %v8246 = vmax.f32 %v8205, 0.0
        %v8247 = vmax.f32 %v8209, 0.0
        %v8248 = vmax.f32 %v8211, 0.0
        %v8249 = vmax.f32 %v8215, 0.0
        %v8250 = vmax.f32 %v8217, 0.0
        %v8251 = vmax.f32 %v8221, 0.0
        %v8252 = vmax.f32 %v8223, 0.0
        %v8253 = vmax.f32 %v8227, 0.0
        %v8254 = vmax.f32 %v8229, 0.0
        %v8255 = vmax.f32 %v8233, 0.0
        %v8256 = vmax.f32 %v8235, 0.0
        %v8257 = vmax.f32 %v8239, 0.0
        %v8258 = vmax.f32 %v8241, 0.0
        %8259 = vmatprep.subr.mxu0 %v8244
        %8260 = vmatpush1.msra.mxu0 %v8243
        %8261 = vmatprep.subr.mxu0 %v8246
        %8262 = vmatpush1.msra.mxu0 %v8245
        %8263 = vmatprep.subr.mxu0 %v8248
        %8264 = vmatpush1.msra.mxu0 %v8247
        %8265 = vmatprep.subr.mxu0 %v8250
        %8266 = vmatpush1.msra.mxu0 %v8249
        %8267 = vmatprep.subr.mxu0 %v8252
        %8268 = vmatpush1.msra.mxu0 %v8251
        %8269 = vmatprep.subr.mxu0 %v8254
        %8270 = vmatpush1.msra.mxu0 %v8253
        %8271 = vmatprep.subr.mxu0 %v8256
        %8272 = vmatpush1.msra.mxu0 %v8255
        %8273 = vmatprep.subr.mxu0 %v8258
        %8274 = vmatpush1.msra.mxu0 %v8257
        %8275 = vmatprep.subr.mxu0 0.0
        %8276 = vmatpush1.msra.mxu0 0.0
        %8277 = vmatprep.subr.mxu0 0.0
        %8278 = vmatpush1.msra.mxu0 0.0
        %8279 = vmatprep.subr.mxu0 0.0
        %8280 = vmatpush1.msra.mxu0 0.0
        %8281 = vmatprep.subr.mxu0 0.0
        %8282 = vmatpush1.msra.mxu0 0.0
        %8283 = vmatprep.subr.mxu0 0.0
        %8284 = vmatpush1.msra.mxu0 0.0
        %8285 = vmatprep.subr.mxu0 0.0
        %8286 = vmatpush1.msra.mxu0 0.0
        %8287 = vmatprep.subr.mxu0 0.0
        %8288 = vmatpush1.msra.mxu0 0.0
        %8289 = vmatprep.subr.mxu0 0.0
        %8290 = vmatpush1.msra.mxu0 0.0
        %8291 = vmatprep.subr.mxu0 0.0
        %8292 = vmatpush1.msra.mxu0 0.0
        %8293 = vmatprep.subr.mxu0 0.0
        %8294 = vmatpush1.msra.mxu0 0.0
        %8295 = vmatprep.subr.mxu0 0.0
        %8296 = vmatpush1.msra.mxu0 0.0
        %8297 = vmatprep.subr.mxu0 0.0
        %8298 = vmatpush1.msra.mxu0 0.0
        %8299 = vmatprep.subr.mxu0 0.0
        %8300 = vmatpush1.msra.mxu0 0.0
        %8301 = vmatprep.subr.mxu0 0.0
        %8302 = vmatpush1.msra.mxu0 0.0
        %8303 = vmatprep.subr.mxu0 0.0
        %8304 = vmatpush1.msra.mxu0 0.0
        %8305 = vmatprep.subr.mxu0 0.0
        %8306 = vmatpush1.msra.mxu0 0.0
        %8307 = vmatprep.subr.mxu0 0.0
        %8308 = vmatpush1.msra.mxu0 0.0
        %8309 = vmatprep.subr.mxu0 0.0
        %8310 = vmatpush1.msra.mxu0 0.0
        %8311 = vmatprep.subr.mxu0 0.0
        %8312 = vmatpush1.msra.mxu0 0.0
        %8313 = vmatprep.subr.mxu0 0.0
        %8314 = vmatpush1.msra.mxu0 0.0
        %8315 = vmatprep.subr.mxu0 0.0
        %8316 = vmatpush1.msra.mxu0 0.0
        %8317 = vmatprep.subr.mxu0 0.0
        %8318 = vmatpush1.msra.mxu0 0.0
        %8319 = vmatprep.subr.mxu0 0.0
        %8320 = vmatpush1.msra.mxu0 0.0
        %8321 = vmatprep.subr.mxu0 0.0
        %8322 = vmatpush1.msra.mxu0 0.0
        %8323 = vmatprep.mubr.f32.mxu0 0.0
        %8324 = vmatmul.mubr.f32.gmra.mrb[0].mxu0 %v7736
        %v8325 = vpop.f32.mrb[0].mxu0
        %v8326 = vadd.f32 0.0, %v8325
        %v8327 = vpop.f32.mrb[0].mxu0
        %v8328 = vadd.f32 0.0, %v8327
        %8329 = vmatprep.mubr.f32.mxu0 0.0
        %8330 = vmatmul.mubr.f32.gmra.mrb[0].mxu0 %v7739
        %v8331 = vpop.f32.mrb[0].mxu0
        %v8332 = vadd.f32 0.0, %v8331
        %v8333 = vpop.f32.mrb[0].mxu0
        %v8334 = vadd.f32 0.0, %v8333
        %8335 = vmatprep.mubr.f32.mxu0 0.0
        %8336 = vmatmul.mubr.f32.gmra.mrb[0].mxu0 %v7742
        %v8337 = vpop.f32.mrb[0].mxu0
        %v8338 = vadd.f32 0.0, %v8337
        %v8339 = vpop.f32.mrb[0].mxu0
        %v8340 = vadd.f32 0.0, %v8339
        %8341 = vmatprep.mubr.f32.mxu0 0.0
        %8342 = vmatmul.mubr.f32.gmra.mrb[0].mxu0 %v7745
        %v8343 = vpop.f32.mrb[0].mxu0
        %v8344 = vadd.f32 0.0, %v8343
        %v8345 = vpop.f32.mrb[0].mxu0
        %v8346 = vadd.f32 0.0, %v8345
        %8347 = vmatprep.mubr.f32.mxu0 0.0
        %8348 = vmatmul.mubr.f32.gmra.mrb[0].mxu0 %v7748
        %v8349 = vpop.f32.mrb[0].mxu0
        %v8350 = vadd.f32 0.0, %v8349
        %v8351 = vpop.f32.mrb[0].mxu0
        %v8352 = vadd.f32 0.0, %v8351
        %8353 = vmatprep.mubr.f32.mxu0 0.0
        %8354 = vmatmul.mubr.f32.gmra.mrb[0].mxu0 %v7751
        %v8355 = vpop.f32.mrb[0].mxu0
        %v8356 = vadd.f32 0.0, %v8355
        %v8357 = vpop.f32.mrb[0].mxu0
        %v8358 = vadd.f32 0.0, %v8357
        %8359 = vmatprep.mubr.f32.mxu0 0.0
        %8360 = vmatmul.mubr.f32.gmra.mrb[0].mxu0 %v7754
        %v8361 = vpop.f32.mrb[0].mxu0
        %v8362 = vadd.f32 0.0, %v8361
        %v8363 = vpop.f32.mrb[0].mxu0
        %v8364 = vadd.f32 0.0, %v8363
        %8365 = vmatprep.mubr.f32.mxu0 0.0
        %8366 = vmatmul.mubr.f32.gmra.mrb[0].mxu0 %v7757
        %v8367 = vpop.f32.mrb[0].mxu0
        %v8368 = vadd.f32 0.0, %v8367
        %v8369 = vpop.f32.mrb[0].mxu0
        %v8370 = vadd.f32 0.0, %v8369
        %8371 = vdwg.mxu0
        %v8372 = vmax.f32 %v8114, %v8326
        %v8373 = vmax.f32 %v8115, %v8328
        %v8374 = vmax.f32 %v8116, %v8332
        %v8375 = vmax.f32 %v8117, %v8334
        %v8376 = vmax.f32 %v8118, %v8338
        %v8377 = vmax.f32 %v8119, %v8340
        %v8378 = vmax.f32 %v8120, %v8344
        %v8379 = vmax.f32 %v8121, %v8346
        %v8380 = vmax.f32 %v8122, %v8350
        %v8381 = vmax.f32 %v8123, %v8352
        %v8382 = vmax.f32 %v8124, %v8356
        %v8383 = vmax.f32 %v8125, %v8358
        %v8384 = vmax.f32 %v8126, %v8362
        %v8385 = vmax.f32 %v8127, %v8364
        %v8386 = vmax.f32 %v8128, %v8368
        %v8387 = vmax.f32 %v8129, %v8370
        %8388 = vmatprep.subr.mxu0 %v4249
        %8389 = vmatpush1.msra.mxu0 %v4248
        %8390 = vmatprep.subr.mxu0 %v4251
        %8391 = vmatpush1.msra.mxu0 %v4250
        %8392 = vmatprep.subr.mxu0 %v4253
        %8393 = vmatpush1.msra.mxu0 %v4252
        %8394 = vmatprep.subr.mxu0 %v4255
        %8395 = vmatpush1.msra.mxu0 %v4254
        %8396 = vmatprep.subr.mxu0 %v4257
        %8397 = vmatpush1.msra.mxu0 %v4256
        %8398 = vmatprep.subr.mxu0 %v4259
        %8399 = vmatpush1.msra.mxu0 %v4258
        %8400 = vmatprep.subr.mxu0 %v4261
        %8401 = vmatpush1.msra.mxu0 %v4260
        %8402 = vmatprep.subr.mxu0 %v4263
        %8403 = vmatpush1.msra.mxu0 %v4262
        %8404 = vmatprep.subr.mxu0 %v4265
        %8405 = vmatpush1.msra.mxu0 %v4264
        %8406 = vmatprep.subr.mxu0 %v4267
        %8407 = vmatpush1.msra.mxu0 %v4266
        %8408 = vmatprep.subr.mxu0 %v4269
        %8409 = vmatpush1.msra.mxu0 %v4268
        %8410 = vmatprep.subr.mxu0 %v4271
        %8411 = vmatpush1.msra.mxu0 %v4270
        %8412 = vmatprep.subr.mxu0 %v4273
        %8413 = vmatpush1.msra.mxu0 %v4272
        %8414 = vmatprep.subr.mxu0 %v4275
        %8415 = vmatpush1.msra.mxu0 %v4274
        %8416 = vmatprep.subr.mxu0 %v4277
        %8417 = vmatpush1.msra.mxu0 %v4276
        %8418 = vmatprep.subr.mxu0 %v4279
        %8419 = vmatpush1.msra.mxu0 %v4278
        %8420 = vmatprep.subr.mxu0 0.0
        %8421 = vmatpush1.msra.mxu0 0.0
        %8422 = vmatprep.subr.mxu0 0.0
        %8423 = vmatpush1.msra.mxu0 0.0
        %8424 = vmatprep.subr.mxu0 0.0
        %8425 = vmatpush1.msra.mxu0 0.0
        %8426 = vmatprep.subr.mxu0 0.0
        %8427 = vmatpush1.msra.mxu0 0.0
        %8428 = vmatprep.subr.mxu0 0.0
        %8429 = vmatpush1.msra.mxu0 0.0
        %8430 = vmatprep.subr.mxu0 0.0
        %8431 = vmatpush1.msra.mxu0 0.0
        %8432 = vmatprep.subr.mxu0 0.0
        %8433 = vmatpush1.msra.mxu0 0.0
        %8434 = vmatprep.subr.mxu0 0.0
        %8435 = vmatpush1.msra.mxu0 0.0
        %8436 = vmatprep.subr.mxu0 0.0
        %8437 = vmatpush1.msra.mxu0 0.0
        %8438 = vmatprep.subr.mxu0 0.0
        %8439 = vmatpush1.msra.mxu0 0.0
        %8440 = vmatprep.subr.mxu0 0.0
        %8441 = vmatpush1.msra.mxu0 0.0
        %8442 = vmatprep.subr.mxu0 0.0
        %8443 = vmatpush1.msra.mxu0 0.0
        %8444 = vmatprep.subr.mxu0 0.0
        %8445 = vmatpush1.msra.mxu0 0.0
        %8446 = vmatprep.subr.mxu0 0.0
        %8447 = vmatpush1.msra.mxu0 0.0
        %8448 = vmatprep.subr.mxu0 0.0
        %8449 = vmatpush1.msra.mxu0 0.0
        %8450 = vmatprep.subr.mxu0 0.0
        %8451 = vmatpush1.msra.mxu0 0.0
        %8452 = vmatprep.mubr.f32.mxu0 0.0
        %8453 = vmatmul.mubr.f32.gmra.mrb[0].mxu0 %v7528
        %v8454 = vpop.f32.mrb[0].mxu0
        %v8455 = vadd.f32 %v7569, %v8454
        %v8456 = vpop.f32.mrb[0].mxu0
        %v8457 = vadd.f32 %v7569, %v8456
        %8458 = vmatprep.mubr.f32.mxu0 0.0
        %8459 = vmatmul.mubr.f32.gmra.mrb[0].mxu0 %v7533
        %v8460 = vpop.f32.mrb[0].mxu0
        %v8461 = vadd.f32 %v7574, %v8460
        %v8462 = vpop.f32.mrb[0].mxu0
        %v8463 = vadd.f32 %v7574, %v8462
        %8464 = vmatprep.mubr.f32.mxu0 0.0
        %8465 = vmatmul.mubr.f32.gmra.mrb[0].mxu0 %v7538
        %v8466 = vpop.f32.mrb[0].mxu0
        %v8467 = vadd.f32 %v7579, %v8466
        %v8468 = vpop.f32.mrb[0].mxu0
        %v8469 = vadd.f32 %v7579, %v8468
        %8470 = vmatprep.mubr.f32.mxu0 0.0
        %8471 = vmatmul.mubr.f32.gmra.mrb[0].mxu0 %v7543
        %v8472 = vpop.f32.mrb[0].mxu0
        %v8473 = vadd.f32 %v7584, %v8472
        %v8474 = vpop.f32.mrb[0].mxu0
        %v8475 = vadd.f32 %v7584, %v8474
        %8476 = vmatprep.mubr.f32.mxu0 0.0
        %8477 = vmatmul.mubr.f32.gmra.mrb[0].mxu0 %v7548
        %v8478 = vpop.f32.mrb[0].mxu0
        %v8479 = vadd.f32 %v7589, %v8478
        %v8480 = vpop.f32.mrb[0].mxu0
        %v8481 = vadd.f32 %v7589, %v8480
        %8482 = vmatprep.mubr.f32.mxu0 0.0
        %8483 = vmatmul.mubr.f32.gmra.mrb[0].mxu0 %v7553
        %v8484 = vpop.f32.mrb[0].mxu0
        %v8485 = vadd.f32 %v7594, %v8484
        %v8486 = vpop.f32.mrb[0].mxu0
        %v8487 = vadd.f32 %v7594, %v8486
        %8488 = vmatprep.mubr.f32.mxu0 0.0
        %8489 = vmatmul.mubr.f32.gmra.mrb[0].mxu0 %v7558
        %v8490 = vpop.f32.mrb[0].mxu0
        %v8491 = vadd.f32 %v7599, %v8490
        %v8492 = vpop.f32.mrb[0].mxu0
        %v8493 = vadd.f32 %v7599, %v8492
        %8494 = vmatprep.mubr.f32.mxu0 0.0
        %8495 = vmatmul.mubr.f32.gmra.mrb[0].mxu0 %v7563
        %v8496 = vpop.f32.mrb[0].mxu0
        %v8497 = vadd.f32 %v7604, %v8496
        %v8498 = vpop.f32.mrb[0].mxu0
        %v8499 = vadd.f32 %v7604, %v8498
        %8500 = vdwg.mxu0
        %v8501 = vmax.f32 %v8455, 0.0
        %v8502 = vmax.f32 %v8457, 0.0
        %v8503 = vmax.f32 %v8461, 0.0
        %v8504 = vmax.f32 %v8463, 0.0
        %v8505 = vmax.f32 %v8467, 0.0
        %v8506 = vmax.f32 %v8469, 0.0
        %v8507 = vmax.f32 %v8473, 0.0
        %v8508 = vmax.f32 %v8475, 0.0
        %v8509 = vmax.f32 %v8479, 0.0
        %v8510 = vmax.f32 %v8481, 0.0
        %v8511 = vmax.f32 %v8485, 0.0
        %v8512 = vmax.f32 %v8487, 0.0
        %v8513 = vmax.f32 %v8491, 0.0
        %v8514 = vmax.f32 %v8493, 0.0
        %v8515 = vmax.f32 %v8497, 0.0
        %v8516 = vmax.f32 %v8499, 0.0
        %8517 = vmatprep.subr.mxu0 %v8502
        %8518 = vmatpush1.msra.mxu0 %v8501
        %8519 = vmatprep.subr.mxu0 %v8504
        %8520 = vmatpush1.msra.mxu0 %v8503
        %8521 = vmatprep.subr.mxu0 %v8506
        %8522 = vmatpush1.msra.mxu0 %v8505
        %8523 = vmatprep.subr.mxu0 %v8508
        %8524 = vmatpush1.msra.mxu0 %v8507
        %8525 = vmatprep.subr.mxu0 %v8510
        %8526 = vmatpush1.msra.mxu0 %v8509
        %8527 = vmatprep.subr.mxu0 %v8512
        %8528 = vmatpush1.msra.mxu0 %v8511
        %8529 = vmatprep.subr.mxu0 %v8514
        %8530 = vmatpush1.msra.mxu0 %v8513
        %8531 = vmatprep.subr.mxu0 %v8516
        %8532 = vmatpush1.msra.mxu0 %v8515
        %8533 = vmatprep.subr.mxu0 0.0
        %8534 = vmatpush1.msra.mxu0 0.0
        %8535 = vmatprep.subr.mxu0 0.0
        %8536 = vmatpush1.msra.mxu0 0.0
        %8537 = vmatprep.subr.mxu0 0.0
        %8538 = vmatpush1.msra.mxu0 0.0
        %8539 = vmatprep.subr.mxu0 0.0
        %8540 = vmatpush1.msra.mxu0 0.0
        %8541 = vmatprep.subr.mxu0 0.0
        %8542 = vmatpush1.msra.mxu0 0.0
        %8543 = vmatprep.subr.mxu0 0.0
        %8544 = vmatpush1.msra.mxu0 0.0
        %8545 = vmatprep.subr.mxu0 0.0
        %8546 = vmatpush1.msra.mxu0 0.0
        %8547 = vmatprep.subr.mxu0 0.0
        %8548 = vmatpush1.msra.mxu0 0.0
        %8549 = vmatprep.subr.mxu0 0.0
        %8550 = vmatpush1.msra.mxu0 0.0
        %8551 = vmatprep.subr.mxu0 0.0
        %8552 = vmatpush1.msra.mxu0 0.0
        %8553 = vmatprep.subr.mxu0 0.0
        %8554 = vmatpush1.msra.mxu0 0.0
        %8555 = vmatprep.subr.mxu0 0.0
        %8556 = vmatpush1.msra.mxu0 0.0
        %8557 = vmatprep.subr.mxu0 0.0
        %8558 = vmatpush1.msra.mxu0 0.0
        %8559 = vmatprep.subr.mxu0 0.0
        %8560 = vmatpush1.msra.mxu0 0.0
        %8561 = vmatprep.subr.mxu0 0.0
        %8562 = vmatpush1.msra.mxu0 0.0
        %8563 = vmatprep.subr.mxu0 0.0
        %8564 = vmatpush1.msra.mxu0 0.0
        %8565 = vmatprep.subr.mxu0 0.0
        %8566 = vmatpush1.msra.mxu0 0.0
        %8567 = vmatprep.subr.mxu0 0.0
        %8568 = vmatpush1.msra.mxu0 0.0
        %8569 = vmatprep.subr.mxu0 0.0
        %8570 = vmatpush1.msra.mxu0 0.0
        %8571 = vmatprep.subr.mxu0 0.0
        %8572 = vmatpush1.msra.mxu0 0.0
        %8573 = vmatprep.subr.mxu0 0.0
        %8574 = vmatpush1.msra.mxu0 0.0
        %8575 = vmatprep.subr.mxu0 0.0
        %8576 = vmatpush1.msra.mxu0 0.0
        %8577 = vmatprep.subr.mxu0 0.0
        %8578 = vmatpush1.msra.mxu0 0.0
        %8579 = vmatprep.subr.mxu0 0.0
        %8580 = vmatpush1.msra.mxu0 0.0
        %8581 = vmatprep.mubr.f32.mxu0 0.0
        %8582 = vmatmul.mubr.f32.gmra.mrb[0].mxu0 %v7736
        %v8583 = vpop.f32.mrb[0].mxu0
        %v8584 = vadd.f32 0.0, %v8583
        %v8585 = vpop.f32.mrb[0].mxu0
        %v8586 = vadd.f32 0.0, %v8585
        %8587 = vmatprep.mubr.f32.mxu0 0.0
        %8588 = vmatmul.mubr.f32.gmra.mrb[0].mxu0 %v7739
        %v8589 = vpop.f32.mrb[0].mxu0
        %v8590 = vadd.f32 0.0, %v8589
        %v8591 = vpop.f32.mrb[0].mxu0
        %v8592 = vadd.f32 0.0, %v8591
        %8593 = vmatprep.mubr.f32.mxu0 0.0
        %8594 = vmatmul.mubr.f32.gmra.mrb[0].mxu0 %v7742
        %v8595 = vpop.f32.mrb[0].mxu0
        %v8596 = vadd.f32 0.0, %v8595
        %v8597 = vpop.f32.mrb[0].mxu0
        %v8598 = vadd.f32 0.0, %v8597
        %8599 = vmatprep.mubr.f32.mxu0 0.0
        %8600 = vmatmul.mubr.f32.gmra.mrb[0].mxu0 %v7745
        %v8601 = vpop.f32.mrb[0].mxu0
        %v8602 = vadd.f32 0.0, %v8601
        %v8603 = vpop.f32.mrb[0].mxu0
        %v8604 = vadd.f32 0.0, %v8603
        %8605 = vmatprep.mubr.f32.mxu0 0.0
        %8606 = vmatmul.mubr.f32.gmra.mrb[0].mxu0 %v7748
        %v8607 = vpop.f32.mrb[0].mxu0
        %v8608 = vadd.f32 0.0, %v8607
        %v8609 = vpop.f32.mrb[0].mxu0
        %v8610 = vadd.f32 0.0, %v8609
        %8611 = vmatprep.mubr.f32.mxu0 0.0
        %8612 = vmatmul.mubr.f32.gmra.mrb[0].mxu0 %v7751
        %v8613 = vpop.f32.mrb[0].mxu0
        %v8614 = vadd.f32 0.0, %v8613
        %v8615 = vpop.f32.mrb[0].mxu0
        %v8616 = vadd.f32 0.0, %v8615
        %8617 = vmatprep.mubr.f32.mxu0 0.0
        %8618 = vmatmul.mubr.f32.gmra.mrb[0].mxu0 %v7754
        %v8619 = vpop.f32.mrb[0].mxu0
        %v8620 = vadd.f32 0.0, %v8619
        %v8621 = vpop.f32.mrb[0].mxu0
        %v8622 = vadd.f32 0.0, %v8621
        %8623 = vmatprep.mubr.f32.mxu0 0.0
        %8624 = vmatmul.mubr.f32.gmra.mrb[0].mxu0 %v7757
        %v8625 = vpop.f32.mrb[0].mxu0
        %v8626 = vadd.f32 0.0, %v8625
        %v8627 = vpop.f32.mrb[0].mxu0
        %v8628 = vadd.f32 0.0, %v8627
        %8629 = vdwg.mxu0
        %v8630 = vmax.f32 %v8372, %v8584
        %v8631 = vmax.f32 %v8373, %v8586
        %v8632 = vmax.f32 %v8374, %v8590
        %v8633 = vmax.f32 %v8375, %v8592
        %v8634 = vmax.f32 %v8376, %v8596
        %v8635 = vmax.f32 %v8377, %v8598
        %v8636 = vmax.f32 %v8378, %v8602
        %v8637 = vmax.f32 %v8379, %v8604
        %v8638 = vmax.f32 %v8380, %v8608
        %v8639 = vmax.f32 %v8381, %v8610
        %v8640 = vmax.f32 %v8382, %v8614
        %v8641 = vmax.f32 %v8383, %v8616
        %v8642 = vmax.f32 %v8384, %v8620
        %v8643 = vmax.f32 %v8385, %v8622
        %v8644 = vmax.f32 %v8386, %v8626
        %v8645 = vmax.f32 %v8387, %v8628
        %8646 = vmatprep.subr.mxu0 %v4555
        %8647 = vmatpush1.msra.mxu0 %v4554
        %8648 = vmatprep.subr.mxu0 %v4557
        %8649 = vmatpush1.msra.mxu0 %v4556
        %8650 = vmatprep.subr.mxu0 %v4559
        %8651 = vmatpush1.msra.mxu0 %v4558
        %8652 = vmatprep.subr.mxu0 %v4561
        %8653 = vmatpush1.msra.mxu0 %v4560
        %8654 = vmatprep.subr.mxu0 %v4563
        %8655 = vmatpush1.msra.mxu0 %v4562
        %8656 = vmatprep.subr.mxu0 %v4565
        %8657 = vmatpush1.msra.mxu0 %v4564
        %8658 = vmatprep.subr.mxu0 %v4567
        %8659 = vmatpush1.msra.mxu0 %v4566
        %8660 = vmatprep.subr.mxu0 %v4569
        %8661 = vmatpush1.msra.mxu0 %v4568
        %8662 = vmatprep.subr.mxu0 %v4571
        %8663 = vmatpush1.msra.mxu0 %v4570
        %8664 = vmatprep.subr.mxu0 %v4573
        %8665 = vmatpush1.msra.mxu0 %v4572
        %8666 = vmatprep.subr.mxu0 %v4575
        %8667 = vmatpush1.msra.mxu0 %v4574
        %8668 = vmatprep.subr.mxu0 %v4577
        %8669 = vmatpush1.msra.mxu0 %v4576
        %8670 = vmatprep.subr.mxu0 %v4579
        %8671 = vmatpush1.msra.mxu0 %v4578
        %8672 = vmatprep.subr.mxu0 %v4581
        %8673 = vmatpush1.msra.mxu0 %v4580
        %8674 = vmatprep.subr.mxu0 %v4583
        %8675 = vmatpush1.msra.mxu0 %v4582
        %8676 = vmatprep.subr.mxu0 %v4585
        %8677 = vmatpush1.msra.mxu0 %v4584
        %8678 = vmatprep.subr.mxu0 0.0
        %8679 = vmatpush1.msra.mxu0 0.0
        %8680 = vmatprep.subr.mxu0 0.0
        %8681 = vmatpush1.msra.mxu0 0.0
        %8682 = vmatprep.subr.mxu0 0.0
        %8683 = vmatpush1.msra.mxu0 0.0
        %8684 = vmatprep.subr.mxu0 0.0
        %8685 = vmatpush1.msra.mxu0 0.0
        %8686 = vmatprep.subr.mxu0 0.0
        %8687 = vmatpush1.msra.mxu0 0.0
        %8688 = vmatprep.subr.mxu0 0.0
        %8689 = vmatpush1.msra.mxu0 0.0
        %8690 = vmatprep.subr.mxu0 0.0
        %8691 = vmatpush1.msra.mxu0 0.0
        %8692 = vmatprep.subr.mxu0 0.0
        %8693 = vmatpush1.msra.mxu0 0.0
        %8694 = vmatprep.subr.mxu0 0.0
        %8695 = vmatpush1.msra.mxu0 0.0
        %8696 = vmatprep.subr.mxu0 0.0
        %8697 = vmatpush1.msra.mxu0 0.0
        %8698 = vmatprep.subr.mxu0 0.0
        %8699 = vmatpush1.msra.mxu0 0.0
        %8700 = vmatprep.subr.mxu0 0.0
        %8701 = vmatpush1.msra.mxu0 0.0
        %8702 = vmatprep.subr.mxu0 0.0
        %8703 = vmatpush1.msra.mxu0 0.0
        %8704 = vmatprep.subr.mxu0 0.0
        %8705 = vmatpush1.msra.mxu0 0.0
        %8706 = vmatprep.subr.mxu0 0.0
        %8707 = vmatpush1.msra.mxu0 0.0
        %8708 = vmatprep.subr.mxu0 0.0
        %8709 = vmatpush1.msra.mxu0 0.0
        %8710 = vmatprep.mubr.f32.mxu0 0.0
        %8711 = vmatmul.mubr.f32.gmra.mrb[0].mxu0 %v7528
        %v8712 = vpop.f32.mrb[0].mxu0
        %v8713 = vadd.f32 %v7569, %v8712
        %v8714 = vpop.f32.mrb[0].mxu0
        %v8715 = vadd.f32 %v7569, %v8714
        %8716 = vmatprep.mubr.f32.mxu0 0.0
        %8717 = vmatmul.mubr.f32.gmra.mrb[0].mxu0 %v7533
        %v8718 = vpop.f32.mrb[0].mxu0
        %v8719 = vadd.f32 %v7574, %v8718
        %v8720 = vpop.f32.mrb[0].mxu0
        %v8721 = vadd.f32 %v7574, %v8720
        %8722 = vmatprep.mubr.f32.mxu0 0.0
        %8723 = vmatmul.mubr.f32.gmra.mrb[0].mxu0 %v7538
        %v8724 = vpop.f32.mrb[0].mxu0
        %v8725 = vadd.f32 %v7579, %v8724
        %v8726 = vpop.f32.mrb[0].mxu0
        %v8727 = vadd.f32 %v7579, %v8726
        %8728 = vmatprep.mubr.f32.mxu0 0.0
        %8729 = vmatmul.mubr.f32.gmra.mrb[0].mxu0 %v7543
        %v8730 = vpop.f32.mrb[0].mxu0
        %v8731 = vadd.f32 %v7584, %v8730
        %v8732 = vpop.f32.mrb[0].mxu0
        %v8733 = vadd.f32 %v7584, %v8732
        %8734 = vmatprep.mubr.f32.mxu0 0.0
        %8735 = vmatmul.mubr.f32.gmra.mrb[0].mxu0 %v7548
        %v8736 = vpop.f32.mrb[0].mxu0
        %v8737 = vadd.f32 %v7589, %v8736
        %v8738 = vpop.f32.mrb[0].mxu0
        %v8739 = vadd.f32 %v7589, %v8738
        %8740 = vmatprep.mubr.f32.mxu0 0.0
        %8741 = vmatmul.mubr.f32.gmra.mrb[0].mxu0 %v7553
        %v8742 = vpop.f32.mrb[0].mxu0
        %v8743 = vadd.f32 %v7594, %v8742
        %v8744 = vpop.f32.mrb[0].mxu0
        %v8745 = vadd.f32 %v7594, %v8744
        %8746 = vmatprep.mubr.f32.mxu0 0.0
        %8747 = vmatmul.mubr.f32.gmra.mrb[0].mxu0 %v7558
        %v8748 = vpop.f32.mrb[0].mxu0
        %v8749 = vadd.f32 %v7599, %v8748
        %v8750 = vpop.f32.mrb[0].mxu0
        %v8751 = vadd.f32 %v7599, %v8750
        %8752 = vmatprep.mubr.f32.mxu0 0.0
        %8753 = vmatmul.mubr.f32.gmra.mrb[0].mxu0 %v7563
        %v8754 = vpop.f32.mrb[0].mxu0
        %v8755 = vadd.f32 %v7604, %v8754
        %v8756 = vpop.f32.mrb[0].mxu0
        %v8757 = vadd.f32 %v7604, %v8756
        %8758 = vdwg.mxu0
        %v8759 = vmax.f32 %v8713, 0.0
        %v8760 = vmax.f32 %v8715, 0.0
        %v8761 = vmax.f32 %v8719, 0.0
        %v8762 = vmax.f32 %v8721, 0.0
        %v8763 = vmax.f32 %v8725, 0.0
        %v8764 = vmax.f32 %v8727, 0.0
        %v8765 = vmax.f32 %v8731, 0.0
        %v8766 = vmax.f32 %v8733, 0.0
        %v8767 = vmax.f32 %v8737, 0.0
        %v8768 = vmax.f32 %v8739, 0.0
        %v8769 = vmax.f32 %v8743, 0.0
        %v8770 = vmax.f32 %v8745, 0.0
        %v8771 = vmax.f32 %v8749, 0.0
        %v8772 = vmax.f32 %v8751, 0.0
        %v8773 = vmax.f32 %v8755, 0.0
        %v8774 = vmax.f32 %v8757, 0.0
        %8775 = vmatprep.subr.mxu0 %v8760
        %8776 = vmatpush1.msra.mxu0 %v8759
        %8777 = vmatprep.subr.mxu0 %v8762
        %8778 = vmatpush1.msra.mxu0 %v8761
        %8779 = vmatprep.subr.mxu0 %v8764
        %8780 = vmatpush1.msra.mxu0 %v8763
        %8781 = vmatprep.subr.mxu0 %v8766
        %8782 = vmatpush1.msra.mxu0 %v8765
        %8783 = vmatprep.subr.mxu0 %v8768
        %8784 = vmatpush1.msra.mxu0 %v8767
        %8785 = vmatprep.subr.mxu0 %v8770
        %8786 = vmatpush1.msra.mxu0 %v8769
        %8787 = vmatprep.subr.mxu0 %v8772
        %8788 = vmatpush1.msra.mxu0 %v8771
        %8789 = vmatprep.subr.mxu0 %v8774
        %8790 = vmatpush1.msra.mxu0 %v8773
        %8791 = vmatprep.subr.mxu0 0.0
        %8792 = vmatpush1.msra.mxu0 0.0
        %8793 = vmatprep.subr.mxu0 0.0
        %8794 = vmatpush1.msra.mxu0 0.0
        %8795 = vmatprep.subr.mxu0 0.0
        %8796 = vmatpush1.msra.mxu0 0.0
        %8797 = vmatprep.subr.mxu0 0.0
        %8798 = vmatpush1.msra.mxu0 0.0
        %8799 = vmatprep.subr.mxu0 0.0
        %8800 = vmatpush1.msra.mxu0 0.0
        %8801 = vmatprep.subr.mxu0 0.0
        %8802 = vmatpush1.msra.mxu0 0.0
        %8803 = vmatprep.subr.mxu0 0.0
        %8804 = vmatpush1.msra.mxu0 0.0
        %8805 = vmatprep.subr.mxu0 0.0
        %8806 = vmatpush1.msra.mxu0 0.0
        %8807 = vmatprep.subr.mxu0 0.0
        %8808 = vmatpush1.msra.mxu0 0.0
        %8809 = vmatprep.subr.mxu0 0.0
        %8810 = vmatpush1.msra.mxu0 0.0
        %8811 = vmatprep.subr.mxu0 0.0
        %8812 = vmatpush1.msra.mxu0 0.0
        %8813 = vmatprep.subr.mxu0 0.0
        %8814 = vmatpush1.msra.mxu0 0.0
        %8815 = vmatprep.subr.mxu0 0.0
        %8816 = vmatpush1.msra.mxu0 0.0
        %8817 = vmatprep.subr.mxu0 0.0
        %8818 = vmatpush1.msra.mxu0 0.0
        %8819 = vmatprep.subr.mxu0 0.0
        %8820 = vmatpush1.msra.mxu0 0.0
        %8821 = vmatprep.subr.mxu0 0.0
        %8822 = vmatpush1.msra.mxu0 0.0
        %8823 = vmatprep.subr.mxu0 0.0
        %8824 = vmatpush1.msra.mxu0 0.0
        %8825 = vmatprep.subr.mxu0 0.0
        %8826 = vmatpush1.msra.mxu0 0.0
        %8827 = vmatprep.subr.mxu0 0.0
        %8828 = vmatpush1.msra.mxu0 0.0
        %8829 = vmatprep.subr.mxu0 0.0
        %8830 = vmatpush1.msra.mxu0 0.0
        %8831 = vmatprep.subr.mxu0 0.0
        %8832 = vmatpush1.msra.mxu0 0.0
        %8833 = vmatprep.subr.mxu0 0.0
        %8834 = vmatpush1.msra.mxu0 0.0
        %8835 = vmatprep.subr.mxu0 0.0
        %8836 = vmatpush1.msra.mxu0 0.0
        %8837 = vmatprep.subr.mxu0 0.0
        %8838 = vmatpush1.msra.mxu0 0.0
        %8839 = vmatprep.mubr.f32.mxu0 0.0
        %8840 = vmatmul.mubr.f32.gmra.mrb[0].mxu0 %v7736
        %v8841 = vpop.f32.mrb[0].mxu0
        %v8842 = vadd.f32 0.0, %v8841
        %v8843 = vpop.f32.mrb[0].mxu0
        %v8844 = vadd.f32 0.0, %v8843
        %8845 = vmatprep.mubr.f32.mxu0 0.0
        %8846 = vmatmul.mubr.f32.gmra.mrb[0].mxu0 %v7739
        %v8847 = vpop.f32.mrb[0].mxu0
        %v8848 = vadd.f32 0.0, %v8847
        %v8849 = vpop.f32.mrb[0].mxu0
        %v8850 = vadd.f32 0.0, %v8849
        %8851 = vmatprep.mubr.f32.mxu0 0.0
        %8852 = vmatmul.mubr.f32.gmra.mrb[0].mxu0 %v7742
        %v8853 = vpop.f32.mrb[0].mxu0
        %v8854 = vadd.f32 0.0, %v8853
        %v8855 = vpop.f32.mrb[0].mxu0
        %v8856 = vadd.f32 0.0, %v8855
        %8857 = vmatprep.mubr.f32.mxu0 0.0
        %8858 = vmatmul.mubr.f32.gmra.mrb[0].mxu0 %v7745
        %v8859 = vpop.f32.mrb[0].mxu0
        %v8860 = vadd.f32 0.0, %v8859
        %v8861 = vpop.f32.mrb[0].mxu0
        %v8862 = vadd.f32 0.0, %v8861
        %8863 = vmatprep.mubr.f32.mxu0 0.0
        %8864 = vmatmul.mubr.f32.gmra.mrb[0].mxu0 %v7748
        %v8865 = vpop.f32.mrb[0].mxu0
        %v8866 = vadd.f32 0.0, %v8865
        %v8867 = vpop.f32.mrb[0].mxu0
        %v8868 = vadd.f32 0.0, %v8867
        %8869 = vmatprep.mubr.f32.mxu0 0.0
        %8870 = vmatmul.mubr.f32.gmra.mrb[0].mxu0 %v7751
        %v8871 = vpop.f32.mrb[0].mxu0
        %v8872 = vadd.f32 0.0, %v8871
        %v8873 = vpop.f32.mrb[0].mxu0
        %v8874 = vadd.f32 0.0, %v8873
        %8875 = vmatprep.mubr.f32.mxu0 0.0
        %8876 = vmatmul.mubr.f32.gmra.mrb[0].mxu0 %v7754
        %v8877 = vpop.f32.mrb[0].mxu0
        %v8878 = vadd.f32 0.0, %v8877
        %v8879 = vpop.f32.mrb[0].mxu0
        %v8880 = vadd.f32 0.0, %v8879
        %8881 = vmatprep.mubr.f32.mxu0 0.0
        %8882 = vmatmul.mubr.f32.gmra.mrb[0].mxu0 %v7757
        %v8883 = vpop.f32.mrb[0].mxu0
        %v8884 = vadd.f32 0.0, %v8883
        %v8885 = vpop.f32.mrb[0].mxu0
        %v8886 = vadd.f32 0.0, %v8885
        %8887 = vdwg.mxu0
        %v8888 = vmax.f32 %v8630, %v8842
        %v8889 = vmax.f32 %v8631, %v8844
        %v8890 = vmax.f32 %v8632, %v8848
        %v8891 = vmax.f32 %v8633, %v8850
        %v8892 = vmax.f32 %v8634, %v8854
        %v8893 = vmax.f32 %v8635, %v8856
        %v8894 = vmax.f32 %v8636, %v8860
        %v8895 = vmax.f32 %v8637, %v8862
        %v8896 = vmax.f32 %v8638, %v8866
        %v8897 = vmax.f32 %v8639, %v8868
        %v8898 = vmax.f32 %v8640, %v8872
        %v8899 = vmax.f32 %v8641, %v8874
        %v8900 = vmax.f32 %v8642, %v8878
        %v8901 = vmax.f32 %v8643, %v8880
        %v8902 = vmax.f32 %v8644, %v8884
        %v8903 = vmax.f32 %v8645, %v8886
        %8904 = vmatprep.subr.mxu0 %v4861
        %8905 = vmatpush1.msra.mxu0 %v4860
        %8906 = vmatprep.subr.mxu0 %v4863
        %8907 = vmatpush1.msra.mxu0 %v4862
        %8908 = vmatprep.subr.mxu0 %v4865
        %8909 = vmatpush1.msra.mxu0 %v4864
        %8910 = vmatprep.subr.mxu0 %v4867
        %8911 = vmatpush1.msra.mxu0 %v4866
        %8912 = vmatprep.subr.mxu0 %v4869
        %8913 = vmatpush1.msra.mxu0 %v4868
        %8914 = vmatprep.subr.mxu0 %v4871
        %8915 = vmatpush1.msra.mxu0 %v4870
        %8916 = vmatprep.subr.mxu0 %v4873
        %8917 = vmatpush1.msra.mxu0 %v4872
        %8918 = vmatprep.subr.mxu0 %v4875
        %8919 = vmatpush1.msra.mxu0 %v4874
        %8920 = vmatprep.subr.mxu0 %v4877
        %8921 = vmatpush1.msra.mxu0 %v4876
        %8922 = vmatprep.subr.mxu0 %v4879
        %8923 = vmatpush1.msra.mxu0 %v4878
        %8924 = vmatprep.subr.mxu0 %v4881
        %8925 = vmatpush1.msra.mxu0 %v4880
        %8926 = vmatprep.subr.mxu0 %v4883
        %8927 = vmatpush1.msra.mxu0 %v4882
        %8928 = vmatprep.subr.mxu0 %v4885
        %8929 = vmatpush1.msra.mxu0 %v4884
        %8930 = vmatprep.subr.mxu0 %v4887
        %8931 = vmatpush1.msra.mxu0 %v4886
        %8932 = vmatprep.subr.mxu0 %v4889
        %8933 = vmatpush1.msra.mxu0 %v4888
        %8934 = vmatprep.subr.mxu0 %v4891
        %8935 = vmatpush1.msra.mxu0 %v4890
        %8936 = vmatprep.subr.mxu0 0.0
        %8937 = vmatpush1.msra.mxu0 0.0
        %8938 = vmatprep.subr.mxu0 0.0
        %8939 = vmatpush1.msra.mxu0 0.0
        %8940 = vmatprep.subr.mxu0 0.0
        %8941 = vmatpush1.msra.mxu0 0.0
        %8942 = vmatprep.subr.mxu0 0.0
        %8943 = vmatpush1.msra.mxu0 0.0
        %8944 = vmatprep.subr.mxu0 0.0
        %8945 = vmatpush1.msra.mxu0 0.0
        %8946 = vmatprep.subr.mxu0 0.0
        %8947 = vmatpush1.msra.mxu0 0.0
        %8948 = vmatprep.subr.mxu0 0.0
        %8949 = vmatpush1.msra.mxu0 0.0
        %8950 = vmatprep.subr.mxu0 0.0
        %8951 = vmatpush1.msra.mxu0 0.0
        %8952 = vmatprep.subr.mxu0 0.0
        %8953 = vmatpush1.msra.mxu0 0.0
        %8954 = vmatprep.subr.mxu0 0.0
        %8955 = vmatpush1.msra.mxu0 0.0
        %8956 = vmatprep.subr.mxu0 0.0
        %8957 = vmatpush1.msra.mxu0 0.0
        %8958 = vmatprep.subr.mxu0 0.0
        %8959 = vmatpush1.msra.mxu0 0.0
        %8960 = vmatprep.subr.mxu0 0.0
        %8961 = vmatpush1.msra.mxu0 0.0
        %8962 = vmatprep.subr.mxu0 0.0
        %8963 = vmatpush1.msra.mxu0 0.0
        %8964 = vmatprep.subr.mxu0 0.0
        %8965 = vmatpush1.msra.mxu0 0.0
        %8966 = vmatprep.subr.mxu0 0.0
        %8967 = vmatpush1.msra.mxu0 0.0
        %8968 = vmatprep.mubr.f32.mxu0 0.0
        %8969 = vmatmul.mubr.f32.gmra.mrb[0].mxu0 %v7528
        %v8970 = vpop.f32.mrb[0].mxu0
        %v8971 = vadd.f32 %v7569, %v8970
        %v8972 = vpop.f32.mrb[0].mxu0
        %v8973 = vadd.f32 %v7569, %v8972
        %8974 = vmatprep.mubr.f32.mxu0 0.0
        %8975 = vmatmul.mubr.f32.gmra.mrb[0].mxu0 %v7533
        %v8976 = vpop.f32.mrb[0].mxu0
        %v8977 = vadd.f32 %v7574, %v8976
        %v8978 = vpop.f32.mrb[0].mxu0
        %v8979 = vadd.f32 %v7574, %v8978
        %8980 = vmatprep.mubr.f32.mxu0 0.0
        %8981 = vmatmul.mubr.f32.gmra.mrb[0].mxu0 %v7538
        %v8982 = vpop.f32.mrb[0].mxu0
        %v8983 = vadd.f32 %v7579, %v8982
        %v8984 = vpop.f32.mrb[0].mxu0
        %v8985 = vadd.f32 %v7579, %v8984
        %8986 = vmatprep.mubr.f32.mxu0 0.0
        %8987 = vmatmul.mubr.f32.gmra.mrb[0].mxu0 %v7543
        %v8988 = vpop.f32.mrb[0].mxu0
        %v8989 = vadd.f32 %v7584, %v8988
        %v8990 = vpop.f32.mrb[0].mxu0
        %v8991 = vadd.f32 %v7584, %v8990
        %8992 = vmatprep.mubr.f32.mxu0 0.0
        %8993 = vmatmul.mubr.f32.gmra.mrb[0].mxu0 %v7548
        %v8994 = vpop.f32.mrb[0].mxu0
        %v8995 = vadd.f32 %v7589, %v8994
        %v8996 = vpop.f32.mrb[0].mxu0
        %v8997 = vadd.f32 %v7589, %v8996
        %8998 = vmatprep.mubr.f32.mxu0 0.0
        %8999 = vmatmul.mubr.f32.gmra.mrb[0].mxu0 %v7553
        %v9000 = vpop.f32.mrb[0].mxu0
        %v9001 = vadd.f32 %v7594, %v9000
        %v9002 = vpop.f32.mrb[0].mxu0
        %v9003 = vadd.f32 %v7594, %v9002
        %9004 = vmatprep.mubr.f32.mxu0 0.0
        %9005 = vmatmul.mubr.f32.gmra.mrb[0].mxu0 %v7558
        %v9006 = vpop.f32.mrb[0].mxu0
        %v9007 = vadd.f32 %v7599, %v9006
        %v9008 = vpop.f32.mrb[0].mxu0
        %v9009 = vadd.f32 %v7599, %v9008
        %9010 = vmatprep.mubr.f32.mxu0 0.0
        %9011 = vmatmul.mubr.f32.gmra.mrb[0].mxu0 %v7563
        %v9012 = vpop.f32.mrb[0].mxu0
        %v9013 = vadd.f32 %v7604, %v9012
        %v9014 = vpop.f32.mrb[0].mxu0
        %v9015 = vadd.f32 %v7604, %v9014
        %9016 = vdwg.mxu0
        %v9017 = vmax.f32 %v8971, 0.0
        %v9018 = vmax.f32 %v8973, 0.0
        %v9019 = vmax.f32 %v8977, 0.0
        %v9020 = vmax.f32 %v8979, 0.0
        %v9021 = vmax.f32 %v8983, 0.0
        %v9022 = vmax.f32 %v8985, 0.0
        %v9023 = vmax.f32 %v8989, 0.0
        %v9024 = vmax.f32 %v8991, 0.0
        %v9025 = vmax.f32 %v8995, 0.0
        %v9026 = vmax.f32 %v8997, 0.0
        %v9027 = vmax.f32 %v9001, 0.0
        %v9028 = vmax.f32 %v9003, 0.0
        %v9029 = vmax.f32 %v9007, 0.0
        %v9030 = vmax.f32 %v9009, 0.0
        %v9031 = vmax.f32 %v9013, 0.0
        %v9032 = vmax.f32 %v9015, 0.0
        %9033 = vmatprep.subr.mxu0 %v9018
        %9034 = vmatpush1.msra.mxu0 %v9017
        %9035 = vmatprep.subr.mxu0 %v9020
        %9036 = vmatpush1.msra.mxu0 %v9019
        %9037 = vmatprep.subr.mxu0 %v9022
        %9038 = vmatpush1.msra.mxu0 %v9021
        %9039 = vmatprep.subr.mxu0 %v9024
        %9040 = vmatpush1.msra.mxu0 %v9023
        %9041 = vmatprep.subr.mxu0 %v9026
        %9042 = vmatpush1.msra.mxu0 %v9025
        %9043 = vmatprep.subr.mxu0 %v9028
        %9044 = vmatpush1.msra.mxu0 %v9027
        %9045 = vmatprep.subr.mxu0 %v9030
        %9046 = vmatpush1.msra.mxu0 %v9029
        %9047 = vmatprep.subr.mxu0 %v9032
        %9048 = vmatpush1.msra.mxu0 %v9031
        %9049 = vmatprep.subr.mxu0 0.0
        %9050 = vmatpush1.msra.mxu0 0.0
        %9051 = vmatprep.subr.mxu0 0.0
        %9052 = vmatpush1.msra.mxu0 0.0
        %9053 = vmatprep.subr.mxu0 0.0
        %9054 = vmatpush1.msra.mxu0 0.0
        %9055 = vmatprep.subr.mxu0 0.0
        %9056 = vmatpush1.msra.mxu0 0.0
        %9057 = vmatprep.subr.mxu0 0.0
        %9058 = vmatpush1.msra.mxu0 0.0
        %9059 = vmatprep.subr.mxu0 0.0
        %9060 = vmatpush1.msra.mxu0 0.0
        %9061 = vmatprep.subr.mxu0 0.0
        %9062 = vmatpush1.msra.mxu0 0.0
        %9063 = vmatprep.subr.mxu0 0.0
        %9064 = vmatpush1.msra.mxu0 0.0
        %9065 = vmatprep.subr.mxu0 0.0
        %9066 = vmatpush1.msra.mxu0 0.0
        %9067 = vmatprep.subr.mxu0 0.0
        %9068 = vmatpush1.msra.mxu0 0.0
        %9069 = vmatprep.subr.mxu0 0.0
        %9070 = vmatpush1.msra.mxu0 0.0
        %9071 = vmatprep.subr.mxu0 0.0
        %9072 = vmatpush1.msra.mxu0 0.0
        %9073 = vmatprep.subr.mxu0 0.0
        %9074 = vmatpush1.msra.mxu0 0.0
        %9075 = vmatprep.subr.mxu0 0.0
        %9076 = vmatpush1.msra.mxu0 0.0
        %9077 = vmatprep.subr.mxu0 0.0
        %9078 = vmatpush1.msra.mxu0 0.0
        %9079 = vmatprep.subr.mxu0 0.0
        %9080 = vmatpush1.msra.mxu0 0.0
        %9081 = vmatprep.subr.mxu0 0.0
        %9082 = vmatpush1.msra.mxu0 0.0
        %9083 = vmatprep.subr.mxu0 0.0
        %9084 = vmatpush1.msra.mxu0 0.0
        %9085 = vmatprep.subr.mxu0 0.0
        %9086 = vmatpush1.msra.mxu0 0.0
        %9087 = vmatprep.subr.mxu0 0.0
        %9088 = vmatpush1.msra.mxu0 0.0
        %9089 = vmatprep.subr.mxu0 0.0
        %9090 = vmatpush1.msra.mxu0 0.0
        %9091 = vmatprep.subr.mxu0 0.0
        %9092 = vmatpush1.msra.mxu0 0.0
        %9093 = vmatprep.subr.mxu0 0.0
        %9094 = vmatpush1.msra.mxu0 0.0
        %9095 = vmatprep.subr.mxu0 0.0
        %9096 = vmatpush1.msra.mxu0 0.0
        %9097 = vmatprep.mubr.f32.mxu0 0.0
        %9098 = vmatmul.mubr.f32.gmra.mrb[0].mxu0 %v7736
        %v9099 = vpop.f32.mrb[0].mxu0
        %v9100 = vadd.f32 0.0, %v9099
        %v9101 = vpop.f32.mrb[0].mxu0
        %v9102 = vadd.f32 0.0, %v9101
        %9103 = vmatprep.mubr.f32.mxu0 0.0
        %9104 = vmatmul.mubr.f32.gmra.mrb[0].mxu0 %v7739
        %v9105 = vpop.f32.mrb[0].mxu0
        %v9106 = vadd.f32 0.0, %v9105
        %v9107 = vpop.f32.mrb[0].mxu0
        %v9108 = vadd.f32 0.0, %v9107
        %9109 = vmatprep.mubr.f32.mxu0 0.0
        %9110 = vmatmul.mubr.f32.gmra.mrb[0].mxu0 %v7742
        %v9111 = vpop.f32.mrb[0].mxu0
        %v9112 = vadd.f32 0.0, %v9111
        %v9113 = vpop.f32.mrb[0].mxu0
        %v9114 = vadd.f32 0.0, %v9113
        %9115 = vmatprep.mubr.f32.mxu0 0.0
        %9116 = vmatmul.mubr.f32.gmra.mrb[0].mxu0 %v7745
        %v9117 = vpop.f32.mrb[0].mxu0
        %v9118 = vadd.f32 0.0, %v9117
        %v9119 = vpop.f32.mrb[0].mxu0
        %v9120 = vadd.f32 0.0, %v9119
        %9121 = vmatprep.mubr.f32.mxu0 0.0
        %9122 = vmatmul.mubr.f32.gmra.mrb[0].mxu0 %v7748
        %v9123 = vpop.f32.mrb[0].mxu0
        %v9124 = vadd.f32 0.0, %v9123
        %v9125 = vpop.f32.mrb[0].mxu0
        %v9126 = vadd.f32 0.0, %v9125
        %9127 = vmatprep.mubr.f32.mxu0 0.0
        %9128 = vmatmul.mubr.f32.gmra.mrb[0].mxu0 %v7751
        %v9129 = vpop.f32.mrb[0].mxu0
        %v9130 = vadd.f32 0.0, %v9129
        %v9131 = vpop.f32.mrb[0].mxu0
        %v9132 = vadd.f32 0.0, %v9131
        %9133 = vmatprep.mubr.f32.mxu0 0.0
        %9134 = vmatmul.mubr.f32.gmra.mrb[0].mxu0 %v7754
        %v9135 = vpop.f32.mrb[0].mxu0
        %v9136 = vadd.f32 0.0, %v9135
        %v9137 = vpop.f32.mrb[0].mxu0
        %v9138 = vadd.f32 0.0, %v9137
        %9139 = vmatprep.mubr.f32.mxu0 0.0
        %9140 = vmatmul.mubr.f32.gmra.mrb[0].mxu0 %v7757
        %v9141 = vpop.f32.mrb[0].mxu0
        %v9142 = vadd.f32 0.0, %v9141
        %v9143 = vpop.f32.mrb[0].mxu0
        %v9144 = vadd.f32 0.0, %v9143
        %9145 = vdwg.mxu0
        %v9146 = vmax.f32 %v8888, %v9100
        %v9147 = vmax.f32 %v8889, %v9102
        %v9148 = vmax.f32 %v8890, %v9106
        %v9149 = vmax.f32 %v8891, %v9108
        %v9150 = vmax.f32 %v8892, %v9112
        %v9151 = vmax.f32 %v8893, %v9114
        %v9152 = vmax.f32 %v8894, %v9118
        %v9153 = vmax.f32 %v8895, %v9120
        %v9154 = vmax.f32 %v8896, %v9124
        %v9155 = vmax.f32 %v8897, %v9126
        %v9156 = vmax.f32 %v8898, %v9130
        %v9157 = vmax.f32 %v8899, %v9132
        %v9158 = vmax.f32 %v8900, %v9136
        %v9159 = vmax.f32 %v8901, %v9138
        %v9160 = vmax.f32 %v8902, %v9142
        %v9161 = vmax.f32 %v8903, %v9144
        %v9162 = vmax.f32 %v9146, %v9147
        %v9163 = vmax.f32 %v9148, %v9149
        %v9164 = vmax.f32 %v9150, %v9151
        %v9165 = vmax.f32 %v9152, %v9153
        %v9166 = vmax.f32 %v9154, %v9155
        %v9167 = vmax.f32 %v9156, %v9157
        %v9168 = vmax.f32 %v9158, %v9159
        %v9169 = vmax.f32 %v9160, %v9161
        %9171 = vset.pattern.permute.xlu0 0
        %9172 = vperm.xlu0 %9171, %v7413
        %v9173 = vpop.permute.xlu0 %9172
        %9176 = vset.pattern.permute.xlu0 0
        %9177 = vperm.xlu0 %9176, %v7414
        %v9178 = vpop.permute.xlu0 %9177
        %9181 = vset.pattern.permute.xlu0 0
        %9182 = vperm.xlu0 %9181, %v7415
        %v9183 = vpop.permute.xlu0 %9182
        %9186 = vset.pattern.permute.xlu0 0
        %9187 = vperm.xlu0 %9186, %v7416
        %v9188 = vpop.permute.xlu0 %9187
        %9191 = vset.pattern.permute.xlu0 0
        %9192 = vperm.xlu0 %9191, %v7417
        %v9193 = vpop.permute.xlu0 %9192
        %9196 = vset.pattern.permute.xlu0 0
        %9197 = vperm.xlu0 %9196, %v7418
        %v9198 = vpop.permute.xlu0 %9197
        %9201 = vset.pattern.permute.xlu0 0
        %9202 = vperm.xlu0 %9201, %v7419
        %v9203 = vpop.permute.xlu0 %9202
        %9206 = vset.pattern.permute.xlu0 0
        %9207 = vperm.xlu0 %9206, %v7420
        %v9208 = vpop.permute.xlu0 %9207
        %v9210 = vadd.f32 %v9162, %v9173
        %v9211 = vadd.f32 %v9163, %v9178
        %v9212 = vadd.f32 %v9164, %v9183
        %v9213 = vadd.f32 %v9165, %v9188
        %v9214 = vadd.f32 %v9166, %v9193
        %v9215 = vadd.f32 %v9167, %v9198
        %v9216 = vadd.f32 %v9168, %v9203
        %v9217 = vadd.f32 %v9169, %v9208
        %9219 = vset.pattern.permute.xlu0 0
        %9220 = vperm.xlu0 %9219, %v7429
        %v9221 = vpop.permute.xlu0 %9220
        %9224 = vset.pattern.permute.xlu0 0
        %9225 = vperm.xlu0 %9224, %v7430
        %v9226 = vpop.permute.xlu0 %9225
        %9229 = vset.pattern.permute.xlu0 0
        %9230 = vperm.xlu0 %9229, %v7431
        %v9231 = vpop.permute.xlu0 %9230
        %9234 = vset.pattern.permute.xlu0 0
        %9235 = vperm.xlu0 %9234, %v7432
        %v9236 = vpop.permute.xlu0 %9235
        %9239 = vset.pattern.permute.xlu0 0
        %9240 = vperm.xlu0 %9239, %v7433
        %v9241 = vpop.permute.xlu0 %9240
        %9244 = vset.pattern.permute.xlu0 0
        %9245 = vperm.xlu0 %9244, %v7434
        %v9246 = vpop.permute.xlu0 %9245
        %9249 = vset.pattern.permute.xlu0 0
        %9250 = vperm.xlu0 %9249, %v7435
        %v9251 = vpop.permute.xlu0 %9250
        %9254 = vset.pattern.permute.xlu0 0
        %9255 = vperm.xlu0 %9254, %v7436
        %v9256 = vpop.permute.xlu0 %9255
        %v9259 = vsel %vm3482, %v7421, 0
        %v9262 = vsel %vm3482, %v7422, 0
        %v9265 = vsel %vm3482, %v7423, 0
        %v9268 = vsel %vm3482, %v7424, 0
        %v9271 = vsel %vm3482, %v7425, 0
        %v9274 = vsel %vm3482, %v7426, 0
        %v9277 = vsel %vm3482, %v7427, 0
        %v9280 = vsel %vm3482, %v7428, 0
        %9282 = vmatprep.subr.mxu0 0.0
        %9283 = vmatpush1.msra.mxu0 %v9210
        %9284 = vmatprep.subr.mxu0 0.0
        %9285 = vmatpush1.msra.mxu0 %v9211
        %9286 = vmatprep.subr.mxu0 0.0
        %9287 = vmatpush1.msra.mxu0 %v9212
        %9288 = vmatprep.subr.mxu0 0.0
        %9289 = vmatpush1.msra.mxu0 %v9213
        %9290 = vmatprep.subr.mxu0 0.0
        %9291 = vmatpush1.msra.mxu0 %v9214
        %9292 = vmatprep.subr.mxu0 0.0
        %9293 = vmatpush1.msra.mxu0 %v9215
        %9294 = vmatprep.subr.mxu0 0.0
        %9295 = vmatpush1.msra.mxu0 %v9216
        %9296 = vmatprep.subr.mxu0 0.0
        %9297 = vmatpush1.msra.mxu0 %v9217
        %9298 = vmatprep.subr.mxu0 0.0
        %9299 = vmatpush1.msra.mxu0 0.0
        %9300 = vmatprep.subr.mxu0 0.0
        %9301 = vmatpush1.msra.mxu0 0.0
        %9302 = vmatprep.subr.mxu0 0.0
        %9303 = vmatpush1.msra.mxu0 0.0
        %9304 = vmatprep.subr.mxu0 0.0
        %9305 = vmatpush1.msra.mxu0 0.0
        %9306 = vmatprep.subr.mxu0 0.0
        %9307 = vmatpush1.msra.mxu0 0.0
        %9308 = vmatprep.subr.mxu0 0.0
        %9309 = vmatpush1.msra.mxu0 0.0
        %9310 = vmatprep.subr.mxu0 0.0
        %9311 = vmatpush1.msra.mxu0 0.0
        %9312 = vmatprep.subr.mxu0 0.0
        %9313 = vmatpush1.msra.mxu0 0.0
        %9314 = vmatprep.subr.mxu0 0.0
        %9315 = vmatpush1.msra.mxu0 0.0
        %9316 = vmatprep.subr.mxu0 0.0
        %9317 = vmatpush1.msra.mxu0 0.0
        %9318 = vmatprep.subr.mxu0 0.0
        %9319 = vmatpush1.msra.mxu0 0.0
        %9320 = vmatprep.subr.mxu0 0.0
        %9321 = vmatpush1.msra.mxu0 0.0
        %9322 = vmatprep.subr.mxu0 0.0
        %9323 = vmatpush1.msra.mxu0 0.0
        %9324 = vmatprep.subr.mxu0 0.0
        %9325 = vmatpush1.msra.mxu0 0.0
        %9326 = vmatprep.subr.mxu0 0.0
        %9327 = vmatpush1.msra.mxu0 0.0
        %9328 = vmatprep.subr.mxu0 0.0
        %9329 = vmatpush1.msra.mxu0 0.0
        %9330 = vmatprep.subr.mxu0 0.0
        %9331 = vmatpush1.msra.mxu0 0.0
        %9332 = vmatprep.subr.mxu0 0.0
        %9333 = vmatpush1.msra.mxu0 0.0
        %9334 = vmatprep.subr.mxu0 0.0
        %9335 = vmatpush1.msra.mxu0 0.0
        %9336 = vmatprep.subr.mxu0 0.0
        %9337 = vmatpush1.msra.mxu0 0.0
        %9338 = vmatprep.subr.mxu0 0.0
        %9339 = vmatpush1.msra.mxu0 0.0
        %9340 = vmatprep.subr.mxu0 0.0
        %9341 = vmatpush1.msra.mxu0 0.0
        %9342 = vmatprep.subr.mxu0 0.0
        %9343 = vmatpush1.msra.mxu0 0.0
        %9344 = vmatprep.subr.mxu0 0.0
        %9345 = vmatpush1.msra.mxu0 0.0
        %9346 = vmatprep.mubr.f32.mxu0 0.0
        %9347 = vmatmul.mubr.f32.gmra.mrb[0].mxu0 %v9259
        %v9348 = vpop.f32.mrb[0].mxu0
        %v9349 = vadd.f32 %v9221, %v9348
        %v9350 = vpop.f32.mrb[0].mxu0
        %9351 = vmatprep.mubr.f32.mxu0 0.0
        %9352 = vmatmul.mubr.f32.gmra.mrb[0].mxu0 %v9262
        %v9353 = vpop.f32.mrb[0].mxu0
        %v9354 = vadd.f32 %v9226, %v9353
        %v9355 = vpop.f32.mrb[0].mxu0
        %9356 = vmatprep.mubr.f32.mxu0 0.0
        %9357 = vmatmul.mubr.f32.gmra.mrb[0].mxu0 %v9265
        %v9358 = vpop.f32.mrb[0].mxu0
        %v9359 = vadd.f32 %v9231, %v9358
        %v9360 = vpop.f32.mrb[0].mxu0
        %9361 = vmatprep.mubr.f32.mxu0 0.0
        %9362 = vmatmul.mubr.f32.gmra.mrb[0].mxu0 %v9268
        %v9363 = vpop.f32.mrb[0].mxu0
        %v9364 = vadd.f32 %v9236, %v9363
        %v9365 = vpop.f32.mrb[0].mxu0
        %9366 = vmatprep.mubr.f32.mxu0 0.0
        %9367 = vmatmul.mubr.f32.gmra.mrb[0].mxu0 %v9271
        %v9368 = vpop.f32.mrb[0].mxu0
        %v9369 = vadd.f32 %v9241, %v9368
        %v9370 = vpop.f32.mrb[0].mxu0
        %9371 = vmatprep.mubr.f32.mxu0 0.0
        %9372 = vmatmul.mubr.f32.gmra.mrb[0].mxu0 %v9274
        %v9373 = vpop.f32.mrb[0].mxu0
        %v9374 = vadd.f32 %v9246, %v9373
        %v9375 = vpop.f32.mrb[0].mxu0
        %9376 = vmatprep.mubr.f32.mxu0 0.0
        %9377 = vmatmul.mubr.f32.gmra.mrb[0].mxu0 %v9277
        %v9378 = vpop.f32.mrb[0].mxu0
        %v9379 = vadd.f32 %v9251, %v9378
        %v9380 = vpop.f32.mrb[0].mxu0
        %9381 = vmatprep.mubr.f32.mxu0 0.0
        %9382 = vmatmul.mubr.f32.gmra.mrb[0].mxu0 %v9280
        %v9383 = vpop.f32.mrb[0].mxu0
        %v9384 = vadd.f32 %v9256, %v9383
        %v9385 = vpop.f32.mrb[0].mxu0
        %9386 = vdwg.mxu0
        %v9387 = vadd.f32 %v7381, %v9349
        %v9388 = vadd.f32 %v7382, %v9354
        %v9389 = vadd.f32 %v7383, %v9359
        %v9390 = vadd.f32 %v7384, %v9364
        %v9391 = vadd.f32 %v7385, %v9369
        %v9392 = vadd.f32 %v7386, %v9374
        %v9393 = vadd.f32 %v7387, %v9379
        %v9394 = vadd.f32 %v7388, %v9384
        %9395 = vst [vmem:[%s593] sm:$0xff] %v9387
        %9396 = vst [vmem:[%s593 + $0x8] sm:$0xff] %v9388
        %9397 = vst [vmem:[%s593 + $0x10] sm:$0xff] %v9389
        %9398 = vst [vmem:[%s593 + $0x18] sm:$0xff] %v9390
        %9399 = vst [vmem:[%s593 + $0x20] sm:$0xff] %v9391
        %9400 = vst [vmem:[%s593 + $0x28] sm:$0xff] %v9392
        %9401 = vst [vmem:[%s593 + $0x30] sm:$0xff] %v9393
        %9402 = vst [vmem:[%s593 + $0x38] sm:$0xff] %v9394
        %s9403 = sand.u32 %s445, 1
        %s9404 = scalar_lea.sflag [#allocation4], %s9403
        %s9405 = sand.u32 %s445, 1
        %s9406 = smul.addr %s9405, 64
        %s9407 = scalar_lea.vmem [#allocation3], %s9406
        // Predicated region
        $region97: #{gnn_forward.1} parent=95 // pred_check
          %p9408 = pneg %p455
        $region98: #{gnn_forward.1} parent=95 // pred_check_branch
          %9410 = sbr.rel (%p9408) target = $region100
        $region99: #{gnn_forward.1} parent=95 // pred_region
          %s9412 = ssub.s32 1024, 1024
          %9413 = vsyncadd %s9404, %s9412
          %s9414 = smul.addr %s33, 8
          %s9415 = smul.addr %s9414, 128
          %s9416 = scalar_lea.hbm %s19, %s9415
          %s9417 = sshll.u32 %s9407, 4
          %s9418 = int_to_ptr.vmem [resolvable:$true] %s9417
          %9423 = dma.vmem_to_hbm [thread:$0]  %s9418, 1024, %s9416, %s9404, 128, 128, 8
        $region100: #{gnn_forward.1} parent=95 // pred_fallthru
          _
      $region96: #{gnn_forward.1} parent=5 // pred_fallthru
        _
      %p9424 = scmp.le.s32.totalorder 2, %s28
      // Predicated region
      $region101: #{gnn_forward.1} parent=5 // pred_check
        %p9425 = pneg %p9424
      $region102: #{gnn_forward.1} parent=5 // pred_check_branch
        %9427 = sbr.rel (%p9425) target = $region104
      $region103: #{gnn_forward.1} parent=5 // pred_region
        %s9428 = ssub.s32 %s28, 2
        // Predicated region
        $region105: #{gnn_forward.1} parent=103 // pred_check
          %p9429 = pneg %p461
        $region106: #{gnn_forward.1} parent=103 // pred_check_branch
          %9431 = sbr.rel (%p9429) target = $region108
        $region107: #{gnn_forward.1} parent=103 // pred_region
          %s9432 = sand.u32 %s446, 1
          %s9433 = scalar_lea.sflag [#allocation4], %s9432
          %s9434 = sand.u32 %s446, 1
          %s9435 = smul.addr %s9434, 64
          %s9436 = scalar_lea.vmem [#allocation3], %s9435
          %9437 = dma.done %s9433, 1024
        $region108: #{gnn_forward.1} parent=103 // pred_fallthru
          _
      $region104: #{gnn_forward.1} parent=5 // pred_fallthru
        _
    $region6: #{gnn_forward.1} parent=1 // loop_footer
      %s32 = sadd.s32 1, %s28
    $region7: #{gnn_forward.1} parent=1 // loop_footer_branch
      %27 = sbr.rel target = $region3
    $region8: #{gnn_forward.1} parent=1 // loop_exit
      _
    %9438 = vsyncpa [#allocation4], 1
    %s9439 = scalar_lea.sflag [#allocation4], 1
    %9440 = vsyncpa %s9439, 1

</llo_original>
